<compile_context>
chip_gen: v6e
topology: v6e:2x2x1
jax: 0.10.0
libtpu: 0.0.40
codegen_flags: <defaults>
</compile_context>

<pallas_src>
import numpy as np

import jax
import jax.numpy as jnp
from jax.experimental import pallas as pl
from jax.experimental.pallas import tpu as pltpu

# ----------------------------- configuration -----------------------------
B = 2            # batch
IMG = 16         # image side
P = 4            # patch size
C = 3            # in channels
E = 32           # encoder embed dim
D_DEC = 32       # decoder dim
H = 4            # heads (encoder & decoder)
DEPTH_ENC = 2    # encoder blocks
DEPTH_DEC = 1    # decoder blocks
MLP_RATIO = 4
MASK_RATIO = 0.75
NP_SIDE = IMG // P
NPATCH = NP_SIDE * NP_SIDE
LEN_KEEP = int(NPATCH * MASK_RATIO)   # reference Mask keeps mask_ratio fraction
S_ENC = LEN_KEEP + 1                  # kept tokens + cls
S_DEC = NPATCH + 1                    # all patches + cls
CPP = C * P * P
PPC = P * P * C
EPS = 1e-6


# -------------------------- sin-cos pos embedding -------------------------
def _get_1d_sincos(embed_dim, pos):
    omega = np.arange(embed_dim // 2, dtype=np.float64) / (embed_dim / 2.0)
    omega = 1.0 / 10000 ** omega
    out = np.einsum("m,d->md", pos.reshape(-1), omega)
    return np.concatenate([np.sin(out), np.cos(out)], axis=1)


def get_2d_sincos_pos_embed(embed_dim, grid_size, cls_token=True):
    gh = np.arange(grid_size, dtype=np.float64)
    gw = np.arange(grid_size, dtype=np.float64)
    grid = np.meshgrid(gw, gh)                       # w first (like MAE reference)
    grid = np.stack(grid, axis=0).reshape(2, 1, grid_size, grid_size)
    emb_h = _get_1d_sincos(embed_dim // 2, grid[0])
    emb_w = _get_1d_sincos(embed_dim // 2, grid[1])
    pe = np.concatenate([emb_h, emb_w], axis=1)
    if cls_token:
        pe = np.concatenate([np.zeros([1, embed_dim]), pe], axis=0)
    return pe.astype(np.float32)


# -------------------------- in-kernel building blocks ----------------------
def _layer_norm(v, g, b):
    mu = jnp.mean(v, axis=-1, keepdims=True)
    var = jnp.mean(jnp.square(v - mu), axis=-1, keepdims=True)
    return (v - mu) * jax.lax.rsqrt(var + EPS) * g + b


def _transformer_block(x, ln1g, ln1b, wq, wk, wv, wo, bo,
                       ln2g, ln2b, w1, b1, w2, b2):
    """Pre-LN ViT block.  wq/wk/wv: [H, D, hd] (wq pre-scaled), wo: [H, hd, D]."""
    S, D = x.shape
    nheads = wq.shape[0]

    # ---- multi-head self attention (qkv_bias=False, as in module default) ----
    xn = _layer_norm(x, ln1g, ln1b)
    xb = jnp.broadcast_to(xn[None, :, :], (nheads, S, D))          # [H, S, D]
    q = jnp.einsum("hsd,hde->hse", xb, wq, preferred_element_type=jnp.float32)
    k = jnp.einsum("hsd,hde->hse", xb, wk, preferred_element_type=jnp.float32)
    v = jnp.einsum("hsd,hde->hse", xb, wv, preferred_element_type=jnp.float32)

    # scale already folded into wq at pack time
    att = jnp.einsum("hqe,hke->hqk", q, k,
                     preferred_element_type=jnp.float32)           # [H, S, S]
    att = att - jnp.max(att, axis=-1, keepdims=True)
    att = jnp.exp(att)
    att = att * pl.reciprocal(jnp.sum(att, axis=-1, keepdims=True), approx=True)

    o = jnp.einsum("hqk,hke->hqe", att, v,
                   preferred_element_type=jnp.float32)             # [H, S, hd]
    proj = jnp.einsum("hse,hed->hsd", o, wo,
                      preferred_element_type=jnp.float32)          # [H, S, D]
    x = x + jnp.sum(proj, axis=0) + bo

    # -------------------------------- MLP --------------------------------
    xn2 = _layer_norm(x, ln2g, ln2b)
    m = jnp.dot(xn2, w1, preferred_element_type=jnp.float32) + b1
    m = jax.nn.gelu(m, approximate=True)   # TODO(synk): torch nn.GELU default is exact erf
    m = jnp.dot(m, w2, preferred_element_type=jnp.float32) + b2
    return x + m


# ------------------------------ fused kernel -------------------------------
def _mae_fused_kernel(
        # per-batch inputs
        xp_ref, enc_sel_ref, dec_sel_ref, mask_ext_ref,
        # shared inputs
        cls_ind_ref,
        patch_w_ref, patch_b_ref, cls_tok_ref, pos_cls_ref, pos_patch_ref,
        e_ln1g_ref, e_ln1b_ref, e_wq_ref, e_wk_ref, e_wv_ref,
        e_wo_ref, e_bo_ref, e_ln2g_ref, e_ln2b_ref,
        e_w1_ref, e_b1_ref, e_w2_ref, e_b2_ref,
        norm_g_ref, norm_b_ref, dembed_w_ref, dembed_b_ref,
        mask_tok_ref, dpos_ref,
        d_ln1g_ref, d_ln1b_ref, d_wq_ref, d_wk_ref, d_wv_ref,
        d_wo_ref, d_bo_ref, d_ln2g_ref, d_ln2b_ref,
        d_w1_ref, d_b1_ref, d_w2_ref, d_b2_ref,
        dnorm_g_ref, dnorm_b_ref, dpred_w_ref, dpred_b_ref,
        # outputs
        target_ref, pred_ref):
    # ------------------- patch embedding (linear + bias) -------------------
    xp = xp_ref[0]                                                   # [NPATCH, CPP]
    emb = jnp.dot(xp, patch_w_ref[...],
                  preferred_element_type=jnp.float32) + patch_b_ref[...]
    target_ref[0] = emb                                              # pre-pos-embed target

    # ---------- +pos embed, gather kept tokens + prepend cls token ----------
    xenc = emb + pos_patch_ref[...]                                  # [NPATCH, E]
    cls = cls_tok_ref[...] + pos_cls_ref[...]                        # [1, E]
    x = (jnp.dot(enc_sel_ref[0], xenc, preferred_element_type=jnp.float32)
         + cls_ind_ref[...] * cls)                                   # [S_ENC, E]

    # ---------------------------- encoder blocks ----------------------------
    for l in range(DEPTH_ENC):
        x = _transformer_block(
            x, e_ln1g_ref[l], e_ln1b_ref[l], e_wq_ref[l], e_wk_ref[l],
            e_wv_ref[l], e_wo_ref[l], e_bo_ref[l], e_ln2g_ref[l],
            e_ln2b_ref[l], e_w1_ref[l], e_b1_ref[l], e_w2_ref[l], e_b2_ref[l])

    # -------------- final encoder LN fused with decoder embed --------------
    x = _layer_norm(x, norm_g_ref[...], norm_b_ref[...])
    xd = jnp.dot(x, dembed_w_ref[...],
                 preferred_element_type=jnp.float32) + dembed_b_ref[...]   # [S_ENC, DD]

    # --- un-shuffle + insert mask tokens (one-hot matmul) + decoder pos embed ---
    xfull = (jnp.dot(dec_sel_ref[0], xd, preferred_element_type=jnp.float32)
             + mask_ext_ref[0] * mask_tok_ref[...] + dpos_ref[...])        # [S_DEC, DD]

    # ---------------------------- decoder blocks ----------------------------
    for l in range(DEPTH_DEC):
        xfull = _transformer_block(
            xfull, d_ln1g_ref[l], d_ln1b_ref[l], d_wq_ref[l], d_wk_ref[l],
            d_wv_ref[l], d_wo_ref[l], d_bo_ref[l], d_ln2g_ref[l],
            d_ln2b_ref[l], d_w1_ref[l], d_b1_ref[l], d_w2_ref[l], d_b2_ref[l])

    # ---------------- decoder LN fused with prediction head ----------------
    xfull = _layer_norm(xfull, dnorm_g_ref[...], dnorm_b_ref[...])
    pred_ref[0] = (jnp.dot(xfull, dpred_w_ref[...],
                           preferred_element_type=jnp.float32) + dpred_b_ref[...])


# ------------------------------- parameters --------------------------------
def init_block_params(key, dim, mlp_ratio):
    hidden = int(dim * mlp_ratio)
    ks = jax.random.split(key, 4)
    return dict(
        ln1_g=jnp.ones((dim,), jnp.float32), ln1_b=jnp.zeros((dim,), jnp.float32),
        wqkv=0.02 * jax.random.normal(ks[0], (dim, 3 * dim), jnp.float32),
        wproj=0.02 * jax.random.normal(ks[1], (dim, dim), jnp.float32),
        bproj=jnp.zeros((dim,), jnp.float32),
        ln2_g=jnp.ones((dim,), jnp.float32), ln2_b=jnp.zeros((dim,), jnp.float32),
        w1=0.02 * jax.random.normal(ks[2], (dim, hidden), jnp.float32),
        b1=jnp.zeros((hidden,), jnp.float32),
        w2=0.02 * jax.random.normal(ks[3], (hidden, dim), jnp.float32),
        b2=jnp.zeros((dim,), jnp.float32),
    )


def init_params(key):
    ks = jax.random.split(key, 7)
    enc_keys = jax.random.split(ks[5], DEPTH_ENC)
    dec_keys = jax.random.split(ks[6], DEPTH_DEC)
    return dict(
        patch_w=0.02 * jax.random.normal(ks[0], (CPP, E), jnp.float32),
        patch_b=jnp.zeros((E,), jnp.float32),
        cls_token=0.02 * jax.random.normal(ks[1], (1, 1, E), jnp.float32),
        pos_embed=jnp.asarray(get_2d_sincos_pos_embed(E, NP_SIDE, True))[None],
        enc_blocks=[init_block_params(k, E, MLP_RATIO) for k in enc_keys],
        norm_g=jnp.ones((E,), jnp.float32), norm_b=jnp.zeros((E,), jnp.float32),
        dec_embed_w=0.02 * jax.random.normal(ks[2], (E, D_DEC), jnp.float32),
        dec_embed_b=jnp.zeros((D_DEC,), jnp.float32),
        mask_token=0.02 * jax.random.normal(ks[3], (1, 1, D_DEC), jnp.float32),
        dec_pos_embed=jnp.asarray(get_2d_sincos_pos_embed(D_DEC, NP_SIDE, True))[None],
        dec_blocks=[init_block_params(k, D_DEC, MLP_RATIO) for k in dec_keys],
        dec_norm_g=jnp.ones((D_DEC,), jnp.float32),
        dec_norm_b=jnp.zeros((D_DEC,), jnp.float32),
        dec_pred_w=0.02 * jax.random.normal(ks[4], (D_DEC, PPC), jnp.float32),
        dec_pred_b=jnp.zeros((PPC,), jnp.float32),
    )


def _stack_blocks(blocks, dim, nheads):
    """Stack per-layer weights, pre-split qkv / proj per head (kernel layout)
    and fold the 1/sqrt(head_dim) attention scale into the q weights."""
    L = len(blocks)
    hd = dim // nheads
    hidden = blocks[0]["w1"].shape[1]
    scale = hd ** -0.5

    def st(name):
        return jnp.stack([blk[name] for blk in blocks], axis=0)

    wqkv = st("wqkv")                                            # [L, D, 3D]

    def per_head(w):                                             # [L, D, D] -> [L, H, D, hd]
        return w.reshape(L, dim, nheads, hd).transpose(0, 2, 1, 3)

    return dict(
        ln1g=st("ln1_g").reshape(L, 1, dim), ln1b=st("ln1_b").reshape(L, 1, dim),
        wq=per_head(wqkv[:, :, 0:dim]) * scale,                  # scale folded in
        wk=per_head(wqkv[:, :, dim:2 * dim]),
        wv=per_head(wqkv[:, :, 2 * dim:3 * dim]),
        wo=st("wproj").reshape(L, nheads, hd, dim),              # [L, H, hd, D]
        bo=st("bproj").reshape(L, 1, dim),
        ln2g=st("ln2_g").reshape(L, 1, dim), ln2b=st("ln2_b").reshape(L, 1, dim),
        w1=st("w1"), b1=st("b1").reshape(L, 1, hidden),
        w2=st("w2"), b2=st("b2").reshape(L, 1, dim),
    )


def pack_params(params):
    """Convert module-layout params to the fused-kernel layout (one-time)."""
    kp = dict(
        patch_w=params["patch_w"], patch_b=params["patch_b"].reshape(1, E),
        cls_token=params["cls_token"].reshape(1, E),
        pos_cls=params["pos_embed"][0, :1, :],
        pos_patch=params["pos_embed"][0, 1:, :],
        norm_g=params["norm_g"].reshape(1, E), norm_b=params["norm_b"].reshape(1, E),
        dembed_w=params["dec_embed_w"],
        dembed_b=params["dec_embed_b"].reshape(1, D_DEC),
        mask_token=params["mask_token"].reshape(1, D_DEC),
        dpos=params["dec_pos_embed"][0],
        dnorm_g=params["dec_norm_g"].reshape(1, D_DEC),
        dnorm_b=params["dec_norm_b"].reshape(1, D_DEC),
        dpred_w=params["dec_pred_w"], dpred_b=params["dec_pred_b"].reshape(1, PPC),
    )
    for k, v in _stack_blocks(params["enc_blocks"], E, H).items():
        kp["e_" + k] = v
    for k, v in _stack_blocks(params["dec_blocks"], D_DEC, H).items():
        kp["d_" + k] = v
    return kp


# ------------------------------ BlockSpec helpers ---------------------------
def _full_spec(arr):
    nd = arr.ndim
    return pl.BlockSpec(arr.shape, lambda b, _nd=nd: (0,) * _nd)


def _batch_spec(shape):
    nd = len(shape)
    return pl.BlockSpec((1,) + tuple(shape[1:]),
                        lambda b, _nd=nd: (b,) + (0,) * (_nd - 1))


# ------------------------------- MAE forward --------------------------------
def mae_forward(kp, x_nchw, mask_key):
    Bb = x_nchw.shape[0]

    # --- patch extraction glue (== Conv2d k=s=P, then flatten(2).transpose) ---
    xp = x_nchw.reshape(Bb, C, NP_SIDE, P, NP_SIDE, P)
    xp = xp.transpose(0, 2, 4, 1, 3, 5).reshape(Bb, NPATCH, CPP)

    # --- random masking bookkeeping (argsort glue in plain JAX) ---
    noise = jax.random.uniform(mask_key, (Bb, NPATCH))
    idx_shuffle = jnp.argsort(noise, axis=1)
    idx_restore = jnp.argsort(idx_shuffle, axis=1)
    idx_unmask = idx_shuffle[:, :LEN_KEEP]
    mask = jnp.where(jnp.arange(NPATCH)[None, :] < LEN_KEEP, 0.0, 1.0)
    mask = jnp.broadcast_to(mask, (Bb, NPATCH))
    mask = jnp.take_along_axis(mask, idx_restore, axis=1)        # [B, NPATCH]

    # one-hot selection matrices so all gathers/concats run as MXU matmuls
    keep_oh = jax.nn.one_hot(idx_unmask, NPATCH, dtype=jnp.float32)      # [B, LK, NP]
    enc_sel = jnp.concatenate(
        [jnp.zeros((Bb, 1, NPATCH), jnp.float32), keep_oh], axis=1)      # [B, S_ENC, NP]
    restore_oh = jax.nn.one_hot(idx_restore, NPATCH, dtype=jnp.float32)  # [B, NP, NP]
    rmat = jnp.concatenate(
        [jnp.zeros((Bb, NPATCH, 1), jnp.float32), restore_oh[:, :, :LEN_KEEP]],
        axis=2)                                                          # [B, NP, S_ENC]
    row0 = jnp.zeros((Bb, 1, S_ENC), jnp.float32).at[:, 0, 0].set(1.0)   # picks cls row
    dec_sel = jnp.concatenate([row0, rmat], axis=1)                      # [B, S_DEC, S_ENC]
    mask_ext = jnp.concatenate(
        [jnp.zeros((Bb, 1), jnp.float32), mask], axis=1)[:, :, None]     # [B, S_DEC, 1]
    cls_ind = jnp.zeros((S_ENC, 1), jnp.float32).at[0, 0].set(1.0)

    batch_inputs = [xp, enc_sel, dec_sel, mask_ext]
    shared_inputs = [
        cls_ind,
        kp["patch_w"], kp["patch_b"], kp["cls_token"], kp["pos_cls"], kp["pos_patch"],
        kp["e_ln1g"], kp["e_ln1b"], kp["e_wq"], kp["e_wk"], kp["e_wv"],
        kp["e_wo"], kp["e_bo"], kp["e_ln2g"], kp["e_ln2b"],
        kp["e_w1"], kp["e_b1"], kp["e_w2"], kp["e_b2"],
        kp["norm_g"], kp["norm_b"], kp["dembed_w"], kp["dembed_b"],
        kp["mask_token"], kp["dpos"],
        kp["d_ln1g"], kp["d_ln1b"], kp["d_wq"], kp["d_wk"], kp["d_wv"],
        kp["d_wo"], kp["d_bo"], kp["d_ln2g"], kp["d_ln2b"],
        kp["d_w1"], kp["d_b1"], kp["d_w2"], kp["d_b2"],
        kp["dnorm_g"], kp["dnorm_b"], kp["dpred_w"], kp["dpred_b"],
    ]

    target, pred_full = pl.pallas_call(
        _mae_fused_kernel,
        out_shape=(jax.ShapeDtypeStruct((Bb, NPATCH, E), jnp.float32),
                   jax.ShapeDtypeStruct((Bb, S_DEC, PPC), jnp.float32)),
        grid=(Bb,),
        in_specs=([_batch_spec(a.shape) for a in batch_inputs]
                  + [_full_spec(a) for a in shared_inputs]),
        out_specs=(_batch_spec((Bb, NPATCH, E)),
                   _batch_spec((Bb, S_DEC, PPC))),
        compiler_params=pltpu.CompilerParams(
            dimension_semantics=("parallel",)),   # v7x: one batch element per TC
    )(*(batch_inputs + shared_inputs))

    pred = pred_full[:, 1:, :]                    # drop cls token (cheap JAX slice)
    return pred, mask, target


# --------------------------------- main -----------------------------------
if __name__ == "__main__":
    key = jax.random.PRNGKey(0)
    k_x, k_mask, k_p = jax.random.split(key, 3)

    # layout: NCHW image input, like the PyTorch module
    x = jax.random.normal(k_x, (B, C, IMG, IMG), jnp.float32)
    params = init_params(k_p)
    kparams = pack_params(params)

    pred, mask, target = jax.jit(mae_forward)(kparams, x, k_mask)
    jax.block_until_ready((pred, mask, target))

    assert pred.shape == (B, NPATCH, PPC)
    assert mask.shape == (B, NPATCH)
    assert target.shape == (B, NPATCH, E)
    assert bool(jnp.all(jnp.isfinite(pred)))
    assert bool(jnp.all(jnp.isfinite(target)))
    # mask must contain exactly NPATCH - LEN_KEEP masked patches per sample
    assert bool(jnp.all(jnp.sum(mask, axis=1) == (NPATCH - LEN_KEEP)))
    print("KERNEL_OK")
</pallas_src>

<mosaic_0001>
module attributes {stable_mosaic.version = 11 : i64} {
  func.func @_mae_fused_kernel(%arg0: i32, %arg1: memref<1x16x48xf32, #tpu.memory_space<vmem>>, %arg2: memref<1x13x16xf32, #tpu.memory_space<vmem>>, %arg3: memref<1x17x13xf32, #tpu.memory_space<vmem>>, %arg4: memref<1x17x1xf32, #tpu.memory_space<vmem>>, %arg5: memref<13x1xf32, #tpu.memory_space<vmem>>, %arg6: memref<48x32xf32, #tpu.memory_space<vmem>>, %arg7: memref<1x32xf32, #tpu.memory_space<vmem>>, %arg8: memref<1x32xf32, #tpu.memory_space<vmem>>, %arg9: memref<1x32xf32, #tpu.memory_space<vmem>>, %arg10: memref<16x32xf32, #tpu.memory_space<vmem>>, %arg11: memref<2x1x32xf32, #tpu.memory_space<vmem>>, %arg12: memref<2x1x32xf32, #tpu.memory_space<vmem>>, %arg13: memref<2x4x32x8xf32, #tpu.memory_space<vmem>>, %arg14: memref<2x4x32x8xf32, #tpu.memory_space<vmem>>, %arg15: memref<2x4x32x8xf32, #tpu.memory_space<vmem>>, %arg16: memref<2x4x8x32xf32, #tpu.memory_space<vmem>>, %arg17: memref<2x1x32xf32, #tpu.memory_space<vmem>>, %arg18: memref<2x1x32xf32, #tpu.memory_space<vmem>>, %arg19: memref<2x1x32xf32, #tpu.memory_space<vmem>>, %arg20: memref<2x32x128xf32, #tpu.memory_space<vmem>>, %arg21: memref<2x1x128xf32, #tpu.memory_space<vmem>>, %arg22: memref<2x128x32xf32, #tpu.memory_space<vmem>>, %arg23: memref<2x1x32xf32, #tpu.memory_space<vmem>>, %arg24: memref<1x32xf32, #tpu.memory_space<vmem>>, %arg25: memref<1x32xf32, #tpu.memory_space<vmem>>, %arg26: memref<32x32xf32, #tpu.memory_space<vmem>>, %arg27: memref<1x32xf32, #tpu.memory_space<vmem>>, %arg28: memref<1x32xf32, #tpu.memory_space<vmem>>, %arg29: memref<17x32xf32, #tpu.memory_space<vmem>>, %arg30: memref<1x1x32xf32, #tpu.memory_space<vmem>>, %arg31: memref<1x1x32xf32, #tpu.memory_space<vmem>>, %arg32: memref<1x4x32x8xf32, #tpu.memory_space<vmem>>, %arg33: memref<1x4x32x8xf32, #tpu.memory_space<vmem>>, %arg34: memref<1x4x32x8xf32, #tpu.memory_space<vmem>>, %arg35: memref<1x4x8x32xf32, #tpu.memory_space<vmem>>, %arg36: memref<1x1x32xf32, #tpu.memory_space<vmem>>, %arg37: memref<1x1x32xf32, #tpu.memory_space<vmem>>, %arg38: memref<1x1x32xf32, #tpu.memory_space<vmem>>, %arg39: memref<1x32x128xf32, #tpu.memory_space<vmem>>, %arg40: memref<1x1x128xf32, #tpu.memory_space<vmem>>, %arg41: memref<1x128x32xf32, #tpu.memory_space<vmem>>, %arg42: memref<1x1x32xf32, #tpu.memory_space<vmem>>, %arg43: memref<1x32xf32, #tpu.memory_space<vmem>>, %arg44: memref<1x32xf32, #tpu.memory_space<vmem>>, %arg45: memref<32x48xf32, #tpu.memory_space<vmem>>, %arg46: memref<1x48xf32, #tpu.memory_space<vmem>>, %arg47: memref<1x16x32xf32, #tpu.memory_space<vmem>>, %arg48: memref<1x17x48xf32, #tpu.memory_space<vmem>>) attributes {dimension_semantics = [#tpu.dimension_semantics<parallel>], iteration_bounds = array<i64: 2>, scalar_prefetch = 0 : i64, scratch_operands = 0 : i64, tpu.core_type = #tpu.core_type<tc>, window_params = [{transform_indices = @transform_0, window_bounds = array<i64: 1, 16, 48>}, {transform_indices = @transform_1, window_bounds = array<i64: 1, 13, 16>}, {transform_indices = @transform_2, window_bounds = array<i64: 1, 17, 13>}, {transform_indices = @transform_3, window_bounds = array<i64: 1, 17, 1>}, {pipeline_mode = #tpu.pipeline_mode<synchronous>, transform_indices = @transform_4, window_bounds = array<i64: 13, 1>}, {pipeline_mode = #tpu.pipeline_mode<synchronous>, transform_indices = @transform_5, window_bounds = array<i64: 48, 32>}, {pipeline_mode = #tpu.pipeline_mode<synchronous>, transform_indices = @transform_6, window_bounds = array<i64: 1, 32>}, {pipeline_mode = #tpu.pipeline_mode<synchronous>, transform_indices = @transform_7, window_bounds = array<i64: 1, 32>}, {pipeline_mode = #tpu.pipeline_mode<synchronous>, transform_indices = @transform_8, window_bounds = array<i64: 1, 32>}, {pipeline_mode = #tpu.pipeline_mode<synchronous>, transform_indices = @transform_9, window_bounds = array<i64: 16, 32>}, {pipeline_mode = #tpu.pipeline_mode<synchronous>, transform_indices = @transform_10, window_bounds = array<i64: 2, 1, 32>}, {pipeline_mode = #tpu.pipeline_mode<synchronous>, transform_indices = @transform_11, window_bounds = array<i64: 2, 1, 32>}, {pipeline_mode = #tpu.pipeline_mode<synchronous>, transform_indices = @transform_12, window_bounds = array<i64: 2, 4, 32, 8>}, {pipeline_mode = #tpu.pipeline_mode<synchronous>, transform_indices = @transform_13, window_bounds = array<i64: 2, 4, 32, 8>}, {pipeline_mode = #tpu.pipeline_mode<synchronous>, transform_indices = @transform_14, window_bounds = array<i64: 2, 4, 32, 8>}, {pipeline_mode = #tpu.pipeline_mode<synchronous>, transform_indices = @transform_15, window_bounds = array<i64: 2, 4, 8, 32>}, {pipeline_mode = #tpu.pipeline_mode<synchronous>, transform_indices = @transform_16, window_bounds = array<i64: 2, 1, 32>}, {pipeline_mode = #tpu.pipeline_mode<synchronous>, transform_indices = @transform_17, window_bounds = array<i64: 2, 1, 32>}, {pipeline_mode = #tpu.pipeline_mode<synchronous>, transform_indices = @transform_18, window_bounds = array<i64: 2, 1, 32>}, {pipeline_mode = #tpu.pipeline_mode<synchronous>, transform_indices = @transform_19, window_bounds = array<i64: 2, 32, 128>}, {pipeline_mode = #tpu.pipeline_mode<synchronous>, transform_indices = @transform_20, window_bounds = array<i64: 2, 1, 128>}, {pipeline_mode = #tpu.pipeline_mode<synchronous>, transform_indices = @transform_21, window_bounds = array<i64: 2, 128, 32>}, {pipeline_mode = #tpu.pipeline_mode<synchronous>, transform_indices = @transform_22, window_bounds = array<i64: 2, 1, 32>}, {pipeline_mode = #tpu.pipeline_mode<synchronous>, transform_indices = @transform_23, window_bounds = array<i64: 1, 32>}, {pipeline_mode = #tpu.pipeline_mode<synchronous>, transform_indices = @transform_24, window_bounds = array<i64: 1, 32>}, {pipeline_mode = #tpu.pipeline_mode<synchronous>, transform_indices = @transform_25, window_bounds = array<i64: 32, 32>}, {pipeline_mode = #tpu.pipeline_mode<synchronous>, transform_indices = @transform_26, window_bounds = array<i64: 1, 32>}, {pipeline_mode = #tpu.pipeline_mode<synchronous>, transform_indices = @transform_27, window_bounds = array<i64: 1, 32>}, {pipeline_mode = #tpu.pipeline_mode<synchronous>, transform_indices = @transform_28, window_bounds = array<i64: 17, 32>}, {pipeline_mode = #tpu.pipeline_mode<synchronous>, transform_indices = @transform_29, window_bounds = array<i64: 1, 1, 32>}, {pipeline_mode = #tpu.pipeline_mode<synchronous>, transform_indices = @transform_30, window_bounds = array<i64: 1, 1, 32>}, {pipeline_mode = #tpu.pipeline_mode<synchronous>, transform_indices = @transform_31, window_bounds = array<i64: 1, 4, 32, 8>}, {pipeline_mode = #tpu.pipeline_mode<synchronous>, transform_indices = @transform_32, window_bounds = array<i64: 1, 4, 32, 8>}, {pipeline_mode = #tpu.pipeline_mode<synchronous>, transform_indices = @transform_33, window_bounds = array<i64: 1, 4, 32, 8>}, {pipeline_mode = #tpu.pipeline_mode<synchronous>, transform_indices = @transform_34, window_bounds = array<i64: 1, 4, 8, 32>}, {pipeline_mode = #tpu.pipeline_mode<synchronous>, transform_indices = @transform_35, window_bounds = array<i64: 1, 1, 32>}, {pipeline_mode = #tpu.pipeline_mode<synchronous>, transform_indices = @transform_36, window_bounds = array<i64: 1, 1, 32>}, {pipeline_mode = #tpu.pipeline_mode<synchronous>, transform_indices = @transform_37, window_bounds = array<i64: 1, 1, 32>}, {pipeline_mode = #tpu.pipeline_mode<synchronous>, transform_indices = @transform_38, window_bounds = array<i64: 1, 32, 128>}, {pipeline_mode = #tpu.pipeline_mode<synchronous>, transform_indices = @transform_39, window_bounds = array<i64: 1, 1, 128>}, {pipeline_mode = #tpu.pipeline_mode<synchronous>, transform_indices = @transform_40, window_bounds = array<i64: 1, 128, 32>}, {pipeline_mode = #tpu.pipeline_mode<synchronous>, transform_indices = @transform_41, window_bounds = array<i64: 1, 1, 32>}, {pipeline_mode = #tpu.pipeline_mode<synchronous>, transform_indices = @transform_42, window_bounds = array<i64: 1, 32>}, {pipeline_mode = #tpu.pipeline_mode<synchronous>, transform_indices = @transform_43, window_bounds = array<i64: 1, 32>}, {pipeline_mode = #tpu.pipeline_mode<synchronous>, transform_indices = @transform_44, window_bounds = array<i64: 32, 48>}, {pipeline_mode = #tpu.pipeline_mode<synchronous>, transform_indices = @transform_45, window_bounds = array<i64: 1, 48>}, {transform_indices = @transform_46, window_bounds = array<i64: 1, 16, 32>}, {transform_indices = @transform_47, window_bounds = array<i64: 1, 17, 48>}]} {
    %c0 = arith.constant 0 : index
    %c0_0 = arith.constant 0 : index
    %c0_1 = arith.constant 0 : index
    %0 = vector.load %arg1[%c0, %c0_0, %c0_1] : memref<1x16x48xf32, #tpu.memory_space<vmem>>, vector<1x16x48xf32>
    %1 = vector.shape_cast %0 : vector<1x16x48xf32> to vector<16x48xf32>
    %c0_2 = arith.constant 0 : index
    %c0_3 = arith.constant 0 : index
    %2 = vector.load %arg6[%c0_2, %c0_3] : memref<48x32xf32, #tpu.memory_space<vmem>>, vector<48x32xf32>
    %cst = arith.constant dense<0.000000e+00> : vector<16x32xf32>
    %3 = tpu.matmul %1, %2, %cst {dimension_numbers = #tpu.dot_dimension_numbers<[1], [0], [0], [1], [0, 0, 1, 1], [], []>} : vector<16x48xf32>, vector<48x32xf32>, vector<16x32xf32> -> vector<16x32xf32>
    %c0_4 = arith.constant 0 : index
    %c0_5 = arith.constant 0 : index
    %4 = vector.load %arg7[%c0_4, %c0_5] : memref<1x32xf32, #tpu.memory_space<vmem>>, vector<1x32xf32>
    %5 = vector.broadcast %4 : vector<1x32xf32> to vector<16x32xf32>
    %6 = arith.addf %3, %5 : vector<16x32xf32>
    %c0_6 = arith.constant 0 : index
    %c0_7 = arith.constant 0 : index
    %c0_8 = arith.constant 0 : index
    %7 = vector.load %arg47[%c0_6, %c0_7, %c0_8] : memref<1x16x32xf32, #tpu.memory_space<vmem>>, vector<1x16x32xf32>
    %8 = vector.shape_cast %7 : vector<1x16x32xf32> to vector<16x32xf32>
    %9 = vector.shape_cast %6 : vector<16x32xf32> to vector<1x16x32xf32>
    tpu.vector_store %arg47[%c0_6, %c0_7, %c0_8], %9 {strides = array<i32>} : memref<1x16x32xf32, #tpu.memory_space<vmem>>, vector<1x16x32xf32>,
    %c0_9 = arith.constant 0 : index
    %c0_10 = arith.constant 0 : index
    %10 = vector.load %arg10[%c0_9, %c0_10] : memref<16x32xf32, #tpu.memory_space<vmem>>, vector<16x32xf32>
    %11 = arith.addf %6, %10 : vector<16x32xf32>
    %c0_11 = arith.constant 0 : index
    %c0_12 = arith.constant 0 : index
    %12 = vector.load %arg8[%c0_11, %c0_12] : memref<1x32xf32, #tpu.memory_space<vmem>>, vector<1x32xf32>
    %c0_13 = arith.constant 0 : index
    %c0_14 = arith.constant 0 : index
    %13 = vector.load %arg9[%c0_13, %c0_14] : memref<1x32xf32, #tpu.memory_space<vmem>>, vector<1x32xf32>
    %14 = arith.addf %12, %13 : vector<1x32xf32>
    %c0_15 = arith.constant 0 : index
    %c0_16 = arith.constant 0 : index
    %c0_17 = arith.constant 0 : index
    %15 = vector.load %arg2[%c0_15, %c0_16, %c0_17] : memref<1x13x16xf32, #tpu.memory_space<vmem>>, vector<1x13x16xf32>
    %16 = vector.shape_cast %15 : vector<1x13x16xf32> to vector<13x16xf32>
    %cst_18 = arith.constant dense<0.000000e+00> : vector<13x32xf32>
    %17 = tpu.matmul %16, %11, %cst_18 {dimension_numbers = #tpu.dot_dimension_numbers<[1], [0], [0], [1], [0, 0, 1, 1], [], []>} : vector<13x16xf32>, vector<16x32xf32>, vector<13x32xf32> -> vector<13x32xf32>
    %c0_19 = arith.constant 0 : index
    %c0_20 = arith.constant 0 : index
    %18 = vector.load %arg5[%c0_19, %c0_20] : memref<13x1xf32, #tpu.memory_space<vmem>>, vector<13x1xf32>
    %19 = vector.broadcast %18 : vector<13x1xf32> to vector<13x32xf32>
    %20 = vector.broadcast %14 : vector<1x32xf32> to vector<13x32xf32>
    %21 = arith.mulf %19, %20 : vector<13x32xf32>
    %22 = arith.addf %17, %21 : vector<13x32xf32>
    %c0_21 = arith.constant 0 : index
    %c0_22 = arith.constant 0 : index
    %c0_23 = arith.constant 0 : index
    %23 = vector.load %arg11[%c0_21, %c0_22, %c0_23] : memref<2x1x32xf32, #tpu.memory_space<vmem>>, vector<1x1x32xf32>
    %24 = vector.shape_cast %23 : vector<1x1x32xf32> to vector<1x32xf32>
    %c0_24 = arith.constant 0 : index
    %c0_25 = arith.constant 0 : index
    %c0_26 = arith.constant 0 : index
    %25 = vector.load %arg12[%c0_24, %c0_25, %c0_26] : memref<2x1x32xf32, #tpu.memory_space<vmem>>, vector<1x1x32xf32>
    %26 = vector.shape_cast %25 : vector<1x1x32xf32> to vector<1x32xf32>
    %c0_27 = arith.constant 0 : index
    %c0_28 = arith.constant 0 : index
    %c0_29 = arith.constant 0 : index
    %c0_30 = arith.constant 0 : index
    %27 = vector.load %arg13[%c0_27, %c0_28, %c0_29, %c0_30] : memref<2x4x32x8xf32, #tpu.memory_space<vmem>>, vector<1x4x32x8xf32>
    %28 = vector.shape_cast %27 : vector<1x4x32x8xf32> to vector<4x32x8xf32>
    %c0_31 = arith.constant 0 : index
    %c0_32 = arith.constant 0 : index
    %c0_33 = arith.constant 0 : index
    %c0_34 = arith.constant 0 : index
    %29 = vector.load %arg14[%c0_31, %c0_32, %c0_33, %c0_34] : memref<2x4x32x8xf32, #tpu.memory_space<vmem>>, vector<1x4x32x8xf32>
    %30 = vector.shape_cast %29 : vector<1x4x32x8xf32> to vector<4x32x8xf32>
    %c0_35 = arith.constant 0 : index
    %c0_36 = arith.constant 0 : index
    %c0_37 = arith.constant 0 : index
    %c0_38 = arith.constant 0 : index
    %31 = vector.load %arg15[%c0_35, %c0_36, %c0_37, %c0_38] : memref<2x4x32x8xf32, #tpu.memory_space<vmem>>, vector<1x4x32x8xf32>
    %32 = vector.shape_cast %31 : vector<1x4x32x8xf32> to vector<4x32x8xf32>
    %c0_39 = arith.constant 0 : index
    %c0_40 = arith.constant 0 : index
    %c0_41 = arith.constant 0 : index
    %c0_42 = arith.constant 0 : index
    %33 = vector.load %arg16[%c0_39, %c0_40, %c0_41, %c0_42] : memref<2x4x8x32xf32, #tpu.memory_space<vmem>>, vector<1x4x8x32xf32>
    %34 = vector.shape_cast %33 : vector<1x4x8x32xf32> to vector<4x8x32xf32>
    %c0_43 = arith.constant 0 : index
    %c0_44 = arith.constant 0 : index
    %c0_45 = arith.constant 0 : index
    %35 = vector.load %arg17[%c0_43, %c0_44, %c0_45] : memref<2x1x32xf32, #tpu.memory_space<vmem>>, vector<1x1x32xf32>
    %36 = vector.shape_cast %35 : vector<1x1x32xf32> to vector<1x32xf32>
    %c0_46 = arith.constant 0 : index
    %c0_47 = arith.constant 0 : index
    %c0_48 = arith.constant 0 : index
    %37 = vector.load %arg18[%c0_46, %c0_47, %c0_48] : memref<2x1x32xf32, #tpu.memory_space<vmem>>, vector<1x1x32xf32>
    %38 = vector.shape_cast %37 : vector<1x1x32xf32> to vector<1x32xf32>
    %c0_49 = arith.constant 0 : index
    %c0_50 = arith.constant 0 : index
    %c0_51 = arith.constant 0 : index
    %39 = vector.load %arg19[%c0_49, %c0_50, %c0_51] : memref<2x1x32xf32, #tpu.memory_space<vmem>>, vector<1x1x32xf32>
    %40 = vector.shape_cast %39 : vector<1x1x32xf32> to vector<1x32xf32>
    %c0_52 = arith.constant 0 : index
    %c0_53 = arith.constant 0 : index
    %c0_54 = arith.constant 0 : index
    %41 = vector.load %arg20[%c0_52, %c0_53, %c0_54] : memref<2x32x128xf32, #tpu.memory_space<vmem>>, vector<1x32x128xf32>
    %42 = vector.shape_cast %41 : vector<1x32x128xf32> to vector<32x128xf32>
    %c0_55 = arith.constant 0 : index
    %c0_56 = arith.constant 0 : index
    %c0_57 = arith.constant 0 : index
    %43 = vector.load %arg21[%c0_55, %c0_56, %c0_57] : memref<2x1x128xf32, #tpu.memory_space<vmem>>, vector<1x1x128xf32>
    %44 = vector.shape_cast %43 : vector<1x1x128xf32> to vector<1x128xf32>
    %c0_58 = arith.constant 0 : index
    %c0_59 = arith.constant 0 : index
    %c0_60 = arith.constant 0 : index
    %45 = vector.load %arg22[%c0_58, %c0_59, %c0_60] : memref<2x128x32xf32, #tpu.memory_space<vmem>>, vector<1x128x32xf32>
    %46 = vector.shape_cast %45 : vector<1x128x32xf32> to vector<128x32xf32>
    %c0_61 = arith.constant 0 : index
    %c0_62 = arith.constant 0 : index
    %c0_63 = arith.constant 0 : index
    %47 = vector.load %arg23[%c0_61, %c0_62, %c0_63] : memref<2x1x32xf32, #tpu.memory_space<vmem>>, vector<1x1x32xf32>
    %48 = vector.shape_cast %47 : vector<1x1x32xf32> to vector<1x32xf32>
    %cst_64 = arith.constant dense<0.000000e+00> : vector<13xf32>
    %49 = vector.multi_reduction <add>, %22, %cst_64 [1] : vector<13x32xf32> to vector<13xf32>
    %50 = vector.shape_cast %49 : vector<13xf32> to vector<13x1xf32>
    %cst_65 = arith.constant 3.200000e+01 : f32
    %51 = vector.broadcast %cst_65 : f32 to vector<13x1xf32>
    %52 = arith.divf %50, %51 : vector<13x1xf32>
    %53 = vector.broadcast %52 : vector<13x1xf32> to vector<13x32xf32>
    %54 = arith.subf %22, %53 : vector<13x32xf32>
    %55 = arith.mulf %54, %54 : vector<13x32xf32>
    %cst_66 = arith.constant dense<0.000000e+00> : vector<13xf32>
    %56 = vector.multi_reduction <add>, %55, %cst_66 [1] : vector<13x32xf32> to vector<13xf32>
    %57 = vector.shape_cast %56 : vector<13xf32> to vector<13x1xf32>
    %cst_67 = arith.constant 3.200000e+01 : f32
    %58 = vector.broadcast %cst_67 : f32 to vector<13x1xf32>
    %59 = arith.divf %57, %58 : vector<13x1xf32>
    %60 = vector.broadcast %52 : vector<13x1xf32> to vector<13x32xf32>
    %61 = arith.subf %22, %60 : vector<13x32xf32>
    %cst_68 = arith.constant 9.99999997E-7 : f32
    %62 = vector.broadcast %cst_68 : f32 to vector<13x1xf32>
    %63 = arith.addf %59, %62 : vector<13x1xf32>
    %64 = math.rsqrt %63 : vector<13x1xf32>
    %65 = vector.broadcast %64 : vector<13x1xf32> to vector<13x32xf32>
    %66 = arith.mulf %61, %65 : vector<13x32xf32>
    %67 = vector.broadcast %24 : vector<1x32xf32> to vector<13x32xf32>
    %68 = arith.mulf %66, %67 : vector<13x32xf32>
    %69 = vector.broadcast %26 : vector<1x32xf32> to vector<13x32xf32>
    %70 = arith.addf %68, %69 : vector<13x32xf32>
    %71 = vector.shape_cast %70 : vector<13x32xf32> to vector<1x13x32xf32>
    %72 = vector.shape_cast %71 : vector<1x13x32xf32> to vector<1x13x32xf32>
    %73 = vector.broadcast %72 : vector<1x13x32xf32> to vector<4x13x32xf32>
    "tpu.trace_start"() <{level = 10 : i32, message = "hsd,hde->hse"}> : () -> ()
    %cst_69 = arith.constant dense<0.000000e+00> : vector<4x13x8xf32>
    %74 = tpu.matmul %73, %28, %cst_69 {dimension_numbers = #tpu.dot_dimension_numbers<[2], [1], [1], [2], [0, 0, 0, 1, 1, 2], [0], [0]>} : vector<4x13x32xf32>, vector<4x32x8xf32>, vector<4x13x8xf32> -> vector<4x13x8xf32>
    %cst_70 = arith.constant dense<0.000000e+00> : vector<4x13x8xf32>
    %75 = tpu.matmul %73, %30, %cst_70 {dimension_numbers = #tpu.dot_dimension_numbers<[2], [1], [1], [2], [0, 0, 0, 1, 1, 2], [0], [0]>} : vector<4x13x32xf32>, vector<4x32x8xf32>, vector<4x13x8xf32> -> vector<4x13x8xf32>
    %cst_71 = arith.constant dense<0.000000e+00> : vector<4x13x8xf32>
    %76 = tpu.matmul %73, %32, %cst_71 {dimension_numbers = #tpu.dot_dimension_numbers<[2], [1], [1], [2], [0, 0, 0, 1, 1, 2], [0], [0]>} : vector<4x13x32xf32>, vector<4x32x8xf32>, vector<4x13x8xf32> -> vector<4x13x8xf32>
    "tpu.trace_stop"() : () -> ()
    "tpu.trace_start"() <{level = 10 : i32, message = "hqe,hke->hqk"}> : () -> ()
    %cst_72 = arith.constant dense<0.000000e+00> : vector<4x13x13xf32>
    %77 = tpu.matmul %74, %75, %cst_72 {dimension_numbers = #tpu.dot_dimension_numbers<[2], [2], [1], [1], [0, 0, 0, 1, 1, 1], [0], [0]>} : vector<4x13x8xf32>, vector<4x13x8xf32>, vector<4x13x13xf32> -> vector<4x13x13xf32>
    "tpu.trace_stop"() : () -> ()
    %cst_73 = arith.constant dense<0xFF800000> : vector<4x13xf32>
    %78 = vector.multi_reduction <maximumf>, %77, %cst_73 [2] : vector<4x13x13xf32> to vector<4x13xf32>
    %79 = vector.shape_cast %78 : vector<4x13xf32> to vector<4x13x1xf32>
    %80 = vector.broadcast %79 : vector<4x13x1xf32> to vector<4x13x13xf32>
    %81 = arith.subf %77, %80 : vector<4x13x13xf32>
    %82 = math.exp %81 : vector<4x13x13xf32>
    %cst_74 = arith.constant dense<0.000000e+00> : vector<4x13xf32>
    %83 = vector.multi_reduction <add>, %82, %cst_74 [2] : vector<4x13x13xf32> to vector<4x13xf32>
    %84 = vector.shape_cast %83 : vector<4x13xf32> to vector<4x13x1xf32>
    %85 = tpu.reciprocal %84 {approx = true} : vector<4x13x1xf32> -> vector<4x13x1xf32>
    %86 = vector.broadcast %85 : vector<4x13x1xf32> to vector<4x13x13xf32>
    %87 = arith.mulf %82, %86 : vector<4x13x13xf32>
    "tpu.trace_start"() <{level = 10 : i32, message = "hqk,hke->hqe"}> : () -> ()
    %cst_75 = arith.constant dense<0.000000e+00> : vector<4x13x8xf32>
    %88 = tpu.matmul %87, %76, %cst_75 {dimension_numbers = #tpu.dot_dimension_numbers<[2], [1], [1], [2], [0, 0, 0, 1, 1, 2], [0], [0]>} : vector<4x13x13xf32>, vector<4x13x8xf32>, vector<4x13x8xf32> -> vector<4x13x8xf32>
    "tpu.trace_stop"() : () -> ()
    "tpu.trace_start"() <{level = 10 : i32, message = "hse,hed->hsd"}> : () -> ()
    %cst_76 = arith.constant dense<0.000000e+00> : vector<4x13x32xf32>
    %89 = tpu.matmul %88, %34, %cst_76 {dimension_numbers = #tpu.dot_dimension_numbers<[2], [1], [1], [2], [0, 0, 0, 1, 1, 2], [0], [0]>} : vector<4x13x8xf32>, vector<4x8x32xf32>, vector<4x13x32xf32> -> vector<4x13x32xf32>
    "tpu.trace_stop"() : () -> ()
    %cst_77 = arith.constant dense<0.000000e+00> : vector<13x32xf32>
    %90 = vector.multi_reduction <add>, %89, %cst_77 [0] : vector<4x13x32xf32> to vector<13x32xf32>
    %91 = arith.addf %22, %90 : vector<13x32xf32>
    %92 = vector.broadcast %36 : vector<1x32xf32> to vector<13x32xf32>
    %93 = arith.addf %91, %92 : vector<13x32xf32>
    %cst_78 = arith.constant dense<0.000000e+00> : vector<13xf32>
    %94 = vector.multi_reduction <add>, %93, %cst_78 [1] : vector<13x32xf32> to vector<13xf32>
    %95 = vector.shape_cast %94 : vector<13xf32> to vector<13x1xf32>
    %cst_79 = arith.constant 3.200000e+01 : f32
    %96 = vector.broadcast %cst_79 : f32 to vector<13x1xf32>
    %97 = arith.divf %95, %96 : vector<13x1xf32>
    %98 = vector.broadcast %97 : vector<13x1xf32> to vector<13x32xf32>
    %99 = arith.subf %93, %98 : vector<13x32xf32>
    %100 = arith.mulf %99, %99 : vector<13x32xf32>
    %cst_80 = arith.constant dense<0.000000e+00> : vector<13xf32>
    %101 = vector.multi_reduction <add>, %100, %cst_80 [1] : vector<13x32xf32> to vector<13xf32>
    %102 = vector.shape_cast %101 : vector<13xf32> to vector<13x1xf32>
    %cst_81 = arith.constant 3.200000e+01 : f32
    %103 = vector.broadcast %cst_81 : f32 to vector<13x1xf32>
    %104 = arith.divf %102, %103 : vector<13x1xf32>
    %105 = vector.broadcast %97 : vector<13x1xf32> to vector<13x32xf32>
    %106 = arith.subf %93, %105 : vector<13x32xf32>
    %cst_82 = arith.constant 9.99999997E-7 : f32
    %107 = vector.broadcast %cst_82 : f32 to vector<13x1xf32>
    %108 = arith.addf %104, %107 : vector<13x1xf32>
    %109 = math.rsqrt %108 : vector<13x1xf32>
    %110 = vector.broadcast %109 : vector<13x1xf32> to vector<13x32xf32>
    %111 = arith.mulf %106, %110 : vector<13x32xf32>
    %112 = vector.broadcast %38 : vector<1x32xf32> to vector<13x32xf32>
    %113 = arith.mulf %111, %112 : vector<13x32xf32>
    %114 = vector.broadcast %40 : vector<1x32xf32> to vector<13x32xf32>
    %115 = arith.addf %113, %114 : vector<13x32xf32>
    %cst_83 = arith.constant dense<0.000000e+00> : vector<13x128xf32>
    %116 = tpu.matmul %115, %42, %cst_83 {dimension_numbers = #tpu.dot_dimension_numbers<[1], [0], [0], [1], [0, 0, 1, 1], [], []>} : vector<13x32xf32>, vector<32x128xf32>, vector<13x128xf32> -> vector<13x128xf32>
    %117 = vector.broadcast %44 : vector<1x128xf32> to vector<13x128xf32>
    %118 = arith.addf %116, %117 : vector<13x128xf32>
    %119 = arith.mulf %118, %118 : vector<13x128xf32>
    %120 = arith.mulf %118, %119 : vector<13x128xf32>
    %cst_84 = arith.constant 4.471500e-02 : f32
    %121 = vector.broadcast %cst_84 : f32 to vector<13x128xf32>
    %122 = arith.mulf %121, %120 : vector<13x128xf32>
    %123 = arith.addf %118, %122 : vector<13x128xf32>
    %cst_85 = arith.constant 0.797884583 : f32
    %124 = vector.broadcast %cst_85 : f32 to vector<13x128xf32>
    %125 = arith.mulf %124, %123 : vector<13x128xf32>
    %126 = math.tanh %125 : vector<13x128xf32>
    %cst_86 = arith.constant 1.000000e+00 : f32
    %127 = vector.broadcast %cst_86 : f32 to vector<13x128xf32>
    %128 = arith.addf %127, %126 : vector<13x128xf32>
    %cst_87 = arith.constant 5.000000e-01 : f32
    %129 = vector.broadcast %cst_87 : f32 to vector<13x128xf32>
    %130 = arith.mulf %129, %128 : vector<13x128xf32>
    %131 = arith.mulf %118, %130 : vector<13x128xf32>
    %cst_88 = arith.constant dense<0.000000e+00> : vector<13x32xf32>
    %132 = tpu.matmul %131, %46, %cst_88 {dimension_numbers = #tpu.dot_dimension_numbers<[1], [0], [0], [1], [0, 0, 1, 1], [], []>} : vector<13x128xf32>, vector<128x32xf32>, vector<13x32xf32> -> vector<13x32xf32>
    %133 = vector.broadcast %48 : vector<1x32xf32> to vector<13x32xf32>
    %134 = arith.addf %132, %133 : vector<13x32xf32>
    %135 = arith.addf %93, %134 : vector<13x32xf32>
    %c1 = arith.constant 1 : index
    %c0_89 = arith.constant 0 : index
    %c0_90 = arith.constant 0 : index
    %136 = vector.load %arg11[%c1, %c0_89, %c0_90] : memref<2x1x32xf32, #tpu.memory_space<vmem>>, vector<1x1x32xf32>
    %137 = vector.shape_cast %136 : vector<1x1x32xf32> to vector<1x32xf32>
    %c1_91 = arith.constant 1 : index
    %c0_92 = arith.constant 0 : index
    %c0_93 = arith.constant 0 : index
    %138 = vector.load %arg12[%c1_91, %c0_92, %c0_93] : memref<2x1x32xf32, #tpu.memory_space<vmem>>, vector<1x1x32xf32>
    %139 = vector.shape_cast %138 : vector<1x1x32xf32> to vector<1x32xf32>
    %c1_94 = arith.constant 1 : index
    %c0_95 = arith.constant 0 : index
    %c0_96 = arith.constant 0 : index
    %c0_97 = arith.constant 0 : index
    %140 = vector.load %arg13[%c1_94, %c0_95, %c0_96, %c0_97] : memref<2x4x32x8xf32, #tpu.memory_space<vmem>>, vector<1x4x32x8xf32>
    %141 = vector.shape_cast %140 : vector<1x4x32x8xf32> to vector<4x32x8xf32>
    %c1_98 = arith.constant 1 : index
    %c0_99 = arith.constant 0 : index
    %c0_100 = arith.constant 0 : index
    %c0_101 = arith.constant 0 : index
    %142 = vector.load %arg14[%c1_98, %c0_99, %c0_100, %c0_101] : memref<2x4x32x8xf32, #tpu.memory_space<vmem>>, vector<1x4x32x8xf32>
    %143 = vector.shape_cast %142 : vector<1x4x32x8xf32> to vector<4x32x8xf32>
    %c1_102 = arith.constant 1 : index
    %c0_103 = arith.constant 0 : index
    %c0_104 = arith.constant 0 : index
    %c0_105 = arith.constant 0 : index
    %144 = vector.load %arg15[%c1_102, %c0_103, %c0_104, %c0_105] : memref<2x4x32x8xf32, #tpu.memory_space<vmem>>, vector<1x4x32x8xf32>
    %145 = vector.shape_cast %144 : vector<1x4x32x8xf32> to vector<4x32x8xf32>
    %c1_106 = arith.constant 1 : index
    %c0_107 = arith.constant 0 : index
    %c0_108 = arith.constant 0 : index
    %c0_109 = arith.constant 0 : index
    %146 = vector.load %arg16[%c1_106, %c0_107, %c0_108, %c0_109] : memref<2x4x8x32xf32, #tpu.memory_space<vmem>>, vector<1x4x8x32xf32>
    %147 = vector.shape_cast %146 : vector<1x4x8x32xf32> to vector<4x8x32xf32>
    %c1_110 = arith.constant 1 : index
    %c0_111 = arith.constant 0 : index
    %c0_112 = arith.constant 0 : index
    %148 = vector.load %arg17[%c1_110, %c0_111, %c0_112] : memref<2x1x32xf32, #tpu.memory_space<vmem>>, vector<1x1x32xf32>
    %149 = vector.shape_cast %148 : vector<1x1x32xf32> to vector<1x32xf32>
    %c1_113 = arith.constant 1 : index
    %c0_114 = arith.constant 0 : index
    %c0_115 = arith.constant 0 : index
    %150 = vector.load %arg18[%c1_113, %c0_114, %c0_115] : memref<2x1x32xf32, #tpu.memory_space<vmem>>, vector<1x1x32xf32>
    %151 = vector.shape_cast %150 : vector<1x1x32xf32> to vector<1x32xf32>
    %c1_116 = arith.constant 1 : index
    %c0_117 = arith.constant 0 : index
    %c0_118 = arith.constant 0 : index
    %152 = vector.load %arg19[%c1_116, %c0_117, %c0_118] : memref<2x1x32xf32, #tpu.memory_space<vmem>>, vector<1x1x32xf32>
    %153 = vector.shape_cast %152 : vector<1x1x32xf32> to vector<1x32xf32>
    %c1_119 = arith.constant 1 : index
    %c0_120 = arith.constant 0 : index
    %c0_121 = arith.constant 0 : index
    %154 = vector.load %arg20[%c1_119, %c0_120, %c0_121] : memref<2x32x128xf32, #tpu.memory_space<vmem>>, vector<1x32x128xf32>
    %155 = vector.shape_cast %154 : vector<1x32x128xf32> to vector<32x128xf32>
    %c1_122 = arith.constant 1 : index
    %c0_123 = arith.constant 0 : index
    %c0_124 = arith.constant 0 : index
    %156 = vector.load %arg21[%c1_122, %c0_123, %c0_124] : memref<2x1x128xf32, #tpu.memory_space<vmem>>, vector<1x1x128xf32>
    %157 = vector.shape_cast %156 : vector<1x1x128xf32> to vector<1x128xf32>
    %c1_125 = arith.constant 1 : index
    %c0_126 = arith.constant 0 : index
    %c0_127 = arith.constant 0 : index
    %158 = vector.load %arg22[%c1_125, %c0_126, %c0_127] : memref<2x128x32xf32, #tpu.memory_space<vmem>>, vector<1x128x32xf32>
    %159 = vector.shape_cast %158 : vector<1x128x32xf32> to vector<128x32xf32>
    %c1_128 = arith.constant 1 : index
    %c0_129 = arith.constant 0 : index
    %c0_130 = arith.constant 0 : index
    %160 = vector.load %arg23[%c1_128, %c0_129, %c0_130] : memref<2x1x32xf32, #tpu.memory_space<vmem>>, vector<1x1x32xf32>
    %161 = vector.shape_cast %160 : vector<1x1x32xf32> to vector<1x32xf32>
    %cst_131 = arith.constant dense<0.000000e+00> : vector<13xf32>
    %162 = vector.multi_reduction <add>, %135, %cst_131 [1] : vector<13x32xf32> to vector<13xf32>
    %163 = vector.shape_cast %162 : vector<13xf32> to vector<13x1xf32>
    %cst_132 = arith.constant 3.200000e+01 : f32
    %164 = vector.broadcast %cst_132 : f32 to vector<13x1xf32>
    %165 = arith.divf %163, %164 : vector<13x1xf32>
    %166 = vector.broadcast %165 : vector<13x1xf32> to vector<13x32xf32>
    %167 = arith.subf %135, %166 : vector<13x32xf32>
    %168 = arith.mulf %167, %167 : vector<13x32xf32>
    %cst_133 = arith.constant dense<0.000000e+00> : vector<13xf32>
    %169 = vector.multi_reduction <add>, %168, %cst_133 [1] : vector<13x32xf32> to vector<13xf32>
    %170 = vector.shape_cast %169 : vector<13xf32> to vector<13x1xf32>
    %cst_134 = arith.constant 3.200000e+01 : f32
    %171 = vector.broadcast %cst_134 : f32 to vector<13x1xf32>
    %172 = arith.divf %170, %171 : vector<13x1xf32>
    %173 = vector.broadcast %165 : vector<13x1xf32> to vector<13x32xf32>
    %174 = arith.subf %135, %173 : vector<13x32xf32>
    %cst_135 = arith.constant 9.99999997E-7 : f32
    %175 = vector.broadcast %cst_135 : f32 to vector<13x1xf32>
    %176 = arith.addf %172, %175 : vector<13x1xf32>
    %177 = math.rsqrt %176 : vector<13x1xf32>
    %178 = vector.broadcast %177 : vector<13x1xf32> to vector<13x32xf32>
    %179 = arith.mulf %174, %178 : vector<13x32xf32>
    %180 = vector.broadcast %137 : vector<1x32xf32> to vector<13x32xf32>
    %181 = arith.mulf %179, %180 : vector<13x32xf32>
    %182 = vector.broadcast %139 : vector<1x32xf32> to vector<13x32xf32>
    %183 = arith.addf %181, %182 : vector<13x32xf32>
    %184 = vector.shape_cast %183 : vector<13x32xf32> to vector<1x13x32xf32>
    %185 = vector.shape_cast %184 : vector<1x13x32xf32> to vector<1x13x32xf32>
    %186 = vector.broadcast %185 : vector<1x13x32xf32> to vector<4x13x32xf32>
    "tpu.trace_start"() <{level = 10 : i32, message = "hsd,hde->hse"}> : () -> ()
    %cst_136 = arith.constant dense<0.000000e+00> : vector<4x13x8xf32>
    %187 = tpu.matmul %186, %141, %cst_136 {dimension_numbers = #tpu.dot_dimension_numbers<[2], [1], [1], [2], [0, 0, 0, 1, 1, 2], [0], [0]>} : vector<4x13x32xf32>, vector<4x32x8xf32>, vector<4x13x8xf32> -> vector<4x13x8xf32>
    %cst_137 = arith.constant dense<0.000000e+00> : vector<4x13x8xf32>
    %188 = tpu.matmul %186, %143, %cst_137 {dimension_numbers = #tpu.dot_dimension_numbers<[2], [1], [1], [2], [0, 0, 0, 1, 1, 2], [0], [0]>} : vector<4x13x32xf32>, vector<4x32x8xf32>, vector<4x13x8xf32> -> vector<4x13x8xf32>
    %cst_138 = arith.constant dense<0.000000e+00> : vector<4x13x8xf32>
    %189 = tpu.matmul %186, %145, %cst_138 {dimension_numbers = #tpu.dot_dimension_numbers<[2], [1], [1], [2], [0, 0, 0, 1, 1, 2], [0], [0]>} : vector<4x13x32xf32>, vector<4x32x8xf32>, vector<4x13x8xf32> -> vector<4x13x8xf32>
    "tpu.trace_stop"() : () -> ()
    "tpu.trace_start"() <{level = 10 : i32, message = "hqe,hke->hqk"}> : () -> ()
    %cst_139 = arith.constant dense<0.000000e+00> : vector<4x13x13xf32>
    %190 = tpu.matmul %187, %188, %cst_139 {dimension_numbers = #tpu.dot_dimension_numbers<[2], [2], [1], [1], [0, 0, 0, 1, 1, 1], [0], [0]>} : vector<4x13x8xf32>, vector<4x13x8xf32>, vector<4x13x13xf32> -> vector<4x13x13xf32>
    "tpu.trace_stop"() : () -> ()
    %cst_140 = arith.constant dense<0xFF800000> : vector<4x13xf32>
    %191 = vector.multi_reduction <maximumf>, %190, %cst_140 [2] : vector<4x13x13xf32> to vector<4x13xf32>
    %192 = vector.shape_cast %191 : vector<4x13xf32> to vector<4x13x1xf32>
    %193 = vector.broadcast %192 : vector<4x13x1xf32> to vector<4x13x13xf32>
    %194 = arith.subf %190, %193 : vector<4x13x13xf32>
    %195 = math.exp %194 : vector<4x13x13xf32>
    %cst_141 = arith.constant dense<0.000000e+00> : vector<4x13xf32>
    %196 = vector.multi_reduction <add>, %195, %cst_141 [2] : vector<4x13x13xf32> to vector<4x13xf32>
    %197 = vector.shape_cast %196 : vector<4x13xf32> to vector<4x13x1xf32>
    %198 = tpu.reciprocal %197 {approx = true} : vector<4x13x1xf32> -> vector<4x13x1xf32>
    %199 = vector.broadcast %198 : vector<4x13x1xf32> to vector<4x13x13xf32>
    %200 = arith.mulf %195, %199 : vector<4x13x13xf32>
    "tpu.trace_start"() <{level = 10 : i32, message = "hqk,hke->hqe"}> : () -> ()
    %cst_142 = arith.constant dense<0.000000e+00> : vector<4x13x8xf32>
    %201 = tpu.matmul %200, %189, %cst_142 {dimension_numbers = #tpu.dot_dimension_numbers<[2], [1], [1], [2], [0, 0, 0, 1, 1, 2], [0], [0]>} : vector<4x13x13xf32>, vector<4x13x8xf32>, vector<4x13x8xf32> -> vector<4x13x8xf32>
    "tpu.trace_stop"() : () -> ()
    "tpu.trace_start"() <{level = 10 : i32, message = "hse,hed->hsd"}> : () -> ()
    %cst_143 = arith.constant dense<0.000000e+00> : vector<4x13x32xf32>
    %202 = tpu.matmul %201, %147, %cst_143 {dimension_numbers = #tpu.dot_dimension_numbers<[2], [1], [1], [2], [0, 0, 0, 1, 1, 2], [0], [0]>} : vector<4x13x8xf32>, vector<4x8x32xf32>, vector<4x13x32xf32> -> vector<4x13x32xf32>
    "tpu.trace_stop"() : () -> ()
    %cst_144 = arith.constant dense<0.000000e+00> : vector<13x32xf32>
    %203 = vector.multi_reduction <add>, %202, %cst_144 [0] : vector<4x13x32xf32> to vector<13x32xf32>
    %204 = arith.addf %135, %203 : vector<13x32xf32>
    %205 = vector.broadcast %149 : vector<1x32xf32> to vector<13x32xf32>
    %206 = arith.addf %204, %205 : vector<13x32xf32>
    %cst_145 = arith.constant dense<0.000000e+00> : vector<13xf32>
    %207 = vector.multi_reduction <add>, %206, %cst_145 [1] : vector<13x32xf32> to vector<13xf32>
    %208 = vector.shape_cast %207 : vector<13xf32> to vector<13x1xf32>
    %cst_146 = arith.constant 3.200000e+01 : f32
    %209 = vector.broadcast %cst_146 : f32 to vector<13x1xf32>
    %210 = arith.divf %208, %209 : vector<13x1xf32>
    %211 = vector.broadcast %210 : vector<13x1xf32> to vector<13x32xf32>
    %212 = arith.subf %206, %211 : vector<13x32xf32>
    %213 = arith.mulf %212, %212 : vector<13x32xf32>
    %cst_147 = arith.constant dense<0.000000e+00> : vector<13xf32>
    %214 = vector.multi_reduction <add>, %213, %cst_147 [1] : vector<13x32xf32> to vector<13xf32>
    %215 = vector.shape_cast %214 : vector<13xf32> to vector<13x1xf32>
    %cst_148 = arith.constant 3.200000e+01 : f32
    %216 = vector.broadcast %cst_148 : f32 to vector<13x1xf32>
    %217 = arith.divf %215, %216 : vector<13x1xf32>
    %218 = vector.broadcast %210 : vector<13x1xf32> to vector<13x32xf32>
    %219 = arith.subf %206, %218 : vector<13x32xf32>
    %cst_149 = arith.constant 9.99999997E-7 : f32
    %220 = vector.broadcast %cst_149 : f32 to vector<13x1xf32>
    %221 = arith.addf %217, %220 : vector<13x1xf32>
    %222 = math.rsqrt %221 : vector<13x1xf32>
    %223 = vector.broadcast %222 : vector<13x1xf32> to vector<13x32xf32>
    %224 = arith.mulf %219, %223 : vector<13x32xf32>
    %225 = vector.broadcast %151 : vector<1x32xf32> to vector<13x32xf32>
    %226 = arith.mulf %224, %225 : vector<13x32xf32>
    %227 = vector.broadcast %153 : vector<1x32xf32> to vector<13x32xf32>
    %228 = arith.addf %226, %227 : vector<13x32xf32>
    %cst_150 = arith.constant dense<0.000000e+00> : vector<13x128xf32>
    %229 = tpu.matmul %228, %155, %cst_150 {dimension_numbers = #tpu.dot_dimension_numbers<[1], [0], [0], [1], [0, 0, 1, 1], [], []>} : vector<13x32xf32>, vector<32x128xf32>, vector<13x128xf32> -> vector<13x128xf32>
    %230 = vector.broadcast %157 : vector<1x128xf32> to vector<13x128xf32>
    %231 = arith.addf %229, %230 : vector<13x128xf32>
    %232 = arith.mulf %231, %231 : vector<13x128xf32>
    %233 = arith.mulf %231, %232 : vector<13x128xf32>
    %cst_151 = arith.constant 4.471500e-02 : f32
    %234 = vector.broadcast %cst_151 : f32 to vector<13x128xf32>
    %235 = arith.mulf %234, %233 : vector<13x128xf32>
    %236 = arith.addf %231, %235 : vector<13x128xf32>
    %cst_152 = arith.constant 0.797884583 : f32
    %237 = vector.broadcast %cst_152 : f32 to vector<13x128xf32>
    %238 = arith.mulf %237, %236 : vector<13x128xf32>
    %239 = math.tanh %238 : vector<13x128xf32>
    %cst_153 = arith.constant 1.000000e+00 : f32
    %240 = vector.broadcast %cst_153 : f32 to vector<13x128xf32>
    %241 = arith.addf %240, %239 : vector<13x128xf32>
    %cst_154 = arith.constant 5.000000e-01 : f32
    %242 = vector.broadcast %cst_154 : f32 to vector<13x128xf32>
    %243 = arith.mulf %242, %241 : vector<13x128xf32>
    %244 = arith.mulf %231, %243 : vector<13x128xf32>
    %cst_155 = arith.constant dense<0.000000e+00> : vector<13x32xf32>
    %245 = tpu.matmul %244, %159, %cst_155 {dimension_numbers = #tpu.dot_dimension_numbers<[1], [0], [0], [1], [0, 0, 1, 1], [], []>} : vector<13x128xf32>, vector<128x32xf32>, vector<13x32xf32> -> vector<13x32xf32>
    %246 = vector.broadcast %161 : vector<1x32xf32> to vector<13x32xf32>
    %247 = arith.addf %245, %246 : vector<13x32xf32>
    %248 = arith.addf %206, %247 : vector<13x32xf32>
    %c0_156 = arith.constant 0 : index
    %c0_157 = arith.constant 0 : index
    %249 = vector.load %arg24[%c0_156, %c0_157] : memref<1x32xf32, #tpu.memory_space<vmem>>, vector<1x32xf32>
    %c0_158 = arith.constant 0 : index
    %c0_159 = arith.constant 0 : index
    %250 = vector.load %arg25[%c0_158, %c0_159] : memref<1x32xf32, #tpu.memory_space<vmem>>, vector<1x32xf32>
    %cst_160 = arith.constant dense<0.000000e+00> : vector<13xf32>
    %251 = vector.multi_reduction <add>, %248, %cst_160 [1] : vector<13x32xf32> to vector<13xf32>
    %252 = vector.shape_cast %251 : vector<13xf32> to vector<13x1xf32>
    %cst_161 = arith.constant 3.200000e+01 : f32
    %253 = vector.broadcast %cst_161 : f32 to vector<13x1xf32>
    %254 = arith.divf %252, %253 : vector<13x1xf32>
    %255 = vector.broadcast %254 : vector<13x1xf32> to vector<13x32xf32>
    %256 = arith.subf %248, %255 : vector<13x32xf32>
    %257 = arith.mulf %256, %256 : vector<13x32xf32>
    %cst_162 = arith.constant dense<0.000000e+00> : vector<13xf32>
    %258 = vector.multi_reduction <add>, %257, %cst_162 [1] : vector<13x32xf32> to vector<13xf32>
    %259 = vector.shape_cast %258 : vector<13xf32> to vector<13x1xf32>
    %cst_163 = arith.constant 3.200000e+01 : f32
    %260 = vector.broadcast %cst_163 : f32 to vector<13x1xf32>
    %261 = arith.divf %259, %260 : vector<13x1xf32>
    %262 = vector.broadcast %254 : vector<13x1xf32> to vector<13x32xf32>
    %263 = arith.subf %248, %262 : vector<13x32xf32>
    %cst_164 = arith.constant 9.99999997E-7 : f32
    %264 = vector.broadcast %cst_164 : f32 to vector<13x1xf32>
    %265 = arith.addf %261, %264 : vector<13x1xf32>
    %266 = math.rsqrt %265 : vector<13x1xf32>
    %267 = vector.broadcast %266 : vector<13x1xf32> to vector<13x32xf32>
    %268 = arith.mulf %263, %267 : vector<13x32xf32>
    %269 = vector.broadcast %249 : vector<1x32xf32> to vector<13x32xf32>
    %270 = arith.mulf %268, %269 : vector<13x32xf32>
    %271 = vector.broadcast %250 : vector<1x32xf32> to vector<13x32xf32>
    %272 = arith.addf %270, %271 : vector<13x32xf32>
    %c0_165 = arith.constant 0 : index
    %c0_166 = arith.constant 0 : index
    %273 = vector.load %arg26[%c0_165, %c0_166] : memref<32x32xf32, #tpu.memory_space<vmem>>, vector<32x32xf32>
    %cst_167 = arith.constant dense<0.000000e+00> : vector<13x32xf32>
    %274 = tpu.matmul %272, %273, %cst_167 {dimension_numbers = #tpu.dot_dimension_numbers<[1], [0], [0], [1], [0, 0, 1, 1], [], []>} : vector<13x32xf32>, vector<32x32xf32>, vector<13x32xf32> -> vector<13x32xf32>
    %c0_168 = arith.constant 0 : index
    %c0_169 = arith.constant 0 : index
    %275 = vector.load %arg27[%c0_168, %c0_169] : memref<1x32xf32, #tpu.memory_space<vmem>>, vector<1x32xf32>
    %276 = vector.broadcast %275 : vector<1x32xf32> to vector<13x32xf32>
    %277 = arith.addf %274, %276 : vector<13x32xf32>
    %c0_170 = arith.constant 0 : index
    %c0_171 = arith.constant 0 : index
    %c0_172 = arith.constant 0 : index
    %278 = vector.load %arg3[%c0_170, %c0_171, %c0_172] : memref<1x17x13xf32, #tpu.memory_space<vmem>>, vector<1x17x13xf32>
    %279 = vector.shape_cast %278 : vector<1x17x13xf32> to vector<17x13xf32>
    %cst_173 = arith.constant dense<0.000000e+00> : vector<17x32xf32>
    %280 = tpu.matmul %279, %277, %cst_173 {dimension_numbers = #tpu.dot_dimension_numbers<[1], [0], [0], [1], [0, 0, 1, 1], [], []>} : vector<17x13xf32>, vector<13x32xf32>, vector<17x32xf32> -> vector<17x32xf32>
    %c0_174 = arith.constant 0 : index
    %c0_175 = arith.constant 0 : index
    %c0_176 = arith.constant 0 : index
    %281 = vector.load %arg4[%c0_174, %c0_175, %c0_176] : memref<1x17x1xf32, #tpu.memory_space<vmem>>, vector<1x17x1xf32>
    %282 = vector.shape_cast %281 : vector<1x17x1xf32> to vector<17x1xf32>
    %c0_177 = arith.constant 0 : index
    %c0_178 = arith.constant 0 : index
    %283 = vector.load %arg28[%c0_177, %c0_178] : memref<1x32xf32, #tpu.memory_space<vmem>>, vector<1x32xf32>
    %284 = vector.broadcast %282 : vector<17x1xf32> to vector<17x32xf32>
    %285 = vector.broadcast %283 : vector<1x32xf32> to vector<17x32xf32>
    %286 = arith.mulf %284, %285 : vector<17x32xf32>
    %287 = arith.addf %280, %286 : vector<17x32xf32>
    %c0_179 = arith.constant 0 : index
    %c0_180 = arith.constant 0 : index
    %288 = vector.load %arg29[%c0_179, %c0_180] : memref<17x32xf32, #tpu.memory_space<vmem>>, vector<17x32xf32>
    %289 = arith.addf %287, %288 : vector<17x32xf32>
    %c0_181 = arith.constant 0 : index
    %c0_182 = arith.constant 0 : index
    %c0_183 = arith.constant 0 : index
    %290 = vector.load %arg30[%c0_181, %c0_182, %c0_183] : memref<1x1x32xf32, #tpu.memory_space<vmem>>, vector<1x1x32xf32>
    %291 = vector.shape_cast %290 : vector<1x1x32xf32> to vector<1x32xf32>
    %c0_184 = arith.constant 0 : index
    %c0_185 = arith.constant 0 : index
    %c0_186 = arith.constant 0 : index
    %292 = vector.load %arg31[%c0_184, %c0_185, %c0_186] : memref<1x1x32xf32, #tpu.memory_space<vmem>>, vector<1x1x32xf32>
    %293 = vector.shape_cast %292 : vector<1x1x32xf32> to vector<1x32xf32>
    %c0_187 = arith.constant 0 : index
    %c0_188 = arith.constant 0 : index
    %c0_189 = arith.constant 0 : index
    %c0_190 = arith.constant 0 : index
    %294 = vector.load %arg32[%c0_187, %c0_188, %c0_189, %c0_190] : memref<1x4x32x8xf32, #tpu.memory_space<vmem>>, vector<1x4x32x8xf32>
    %295 = vector.shape_cast %294 : vector<1x4x32x8xf32> to vector<4x32x8xf32>
    %c0_191 = arith.constant 0 : index
    %c0_192 = arith.constant 0 : index
    %c0_193 = arith.constant 0 : index
    %c0_194 = arith.constant 0 : index
    %296 = vector.load %arg33[%c0_191, %c0_192, %c0_193, %c0_194] : memref<1x4x32x8xf32, #tpu.memory_space<vmem>>, vector<1x4x32x8xf32>
    %297 = vector.shape_cast %296 : vector<1x4x32x8xf32> to vector<4x32x8xf32>
    %c0_195 = arith.constant 0 : index
    %c0_196 = arith.constant 0 : index
    %c0_197 = arith.constant 0 : index
    %c0_198 = arith.constant 0 : index
    %298 = vector.load %arg34[%c0_195, %c0_196, %c0_197, %c0_198] : memref<1x4x32x8xf32, #tpu.memory_space<vmem>>, vector<1x4x32x8xf32>
    %299 = vector.shape_cast %298 : vector<1x4x32x8xf32> to vector<4x32x8xf32>
    %c0_199 = arith.constant 0 : index
    %c0_200 = arith.constant 0 : index
    %c0_201 = arith.constant 0 : index
    %c0_202 = arith.constant 0 : index
    %300 = vector.load %arg35[%c0_199, %c0_200, %c0_201, %c0_202] : memref<1x4x8x32xf32, #tpu.memory_space<vmem>>, vector<1x4x8x32xf32>
    %301 = vector.shape_cast %300 : vector<1x4x8x32xf32> to vector<4x8x32xf32>
    %c0_203 = arith.constant 0 : index
    %c0_204 = arith.constant 0 : index
    %c0_205 = arith.constant 0 : index
    %302 = vector.load %arg36[%c0_203, %c0_204, %c0_205] : memref<1x1x32xf32, #tpu.memory_space<vmem>>, vector<1x1x32xf32>
    %303 = vector.shape_cast %302 : vector<1x1x32xf32> to vector<1x32xf32>
    %c0_206 = arith.constant 0 : index
    %c0_207 = arith.constant 0 : index
    %c0_208 = arith.constant 0 : index
    %304 = vector.load %arg37[%c0_206, %c0_207, %c0_208] : memref<1x1x32xf32, #tpu.memory_space<vmem>>, vector<1x1x32xf32>
    %305 = vector.shape_cast %304 : vector<1x1x32xf32> to vector<1x32xf32>
    %c0_209 = arith.constant 0 : index
    %c0_210 = arith.constant 0 : index
    %c0_211 = arith.constant 0 : index
    %306 = vector.load %arg38[%c0_209, %c0_210, %c0_211] : memref<1x1x32xf32, #tpu.memory_space<vmem>>, vector<1x1x32xf32>
    %307 = vector.shape_cast %306 : vector<1x1x32xf32> to vector<1x32xf32>
    %c0_212 = arith.constant 0 : index
    %c0_213 = arith.constant 0 : index
    %c0_214 = arith.constant 0 : index
    %308 = vector.load %arg39[%c0_212, %c0_213, %c0_214] : memref<1x32x128xf32, #tpu.memory_space<vmem>>, vector<1x32x128xf32>
    %309 = vector.shape_cast %308 : vector<1x32x128xf32> to vector<32x128xf32>
    %c0_215 = arith.constant 0 : index
    %c0_216 = arith.constant 0 : index
    %c0_217 = arith.constant 0 : index
    %310 = vector.load %arg40[%c0_215, %c0_216, %c0_217] : memref<1x1x128xf32, #tpu.memory_space<vmem>>, vector<1x1x128xf32>
    %311 = vector.shape_cast %310 : vector<1x1x128xf32> to vector<1x128xf32>
    %c0_218 = arith.constant 0 : index
    %c0_219 = arith.constant 0 : index
    %c0_220 = arith.constant 0 : index
    %312 = vector.load %arg41[%c0_218, %c0_219, %c0_220] : memref<1x128x32xf32, #tpu.memory_space<vmem>>, vector<1x128x32xf32>
    %313 = vector.shape_cast %312 : vector<1x128x32xf32> to vector<128x32xf32>
    %c0_221 = arith.constant 0 : index
    %c0_222 = arith.constant 0 : index
    %c0_223 = arith.constant 0 : index
    %314 = vector.load %arg42[%c0_221, %c0_222, %c0_223] : memref<1x1x32xf32, #tpu.memory_space<vmem>>, vector<1x1x32xf32>
    %315 = vector.shape_cast %314 : vector<1x1x32xf32> to vector<1x32xf32>
    %cst_224 = arith.constant dense<0.000000e+00> : vector<17xf32>
    %316 = vector.multi_reduction <add>, %289, %cst_224 [1] : vector<17x32xf32> to vector<17xf32>
    %317 = vector.shape_cast %316 : vector<17xf32> to vector<17x1xf32>
    %cst_225 = arith.constant 3.200000e+01 : f32
    %318 = vector.broadcast %cst_225 : f32 to vector<17x1xf32>
    %319 = arith.divf %317, %318 : vector<17x1xf32>
    %320 = vector.broadcast %319 : vector<17x1xf32> to vector<17x32xf32>
    %321 = arith.subf %289, %320 : vector<17x32xf32>
    %322 = arith.mulf %321, %321 : vector<17x32xf32>
    %cst_226 = arith.constant dense<0.000000e+00> : vector<17xf32>
    %323 = vector.multi_reduction <add>, %322, %cst_226 [1] : vector<17x32xf32> to vector<17xf32>
    %324 = vector.shape_cast %323 : vector<17xf32> to vector<17x1xf32>
    %cst_227 = arith.constant 3.200000e+01 : f32
    %325 = vector.broadcast %cst_227 : f32 to vector<17x1xf32>
    %326 = arith.divf %324, %325 : vector<17x1xf32>
    %327 = vector.broadcast %319 : vector<17x1xf32> to vector<17x32xf32>
    %328 = arith.subf %289, %327 : vector<17x32xf32>
    %cst_228 = arith.constant 9.99999997E-7 : f32
    %329 = vector.broadcast %cst_228 : f32 to vector<17x1xf32>
    %330 = arith.addf %326, %329 : vector<17x1xf32>
    %331 = math.rsqrt %330 : vector<17x1xf32>
    %332 = vector.broadcast %331 : vector<17x1xf32> to vector<17x32xf32>
    %333 = arith.mulf %328, %332 : vector<17x32xf32>
    %334 = vector.broadcast %291 : vector<1x32xf32> to vector<17x32xf32>
    %335 = arith.mulf %333, %334 : vector<17x32xf32>
    %336 = vector.broadcast %293 : vector<1x32xf32> to vector<17x32xf32>
    %337 = arith.addf %335, %336 : vector<17x32xf32>
    %338 = vector.shape_cast %337 : vector<17x32xf32> to vector<1x17x32xf32>
    %339 = vector.shape_cast %338 : vector<1x17x32xf32> to vector<1x17x32xf32>
    %340 = vector.broadcast %339 : vector<1x17x32xf32> to vector<4x17x32xf32>
    "tpu.trace_start"() <{level = 10 : i32, message = "hsd,hde->hse"}> : () -> ()
    %cst_229 = arith.constant dense<0.000000e+00> : vector<4x17x8xf32>
    %341 = tpu.matmul %340, %295, %cst_229 {dimension_numbers = #tpu.dot_dimension_numbers<[2], [1], [1], [2], [0, 0, 0, 1, 1, 2], [0], [0]>} : vector<4x17x32xf32>, vector<4x32x8xf32>, vector<4x17x8xf32> -> vector<4x17x8xf32>
    %cst_230 = arith.constant dense<0.000000e+00> : vector<4x17x8xf32>
    %342 = tpu.matmul %340, %297, %cst_230 {dimension_numbers = #tpu.dot_dimension_numbers<[2], [1], [1], [2], [0, 0, 0, 1, 1, 2], [0], [0]>} : vector<4x17x32xf32>, vector<4x32x8xf32>, vector<4x17x8xf32> -> vector<4x17x8xf32>
    %cst_231 = arith.constant dense<0.000000e+00> : vector<4x17x8xf32>
    %343 = tpu.matmul %340, %299, %cst_231 {dimension_numbers = #tpu.dot_dimension_numbers<[2], [1], [1], [2], [0, 0, 0, 1, 1, 2], [0], [0]>} : vector<4x17x32xf32>, vector<4x32x8xf32>, vector<4x17x8xf32> -> vector<4x17x8xf32>
    "tpu.trace_stop"() : () -> ()
    "tpu.trace_start"() <{level = 10 : i32, message = "hqe,hke->hqk"}> : () -> ()
    %cst_232 = arith.constant dense<0.000000e+00> : vector<4x17x17xf32>
    %344 = tpu.matmul %341, %342, %cst_232 {dimension_numbers = #tpu.dot_dimension_numbers<[2], [2], [1], [1], [0, 0, 0, 1, 1, 1], [0], [0]>} : vector<4x17x8xf32>, vector<4x17x8xf32>, vector<4x17x17xf32> -> vector<4x17x17xf32>
    "tpu.trace_stop"() : () -> ()
    %cst_233 = arith.constant dense<0xFF800000> : vector<4x17xf32>
    %345 = vector.multi_reduction <maximumf>, %344, %cst_233 [2] : vector<4x17x17xf32> to vector<4x17xf32>
    %346 = vector.shape_cast %345 : vector<4x17xf32> to vector<4x17x1xf32>
    %347 = vector.broadcast %346 : vector<4x17x1xf32> to vector<4x17x17xf32>
    %348 = arith.subf %344, %347 : vector<4x17x17xf32>
    %349 = math.exp %348 : vector<4x17x17xf32>
    %cst_234 = arith.constant dense<0.000000e+00> : vector<4x17xf32>
    %350 = vector.multi_reduction <add>, %349, %cst_234 [2] : vector<4x17x17xf32> to vector<4x17xf32>
    %351 = vector.shape_cast %350 : vector<4x17xf32> to vector<4x17x1xf32>
    %352 = tpu.reciprocal %351 {approx = true} : vector<4x17x1xf32> -> vector<4x17x1xf32>
    %353 = vector.broadcast %352 : vector<4x17x1xf32> to vector<4x17x17xf32>
    %354 = arith.mulf %349, %353 : vector<4x17x17xf32>
    "tpu.trace_start"() <{level = 10 : i32, message = "hqk,hke->hqe"}> : () -> ()
    %cst_235 = arith.constant dense<0.000000e+00> : vector<4x17x8xf32>
    %355 = tpu.matmul %354, %343, %cst_235 {dimension_numbers = #tpu.dot_dimension_numbers<[2], [1], [1], [2], [0, 0, 0, 1, 1, 2], [0], [0]>} : vector<4x17x17xf32>, vector<4x17x8xf32>, vector<4x17x8xf32> -> vector<4x17x8xf32>
    "tpu.trace_stop"() : () -> ()
    "tpu.trace_start"() <{level = 10 : i32, message = "hse,hed->hsd"}> : () -> ()
    %cst_236 = arith.constant dense<0.000000e+00> : vector<4x17x32xf32>
    %356 = tpu.matmul %355, %301, %cst_236 {dimension_numbers = #tpu.dot_dimension_numbers<[2], [1], [1], [2], [0, 0, 0, 1, 1, 2], [0], [0]>} : vector<4x17x8xf32>, vector<4x8x32xf32>, vector<4x17x32xf32> -> vector<4x17x32xf32>
    "tpu.trace_stop"() : () -> ()
    %cst_237 = arith.constant dense<0.000000e+00> : vector<17x32xf32>
    %357 = vector.multi_reduction <add>, %356, %cst_237 [0] : vector<4x17x32xf32> to vector<17x32xf32>
    %358 = arith.addf %289, %357 : vector<17x32xf32>
    %359 = vector.broadcast %303 : vector<1x32xf32> to vector<17x32xf32>
    %360 = arith.addf %358, %359 : vector<17x32xf32>
    %cst_238 = arith.constant dense<0.000000e+00> : vector<17xf32>
    %361 = vector.multi_reduction <add>, %360, %cst_238 [1] : vector<17x32xf32> to vector<17xf32>
    %362 = vector.shape_cast %361 : vector<17xf32> to vector<17x1xf32>
    %cst_239 = arith.constant 3.200000e+01 : f32
    %363 = vector.broadcast %cst_239 : f32 to vector<17x1xf32>
    %364 = arith.divf %362, %363 : vector<17x1xf32>
    %365 = vector.broadcast %364 : vector<17x1xf32> to vector<17x32xf32>
    %366 = arith.subf %360, %365 : vector<17x32xf32>
    %367 = arith.mulf %366, %366 : vector<17x32xf32>
    %cst_240 = arith.constant dense<0.000000e+00> : vector<17xf32>
    %368 = vector.multi_reduction <add>, %367, %cst_240 [1] : vector<17x32xf32> to vector<17xf32>
    %369 = vector.shape_cast %368 : vector<17xf32> to vector<17x1xf32>
    %cst_241 = arith.constant 3.200000e+01 : f32
    %370 = vector.broadcast %cst_241 : f32 to vector<17x1xf32>
    %371 = arith.divf %369, %370 : vector<17x1xf32>
    %372 = vector.broadcast %364 : vector<17x1xf32> to vector<17x32xf32>
    %373 = arith.subf %360, %372 : vector<17x32xf32>
    %cst_242 = arith.constant 9.99999997E-7 : f32
    %374 = vector.broadcast %cst_242 : f32 to vector<17x1xf32>
    %375 = arith.addf %371, %374 : vector<17x1xf32>
    %376 = math.rsqrt %375 : vector<17x1xf32>
    %377 = vector.broadcast %376 : vector<17x1xf32> to vector<17x32xf32>
    %378 = arith.mulf %373, %377 : vector<17x32xf32>
    %379 = vector.broadcast %305 : vector<1x32xf32> to vector<17x32xf32>
    %380 = arith.mulf %378, %379 : vector<17x32xf32>
    %381 = vector.broadcast %307 : vector<1x32xf32> to vector<17x32xf32>
    %382 = arith.addf %380, %381 : vector<17x32xf32>
    %cst_243 = arith.constant dense<0.000000e+00> : vector<17x128xf32>
    %383 = tpu.matmul %382, %309, %cst_243 {dimension_numbers = #tpu.dot_dimension_numbers<[1], [0], [0], [1], [0, 0, 1, 1], [], []>} : vector<17x32xf32>, vector<32x128xf32>, vector<17x128xf32> -> vector<17x128xf32>
    %384 = vector.broadcast %311 : vector<1x128xf32> to vector<17x128xf32>
    %385 = arith.addf %383, %384 : vector<17x128xf32>
    %386 = arith.mulf %385, %385 : vector<17x128xf32>
    %387 = arith.mulf %385, %386 : vector<17x128xf32>
    %cst_244 = arith.constant 4.471500e-02 : f32
    %388 = vector.broadcast %cst_244 : f32 to vector<17x128xf32>
    %389 = arith.mulf %388, %387 : vector<17x128xf32>
    %390 = arith.addf %385, %389 : vector<17x128xf32>
    %cst_245 = arith.constant 0.797884583 : f32
    %391 = vector.broadcast %cst_245 : f32 to vector<17x128xf32>
    %392 = arith.mulf %391, %390 : vector<17x128xf32>
    %393 = math.tanh %392 : vector<17x128xf32>
    %cst_246 = arith.constant 1.000000e+00 : f32
    %394 = vector.broadcast %cst_246 : f32 to vector<17x128xf32>
    %395 = arith.addf %394, %393 : vector<17x128xf32>
    %cst_247 = arith.constant 5.000000e-01 : f32
    %396 = vector.broadcast %cst_247 : f32 to vector<17x128xf32>
    %397 = arith.mulf %396, %395 : vector<17x128xf32>
    %398 = arith.mulf %385, %397 : vector<17x128xf32>
    %cst_248 = arith.constant dense<0.000000e+00> : vector<17x32xf32>
    %399 = tpu.matmul %398, %313, %cst_248 {dimension_numbers = #tpu.dot_dimension_numbers<[1], [0], [0], [1], [0, 0, 1, 1], [], []>} : vector<17x128xf32>, vector<128x32xf32>, vector<17x32xf32> -> vector<17x32xf32>
    %400 = vector.broadcast %315 : vector<1x32xf32> to vector<17x32xf32>
    %401 = arith.addf %399, %400 : vector<17x32xf32>
    %402 = arith.addf %360, %401 : vector<17x32xf32>
    %c0_249 = arith.constant 0 : index
    %c0_250 = arith.constant 0 : index
    %403 = vector.load %arg43[%c0_249, %c0_250] : memref<1x32xf32, #tpu.memory_space<vmem>>, vector<1x32xf32>
    %c0_251 = arith.constant 0 : index
    %c0_252 = arith.constant 0 : index
    %404 = vector.load %arg44[%c0_251, %c0_252] : memref<1x32xf32, #tpu.memory_space<vmem>>, vector<1x32xf32>
    %cst_253 = arith.constant dense<0.000000e+00> : vector<17xf32>
    %405 = vector.multi_reduction <add>, %402, %cst_253 [1] : vector<17x32xf32> to vector<17xf32>
    %406 = vector.shape_cast %405 : vector<17xf32> to vector<17x1xf32>
    %cst_254 = arith.constant 3.200000e+01 : f32
    %407 = vector.broadcast %cst_254 : f32 to vector<17x1xf32>
    %408 = arith.divf %406, %407 : vector<17x1xf32>
    %409 = vector.broadcast %408 : vector<17x1xf32> to vector<17x32xf32>
    %410 = arith.subf %402, %409 : vector<17x32xf32>
    %411 = arith.mulf %410, %410 : vector<17x32xf32>
    %cst_255 = arith.constant dense<0.000000e+00> : vector<17xf32>
    %412 = vector.multi_reduction <add>, %411, %cst_255 [1] : vector<17x32xf32> to vector<17xf32>
    %413 = vector.shape_cast %412 : vector<17xf32> to vector<17x1xf32>
    %cst_256 = arith.constant 3.200000e+01 : f32
    %414 = vector.broadcast %cst_256 : f32 to vector<17x1xf32>
    %415 = arith.divf %413, %414 : vector<17x1xf32>
    %416 = vector.broadcast %408 : vector<17x1xf32> to vector<17x32xf32>
    %417 = arith.subf %402, %416 : vector<17x32xf32>
    %cst_257 = arith.constant 9.99999997E-7 : f32
    %418 = vector.broadcast %cst_257 : f32 to vector<17x1xf32>
    %419 = arith.addf %415, %418 : vector<17x1xf32>
    %420 = math.rsqrt %419 : vector<17x1xf32>
    %421 = vector.broadcast %420 : vector<17x1xf32> to vector<17x32xf32>
    %422 = arith.mulf %417, %421 : vector<17x32xf32>
    %423 = vector.broadcast %403 : vector<1x32xf32> to vector<17x32xf32>
    %424 = arith.mulf %422, %423 : vector<17x32xf32>
    %425 = vector.broadcast %404 : vector<1x32xf32> to vector<17x32xf32>
    %426 = arith.addf %424, %425 : vector<17x32xf32>
    %c0_258 = arith.constant 0 : index
    %c0_259 = arith.constant 0 : index
    %427 = vector.load %arg45[%c0_258, %c0_259] : memref<32x48xf32, #tpu.memory_space<vmem>>, vector<32x48xf32>
    %cst_260 = arith.constant dense<0.000000e+00> : vector<17x48xf32>
    %428 = tpu.matmul %426, %427, %cst_260 {dimension_numbers = #tpu.dot_dimension_numbers<[1], [0], [0], [1], [0, 0, 1, 1], [], []>} : vector<17x32xf32>, vector<32x48xf32>, vector<17x48xf32> -> vector<17x48xf32>
    %c0_261 = arith.constant 0 : index
    %c0_262 = arith.constant 0 : index
    %429 = vector.load %arg46[%c0_261, %c0_262] : memref<1x48xf32, #tpu.memory_space<vmem>>, vector<1x48xf32>
    %430 = vector.broadcast %429 : vector<1x48xf32> to vector<17x48xf32>
    %431 = arith.addf %428, %430 : vector<17x48xf32>
    %c0_263 = arith.constant 0 : index
    %c0_264 = arith.constant 0 : index
    %c0_265 = arith.constant 0 : index
    %432 = vector.load %arg48[%c0_263, %c0_264, %c0_265] : memref<1x17x48xf32, #tpu.memory_space<vmem>>, vector<1x17x48xf32>
    %433 = vector.shape_cast %432 : vector<1x17x48xf32> to vector<17x48xf32>
    %434 = vector.shape_cast %431 : vector<17x48xf32> to vector<1x17x48xf32>
    tpu.vector_store %arg48[%c0_263, %c0_264, %c0_265], %434 {strides = array<i32>} : memref<1x17x48xf32, #tpu.memory_space<vmem>>, vector<1x17x48xf32>,
    return
  }
  func.func @transform_0(%arg0: i32) -> (i32, i32, i32) {
    %c0_i32 = arith.constant 0 : i32
    %c0_i32_0 = arith.constant 0 : i32
    %c0_i32_1 = arith.constant 0 : i32
    return %arg0, %c0_i32, %c0_i32_0 : i32, i32, i32
  }
  func.func @transform_1(%arg0: i32) -> (i32, i32, i32) {
    %c0_i32 = arith.constant 0 : i32
    %c0_i32_0 = arith.constant 0 : i32
    %c0_i32_1 = arith.constant 0 : i32
    return %arg0, %c0_i32, %c0_i32_0 : i32, i32, i32
  }
  func.func @transform_2(%arg0: i32) -> (i32, i32, i32) {
    %c0_i32 = arith.constant 0 : i32
    %c0_i32_0 = arith.constant 0 : i32
    %c0_i32_1 = arith.constant 0 : i32
    return %arg0, %c0_i32, %c0_i32_0 : i32, i32, i32
  }
  func.func @transform_3(%arg0: i32) -> (i32, i32, i32) {
    %c0_i32 = arith.constant 0 : i32
    %c0_i32_0 = arith.constant 0 : i32
    %c0_i32_1 = arith.constant 0 : i32
    return %arg0, %c0_i32, %c0_i32_0 : i32, i32, i32
  }
  func.func @transform_4(%arg0: i32) -> (i32, i32) {
    %c0_i32 = arith.constant 0 : i32
    %c0_i32_0 = arith.constant 0 : i32
    %c0_i32_1 = arith.constant 0 : i32
    return %c0_i32, %c0_i32_0 : i32, i32
  }
  func.func @transform_5(%arg0: i32) -> (i32, i32) {
    %c0_i32 = arith.constant 0 : i32
    %c0_i32_0 = arith.constant 0 : i32
    %c0_i32_1 = arith.constant 0 : i32
    return %c0_i32, %c0_i32_0 : i32, i32
  }
  func.func @transform_6(%arg0: i32) -> (i32, i32) {
    %c0_i32 = arith.constant 0 : i32
    %c0_i32_0 = arith.constant 0 : i32
    %c0_i32_1 = arith.constant 0 : i32
    return %c0_i32, %c0_i32_0 : i32, i32
  }
  func.func @transform_7(%arg0: i32) -> (i32, i32) {
    %c0_i32 = arith.constant 0 : i32
    %c0_i32_0 = arith.constant 0 : i32
    %c0_i32_1 = arith.constant 0 : i32
    return %c0_i32, %c0_i32_0 : i32, i32
  }
  func.func @transform_8(%arg0: i32) -> (i32, i32) {
    %c0_i32 = arith.constant 0 : i32
    %c0_i32_0 = arith.constant 0 : i32
    %c0_i32_1 = arith.constant 0 : i32
    return %c0_i32, %c0_i32_0 : i32, i32
  }
  func.func @transform_9(%arg0: i32) -> (i32, i32) {
    %c0_i32 = arith.constant 0 : i32
    %c0_i32_0 = arith.constant 0 : i32
    %c0_i32_1 = arith.constant 0 : i32
    return %c0_i32, %c0_i32_0 : i32, i32
  }
  func.func @transform_10(%arg0: i32) -> (i32, i32, i32) {
    %c0_i32 = arith.constant 0 : i32
    %c0_i32_0 = arith.constant 0 : i32
    %c0_i32_1 = arith.constant 0 : i32
    %c0_i32_2 = arith.constant 0 : i32
    return %c0_i32, %c0_i32_0, %c0_i32_1 : i32, i32, i32
  }
  func.func @transform_11(%arg0: i32) -> (i32, i32, i32) {
    %c0_i32 = arith.constant 0 : i32
    %c0_i32_0 = arith.constant 0 : i32
    %c0_i32_1 = arith.constant 0 : i32
    %c0_i32_2 = arith.constant 0 : i32
    return %c0_i32, %c0_i32_0, %c0_i32_1 : i32, i32, i32
  }
  func.func @transform_12(%arg0: i32) -> (i32, i32, i32, i32) {
    %c0_i32 = arith.constant 0 : i32
    %c0_i32_0 = arith.constant 0 : i32
    %c0_i32_1 = arith.constant 0 : i32
    %c0_i32_2 = arith.constant 0 : i32
    %c0_i32_3 = arith.constant 0 : i32
    return %c0_i32, %c0_i32_0, %c0_i32_1, %c0_i32_2 : i32, i32, i32, i32
  }
  func.func @transform_13(%arg0: i32) -> (i32, i32, i32, i32) {
    %c0_i32 = arith.constant 0 : i32
    %c0_i32_0 = arith.constant 0 : i32
    %c0_i32_1 = arith.constant 0 : i32
    %c0_i32_2 = arith.constant 0 : i32
    %c0_i32_3 = arith.constant 0 : i32
    return %c0_i32, %c0_i32_0, %c0_i32_1, %c0_i32_2 : i32, i32, i32, i32
  }
  func.func @transform_14(%arg0: i32) -> (i32, i32, i32, i32) {
    %c0_i32 = arith.constant 0 : i32
    %c0_i32_0 = arith.constant 0 : i32
    %c0_i32_1 = arith.constant 0 : i32
    %c0_i32_2 = arith.constant 0 : i32
    %c0_i32_3 = arith.constant 0 : i32
    return %c0_i32, %c0_i32_0, %c0_i32_1, %c0_i32_2 : i32, i32, i32, i32
  }
  func.func @transform_15(%arg0: i32) -> (i32, i32, i32, i32) {
    %c0_i32 = arith.constant 0 : i32
    %c0_i32_0 = arith.constant 0 : i32
    %c0_i32_1 = arith.constant 0 : i32
    %c0_i32_2 = arith.constant 0 : i32
    %c0_i32_3 = arith.constant 0 : i32
    return %c0_i32, %c0_i32_0, %c0_i32_1, %c0_i32_2 : i32, i32, i32, i32
  }
  func.func @transform_16(%arg0: i32) -> (i32, i32, i32) {
    %c0_i32 = arith.constant 0 : i32
    %c0_i32_0 = arith.constant 0 : i32
    %c0_i32_1 = arith.constant 0 : i32
    %c0_i32_2 = arith.constant 0 : i32
    return %c0_i32, %c0_i32_0, %c0_i32_1 : i32, i32, i32
  }
  func.func @transform_17(%arg0: i32) -> (i32, i32, i32) {
    %c0_i32 = arith.constant 0 : i32
    %c0_i32_0 = arith.constant 0 : i32
    %c0_i32_1 = arith.constant 0 : i32
    %c0_i32_2 = arith.constant 0 : i32
    return %c0_i32, %c0_i32_0, %c0_i32_1 : i32, i32, i32
  }
  func.func @transform_18(%arg0: i32) -> (i32, i32, i32) {
    %c0_i32 = arith.constant 0 : i32
    %c0_i32_0 = arith.constant 0 : i32
    %c0_i32_1 = arith.constant 0 : i32
    %c0_i32_2 = arith.constant 0 : i32
    return %c0_i32, %c0_i32_0, %c0_i32_1 : i32, i32, i32
  }
  func.func @transform_19(%arg0: i32) -> (i32, i32, i32) {
    %c0_i32 = arith.constant 0 : i32
    %c0_i32_0 = arith.constant 0 : i32
    %c0_i32_1 = arith.constant 0 : i32
    %c0_i32_2 = arith.constant 0 : i32
    return %c0_i32, %c0_i32_0, %c0_i32_1 : i32, i32, i32
  }
  func.func @transform_20(%arg0: i32) -> (i32, i32, i32) {
    %c0_i32 = arith.constant 0 : i32
    %c0_i32_0 = arith.constant 0 : i32
    %c0_i32_1 = arith.constant 0 : i32
    %c0_i32_2 = arith.constant 0 : i32
    return %c0_i32, %c0_i32_0, %c0_i32_1 : i32, i32, i32
  }
  func.func @transform_21(%arg0: i32) -> (i32, i32, i32) {
    %c0_i32 = arith.constant 0 : i32
    %c0_i32_0 = arith.constant 0 : i32
    %c0_i32_1 = arith.constant 0 : i32
    %c0_i32_2 = arith.constant 0 : i32
    return %c0_i32, %c0_i32_0, %c0_i32_1 : i32, i32, i32
  }
  func.func @transform_22(%arg0: i32) -> (i32, i32, i32) {
    %c0_i32 = arith.constant 0 : i32
    %c0_i32_0 = arith.constant 0 : i32
    %c0_i32_1 = arith.constant 0 : i32
    %c0_i32_2 = arith.constant 0 : i32
    return %c0_i32, %c0_i32_0, %c0_i32_1 : i32, i32, i32
  }
  func.func @transform_23(%arg0: i32) -> (i32, i32) {
    %c0_i32 = arith.constant 0 : i32
    %c0_i32_0 = arith.constant 0 : i32
    %c0_i32_1 = arith.constant 0 : i32
    return %c0_i32, %c0_i32_0 : i32, i32
  }
  func.func @transform_24(%arg0: i32) -> (i32, i32) {
    %c0_i32 = arith.constant 0 : i32
    %c0_i32_0 = arith.constant 0 : i32
    %c0_i32_1 = arith.constant 0 : i32
    return %c0_i32, %c0_i32_0 : i32, i32
  }
  func.func @transform_25(%arg0: i32) -> (i32, i32) {
    %c0_i32 = arith.constant 0 : i32
    %c0_i32_0 = arith.constant 0 : i32
    %c0_i32_1 = arith.constant 0 : i32
    return %c0_i32, %c0_i32_0 : i32, i32
  }
  func.func @transform_26(%arg0: i32) -> (i32, i32) {
    %c0_i32 = arith.constant 0 : i32
    %c0_i32_0 = arith.constant 0 : i32
    %c0_i32_1 = arith.constant 0 : i32
    return %c0_i32, %c0_i32_0 : i32, i32
  }
  func.func @transform_27(%arg0: i32) -> (i32, i32) {
    %c0_i32 = arith.constant 0 : i32
    %c0_i32_0 = arith.constant 0 : i32
    %c0_i32_1 = arith.constant 0 : i32
    return %c0_i32, %c0_i32_0 : i32, i32
  }
  func.func @transform_28(%arg0: i32) -> (i32, i32) {
    %c0_i32 = arith.constant 0 : i32
    %c0_i32_0 = arith.constant 0 : i32
    %c0_i32_1 = arith.constant 0 : i32
    return %c0_i32, %c0_i32_0 : i32, i32
  }
  func.func @transform_29(%arg0: i32) -> (i32, i32, i32) {
    %c0_i32 = arith.constant 0 : i32
    %c0_i32_0 = arith.constant 0 : i32
    %c0_i32_1 = arith.constant 0 : i32
    %c0_i32_2 = arith.constant 0 : i32
    return %c0_i32, %c0_i32_0, %c0_i32_1 : i32, i32, i32
  }
  func.func @transform_30(%arg0: i32) -> (i32, i32, i32) {
    %c0_i32 = arith.constant 0 : i32
    %c0_i32_0 = arith.constant 0 : i32
    %c0_i32_1 = arith.constant 0 : i32
    %c0_i32_2 = arith.constant 0 : i32
    return %c0_i32, %c0_i32_0, %c0_i32_1 : i32, i32, i32
  }
  func.func @transform_31(%arg0: i32) -> (i32, i32, i32, i32) {
    %c0_i32 = arith.constant 0 : i32
    %c0_i32_0 = arith.constant 0 : i32
    %c0_i32_1 = arith.constant 0 : i32
    %c0_i32_2 = arith.constant 0 : i32
    %c0_i32_3 = arith.constant 0 : i32
    return %c0_i32, %c0_i32_0, %c0_i32_1, %c0_i32_2 : i32, i32, i32, i32
  }
  func.func @transform_32(%arg0: i32) -> (i32, i32, i32, i32) {
    %c0_i32 = arith.constant 0 : i32
    %c0_i32_0 = arith.constant 0 : i32
    %c0_i32_1 = arith.constant 0 : i32
    %c0_i32_2 = arith.constant 0 : i32
    %c0_i32_3 = arith.constant 0 : i32
    return %c0_i32, %c0_i32_0, %c0_i32_1, %c0_i32_2 : i32, i32, i32, i32
  }
  func.func @transform_33(%arg0: i32) -> (i32, i32, i32, i32) {
    %c0_i32 = arith.constant 0 : i32
    %c0_i32_0 = arith.constant 0 : i32
    %c0_i32_1 = arith.constant 0 : i32
    %c0_i32_2 = arith.constant 0 : i32
    %c0_i32_3 = arith.constant 0 : i32
    return %c0_i32, %c0_i32_0, %c0_i32_1, %c0_i32_2 : i32, i32, i32, i32
  }
  func.func @transform_34(%arg0: i32) -> (i32, i32, i32, i32) {
    %c0_i32 = arith.constant 0 : i32
    %c0_i32_0 = arith.constant 0 : i32
    %c0_i32_1 = arith.constant 0 : i32
    %c0_i32_2 = arith.constant 0 : i32
    %c0_i32_3 = arith.constant 0 : i32
    return %c0_i32, %c0_i32_0, %c0_i32_1, %c0_i32_2 : i32, i32, i32, i32
  }
  func.func @transform_35(%arg0: i32) -> (i32, i32, i32) {
    %c0_i32 = arith.constant 0 : i32
    %c0_i32_0 = arith.constant 0 : i32
    %c0_i32_1 = arith.constant 0 : i32
    %c0_i32_2 = arith.constant 0 : i32
    return %c0_i32, %c0_i32_0, %c0_i32_1 : i32, i32, i32
  }
  func.func @transform_36(%arg0: i32) -> (i32, i32, i32) {
    %c0_i32 = arith.constant 0 : i32
    %c0_i32_0 = arith.constant 0 : i32
    %c0_i32_1 = arith.constant 0 : i32
    %c0_i32_2 = arith.constant 0 : i32
    return %c0_i32, %c0_i32_0, %c0_i32_1 : i32, i32, i32
  }
  func.func @transform_37(%arg0: i32) -> (i32, i32, i32) {
    %c0_i32 = arith.constant 0 : i32
    %c0_i32_0 = arith.constant 0 : i32
    %c0_i32_1 = arith.constant 0 : i32
    %c0_i32_2 = arith.constant 0 : i32
    return %c0_i32, %c0_i32_0, %c0_i32_1 : i32, i32, i32
  }
  func.func @transform_38(%arg0: i32) -> (i32, i32, i32) {
    %c0_i32 = arith.constant 0 : i32
    %c0_i32_0 = arith.constant 0 : i32
    %c0_i32_1 = arith.constant 0 : i32
    %c0_i32_2 = arith.constant 0 : i32
    return %c0_i32, %c0_i32_0, %c0_i32_1 : i32, i32, i32
  }
  func.func @transform_39(%arg0: i32) -> (i32, i32, i32) {
    %c0_i32 = arith.constant 0 : i32
    %c0_i32_0 = arith.constant 0 : i32
    %c0_i32_1 = arith.constant 0 : i32
    %c0_i32_2 = arith.constant 0 : i32
    return %c0_i32, %c0_i32_0, %c0_i32_1 : i32, i32, i32
  }
  func.func @transform_40(%arg0: i32) -> (i32, i32, i32) {
    %c0_i32 = arith.constant 0 : i32
    %c0_i32_0 = arith.constant 0 : i32
    %c0_i32_1 = arith.constant 0 : i32
    %c0_i32_2 = arith.constant 0 : i32
    return %c0_i32, %c0_i32_0, %c0_i32_1 : i32, i32, i32
  }
  func.func @transform_41(%arg0: i32) -> (i32, i32, i32) {
    %c0_i32 = arith.constant 0 : i32
    %c0_i32_0 = arith.constant 0 : i32
    %c0_i32_1 = arith.constant 0 : i32
    %c0_i32_2 = arith.constant 0 : i32
    return %c0_i32, %c0_i32_0, %c0_i32_1 : i32, i32, i32
  }
  func.func @transform_42(%arg0: i32) -> (i32, i32) {
    %c0_i32 = arith.constant 0 : i32
    %c0_i32_0 = arith.constant 0 : i32
    %c0_i32_1 = arith.constant 0 : i32
    return %c0_i32, %c0_i32_0 : i32, i32
  }
  func.func @transform_43(%arg0: i32) -> (i32, i32) {
    %c0_i32 = arith.constant 0 : i32
    %c0_i32_0 = arith.constant 0 : i32
    %c0_i32_1 = arith.constant 0 : i32
    return %c0_i32, %c0_i32_0 : i32, i32
  }
  func.func @transform_44(%arg0: i32) -> (i32, i32) {
    %c0_i32 = arith.constant 0 : i32
    %c0_i32_0 = arith.constant 0 : i32
    %c0_i32_1 = arith.constant 0 : i32
    return %c0_i32, %c0_i32_0 : i32, i32
  }
  func.func @transform_45(%arg0: i32) -> (i32, i32) {
    %c0_i32 = arith.constant 0 : i32
    %c0_i32_0 = arith.constant 0 : i32
    %c0_i32_1 = arith.constant 0 : i32
    return %c0_i32, %c0_i32_0 : i32, i32
  }
  func.func @transform_46(%arg0: i32) -> (i32, i32, i32) {
    %c0_i32 = arith.constant 0 : i32
    %c0_i32_0 = arith.constant 0 : i32
    %c0_i32_1 = arith.constant 0 : i32
    return %arg0, %c0_i32, %c0_i32_0 : i32, i32, i32
  }
  func.func @transform_47(%arg0: i32) -> (i32, i32, i32) {
    %c0_i32 = arith.constant 0 : i32
    %c0_i32_0 = arith.constant 0 : i32
    %c0_i32_1 = arith.constant 0 : i32
    return %arg0, %c0_i32, %c0_i32_0 : i32, i32, i32
  }
}

</mosaic_0001>

<llo_original>
// kernel: mae_forward.1
$region0: #{mae_forward.1}
  #allocation0 [shape = 'u32[]', space=smem, size = 0x4, offset = 0x4, fixed_abs, tag = 'smem constant byte address 0x4 - core index']
  #allocation1 [shape = 'u32[144,128]{1,0:T(1,128)}', space=vmem, size = 0x12000, scoped, tag = 'internal scratch']
  %s0 = inlined_call_operand.smem [shape: u32[48], index: -1, kind: input, shape index: {}]
  %s1 = sld [smem:[%s0]]
  %s2 = scalar_lea.smem %s0, 1
  %s3 = sld [smem:[%s2]]
  %s4 = scalar_lea.smem %s0, 2
  %s5 = sld [smem:[%s4]]
  %s6 = scalar_lea.smem %s0, 3
  %s7 = sld [smem:[%s6]]
  %s8 = scalar_lea.smem %s0, 4
  %s9 = sld [smem:[%s8]]
  %s10 = scalar_lea.smem %s0, 5
  %s11 = sld [smem:[%s10]]
  %s12 = scalar_lea.smem %s0, 6
  %s13 = sld [smem:[%s12]]
  %s14 = scalar_lea.smem %s0, 7
  %s15 = sld [smem:[%s14]]
  %s16 = scalar_lea.smem %s0, 8
  %s17 = sld [smem:[%s16]]
  %s18 = scalar_lea.smem %s0, 9
  %s19 = sld [smem:[%s18]]
  %s20 = scalar_lea.smem %s0, 10
  %s21 = sld [smem:[%s20]]
  %s22 = scalar_lea.smem %s0, 11
  %s23 = sld [smem:[%s22]]
  %s24 = scalar_lea.smem %s0, 12
  %s25 = sld [smem:[%s24]]
  %s26 = scalar_lea.smem %s0, 13
  %s27 = sld [smem:[%s26]]
  %s28 = scalar_lea.smem %s0, 14
  %s29 = sld [smem:[%s28]]
  %s30 = scalar_lea.smem %s0, 15
  %s31 = sld [smem:[%s30]]
  %s32 = scalar_lea.smem %s0, 16
  %s33 = sld [smem:[%s32]]
  %s34 = scalar_lea.smem %s0, 17
  %s35 = sld [smem:[%s34]]
  %s36 = scalar_lea.smem %s0, 18
  %s37 = sld [smem:[%s36]]
  %s38 = scalar_lea.smem %s0, 19
  %s39 = sld [smem:[%s38]]
  %s40 = scalar_lea.smem %s0, 20
  %s41 = sld [smem:[%s40]]
  %s42 = scalar_lea.smem %s0, 21
  %s43 = sld [smem:[%s42]]
  %s44 = scalar_lea.smem %s0, 22
  %s45 = sld [smem:[%s44]]
  %s46 = scalar_lea.smem %s0, 23
  %s47 = sld [smem:[%s46]]
  %s48 = scalar_lea.smem %s0, 24
  %s49 = sld [smem:[%s48]]
  %s50 = scalar_lea.smem %s0, 25
  %s51 = sld [smem:[%s50]]
  %s52 = scalar_lea.smem %s0, 26
  %s53 = sld [smem:[%s52]]
  %s54 = scalar_lea.smem %s0, 27
  %s55 = sld [smem:[%s54]]
  %s56 = scalar_lea.smem %s0, 28
  %s57 = sld [smem:[%s56]]
  %s58 = scalar_lea.smem %s0, 29
  %s59 = sld [smem:[%s58]]
  %s60 = scalar_lea.smem %s0, 30
  %s61 = sld [smem:[%s60]]
  %s62 = scalar_lea.smem %s0, 31
  %s63 = sld [smem:[%s62]]
  %s64 = scalar_lea.smem %s0, 32
  %s65 = sld [smem:[%s64]]
  %s66 = scalar_lea.smem %s0, 33
  %s67 = sld [smem:[%s66]]
  %s68 = scalar_lea.smem %s0, 34
  %s69 = sld [smem:[%s68]]
  %s70 = scalar_lea.smem %s0, 35
  %s71 = sld [smem:[%s70]]
  %s72 = scalar_lea.smem %s0, 36
  %s73 = sld [smem:[%s72]]
  %s74 = scalar_lea.smem %s0, 37
  %s75 = sld [smem:[%s74]]
  %s76 = scalar_lea.smem %s0, 38
  %s77 = sld [smem:[%s76]]
  %s78 = scalar_lea.smem %s0, 39
  %s79 = sld [smem:[%s78]]
  %s80 = scalar_lea.smem %s0, 40
  %s81 = sld [smem:[%s80]]
  %s82 = scalar_lea.smem %s0, 41
  %s83 = sld [smem:[%s82]]
  %s84 = scalar_lea.smem %s0, 42
  %s85 = sld [smem:[%s84]]
  %s86 = scalar_lea.smem %s0, 43
  %s87 = sld [smem:[%s86]]
  %s88 = scalar_lea.smem %s0, 44
  %s89 = sld [smem:[%s88]]
  %s90 = scalar_lea.smem %s0, 45
  %s91 = sld [smem:[%s90]]
  %s92 = scalar_lea.smem %s0, 46
  %s93 = sld [smem:[%s92]]
  %s94 = scalar_lea.smem %s0, 47
  %s95 = sld [smem:[%s94]]
  %96 = xla_tuple %s93, %s95
  %s97 = sld [smem:[#allocation0]]
  $region225: #{mae_forward.1} parent=0
    _
  %s99 = ssub.s32 1, %s97
  %s100 = scalar_select 0, %s99, %s97
  $region1: #{mae_forward.1} parent=0
    #allocation2 [shape = 'u8[16384]{0}', space=vmem, size = 0x4000, scoped, tag = 'output window, operand 0']
    #allocation3 [shape = 's32[2]{0}', space=sflag, size = 0x8, scoped, tag = 'scoped memory for mae_forward.1']
    %101 = vsyncpa [#allocation3], 0
    %s102 = scalar_lea.sflag [#allocation3], 1
    %103 = vsyncpa %s102, 0
    loop: start=0, step=1, limit=4
    $region2: #{mae_forward.1} parent=1 // loop_pre_header
      _
    $region3: #{mae_forward.1} parent=1 // loop_header
      %s105 = sphi 0, %s109
      %p106 = scmp.ge.s32.totalorder %s105, 4
      %s115 = sphi 0, %s117
      %s118 = sphi 0, %s115
      %s119 = sphi 0, %s118
      %s135 = sphi 0, %s119
      %s141 = sphi 0, %s143
      %s144 = sphi 0, %s141
      %s145 = sphi 0, %s144
      %s161 = sphi 0, %s145
      %s167 = sphi 0, %s169
      %s170 = sphi 0, %s167
      %s171 = sphi 0, %s170
      %s187 = sphi 0, %s171
      %s193 = sphi 0, %s195
      %s196 = sphi 0, %s193
      %s197 = sphi 0, %s196
      %s213 = sphi 0, %s197
      %s217 = sphi 0, %s217
      %s219 = sphi 0, %s217
      %s220 = sphi 0, %s219
      %s234 = sphi 0, %s220
      %s238 = sphi 0, %s238
      %s240 = sphi 0, %s238
      %s241 = sphi 0, %s240
      %s255 = sphi 0, %s241
      %s259 = sphi 0, %s259
      %s261 = sphi 0, %s259
      %s262 = sphi 0, %s261
      %s276 = sphi 0, %s262
      %s280 = sphi 0, %s280
      %s282 = sphi 0, %s280
      %s283 = sphi 0, %s282
      %s297 = sphi 0, %s283
      %s301 = sphi 0, %s301
      %s303 = sphi 0, %s301
      %s304 = sphi 0, %s303
      %s318 = sphi 0, %s304
      %s322 = sphi 0, %s322
      %s324 = sphi 0, %s322
      %s325 = sphi 0, %s324
      %s339 = sphi 0, %s325
      %s343 = sphi 0, %s343
      %s345 = sphi 0, %s343
      %s346 = sphi 0, %s345
      %s360 = sphi 0, %s346
      %s364 = sphi 0, %s364
      %s366 = sphi 0, %s364
      %s367 = sphi 0, %s366
      %s381 = sphi 0, %s367
      %s385 = sphi 0, %s385
      %s387 = sphi 0, %s385
      %s388 = sphi 0, %s387
      %s402 = sphi 0, %s388
      %s406 = sphi 0, %s406
      %s408 = sphi 0, %s406
      %s409 = sphi 0, %s408
      %s423 = sphi 0, %s409
      %s427 = sphi 0, %s427
      %s429 = sphi 0, %s427
      %s430 = sphi 0, %s429
      %s444 = sphi 0, %s430
      %s448 = sphi 0, %s448
      %s450 = sphi 0, %s448
      %s451 = sphi 0, %s450
      %s465 = sphi 0, %s451
      %s469 = sphi 0, %s469
      %s471 = sphi 0, %s469
      %s472 = sphi 0, %s471
      %s486 = sphi 0, %s472
      %s490 = sphi 0, %s490
      %s492 = sphi 0, %s490
      %s493 = sphi 0, %s492
      %s507 = sphi 0, %s493
      %s511 = sphi 0, %s511
      %s513 = sphi 0, %s511
      %s514 = sphi 0, %s513
      %s528 = sphi 0, %s514
      %s532 = sphi 0, %s532
      %s534 = sphi 0, %s532
      %s535 = sphi 0, %s534
      %s549 = sphi 0, %s535
      %s553 = sphi 0, %s553
      %s555 = sphi 0, %s553
      %s556 = sphi 0, %s555
      %s570 = sphi 0, %s556
      %s574 = sphi 0, %s574
      %s576 = sphi 0, %s574
      %s577 = sphi 0, %s576
      %s591 = sphi 0, %s577
      %s595 = sphi 0, %s595
      %s597 = sphi 0, %s595
      %s598 = sphi 0, %s597
      %s612 = sphi 0, %s598
      %s616 = sphi 0, %s616
      %s618 = sphi 0, %s616
      %s619 = sphi 0, %s618
      %s633 = sphi 0, %s619
      %s637 = sphi 0, %s637
      %s639 = sphi 0, %s637
      %s640 = sphi 0, %s639
      %s654 = sphi 0, %s640
      %s658 = sphi 0, %s658
      %s660 = sphi 0, %s658
      %s661 = sphi 0, %s660
      %s675 = sphi 0, %s661
      %s679 = sphi 0, %s679
      %s681 = sphi 0, %s679
      %s682 = sphi 0, %s681
      %s696 = sphi 0, %s682
      %s700 = sphi 0, %s700
      %s702 = sphi 0, %s700
      %s703 = sphi 0, %s702
      %s717 = sphi 0, %s703
      %s721 = sphi 0, %s721
      %s723 = sphi 0, %s721
      %s724 = sphi 0, %s723
      %s738 = sphi 0, %s724
      %s742 = sphi 0, %s742
      %s744 = sphi 0, %s742
      %s745 = sphi 0, %s744
      %s759 = sphi 0, %s745
      %s763 = sphi 0, %s763
      %s765 = sphi 0, %s763
      %s766 = sphi 0, %s765
      %s780 = sphi 0, %s766
      %s784 = sphi 0, %s784
      %s786 = sphi 0, %s784
      %s787 = sphi 0, %s786
      %s801 = sphi 0, %s787
      %s805 = sphi 0, %s805
      %s807 = sphi 0, %s805
      %s808 = sphi 0, %s807
      %s822 = sphi 0, %s808
      %s826 = sphi 0, %s826
      %s828 = sphi 0, %s826
      %s829 = sphi 0, %s828
      %s843 = sphi 0, %s829
      %s847 = sphi 0, %s847
      %s849 = sphi 0, %s847
      %s850 = sphi 0, %s849
      %s864 = sphi 0, %s850
      %s868 = sphi 0, %s868
      %s870 = sphi 0, %s868
      %s871 = sphi 0, %s870
      %s885 = sphi 0, %s871
      %s889 = sphi 0, %s889
      %s891 = sphi 0, %s889
      %s892 = sphi 0, %s891
      %s906 = sphi 0, %s892
      %s910 = sphi 0, %s910
      %s912 = sphi 0, %s910
      %s913 = sphi 0, %s912
      %s927 = sphi 0, %s913
      %s931 = sphi 0, %s931
      %s933 = sphi 0, %s931
      %s934 = sphi 0, %s933
      %s948 = sphi 0, %s934
      %s952 = sphi 0, %s952
      %s954 = sphi 0, %s952
      %s955 = sphi 0, %s954
      %s969 = sphi 0, %s955
      %s973 = sphi 0, %s973
      %s975 = sphi 0, %s973
      %s976 = sphi 0, %s975
      %s990 = sphi 0, %s976
      %s994 = sphi 0, %s994
      %s996 = sphi 0, %s994
      %s997 = sphi 0, %s996
      %s1011 = sphi 0, %s997
      %s1015 = sphi 0, %s1015
      %s1017 = sphi 0, %s1015
      %s1018 = sphi 0, %s1017
      %s1032 = sphi 0, %s1018
      %s1036 = sphi 0, %s1036
      %s1038 = sphi 0, %s1036
      %s1039 = sphi 0, %s1038
      %s1053 = sphi 0, %s1039
      %s1057 = sphi 0, %s1057
      %s1059 = sphi 0, %s1057
      %s1060 = sphi 0, %s1059
      %s1074 = sphi 0, %s1060
      %s1078 = sphi 0, %s1078
      %s1080 = sphi 0, %s1078
      %s1081 = sphi 0, %s1080
      %s1095 = sphi 0, %s1081
      %s1101 = sphi 0, %s1103
      %s1104 = sphi 0, %s1101
      %s1105 = sphi 0, %s1104
      %s1121 = sphi 0, %s1105
      %s1127 = sphi 0, %s1129
      %s1130 = sphi 0, %s1127
      %s1131 = sphi 0, %s1130
      %s1147 = sphi 0, %s1131
    $region4: #{mae_forward.1} parent=1 // loop_header_branch
      %108 = sbr.rel (%p106) target = $region8
    $region5: #{mae_forward.1} parent=1 // loop_body
      %s110 = ssub.s32 %s105, 1
      %s111 = ssub.s32 %s105, 2
      %s112 = sadd.s32 %s105, 1
      %s113 = ssub.s32 %s105, %s112
      %p114 = scmp.eq.s32.totalorder %s113, 0
      %s116 = sadd.s32 %s115, 1
      %s117 = scalar_select %p114, %s115, %s116
      %p120 = pneg %p114
      %p121 = scmp.eq.s32.totalorder %s105, 1
      %p122 = por %p120, %p121
      %p123 = scmp.ne.s32.totalorder %s115, %s118
      %p124 = scmp.eq.s32.totalorder %s105, 0
      %p125 = por %p123, %p124
      %p126 = scmp.ne.s32.totalorder %s115, %s118
      %p127 = scmp.eq.s32.totalorder %s110, 1
      %p128 = por %p126, %p127
      %p129 = scmp.ne.s32.totalorder %s118, %s119
      %p130 = scmp.eq.s32.totalorder %s110, 0
      %p131 = por %p129, %p130
      %p132 = scmp.ne.s32.totalorder %s118, %s119
      %p133 = scmp.eq.s32.totalorder %s111, 1
      %p134 = por %p132, %p133
      %p136 = scmp.ne.s32.totalorder %s119, %s135
      %p137 = scmp.eq.s32.totalorder %s111, 0
      %p138 = por %p136, %p137
      %s139 = ssub.s32 %s105, %s112
      %p140 = scmp.eq.s32.totalorder %s139, 0
      %s142 = sadd.s32 %s141, 1
      %s143 = scalar_select %p140, %s141, %s142
      %p146 = pneg %p140
      %p147 = scmp.eq.s32.totalorder %s105, 1
      %p148 = por %p146, %p147
      %p149 = scmp.ne.s32.totalorder %s141, %s144
      %p150 = scmp.eq.s32.totalorder %s105, 0
      %p151 = por %p149, %p150
      %p152 = scmp.ne.s32.totalorder %s141, %s144
      %p153 = scmp.eq.s32.totalorder %s110, 1
      %p154 = por %p152, %p153
      %p155 = scmp.ne.s32.totalorder %s144, %s145
      %p156 = scmp.eq.s32.totalorder %s110, 0
      %p157 = por %p155, %p156
      %p158 = scmp.ne.s32.totalorder %s144, %s145
      %p159 = scmp.eq.s32.totalorder %s111, 1
      %p160 = por %p158, %p159
      %p162 = scmp.ne.s32.totalorder %s145, %s161
      %p163 = scmp.eq.s32.totalorder %s111, 0
      %p164 = por %p162, %p163
      %s165 = ssub.s32 %s105, %s112
      %p166 = scmp.eq.s32.totalorder %s165, 0
      %s168 = sadd.s32 %s167, 1
      %s169 = scalar_select %p166, %s167, %s168
      %p172 = pneg %p166
      %p173 = scmp.eq.s32.totalorder %s105, 1
      %p174 = por %p172, %p173
      %p175 = scmp.ne.s32.totalorder %s167, %s170
      %p176 = scmp.eq.s32.totalorder %s105, 0
      %p177 = por %p175, %p176
      %p178 = scmp.ne.s32.totalorder %s167, %s170
      %p179 = scmp.eq.s32.totalorder %s110, 1
      %p180 = por %p178, %p179
      %p181 = scmp.ne.s32.totalorder %s170, %s171
      %p182 = scmp.eq.s32.totalorder %s110, 0
      %p183 = por %p181, %p182
      %p184 = scmp.ne.s32.totalorder %s170, %s171
      %p185 = scmp.eq.s32.totalorder %s111, 1
      %p186 = por %p184, %p185
      %p188 = scmp.ne.s32.totalorder %s171, %s187
      %p189 = scmp.eq.s32.totalorder %s111, 0
      %p190 = por %p188, %p189
      %s191 = ssub.s32 %s105, %s112
      %p192 = scmp.eq.s32.totalorder %s191, 0
      %s194 = sadd.s32 %s193, 1
      %s195 = scalar_select %p192, %s193, %s194
      %p198 = pneg %p192
      %p199 = scmp.eq.s32.totalorder %s105, 1
      %p200 = por %p198, %p199
      %p201 = scmp.ne.s32.totalorder %s193, %s196
      %p202 = scmp.eq.s32.totalorder %s105, 0
      %p203 = por %p201, %p202
      %p204 = scmp.ne.s32.totalorder %s193, %s196
      %p205 = scmp.eq.s32.totalorder %s110, 1
      %p206 = por %p204, %p205
      %p207 = scmp.ne.s32.totalorder %s196, %s197
      %p208 = scmp.eq.s32.totalorder %s110, 0
      %p209 = por %p207, %p208
      %p210 = scmp.ne.s32.totalorder %s196, %s197
      %p211 = scmp.eq.s32.totalorder %s111, 1
      %p212 = por %p210, %p211
      %p214 = scmp.ne.s32.totalorder %s197, %s213
      %p215 = scmp.eq.s32.totalorder %s111, 0
      %p216 = por %p214, %p215
      %s218 = sadd.s32 %s217, 1
      %p221 = scmp.eq.s32.totalorder %s105, 1
      %p222 = scmp.ne.s32.totalorder %s217, %s219
      %p223 = scmp.eq.s32.totalorder %s105, 0
      %p224 = por %p222, %p223
      %p225 = scmp.ne.s32.totalorder %s217, %s219
      %p226 = scmp.eq.s32.totalorder %s110, 1
      %p227 = por %p225, %p226
      %p228 = scmp.ne.s32.totalorder %s219, %s220
      %p229 = scmp.eq.s32.totalorder %s110, 0
      %p230 = por %p228, %p229
      %p231 = scmp.ne.s32.totalorder %s219, %s220
      %p232 = scmp.eq.s32.totalorder %s111, 1
      %p233 = por %p231, %p232
      %p235 = scmp.ne.s32.totalorder %s220, %s234
      %p236 = scmp.eq.s32.totalorder %s111, 0
      %p237 = por %p235, %p236
      %s239 = sadd.s32 %s238, 1
      %p242 = scmp.eq.s32.totalorder %s105, 1
      %p243 = scmp.ne.s32.totalorder %s238, %s240
      %p244 = scmp.eq.s32.totalorder %s105, 0
      %p245 = por %p243, %p244
      %p246 = scmp.ne.s32.totalorder %s238, %s240
      %p247 = scmp.eq.s32.totalorder %s110, 1
      %p248 = por %p246, %p247
      %p249 = scmp.ne.s32.totalorder %s240, %s241
      %p250 = scmp.eq.s32.totalorder %s110, 0
      %p251 = por %p249, %p250
      %p252 = scmp.ne.s32.totalorder %s240, %s241
      %p253 = scmp.eq.s32.totalorder %s111, 1
      %p254 = por %p252, %p253
      %p256 = scmp.ne.s32.totalorder %s241, %s255
      %p257 = scmp.eq.s32.totalorder %s111, 0
      %p258 = por %p256, %p257
      %s260 = sadd.s32 %s259, 1
      %p263 = scmp.eq.s32.totalorder %s105, 1
      %p264 = scmp.ne.s32.totalorder %s259, %s261
      %p265 = scmp.eq.s32.totalorder %s105, 0
      %p266 = por %p264, %p265
      %p267 = scmp.ne.s32.totalorder %s259, %s261
      %p268 = scmp.eq.s32.totalorder %s110, 1
      %p269 = por %p267, %p268
      %p270 = scmp.ne.s32.totalorder %s261, %s262
      %p271 = scmp.eq.s32.totalorder %s110, 0
      %p272 = por %p270, %p271
      %p273 = scmp.ne.s32.totalorder %s261, %s262
      %p274 = scmp.eq.s32.totalorder %s111, 1
      %p275 = por %p273, %p274
      %p277 = scmp.ne.s32.totalorder %s262, %s276
      %p278 = scmp.eq.s32.totalorder %s111, 0
      %p279 = por %p277, %p278
      %s281 = sadd.s32 %s280, 1
      %p284 = scmp.eq.s32.totalorder %s105, 1
      %p285 = scmp.ne.s32.totalorder %s280, %s282
      %p286 = scmp.eq.s32.totalorder %s105, 0
      %p287 = por %p285, %p286
      %p288 = scmp.ne.s32.totalorder %s280, %s282
      %p289 = scmp.eq.s32.totalorder %s110, 1
      %p290 = por %p288, %p289
      %p291 = scmp.ne.s32.totalorder %s282, %s283
      %p292 = scmp.eq.s32.totalorder %s110, 0
      %p293 = por %p291, %p292
      %p294 = scmp.ne.s32.totalorder %s282, %s283
      %p295 = scmp.eq.s32.totalorder %s111, 1
      %p296 = por %p294, %p295
      %p298 = scmp.ne.s32.totalorder %s283, %s297
      %p299 = scmp.eq.s32.totalorder %s111, 0
      %p300 = por %p298, %p299
      %s302 = sadd.s32 %s301, 1
      %p305 = scmp.eq.s32.totalorder %s105, 1
      %p306 = scmp.ne.s32.totalorder %s301, %s303
      %p307 = scmp.eq.s32.totalorder %s105, 0
      %p308 = por %p306, %p307
      %p309 = scmp.ne.s32.totalorder %s301, %s303
      %p310 = scmp.eq.s32.totalorder %s110, 1
      %p311 = por %p309, %p310
      %p312 = scmp.ne.s32.totalorder %s303, %s304
      %p313 = scmp.eq.s32.totalorder %s110, 0
      %p314 = por %p312, %p313
      %p315 = scmp.ne.s32.totalorder %s303, %s304
      %p316 = scmp.eq.s32.totalorder %s111, 1
      %p317 = por %p315, %p316
      %p319 = scmp.ne.s32.totalorder %s304, %s318
      %p320 = scmp.eq.s32.totalorder %s111, 0
      %p321 = por %p319, %p320
      %s323 = sadd.s32 %s322, 1
      %p326 = scmp.eq.s32.totalorder %s105, 1
      %p327 = scmp.ne.s32.totalorder %s322, %s324
      %p328 = scmp.eq.s32.totalorder %s105, 0
      %p329 = por %p327, %p328
      %p330 = scmp.ne.s32.totalorder %s322, %s324
      %p331 = scmp.eq.s32.totalorder %s110, 1
      %p332 = por %p330, %p331
      %p333 = scmp.ne.s32.totalorder %s324, %s325
      %p334 = scmp.eq.s32.totalorder %s110, 0
      %p335 = por %p333, %p334
      %p336 = scmp.ne.s32.totalorder %s324, %s325
      %p337 = scmp.eq.s32.totalorder %s111, 1
      %p338 = por %p336, %p337
      %p340 = scmp.ne.s32.totalorder %s325, %s339
      %p341 = scmp.eq.s32.totalorder %s111, 0
      %p342 = por %p340, %p341
      %s344 = sadd.s32 %s343, 1
      %p347 = scmp.eq.s32.totalorder %s105, 1
      %p348 = scmp.ne.s32.totalorder %s343, %s345
      %p349 = scmp.eq.s32.totalorder %s105, 0
      %p350 = por %p348, %p349
      %p351 = scmp.ne.s32.totalorder %s343, %s345
      %p352 = scmp.eq.s32.totalorder %s110, 1
      %p353 = por %p351, %p352
      %p354 = scmp.ne.s32.totalorder %s345, %s346
      %p355 = scmp.eq.s32.totalorder %s110, 0
      %p356 = por %p354, %p355
      %p357 = scmp.ne.s32.totalorder %s345, %s346
      %p358 = scmp.eq.s32.totalorder %s111, 1
      %p359 = por %p357, %p358
      %p361 = scmp.ne.s32.totalorder %s346, %s360
      %p362 = scmp.eq.s32.totalorder %s111, 0
      %p363 = por %p361, %p362
      %s365 = sadd.s32 %s364, 1
      %p368 = scmp.eq.s32.totalorder %s105, 1
      %p369 = scmp.ne.s32.totalorder %s364, %s366
      %p370 = scmp.eq.s32.totalorder %s105, 0
      %p371 = por %p369, %p370
      %p372 = scmp.ne.s32.totalorder %s364, %s366
      %p373 = scmp.eq.s32.totalorder %s110, 1
      %p374 = por %p372, %p373
      %p375 = scmp.ne.s32.totalorder %s366, %s367
      %p376 = scmp.eq.s32.totalorder %s110, 0
      %p377 = por %p375, %p376
      %p378 = scmp.ne.s32.totalorder %s366, %s367
      %p379 = scmp.eq.s32.totalorder %s111, 1
      %p380 = por %p378, %p379
      %p382 = scmp.ne.s32.totalorder %s367, %s381
      %p383 = scmp.eq.s32.totalorder %s111, 0
      %p384 = por %p382, %p383
      %s386 = sadd.s32 %s385, 1
      %p389 = scmp.eq.s32.totalorder %s105, 1
      %p390 = scmp.ne.s32.totalorder %s385, %s387
      %p391 = scmp.eq.s32.totalorder %s105, 0
      %p392 = por %p390, %p391
      %p393 = scmp.ne.s32.totalorder %s385, %s387
      %p394 = scmp.eq.s32.totalorder %s110, 1
      %p395 = por %p393, %p394
      %p396 = scmp.ne.s32.totalorder %s387, %s388
      %p397 = scmp.eq.s32.totalorder %s110, 0
      %p398 = por %p396, %p397
      %p399 = scmp.ne.s32.totalorder %s387, %s388
      %p400 = scmp.eq.s32.totalorder %s111, 1
      %p401 = por %p399, %p400
      %p403 = scmp.ne.s32.totalorder %s388, %s402
      %p404 = scmp.eq.s32.totalorder %s111, 0
      %p405 = por %p403, %p404
      %s407 = sadd.s32 %s406, 1
      %p410 = scmp.eq.s32.totalorder %s105, 1
      %p411 = scmp.ne.s32.totalorder %s406, %s408
      %p412 = scmp.eq.s32.totalorder %s105, 0
      %p413 = por %p411, %p412
      %p414 = scmp.ne.s32.totalorder %s406, %s408
      %p415 = scmp.eq.s32.totalorder %s110, 1
      %p416 = por %p414, %p415
      %p417 = scmp.ne.s32.totalorder %s408, %s409
      %p418 = scmp.eq.s32.totalorder %s110, 0
      %p419 = por %p417, %p418
      %p420 = scmp.ne.s32.totalorder %s408, %s409
      %p421 = scmp.eq.s32.totalorder %s111, 1
      %p422 = por %p420, %p421
      %p424 = scmp.ne.s32.totalorder %s409, %s423
      %p425 = scmp.eq.s32.totalorder %s111, 0
      %p426 = por %p424, %p425
      %s428 = sadd.s32 %s427, 1
      %p431 = scmp.eq.s32.totalorder %s105, 1
      %p432 = scmp.ne.s32.totalorder %s427, %s429
      %p433 = scmp.eq.s32.totalorder %s105, 0
      %p434 = por %p432, %p433
      %p435 = scmp.ne.s32.totalorder %s427, %s429
      %p436 = scmp.eq.s32.totalorder %s110, 1
      %p437 = por %p435, %p436
      %p438 = scmp.ne.s32.totalorder %s429, %s430
      %p439 = scmp.eq.s32.totalorder %s110, 0
      %p440 = por %p438, %p439
      %p441 = scmp.ne.s32.totalorder %s429, %s430
      %p442 = scmp.eq.s32.totalorder %s111, 1
      %p443 = por %p441, %p442
      %p445 = scmp.ne.s32.totalorder %s430, %s444
      %p446 = scmp.eq.s32.totalorder %s111, 0
      %p447 = por %p445, %p446
      %s449 = sadd.s32 %s448, 1
      %p452 = scmp.eq.s32.totalorder %s105, 1
      %p453 = scmp.ne.s32.totalorder %s448, %s450
      %p454 = scmp.eq.s32.totalorder %s105, 0
      %p455 = por %p453, %p454
      %p456 = scmp.ne.s32.totalorder %s448, %s450
      %p457 = scmp.eq.s32.totalorder %s110, 1
      %p458 = por %p456, %p457
      %p459 = scmp.ne.s32.totalorder %s450, %s451
      %p460 = scmp.eq.s32.totalorder %s110, 0
      %p461 = por %p459, %p460
      %p462 = scmp.ne.s32.totalorder %s450, %s451
      %p463 = scmp.eq.s32.totalorder %s111, 1
      %p464 = por %p462, %p463
      %p466 = scmp.ne.s32.totalorder %s451, %s465
      %p467 = scmp.eq.s32.totalorder %s111, 0
      %p468 = por %p466, %p467
      %s470 = sadd.s32 %s469, 1
      %p473 = scmp.eq.s32.totalorder %s105, 1
      %p474 = scmp.ne.s32.totalorder %s469, %s471
      %p475 = scmp.eq.s32.totalorder %s105, 0
      %p476 = por %p474, %p475
      %p477 = scmp.ne.s32.totalorder %s469, %s471
      %p478 = scmp.eq.s32.totalorder %s110, 1
      %p479 = por %p477, %p478
      %p480 = scmp.ne.s32.totalorder %s471, %s472
      %p481 = scmp.eq.s32.totalorder %s110, 0
      %p482 = por %p480, %p481
      %p483 = scmp.ne.s32.totalorder %s471, %s472
      %p484 = scmp.eq.s32.totalorder %s111, 1
      %p485 = por %p483, %p484
      %p487 = scmp.ne.s32.totalorder %s472, %s486
      %p488 = scmp.eq.s32.totalorder %s111, 0
      %p489 = por %p487, %p488
      %s491 = sadd.s32 %s490, 1
      %p494 = scmp.eq.s32.totalorder %s105, 1
      %p495 = scmp.ne.s32.totalorder %s490, %s492
      %p496 = scmp.eq.s32.totalorder %s105, 0
      %p497 = por %p495, %p496
      %p498 = scmp.ne.s32.totalorder %s490, %s492
      %p499 = scmp.eq.s32.totalorder %s110, 1
      %p500 = por %p498, %p499
      %p501 = scmp.ne.s32.totalorder %s492, %s493
      %p502 = scmp.eq.s32.totalorder %s110, 0
      %p503 = por %p501, %p502
      %p504 = scmp.ne.s32.totalorder %s492, %s493
      %p505 = scmp.eq.s32.totalorder %s111, 1
      %p506 = por %p504, %p505
      %p508 = scmp.ne.s32.totalorder %s493, %s507
      %p509 = scmp.eq.s32.totalorder %s111, 0
      %p510 = por %p508, %p509
      %s512 = sadd.s32 %s511, 1
      %p515 = scmp.eq.s32.totalorder %s105, 1
      %p516 = scmp.ne.s32.totalorder %s511, %s513
      %p517 = scmp.eq.s32.totalorder %s105, 0
      %p518 = por %p516, %p517
      %p519 = scmp.ne.s32.totalorder %s511, %s513
      %p520 = scmp.eq.s32.totalorder %s110, 1
      %p521 = por %p519, %p520
      %p522 = scmp.ne.s32.totalorder %s513, %s514
      %p523 = scmp.eq.s32.totalorder %s110, 0
      %p524 = por %p522, %p523
      %p525 = scmp.ne.s32.totalorder %s513, %s514
      %p526 = scmp.eq.s32.totalorder %s111, 1
      %p527 = por %p525, %p526
      %p529 = scmp.ne.s32.totalorder %s514, %s528
      %p530 = scmp.eq.s32.totalorder %s111, 0
      %p531 = por %p529, %p530
      %s533 = sadd.s32 %s532, 1
      %p536 = scmp.eq.s32.totalorder %s105, 1
      %p537 = scmp.ne.s32.totalorder %s532, %s534
      %p538 = scmp.eq.s32.totalorder %s105, 0
      %p539 = por %p537, %p538
      %p540 = scmp.ne.s32.totalorder %s532, %s534
      %p541 = scmp.eq.s32.totalorder %s110, 1
      %p542 = por %p540, %p541
      %p543 = scmp.ne.s32.totalorder %s534, %s535
      %p544 = scmp.eq.s32.totalorder %s110, 0
      %p545 = por %p543, %p544
      %p546 = scmp.ne.s32.totalorder %s534, %s535
      %p547 = scmp.eq.s32.totalorder %s111, 1
      %p548 = por %p546, %p547
      %p550 = scmp.ne.s32.totalorder %s535, %s549
      %p551 = scmp.eq.s32.totalorder %s111, 0
      %p552 = por %p550, %p551
      %s554 = sadd.s32 %s553, 1
      %p557 = scmp.eq.s32.totalorder %s105, 1
      %p558 = scmp.ne.s32.totalorder %s553, %s555
      %p559 = scmp.eq.s32.totalorder %s105, 0
      %p560 = por %p558, %p559
      %p561 = scmp.ne.s32.totalorder %s553, %s555
      %p562 = scmp.eq.s32.totalorder %s110, 1
      %p563 = por %p561, %p562
      %p564 = scmp.ne.s32.totalorder %s555, %s556
      %p565 = scmp.eq.s32.totalorder %s110, 0
      %p566 = por %p564, %p565
      %p567 = scmp.ne.s32.totalorder %s555, %s556
      %p568 = scmp.eq.s32.totalorder %s111, 1
      %p569 = por %p567, %p568
      %p571 = scmp.ne.s32.totalorder %s556, %s570
      %p572 = scmp.eq.s32.totalorder %s111, 0
      %p573 = por %p571, %p572
      %s575 = sadd.s32 %s574, 1
      %p578 = scmp.eq.s32.totalorder %s105, 1
      %p579 = scmp.ne.s32.totalorder %s574, %s576
      %p580 = scmp.eq.s32.totalorder %s105, 0
      %p581 = por %p579, %p580
      %p582 = scmp.ne.s32.totalorder %s574, %s576
      %p583 = scmp.eq.s32.totalorder %s110, 1
      %p584 = por %p582, %p583
      %p585 = scmp.ne.s32.totalorder %s576, %s577
      %p586 = scmp.eq.s32.totalorder %s110, 0
      %p587 = por %p585, %p586
      %p588 = scmp.ne.s32.totalorder %s576, %s577
      %p589 = scmp.eq.s32.totalorder %s111, 1
      %p590 = por %p588, %p589
      %p592 = scmp.ne.s32.totalorder %s577, %s591
      %p593 = scmp.eq.s32.totalorder %s111, 0
      %p594 = por %p592, %p593
      %s596 = sadd.s32 %s595, 1
      %p599 = scmp.eq.s32.totalorder %s105, 1
      %p600 = scmp.ne.s32.totalorder %s595, %s597
      %p601 = scmp.eq.s32.totalorder %s105, 0
      %p602 = por %p600, %p601
      %p603 = scmp.ne.s32.totalorder %s595, %s597
      %p604 = scmp.eq.s32.totalorder %s110, 1
      %p605 = por %p603, %p604
      %p606 = scmp.ne.s32.totalorder %s597, %s598
      %p607 = scmp.eq.s32.totalorder %s110, 0
      %p608 = por %p606, %p607
      %p609 = scmp.ne.s32.totalorder %s597, %s598
      %p610 = scmp.eq.s32.totalorder %s111, 1
      %p611 = por %p609, %p610
      %p613 = scmp.ne.s32.totalorder %s598, %s612
      %p614 = scmp.eq.s32.totalorder %s111, 0
      %p615 = por %p613, %p614
      %s617 = sadd.s32 %s616, 1
      %p620 = scmp.eq.s32.totalorder %s105, 1
      %p621 = scmp.ne.s32.totalorder %s616, %s618
      %p622 = scmp.eq.s32.totalorder %s105, 0
      %p623 = por %p621, %p622
      %p624 = scmp.ne.s32.totalorder %s616, %s618
      %p625 = scmp.eq.s32.totalorder %s110, 1
      %p626 = por %p624, %p625
      %p627 = scmp.ne.s32.totalorder %s618, %s619
      %p628 = scmp.eq.s32.totalorder %s110, 0
      %p629 = por %p627, %p628
      %p630 = scmp.ne.s32.totalorder %s618, %s619
      %p631 = scmp.eq.s32.totalorder %s111, 1
      %p632 = por %p630, %p631
      %p634 = scmp.ne.s32.totalorder %s619, %s633
      %p635 = scmp.eq.s32.totalorder %s111, 0
      %p636 = por %p634, %p635
      %s638 = sadd.s32 %s637, 1
      %p641 = scmp.eq.s32.totalorder %s105, 1
      %p642 = scmp.ne.s32.totalorder %s637, %s639
      %p643 = scmp.eq.s32.totalorder %s105, 0
      %p644 = por %p642, %p643
      %p645 = scmp.ne.s32.totalorder %s637, %s639
      %p646 = scmp.eq.s32.totalorder %s110, 1
      %p647 = por %p645, %p646
      %p648 = scmp.ne.s32.totalorder %s639, %s640
      %p649 = scmp.eq.s32.totalorder %s110, 0
      %p650 = por %p648, %p649
      %p651 = scmp.ne.s32.totalorder %s639, %s640
      %p652 = scmp.eq.s32.totalorder %s111, 1
      %p653 = por %p651, %p652
      %p655 = scmp.ne.s32.totalorder %s640, %s654
      %p656 = scmp.eq.s32.totalorder %s111, 0
      %p657 = por %p655, %p656
      %s659 = sadd.s32 %s658, 1
      %p662 = scmp.eq.s32.totalorder %s105, 1
      %p663 = scmp.ne.s32.totalorder %s658, %s660
      %p664 = scmp.eq.s32.totalorder %s105, 0
      %p665 = por %p663, %p664
      %p666 = scmp.ne.s32.totalorder %s658, %s660
      %p667 = scmp.eq.s32.totalorder %s110, 1
      %p668 = por %p666, %p667
      %p669 = scmp.ne.s32.totalorder %s660, %s661
      %p670 = scmp.eq.s32.totalorder %s110, 0
      %p671 = por %p669, %p670
      %p672 = scmp.ne.s32.totalorder %s660, %s661
      %p673 = scmp.eq.s32.totalorder %s111, 1
      %p674 = por %p672, %p673
      %p676 = scmp.ne.s32.totalorder %s661, %s675
      %p677 = scmp.eq.s32.totalorder %s111, 0
      %p678 = por %p676, %p677
      %s680 = sadd.s32 %s679, 1
      %p683 = scmp.eq.s32.totalorder %s105, 1
      %p684 = scmp.ne.s32.totalorder %s679, %s681
      %p685 = scmp.eq.s32.totalorder %s105, 0
      %p686 = por %p684, %p685
      %p687 = scmp.ne.s32.totalorder %s679, %s681
      %p688 = scmp.eq.s32.totalorder %s110, 1
      %p689 = por %p687, %p688
      %p690 = scmp.ne.s32.totalorder %s681, %s682
      %p691 = scmp.eq.s32.totalorder %s110, 0
      %p692 = por %p690, %p691
      %p693 = scmp.ne.s32.totalorder %s681, %s682
      %p694 = scmp.eq.s32.totalorder %s111, 1
      %p695 = por %p693, %p694
      %p697 = scmp.ne.s32.totalorder %s682, %s696
      %p698 = scmp.eq.s32.totalorder %s111, 0
      %p699 = por %p697, %p698
      %s701 = sadd.s32 %s700, 1
      %p704 = scmp.eq.s32.totalorder %s105, 1
      %p705 = scmp.ne.s32.totalorder %s700, %s702
      %p706 = scmp.eq.s32.totalorder %s105, 0
      %p707 = por %p705, %p706
      %p708 = scmp.ne.s32.totalorder %s700, %s702
      %p709 = scmp.eq.s32.totalorder %s110, 1
      %p710 = por %p708, %p709
      %p711 = scmp.ne.s32.totalorder %s702, %s703
      %p712 = scmp.eq.s32.totalorder %s110, 0
      %p713 = por %p711, %p712
      %p714 = scmp.ne.s32.totalorder %s702, %s703
      %p715 = scmp.eq.s32.totalorder %s111, 1
      %p716 = por %p714, %p715
      %p718 = scmp.ne.s32.totalorder %s703, %s717
      %p719 = scmp.eq.s32.totalorder %s111, 0
      %p720 = por %p718, %p719
      %s722 = sadd.s32 %s721, 1
      %p725 = scmp.eq.s32.totalorder %s105, 1
      %p726 = scmp.ne.s32.totalorder %s721, %s723
      %p727 = scmp.eq.s32.totalorder %s105, 0
      %p728 = por %p726, %p727
      %p729 = scmp.ne.s32.totalorder %s721, %s723
      %p730 = scmp.eq.s32.totalorder %s110, 1
      %p731 = por %p729, %p730
      %p732 = scmp.ne.s32.totalorder %s723, %s724
      %p733 = scmp.eq.s32.totalorder %s110, 0
      %p734 = por %p732, %p733
      %p735 = scmp.ne.s32.totalorder %s723, %s724
      %p736 = scmp.eq.s32.totalorder %s111, 1
      %p737 = por %p735, %p736
      %p739 = scmp.ne.s32.totalorder %s724, %s738
      %p740 = scmp.eq.s32.totalorder %s111, 0
      %p741 = por %p739, %p740
      %s743 = sadd.s32 %s742, 1
      %p746 = scmp.eq.s32.totalorder %s105, 1
      %p747 = scmp.ne.s32.totalorder %s742, %s744
      %p748 = scmp.eq.s32.totalorder %s105, 0
      %p749 = por %p747, %p748
      %p750 = scmp.ne.s32.totalorder %s742, %s744
      %p751 = scmp.eq.s32.totalorder %s110, 1
      %p752 = por %p750, %p751
      %p753 = scmp.ne.s32.totalorder %s744, %s745
      %p754 = scmp.eq.s32.totalorder %s110, 0
      %p755 = por %p753, %p754
      %p756 = scmp.ne.s32.totalorder %s744, %s745
      %p757 = scmp.eq.s32.totalorder %s111, 1
      %p758 = por %p756, %p757
      %p760 = scmp.ne.s32.totalorder %s745, %s759
      %p761 = scmp.eq.s32.totalorder %s111, 0
      %p762 = por %p760, %p761
      %s764 = sadd.s32 %s763, 1
      %p767 = scmp.eq.s32.totalorder %s105, 1
      %p768 = scmp.ne.s32.totalorder %s763, %s765
      %p769 = scmp.eq.s32.totalorder %s105, 0
      %p770 = por %p768, %p769
      %p771 = scmp.ne.s32.totalorder %s763, %s765
      %p772 = scmp.eq.s32.totalorder %s110, 1
      %p773 = por %p771, %p772
      %p774 = scmp.ne.s32.totalorder %s765, %s766
      %p775 = scmp.eq.s32.totalorder %s110, 0
      %p776 = por %p774, %p775
      %p777 = scmp.ne.s32.totalorder %s765, %s766
      %p778 = scmp.eq.s32.totalorder %s111, 1
      %p779 = por %p777, %p778
      %p781 = scmp.ne.s32.totalorder %s766, %s780
      %p782 = scmp.eq.s32.totalorder %s111, 0
      %p783 = por %p781, %p782
      %s785 = sadd.s32 %s784, 1
      %p788 = scmp.eq.s32.totalorder %s105, 1
      %p789 = scmp.ne.s32.totalorder %s784, %s786
      %p790 = scmp.eq.s32.totalorder %s105, 0
      %p791 = por %p789, %p790
      %p792 = scmp.ne.s32.totalorder %s784, %s786
      %p793 = scmp.eq.s32.totalorder %s110, 1
      %p794 = por %p792, %p793
      %p795 = scmp.ne.s32.totalorder %s786, %s787
      %p796 = scmp.eq.s32.totalorder %s110, 0
      %p797 = por %p795, %p796
      %p798 = scmp.ne.s32.totalorder %s786, %s787
      %p799 = scmp.eq.s32.totalorder %s111, 1
      %p800 = por %p798, %p799
      %p802 = scmp.ne.s32.totalorder %s787, %s801
      %p803 = scmp.eq.s32.totalorder %s111, 0
      %p804 = por %p802, %p803
      %s806 = sadd.s32 %s805, 1
      %p809 = scmp.eq.s32.totalorder %s105, 1
      %p810 = scmp.ne.s32.totalorder %s805, %s807
      %p811 = scmp.eq.s32.totalorder %s105, 0
      %p812 = por %p810, %p811
      %p813 = scmp.ne.s32.totalorder %s805, %s807
      %p814 = scmp.eq.s32.totalorder %s110, 1
      %p815 = por %p813, %p814
      %p816 = scmp.ne.s32.totalorder %s807, %s808
      %p817 = scmp.eq.s32.totalorder %s110, 0
      %p818 = por %p816, %p817
      %p819 = scmp.ne.s32.totalorder %s807, %s808
      %p820 = scmp.eq.s32.totalorder %s111, 1
      %p821 = por %p819, %p820
      %p823 = scmp.ne.s32.totalorder %s808, %s822
      %p824 = scmp.eq.s32.totalorder %s111, 0
      %p825 = por %p823, %p824
      %s827 = sadd.s32 %s826, 1
      %p830 = scmp.eq.s32.totalorder %s105, 1
      %p831 = scmp.ne.s32.totalorder %s826, %s828
      %p832 = scmp.eq.s32.totalorder %s105, 0
      %p833 = por %p831, %p832
      %p834 = scmp.ne.s32.totalorder %s826, %s828
      %p835 = scmp.eq.s32.totalorder %s110, 1
      %p836 = por %p834, %p835
      %p837 = scmp.ne.s32.totalorder %s828, %s829
      %p838 = scmp.eq.s32.totalorder %s110, 0
      %p839 = por %p837, %p838
      %p840 = scmp.ne.s32.totalorder %s828, %s829
      %p841 = scmp.eq.s32.totalorder %s111, 1
      %p842 = por %p840, %p841
      %p844 = scmp.ne.s32.totalorder %s829, %s843
      %p845 = scmp.eq.s32.totalorder %s111, 0
      %p846 = por %p844, %p845
      %s848 = sadd.s32 %s847, 1
      %p851 = scmp.eq.s32.totalorder %s105, 1
      %p852 = scmp.ne.s32.totalorder %s847, %s849
      %p853 = scmp.eq.s32.totalorder %s105, 0
      %p854 = por %p852, %p853
      %p855 = scmp.ne.s32.totalorder %s847, %s849
      %p856 = scmp.eq.s32.totalorder %s110, 1
      %p857 = por %p855, %p856
      %p858 = scmp.ne.s32.totalorder %s849, %s850
      %p859 = scmp.eq.s32.totalorder %s110, 0
      %p860 = por %p858, %p859
      %p861 = scmp.ne.s32.totalorder %s849, %s850
      %p862 = scmp.eq.s32.totalorder %s111, 1
      %p863 = por %p861, %p862
      %p865 = scmp.ne.s32.totalorder %s850, %s864
      %p866 = scmp.eq.s32.totalorder %s111, 0
      %p867 = por %p865, %p866
      %s869 = sadd.s32 %s868, 1
      %p872 = scmp.eq.s32.totalorder %s105, 1
      %p873 = scmp.ne.s32.totalorder %s868, %s870
      %p874 = scmp.eq.s32.totalorder %s105, 0
      %p875 = por %p873, %p874
      %p876 = scmp.ne.s32.totalorder %s868, %s870
      %p877 = scmp.eq.s32.totalorder %s110, 1
      %p878 = por %p876, %p877
      %p879 = scmp.ne.s32.totalorder %s870, %s871
      %p880 = scmp.eq.s32.totalorder %s110, 0
      %p881 = por %p879, %p880
      %p882 = scmp.ne.s32.totalorder %s870, %s871
      %p883 = scmp.eq.s32.totalorder %s111, 1
      %p884 = por %p882, %p883
      %p886 = scmp.ne.s32.totalorder %s871, %s885
      %p887 = scmp.eq.s32.totalorder %s111, 0
      %p888 = por %p886, %p887
      %s890 = sadd.s32 %s889, 1
      %p893 = scmp.eq.s32.totalorder %s105, 1
      %p894 = scmp.ne.s32.totalorder %s889, %s891
      %p895 = scmp.eq.s32.totalorder %s105, 0
      %p896 = por %p894, %p895
      %p897 = scmp.ne.s32.totalorder %s889, %s891
      %p898 = scmp.eq.s32.totalorder %s110, 1
      %p899 = por %p897, %p898
      %p900 = scmp.ne.s32.totalorder %s891, %s892
      %p901 = scmp.eq.s32.totalorder %s110, 0
      %p902 = por %p900, %p901
      %p903 = scmp.ne.s32.totalorder %s891, %s892
      %p904 = scmp.eq.s32.totalorder %s111, 1
      %p905 = por %p903, %p904
      %p907 = scmp.ne.s32.totalorder %s892, %s906
      %p908 = scmp.eq.s32.totalorder %s111, 0
      %p909 = por %p907, %p908
      %s911 = sadd.s32 %s910, 1
      %p914 = scmp.eq.s32.totalorder %s105, 1
      %p915 = scmp.ne.s32.totalorder %s910, %s912
      %p916 = scmp.eq.s32.totalorder %s105, 0
      %p917 = por %p915, %p916
      %p918 = scmp.ne.s32.totalorder %s910, %s912
      %p919 = scmp.eq.s32.totalorder %s110, 1
      %p920 = por %p918, %p919
      %p921 = scmp.ne.s32.totalorder %s912, %s913
      %p922 = scmp.eq.s32.totalorder %s110, 0
      %p923 = por %p921, %p922
      %p924 = scmp.ne.s32.totalorder %s912, %s913
      %p925 = scmp.eq.s32.totalorder %s111, 1
      %p926 = por %p924, %p925
      %p928 = scmp.ne.s32.totalorder %s913, %s927
      %p929 = scmp.eq.s32.totalorder %s111, 0
      %p930 = por %p928, %p929
      %s932 = sadd.s32 %s931, 1
      %p935 = scmp.eq.s32.totalorder %s105, 1
      %p936 = scmp.ne.s32.totalorder %s931, %s933
      %p937 = scmp.eq.s32.totalorder %s105, 0
      %p938 = por %p936, %p937
      %p939 = scmp.ne.s32.totalorder %s931, %s933
      %p940 = scmp.eq.s32.totalorder %s110, 1
      %p941 = por %p939, %p940
      %p942 = scmp.ne.s32.totalorder %s933, %s934
      %p943 = scmp.eq.s32.totalorder %s110, 0
      %p944 = por %p942, %p943
      %p945 = scmp.ne.s32.totalorder %s933, %s934
      %p946 = scmp.eq.s32.totalorder %s111, 1
      %p947 = por %p945, %p946
      %p949 = scmp.ne.s32.totalorder %s934, %s948
      %p950 = scmp.eq.s32.totalorder %s111, 0
      %p951 = por %p949, %p950
      %s953 = sadd.s32 %s952, 1
      %p956 = scmp.eq.s32.totalorder %s105, 1
      %p957 = scmp.ne.s32.totalorder %s952, %s954
      %p958 = scmp.eq.s32.totalorder %s105, 0
      %p959 = por %p957, %p958
      %p960 = scmp.ne.s32.totalorder %s952, %s954
      %p961 = scmp.eq.s32.totalorder %s110, 1
      %p962 = por %p960, %p961
      %p963 = scmp.ne.s32.totalorder %s954, %s955
      %p964 = scmp.eq.s32.totalorder %s110, 0
      %p965 = por %p963, %p964
      %p966 = scmp.ne.s32.totalorder %s954, %s955
      %p967 = scmp.eq.s32.totalorder %s111, 1
      %p968 = por %p966, %p967
      %p970 = scmp.ne.s32.totalorder %s955, %s969
      %p971 = scmp.eq.s32.totalorder %s111, 0
      %p972 = por %p970, %p971
      %s974 = sadd.s32 %s973, 1
      %p977 = scmp.eq.s32.totalorder %s105, 1
      %p978 = scmp.ne.s32.totalorder %s973, %s975
      %p979 = scmp.eq.s32.totalorder %s105, 0
      %p980 = por %p978, %p979
      %p981 = scmp.ne.s32.totalorder %s973, %s975
      %p982 = scmp.eq.s32.totalorder %s110, 1
      %p983 = por %p981, %p982
      %p984 = scmp.ne.s32.totalorder %s975, %s976
      %p985 = scmp.eq.s32.totalorder %s110, 0
      %p986 = por %p984, %p985
      %p987 = scmp.ne.s32.totalorder %s975, %s976
      %p988 = scmp.eq.s32.totalorder %s111, 1
      %p989 = por %p987, %p988
      %p991 = scmp.ne.s32.totalorder %s976, %s990
      %p992 = scmp.eq.s32.totalorder %s111, 0
      %p993 = por %p991, %p992
      %s995 = sadd.s32 %s994, 1
      %p998 = scmp.eq.s32.totalorder %s105, 1
      %p999 = scmp.ne.s32.totalorder %s994, %s996
      %p1000 = scmp.eq.s32.totalorder %s105, 0
      %p1001 = por %p999, %p1000
      %p1002 = scmp.ne.s32.totalorder %s994, %s996
      %p1003 = scmp.eq.s32.totalorder %s110, 1
      %p1004 = por %p1002, %p1003
      %p1005 = scmp.ne.s32.totalorder %s996, %s997
      %p1006 = scmp.eq.s32.totalorder %s110, 0
      %p1007 = por %p1005, %p1006
      %p1008 = scmp.ne.s32.totalorder %s996, %s997
      %p1009 = scmp.eq.s32.totalorder %s111, 1
      %p1010 = por %p1008, %p1009
      %p1012 = scmp.ne.s32.totalorder %s997, %s1011
      %p1013 = scmp.eq.s32.totalorder %s111, 0
      %p1014 = por %p1012, %p1013
      %s1016 = sadd.s32 %s1015, 1
      %p1019 = scmp.eq.s32.totalorder %s105, 1
      %p1020 = scmp.ne.s32.totalorder %s1015, %s1017
      %p1021 = scmp.eq.s32.totalorder %s105, 0
      %p1022 = por %p1020, %p1021
      %p1023 = scmp.ne.s32.totalorder %s1015, %s1017
      %p1024 = scmp.eq.s32.totalorder %s110, 1
      %p1025 = por %p1023, %p1024
      %p1026 = scmp.ne.s32.totalorder %s1017, %s1018
      %p1027 = scmp.eq.s32.totalorder %s110, 0
      %p1028 = por %p1026, %p1027
      %p1029 = scmp.ne.s32.totalorder %s1017, %s1018
      %p1030 = scmp.eq.s32.totalorder %s111, 1
      %p1031 = por %p1029, %p1030
      %p1033 = scmp.ne.s32.totalorder %s1018, %s1032
      %p1034 = scmp.eq.s32.totalorder %s111, 0
      %p1035 = por %p1033, %p1034
      %s1037 = sadd.s32 %s1036, 1
      %p1040 = scmp.eq.s32.totalorder %s105, 1
      %p1041 = scmp.ne.s32.totalorder %s1036, %s1038
      %p1042 = scmp.eq.s32.totalorder %s105, 0
      %p1043 = por %p1041, %p1042
      %p1044 = scmp.ne.s32.totalorder %s1036, %s1038
      %p1045 = scmp.eq.s32.totalorder %s110, 1
      %p1046 = por %p1044, %p1045
      %p1047 = scmp.ne.s32.totalorder %s1038, %s1039
      %p1048 = scmp.eq.s32.totalorder %s110, 0
      %p1049 = por %p1047, %p1048
      %p1050 = scmp.ne.s32.totalorder %s1038, %s1039
      %p1051 = scmp.eq.s32.totalorder %s111, 1
      %p1052 = por %p1050, %p1051
      %p1054 = scmp.ne.s32.totalorder %s1039, %s1053
      %p1055 = scmp.eq.s32.totalorder %s111, 0
      %p1056 = por %p1054, %p1055
      %s1058 = sadd.s32 %s1057, 1
      %p1061 = scmp.eq.s32.totalorder %s105, 1
      %p1062 = scmp.ne.s32.totalorder %s1057, %s1059
      %p1063 = scmp.eq.s32.totalorder %s105, 0
      %p1064 = por %p1062, %p1063
      %p1065 = scmp.ne.s32.totalorder %s1057, %s1059
      %p1066 = scmp.eq.s32.totalorder %s110, 1
      %p1067 = por %p1065, %p1066
      %p1068 = scmp.ne.s32.totalorder %s1059, %s1060
      %p1069 = scmp.eq.s32.totalorder %s110, 0
      %p1070 = por %p1068, %p1069
      %p1071 = scmp.ne.s32.totalorder %s1059, %s1060
      %p1072 = scmp.eq.s32.totalorder %s111, 1
      %p1073 = por %p1071, %p1072
      %p1075 = scmp.ne.s32.totalorder %s1060, %s1074
      %p1076 = scmp.eq.s32.totalorder %s111, 0
      %p1077 = por %p1075, %p1076
      %s1079 = sadd.s32 %s1078, 1
      %p1082 = scmp.eq.s32.totalorder %s105, 1
      %p1083 = scmp.ne.s32.totalorder %s1078, %s1080
      %p1084 = scmp.eq.s32.totalorder %s105, 0
      %p1085 = por %p1083, %p1084
      %p1086 = scmp.ne.s32.totalorder %s1078, %s1080
      %p1087 = scmp.eq.s32.totalorder %s110, 1
      %p1088 = por %p1086, %p1087
      %p1089 = scmp.ne.s32.totalorder %s1080, %s1081
      %p1090 = scmp.eq.s32.totalorder %s110, 0
      %p1091 = por %p1089, %p1090
      %p1092 = scmp.ne.s32.totalorder %s1080, %s1081
      %p1093 = scmp.eq.s32.totalorder %s111, 1
      %p1094 = por %p1092, %p1093
      %p1096 = scmp.ne.s32.totalorder %s1081, %s1095
      %p1097 = scmp.eq.s32.totalorder %s111, 0
      %p1098 = por %p1096, %p1097
      %s1099 = ssub.s32 %s105, %s112
      %p1100 = scmp.eq.s32.totalorder %s1099, 0
      %s1102 = sadd.s32 %s1101, 1
      %s1103 = scalar_select %p1100, %s1101, %s1102
      %p1106 = pneg %p1100
      %p1107 = scmp.eq.s32.totalorder %s105, 1
      %p1108 = por %p1106, %p1107
      %p1109 = scmp.ne.s32.totalorder %s1101, %s1104
      %p1110 = scmp.eq.s32.totalorder %s105, 0
      %p1111 = por %p1109, %p1110
      %p1112 = scmp.ne.s32.totalorder %s1101, %s1104
      %p1113 = scmp.eq.s32.totalorder %s110, 1
      %p1114 = por %p1112, %p1113
      %p1115 = scmp.ne.s32.totalorder %s1104, %s1105
      %p1116 = scmp.eq.s32.totalorder %s110, 0
      %p1117 = por %p1115, %p1116
      %p1118 = scmp.ne.s32.totalorder %s1104, %s1105
      %p1119 = scmp.eq.s32.totalorder %s111, 1
      %p1120 = por %p1118, %p1119
      %p1122 = scmp.ne.s32.totalorder %s1105, %s1121
      %p1123 = scmp.eq.s32.totalorder %s111, 0
      %p1124 = por %p1122, %p1123
      %s1125 = ssub.s32 %s105, %s112
      %p1126 = scmp.eq.s32.totalorder %s1125, 0
      %s1128 = sadd.s32 %s1127, 1
      %s1129 = scalar_select %p1126, %s1127, %s1128
      %p1132 = pneg %p1126
      %p1133 = scmp.eq.s32.totalorder %s105, 1
      %p1134 = por %p1132, %p1133
      %p1135 = scmp.ne.s32.totalorder %s1127, %s1130
      %p1136 = scmp.eq.s32.totalorder %s105, 0
      %p1137 = por %p1135, %p1136
      %p1138 = scmp.ne.s32.totalorder %s1127, %s1130
      %p1139 = scmp.eq.s32.totalorder %s110, 1
      %p1140 = por %p1138, %p1139
      %p1141 = scmp.ne.s32.totalorder %s1130, %s1131
      %p1142 = scmp.eq.s32.totalorder %s110, 0
      %p1143 = por %p1141, %p1142
      %p1144 = scmp.ne.s32.totalorder %s1130, %s1131
      %p1145 = scmp.eq.s32.totalorder %s111, 1
      %p1146 = por %p1144, %p1145
      %p1148 = scmp.ne.s32.totalorder %s1131, %s1147
      %p1149 = scmp.eq.s32.totalorder %s111, 0
      %p1150 = por %p1148, %p1149
      %p1151 = scmp.le.s32.totalorder 1, %s105
      %p1152 = scmp.lt.s32.totalorder %s105, 3
      %p1153 = pnand %p1151, %p1152
      %p1154 = pneg %p1153
      // Predicated region
      $region9: #{mae_forward.1} parent=5 // pred_check
        _
      $region10: #{mae_forward.1} parent=5 // pred_check_branch
        %1156 = sbr.rel (%p1153) target = $region12
      $region11: #{mae_forward.1} parent=5 // pred_region
        %s1157 = ssub.s32 %s105, 1
        // Predicated region
        $region13: #{mae_forward.1} parent=11 // pred_check
          %p1158 = pneg %p230
        $region14: #{mae_forward.1} parent=11 // pred_check_branch
          %1160 = sbr.rel (%p1158) target = $region16
        $region15: #{mae_forward.1} parent=11 // pred_region
          _
        $region16: #{mae_forward.1} parent=11 // pred_fallthru
          _
        // Predicated region
        $region17: #{mae_forward.1} parent=11 // pred_check
          %p1161 = pneg %p251
        $region18: #{mae_forward.1} parent=11 // pred_check_branch
          %1163 = sbr.rel (%p1161) target = $region20
        $region19: #{mae_forward.1} parent=11 // pred_region
          _
        $region20: #{mae_forward.1} parent=11 // pred_fallthru
          _
        // Predicated region
        $region21: #{mae_forward.1} parent=11 // pred_check
          %p1164 = pneg %p272
        $region22: #{mae_forward.1} parent=11 // pred_check_branch
          %1166 = sbr.rel (%p1164) target = $region24
        $region23: #{mae_forward.1} parent=11 // pred_region
          _
        $region24: #{mae_forward.1} parent=11 // pred_fallthru
          _
        // Predicated region
        $region25: #{mae_forward.1} parent=11 // pred_check
          %p1167 = pneg %p293
        $region26: #{mae_forward.1} parent=11 // pred_check_branch
          %1169 = sbr.rel (%p1167) target = $region28
        $region27: #{mae_forward.1} parent=11 // pred_region
          _
        $region28: #{mae_forward.1} parent=11 // pred_fallthru
          _
        // Predicated region
        $region29: #{mae_forward.1} parent=11 // pred_check
          %p1170 = pneg %p314
        $region30: #{mae_forward.1} parent=11 // pred_check_branch
          %1172 = sbr.rel (%p1170) target = $region32
        $region31: #{mae_forward.1} parent=11 // pred_region
          _
        $region32: #{mae_forward.1} parent=11 // pred_fallthru
          _
        // Predicated region
        $region33: #{mae_forward.1} parent=11 // pred_check
          %p1173 = pneg %p335
        $region34: #{mae_forward.1} parent=11 // pred_check_branch
          %1175 = sbr.rel (%p1173) target = $region36
        $region35: #{mae_forward.1} parent=11 // pred_region
          _
        $region36: #{mae_forward.1} parent=11 // pred_fallthru
          _
        // Predicated region
        $region37: #{mae_forward.1} parent=11 // pred_check
          %p1176 = pneg %p356
        $region38: #{mae_forward.1} parent=11 // pred_check_branch
          %1178 = sbr.rel (%p1176) target = $region40
        $region39: #{mae_forward.1} parent=11 // pred_region
          _
        $region40: #{mae_forward.1} parent=11 // pred_fallthru
          _
        // Predicated region
        $region41: #{mae_forward.1} parent=11 // pred_check
          %p1179 = pneg %p377
        $region42: #{mae_forward.1} parent=11 // pred_check_branch
          %1181 = sbr.rel (%p1179) target = $region44
        $region43: #{mae_forward.1} parent=11 // pred_region
          _
        $region44: #{mae_forward.1} parent=11 // pred_fallthru
          _
        // Predicated region
        $region45: #{mae_forward.1} parent=11 // pred_check
          %p1182 = pneg %p398
        $region46: #{mae_forward.1} parent=11 // pred_check_branch
          %1184 = sbr.rel (%p1182) target = $region48
        $region47: #{mae_forward.1} parent=11 // pred_region
          _
        $region48: #{mae_forward.1} parent=11 // pred_fallthru
          _
        // Predicated region
        $region49: #{mae_forward.1} parent=11 // pred_check
          %p1185 = pneg %p419
        $region50: #{mae_forward.1} parent=11 // pred_check_branch
          %1187 = sbr.rel (%p1185) target = $region52
        $region51: #{mae_forward.1} parent=11 // pred_region
          _
        $region52: #{mae_forward.1} parent=11 // pred_fallthru
          _
        // Predicated region
        $region53: #{mae_forward.1} parent=11 // pred_check
          %p1188 = pneg %p440
        $region54: #{mae_forward.1} parent=11 // pred_check_branch
          %1190 = sbr.rel (%p1188) target = $region56
        $region55: #{mae_forward.1} parent=11 // pred_region
          _
        $region56: #{mae_forward.1} parent=11 // pred_fallthru
          _
        // Predicated region
        $region57: #{mae_forward.1} parent=11 // pred_check
          %p1191 = pneg %p461
        $region58: #{mae_forward.1} parent=11 // pred_check_branch
          %1193 = sbr.rel (%p1191) target = $region60
        $region59: #{mae_forward.1} parent=11 // pred_region
          _
        $region60: #{mae_forward.1} parent=11 // pred_fallthru
          _
        // Predicated region
        $region61: #{mae_forward.1} parent=11 // pred_check
          %p1194 = pneg %p482
        $region62: #{mae_forward.1} parent=11 // pred_check_branch
          %1196 = sbr.rel (%p1194) target = $region64
        $region63: #{mae_forward.1} parent=11 // pred_region
          _
        $region64: #{mae_forward.1} parent=11 // pred_fallthru
          _
        // Predicated region
        $region65: #{mae_forward.1} parent=11 // pred_check
          %p1197 = pneg %p503
        $region66: #{mae_forward.1} parent=11 // pred_check_branch
          %1199 = sbr.rel (%p1197) target = $region68
        $region67: #{mae_forward.1} parent=11 // pred_region
          _
        $region68: #{mae_forward.1} parent=11 // pred_fallthru
          _
        // Predicated region
        $region69: #{mae_forward.1} parent=11 // pred_check
          %p1200 = pneg %p524
        $region70: #{mae_forward.1} parent=11 // pred_check_branch
          %1202 = sbr.rel (%p1200) target = $region72
        $region71: #{mae_forward.1} parent=11 // pred_region
          _
        $region72: #{mae_forward.1} parent=11 // pred_fallthru
          _
        // Predicated region
        $region73: #{mae_forward.1} parent=11 // pred_check
          %p1203 = pneg %p545
        $region74: #{mae_forward.1} parent=11 // pred_check_branch
          %1205 = sbr.rel (%p1203) target = $region76
        $region75: #{mae_forward.1} parent=11 // pred_region
          _
        $region76: #{mae_forward.1} parent=11 // pred_fallthru
          _
        // Predicated region
        $region77: #{mae_forward.1} parent=11 // pred_check
          %p1206 = pneg %p566
        $region78: #{mae_forward.1} parent=11 // pred_check_branch
          %1208 = sbr.rel (%p1206) target = $region80
        $region79: #{mae_forward.1} parent=11 // pred_region
          _
        $region80: #{mae_forward.1} parent=11 // pred_fallthru
          _
        // Predicated region
        $region81: #{mae_forward.1} parent=11 // pred_check
          %p1209 = pneg %p587
        $region82: #{mae_forward.1} parent=11 // pred_check_branch
          %1211 = sbr.rel (%p1209) target = $region84
        $region83: #{mae_forward.1} parent=11 // pred_region
          _
        $region84: #{mae_forward.1} parent=11 // pred_fallthru
          _
        // Predicated region
        $region85: #{mae_forward.1} parent=11 // pred_check
          %p1212 = pneg %p608
        $region86: #{mae_forward.1} parent=11 // pred_check_branch
          %1214 = sbr.rel (%p1212) target = $region88
        $region87: #{mae_forward.1} parent=11 // pred_region
          _
        $region88: #{mae_forward.1} parent=11 // pred_fallthru
          _
        // Predicated region
        $region89: #{mae_forward.1} parent=11 // pred_check
          %p1215 = pneg %p629
        $region90: #{mae_forward.1} parent=11 // pred_check_branch
          %1217 = sbr.rel (%p1215) target = $region92
        $region91: #{mae_forward.1} parent=11 // pred_region
          _
        $region92: #{mae_forward.1} parent=11 // pred_fallthru
          _
        // Predicated region
        $region93: #{mae_forward.1} parent=11 // pred_check
          %p1218 = pneg %p650
        $region94: #{mae_forward.1} parent=11 // pred_check_branch
          %1220 = sbr.rel (%p1218) target = $region96
        $region95: #{mae_forward.1} parent=11 // pred_region
          _
        $region96: #{mae_forward.1} parent=11 // pred_fallthru
          _
        // Predicated region
        $region97: #{mae_forward.1} parent=11 // pred_check
          %p1221 = pneg %p671
        $region98: #{mae_forward.1} parent=11 // pred_check_branch
          %1223 = sbr.rel (%p1221) target = $region100
        $region99: #{mae_forward.1} parent=11 // pred_region
          _
        $region100: #{mae_forward.1} parent=11 // pred_fallthru
          _
        // Predicated region
        $region101: #{mae_forward.1} parent=11 // pred_check
          %p1224 = pneg %p692
        $region102: #{mae_forward.1} parent=11 // pred_check_branch
          %1226 = sbr.rel (%p1224) target = $region104
        $region103: #{mae_forward.1} parent=11 // pred_region
          _
        $region104: #{mae_forward.1} parent=11 // pred_fallthru
          _
        // Predicated region
        $region105: #{mae_forward.1} parent=11 // pred_check
          %p1227 = pneg %p713
        $region106: #{mae_forward.1} parent=11 // pred_check_branch
          %1229 = sbr.rel (%p1227) target = $region108
        $region107: #{mae_forward.1} parent=11 // pred_region
          _
        $region108: #{mae_forward.1} parent=11 // pred_fallthru
          _
        // Predicated region
        $region109: #{mae_forward.1} parent=11 // pred_check
          %p1230 = pneg %p734
        $region110: #{mae_forward.1} parent=11 // pred_check_branch
          %1232 = sbr.rel (%p1230) target = $region112
        $region111: #{mae_forward.1} parent=11 // pred_region
          _
        $region112: #{mae_forward.1} parent=11 // pred_fallthru
          _
        // Predicated region
        $region113: #{mae_forward.1} parent=11 // pred_check
          %p1233 = pneg %p755
        $region114: #{mae_forward.1} parent=11 // pred_check_branch
          %1235 = sbr.rel (%p1233) target = $region116
        $region115: #{mae_forward.1} parent=11 // pred_region
          _
        $region116: #{mae_forward.1} parent=11 // pred_fallthru
          _
        // Predicated region
        $region117: #{mae_forward.1} parent=11 // pred_check
          %p1236 = pneg %p776
        $region118: #{mae_forward.1} parent=11 // pred_check_branch
          %1238 = sbr.rel (%p1236) target = $region120
        $region119: #{mae_forward.1} parent=11 // pred_region
          _
        $region120: #{mae_forward.1} parent=11 // pred_fallthru
          _
        // Predicated region
        $region121: #{mae_forward.1} parent=11 // pred_check
          %p1239 = pneg %p797
        $region122: #{mae_forward.1} parent=11 // pred_check_branch
          %1241 = sbr.rel (%p1239) target = $region124
        $region123: #{mae_forward.1} parent=11 // pred_region
          _
        $region124: #{mae_forward.1} parent=11 // pred_fallthru
          _
        // Predicated region
        $region125: #{mae_forward.1} parent=11 // pred_check
          %p1242 = pneg %p818
        $region126: #{mae_forward.1} parent=11 // pred_check_branch
          %1244 = sbr.rel (%p1242) target = $region128
        $region127: #{mae_forward.1} parent=11 // pred_region
          _
        $region128: #{mae_forward.1} parent=11 // pred_fallthru
          _
        // Predicated region
        $region129: #{mae_forward.1} parent=11 // pred_check
          %p1245 = pneg %p839
        $region130: #{mae_forward.1} parent=11 // pred_check_branch
          %1247 = sbr.rel (%p1245) target = $region132
        $region131: #{mae_forward.1} parent=11 // pred_region
          _
        $region132: #{mae_forward.1} parent=11 // pred_fallthru
          _
        // Predicated region
        $region133: #{mae_forward.1} parent=11 // pred_check
          %p1248 = pneg %p860
        $region134: #{mae_forward.1} parent=11 // pred_check_branch
          %1250 = sbr.rel (%p1248) target = $region136
        $region135: #{mae_forward.1} parent=11 // pred_region
          _
        $region136: #{mae_forward.1} parent=11 // pred_fallthru
          _
        // Predicated region
        $region137: #{mae_forward.1} parent=11 // pred_check
          %p1251 = pneg %p881
        $region138: #{mae_forward.1} parent=11 // pred_check_branch
          %1253 = sbr.rel (%p1251) target = $region140
        $region139: #{mae_forward.1} parent=11 // pred_region
          _
        $region140: #{mae_forward.1} parent=11 // pred_fallthru
          _
        // Predicated region
        $region141: #{mae_forward.1} parent=11 // pred_check
          %p1254 = pneg %p902
        $region142: #{mae_forward.1} parent=11 // pred_check_branch
          %1256 = sbr.rel (%p1254) target = $region144
        $region143: #{mae_forward.1} parent=11 // pred_region
          _
        $region144: #{mae_forward.1} parent=11 // pred_fallthru
          _
        // Predicated region
        $region145: #{mae_forward.1} parent=11 // pred_check
          %p1257 = pneg %p923
        $region146: #{mae_forward.1} parent=11 // pred_check_branch
          %1259 = sbr.rel (%p1257) target = $region148
        $region147: #{mae_forward.1} parent=11 // pred_region
          _
        $region148: #{mae_forward.1} parent=11 // pred_fallthru
          _
        // Predicated region
        $region149: #{mae_forward.1} parent=11 // pred_check
          %p1260 = pneg %p944
        $region150: #{mae_forward.1} parent=11 // pred_check_branch
          %1262 = sbr.rel (%p1260) target = $region152
        $region151: #{mae_forward.1} parent=11 // pred_region
          _
        $region152: #{mae_forward.1} parent=11 // pred_fallthru
          _
        // Predicated region
        $region153: #{mae_forward.1} parent=11 // pred_check
          %p1263 = pneg %p965
        $region154: #{mae_forward.1} parent=11 // pred_check_branch
          %1265 = sbr.rel (%p1263) target = $region156
        $region155: #{mae_forward.1} parent=11 // pred_region
          _
        $region156: #{mae_forward.1} parent=11 // pred_fallthru
          _
        // Predicated region
        $region157: #{mae_forward.1} parent=11 // pred_check
          %p1266 = pneg %p986
        $region158: #{mae_forward.1} parent=11 // pred_check_branch
          %1268 = sbr.rel (%p1266) target = $region160
        $region159: #{mae_forward.1} parent=11 // pred_region
          _
        $region160: #{mae_forward.1} parent=11 // pred_fallthru
          _
        // Predicated region
        $region161: #{mae_forward.1} parent=11 // pred_check
          %p1269 = pneg %p1007
        $region162: #{mae_forward.1} parent=11 // pred_check_branch
          %1271 = sbr.rel (%p1269) target = $region164
        $region163: #{mae_forward.1} parent=11 // pred_region
          _
        $region164: #{mae_forward.1} parent=11 // pred_fallthru
          _
        // Predicated region
        $region165: #{mae_forward.1} parent=11 // pred_check
          %p1272 = pneg %p1028
        $region166: #{mae_forward.1} parent=11 // pred_check_branch
          %1274 = sbr.rel (%p1272) target = $region168
        $region167: #{mae_forward.1} parent=11 // pred_region
          _
        $region168: #{mae_forward.1} parent=11 // pred_fallthru
          _
        // Predicated region
        $region169: #{mae_forward.1} parent=11 // pred_check
          %p1275 = pneg %p1049
        $region170: #{mae_forward.1} parent=11 // pred_check_branch
          %1277 = sbr.rel (%p1275) target = $region172
        $region171: #{mae_forward.1} parent=11 // pred_region
          _
        $region172: #{mae_forward.1} parent=11 // pred_fallthru
          _
        // Predicated region
        $region173: #{mae_forward.1} parent=11 // pred_check
          %p1278 = pneg %p1070
        $region174: #{mae_forward.1} parent=11 // pred_check_branch
          %1280 = sbr.rel (%p1278) target = $region176
        $region175: #{mae_forward.1} parent=11 // pred_region
          _
        $region176: #{mae_forward.1} parent=11 // pred_fallthru
          _
        // Predicated region
        $region177: #{mae_forward.1} parent=11 // pred_check
          %p1281 = pneg %p1091
        $region178: #{mae_forward.1} parent=11 // pred_check_branch
          %1283 = sbr.rel (%p1281) target = $region180
        $region179: #{mae_forward.1} parent=11 // pred_region
          _
        $region180: #{mae_forward.1} parent=11 // pred_fallthru
          _
      $region12: #{mae_forward.1} parent=5 // pred_fallthru
        _
      %p1284 = scmp.lt.s32.totalorder %s105, 2
      // Predicated region
      $region181: #{mae_forward.1} parent=5 // pred_check
        %p1285 = pneg %p1284
      $region182: #{mae_forward.1} parent=5 // pred_check_branch
        %1287 = sbr.rel (%p1285) target = $region184
      $region183: #{mae_forward.1} parent=5 // pred_region
        // Predicated region
        $region185: #{mae_forward.1} parent=183 // pred_check
          %p1288 = pneg %p125
        $region186: #{mae_forward.1} parent=183 // pred_check_branch
          %1290 = sbr.rel (%p1288) target = $region188
        $region187: #{mae_forward.1} parent=183 // pred_region
          %p1291 = scmp.lt.s32.totalorder %s105, 1
          %s1292 = scalar_select %p1291, %s105, 1
          %s1293 = smul.addr %s1292, 2
          %s1294 = smul.addr %s1293, 8
          %s1295 = scalar_lea.vmem %s1, %s1294
        $region188: #{mae_forward.1} parent=183 // pred_fallthru
          _
        // Predicated region
        $region189: #{mae_forward.1} parent=183 // pred_check
          %p1296 = pneg %p151
        $region190: #{mae_forward.1} parent=183 // pred_check_branch
          %1298 = sbr.rel (%p1296) target = $region192
        $region191: #{mae_forward.1} parent=183 // pred_region
          %p1299 = scmp.lt.s32.totalorder %s105, 1
          %s1300 = scalar_select %p1299, %s105, 1
          %s1301 = smul.addr %s1300, 2
          %s1302 = smul.addr %s1301, 8
          %s1303 = scalar_lea.vmem %s3, %s1302
        $region192: #{mae_forward.1} parent=183 // pred_fallthru
          _
        // Predicated region
        $region193: #{mae_forward.1} parent=183 // pred_check
          %p1304 = pneg %p177
        $region194: #{mae_forward.1} parent=183 // pred_check_branch
          %1306 = sbr.rel (%p1304) target = $region196
        $region195: #{mae_forward.1} parent=183 // pred_region
          %p1307 = scmp.lt.s32.totalorder %s105, 1
          %s1308 = scalar_select %p1307, %s105, 1
          %s1309 = smul.addr %s1308, 3
          %s1310 = smul.addr %s1309, 8
          %s1311 = scalar_lea.vmem %s5, %s1310
        $region196: #{mae_forward.1} parent=183 // pred_fallthru
          _
        // Predicated region
        $region197: #{mae_forward.1} parent=183 // pred_check
          %p1312 = pneg %p203
        $region198: #{mae_forward.1} parent=183 // pred_check_branch
          %1314 = sbr.rel (%p1312) target = $region200
        $region199: #{mae_forward.1} parent=183 // pred_region
          %p1315 = scmp.lt.s32.totalorder %s105, 1
          %s1316 = scalar_select %p1315, %s105, 1
          %s1317 = smul.addr %s1316, 3
          %s1318 = smul.addr %s1317, 8
          %s1319 = scalar_lea.vmem %s7, %s1318
        $region200: #{mae_forward.1} parent=183 // pred_fallthru
          _
      $region184: #{mae_forward.1} parent=5 // pred_fallthru
        _
      %p1320 = scmp.le.s32.totalorder 1, %s105
      %p1321 = scmp.lt.s32.totalorder %s105, 3
      %p1322 = pnand %p1320, %p1321
      %p1323 = pneg %p1322
      // Predicated region
      $region201: #{mae_forward.1} parent=5 // pred_check
        _
      $region202: #{mae_forward.1} parent=5 // pred_check_branch
        %1325 = sbr.rel (%p1322) target = $region204
      $region203: #{mae_forward.1} parent=5 // pred_region
        %s1326 = ssub.s32 %s105, 1
        %p1327 = scmp.lt.s32.totalorder %s110, 1
        %s1328 = scalar_select %p1327, %s110, 1
        %s1329 = smul.addr %s1328, 2
        %s1330 = smul.addr %s1329, 8
        %s1331 = scalar_lea.vmem %s1, %s1330
        %p1332 = pneg %p131
        %p1333 = pneg %p128
        %p1334 = scmp.lt.s32.totalorder %s110, 1
        %s1335 = scalar_select %p1334, %s110, 1
        %s1336 = smul.addr %s1335, 2
        %s1337 = smul.addr %s1336, 8
        %s1338 = scalar_lea.vmem %s3, %s1337
        %p1339 = pneg %p157
        %p1340 = pneg %p154
        %p1341 = scmp.lt.s32.totalorder %s110, 1
        %s1342 = scalar_select %p1341, %s110, 1
        %s1343 = smul.addr %s1342, 3
        %s1344 = smul.addr %s1343, 8
        %s1345 = scalar_lea.vmem %s5, %s1344
        %p1346 = pneg %p183
        %p1347 = pneg %p180
        %p1348 = scmp.lt.s32.totalorder %s110, 1
        %s1349 = scalar_select %p1348, %s110, 1
        %s1350 = smul.addr %s1349, 3
        %s1351 = smul.addr %s1350, 8
        %s1352 = scalar_lea.vmem %s7, %s1351
        %p1353 = pneg %p209
        %p1354 = pneg %p206
        %p1355 = pneg %p230
        %p1356 = pneg %p227
        %p1357 = pneg %p251
        %p1358 = pneg %p248
        %p1359 = pneg %p272
        %p1360 = pneg %p269
        %p1361 = pneg %p293
        %p1362 = pneg %p290
        %p1363 = pneg %p314
        %p1364 = pneg %p311
        %p1365 = pneg %p335
        %p1366 = pneg %p332
        %p1367 = pneg %p356
        %p1368 = pneg %p353
        %p1369 = pneg %p377
        %p1370 = pneg %p374
        %p1371 = pneg %p398
        %p1372 = pneg %p395
        %p1373 = pneg %p419
        %p1374 = pneg %p416
        %p1375 = pneg %p440
        %p1376 = pneg %p437
        %p1377 = pneg %p461
        %p1378 = pneg %p458
        %p1379 = pneg %p482
        %p1380 = pneg %p479
        %p1381 = pneg %p503
        %p1382 = pneg %p500
        %p1383 = pneg %p524
        %p1384 = pneg %p521
        %p1385 = pneg %p545
        %p1386 = pneg %p542
        %p1387 = pneg %p566
        %p1388 = pneg %p563
        %p1389 = pneg %p587
        %p1390 = pneg %p584
        %p1391 = pneg %p608
        %p1392 = pneg %p605
        %p1393 = pneg %p629
        %p1394 = pneg %p626
        %p1395 = pneg %p650
        %p1396 = pneg %p647
        %p1397 = pneg %p671
        %p1398 = pneg %p668
        %p1399 = pneg %p692
        %p1400 = pneg %p689
        %p1401 = pneg %p713
        %p1402 = pneg %p710
        %p1403 = pneg %p734
        %p1404 = pneg %p731
        %p1405 = pneg %p755
        %p1406 = pneg %p752
        %p1407 = pneg %p776
        %p1408 = pneg %p773
        %p1409 = pneg %p797
        %p1410 = pneg %p794
        %p1411 = pneg %p818
        %p1412 = pneg %p815
        %p1413 = pneg %p839
        %p1414 = pneg %p836
        %p1415 = pneg %p860
        %p1416 = pneg %p857
        %p1417 = pneg %p881
        %p1418 = pneg %p878
        %p1419 = pneg %p902
        %p1420 = pneg %p899
        %p1421 = pneg %p923
        %p1422 = pneg %p920
        %p1423 = pneg %p944
        %p1424 = pneg %p941
        %p1425 = pneg %p965
        %p1426 = pneg %p962
        %p1427 = pneg %p986
        %p1428 = pneg %p983
        %p1429 = pneg %p1007
        %p1430 = pneg %p1004
        %p1431 = pneg %p1028
        %p1432 = pneg %p1025
        %p1433 = pneg %p1049
        %p1434 = pneg %p1046
        %p1435 = pneg %p1070
        %p1436 = pneg %p1067
        %p1437 = pneg %p1091
        %p1438 = pneg %p1088
        %p1439 = pneg %p1117
        %p1440 = pneg %p1114
        %s1441 = sand.u32 %s1104, 1
        %s1442 = scalar_lea.sflag [#allocation3], %s1441
        %s1443 = sand.u32 %s1104, 1
        %s1444 = smul.addr %s1443, 16
        %s1445 = scalar_lea.vmem [#allocation2], %s1444
        %p1446 = pneg %p1143
        %p1447 = pneg %p1140
        %p1448 = scmp.lt.s32.totalorder %s110, 1
        %s1449 = scalar_select %p1448, %s110, 1
        %s1450 = smul.addr %s1449, 3
        %s1451 = smul.addr %s1450, 8
        %s1452 = scalar_lea.vmem %s95, %s1451
        %p1453 = scmp.lt.s32.totalorder %s110, 1
        %s1454 = scalar_select %p1453, %s110, 1
        %s1455 = smul.addr %s1454, 2
        %s1456 = smul.addr %s1455, 8
        %s1457 = scalar_lea.vmem %s1, %s1456
        %p1458 = scmp.lt.s32.totalorder %s110, 1
        %s1459 = scalar_select %p1458, %s110, 1
        %s1460 = smul.addr %s1459, 2
        %s1461 = smul.addr %s1460, 8
        %s1462 = scalar_lea.vmem %s3, %s1461
        %p1463 = scmp.lt.s32.totalorder %s110, 1
        %s1464 = scalar_select %p1463, %s110, 1
        %s1465 = smul.addr %s1464, 3
        %s1466 = smul.addr %s1465, 8
        %s1467 = scalar_lea.vmem %s5, %s1466
        %p1468 = scmp.lt.s32.totalorder %s110, 1
        %s1469 = scalar_select %p1468, %s110, 1
        %s1470 = smul.addr %s1469, 3
        %s1471 = smul.addr %s1470, 8
        %s1472 = scalar_lea.vmem %s7, %s1471
        %p1473 = scmp.lt.s32.totalorder %s110, 1
        %s1474 = scalar_select %p1473, %s110, 1
        %s1475 = smul.addr %s1474, 3
        %s1476 = smul.addr %s1475, 8
        %s1477 = scalar_lea.vmem %s95, %s1476
        %v1478 = vld [vmem:[%s1457] sm:$0xff]
        %v1479 = vld [vmem:[%s1457 + $0x8] sm:$0xff]
        %v1480 = vld [vmem:[%s11] sm:$0xff]
        %v1481 = vld [vmem:[%s11 + $0x8] sm:$0xff]
        %v1482 = vld [vmem:[%s11 + $0x10] sm:$0xff]
        %v1483 = vld [vmem:[%s11 + $0x18] sm:$0xff]
        %v1484 = vld [vmem:[%s11 + $0x20] sm:$0xff]
        %v1485 = vld [vmem:[%s11 + $0x28] sm:$0xff]
        %v1486 = vld [vmem:[%s13] sm:$0x1]
        %v1488 = vlaneseq
        %v1489 = vshrl.u32 %v1488, 7
        %v1490 = vsub.s32 0, %v1489
        %v1491 = vrot.slane %v1486, %v1490
        %vm1493 = vcmask 392192
        %v1495 = vsel %vm1493, %v1478, 0
        %v1498 = vsel %vm1493, %v1479, 0
        %1500 = vmatprep.subr.mxu0 0.0
        %1501 = vmatpush1.msra.mxu0 0.0
        %1502 = vmatprep.subr.mxu0 0.0
        %1503 = vmatpush1.msra.mxu0 0.0
        %1504 = vmatprep.subr.mxu0 0.0
        %1505 = vmatpush1.msra.mxu0 0.0
        %1506 = vmatprep.subr.mxu0 0.0
        %1507 = vmatpush1.msra.mxu0 0.0
        %1508 = vmatprep.subr.mxu0 0.0
        %1509 = vmatpush1.msra.mxu0 0.0
        %1510 = vmatprep.subr.mxu0 0.0
        %1511 = vmatpush1.msra.mxu0 0.0
        %1512 = vmatprep.subr.mxu0 0.0
        %1513 = vmatpush1.msra.mxu0 0.0
        %1514 = vmatprep.subr.mxu0 0.0
        %1515 = vmatpush1.msra.mxu0 0.0
        %1516 = vmatprep.subr.mxu0 0.0
        %1517 = vmatpush1.msra.mxu0 0.0
        %1518 = vmatprep.subr.mxu0 0.0
        %1519 = vmatpush1.msra.mxu0 0.0
        %1520 = vmatprep.subr.mxu0 0.0
        %1521 = vmatpush1.msra.mxu0 %v1485
        %1522 = vmatprep.subr.mxu0 0.0
        %1523 = vmatpush1.msra.mxu0 %v1484
        %1524 = vmatprep.subr.mxu0 0.0
        %1525 = vmatpush1.msra.mxu0 %v1483
        %1526 = vmatprep.subr.mxu0 0.0
        %1527 = vmatpush1.msra.mxu0 %v1482
        %1528 = vmatprep.subr.mxu0 0.0
        %1529 = vmatpush1.msra.mxu0 %v1481
        %1530 = vmatprep.subr.mxu0 0.0
        %1531 = vmatpush1.msra.mxu0 %v1480
        %1532 = vmatprep.subr.mxu0 0.0
        %1533 = vmatpush2.msra.mxu0 0.0
        %1534 = vmatprep.subr.mxu0 0.0
        %1535 = vmatpush2.msra.mxu0 0.0
        %1536 = vmatprep.subr.mxu0 0.0
        %1537 = vmatpush2.msra.mxu0 0.0
        %1538 = vmatprep.subr.mxu0 0.0
        %1539 = vmatpush2.msra.mxu0 0.0
        %1540 = vmatprep.subr.mxu0 0.0
        %1541 = vmatpush2.msra.mxu0 0.0
        %1542 = vmatprep.subr.mxu0 0.0
        %1543 = vmatpush2.msra.mxu0 0.0
        %1544 = vmatprep.subr.mxu0 0.0
        %1545 = vmatpush2.msra.mxu0 0.0
        %1546 = vmatprep.subr.mxu0 0.0
        %1547 = vmatpush2.msra.mxu0 0.0
        %1548 = vmatprep.subr.mxu0 0.0
        %1549 = vmatpush2.msra.mxu0 0.0
        %1550 = vmatprep.subr.mxu0 0.0
        %1551 = vmatpush2.msra.mxu0 0.0
        %1552 = vmatprep.subr.mxu0 0.0
        %1553 = vmatpush2.msra.mxu0 0.0
        %1554 = vmatprep.subr.mxu0 0.0
        %1555 = vmatpush2.msra.mxu0 0.0
        %1556 = vmatprep.subr.mxu0 0.0
        %1557 = vmatpush2.msra.mxu0 0.0
        %1558 = vmatprep.subr.mxu0 0.0
        %1559 = vmatpush2.msra.mxu0 0.0
        %1560 = vmatprep.subr.mxu0 0.0
        %1561 = vmatpush2.msra.mxu0 0.0
        %1562 = vmatprep.subr.mxu0 0.0
        %1563 = vmatpush2.msra.mxu0 0.0
        %1564 = vmatprep.mubr.f32.mxu0 0.0
        %1565 = vmatmul.mubr.f32.gmra.mxu0 %v1495
        %v1566 = vpop.f32.mrf.mxu0
        %v1567 = vadd.f32 %v1491, %v1566
        %v1568 = vpop.f32.mrf.mxu0
        %1569 = vmatprep.mubr.f32.mxu0 0.0
        %1570 = vmatmul.mubr.f32.gmra.mxu0 %v1498
        %v1571 = vpop.f32.mrf.mxu0
        %v1572 = vadd.f32 %v1491, %v1571
        %v1573 = vpop.f32.mrf.mxu0
        %1574 = vdwg.mxu0
        %vm1575 = vcmask 261120
        %1576 = vst.msk [vmem:[%s1445] sm:$0xff] %vm1575, %v1567
        %1577 = vst.msk [vmem:[%s1445 + $0x8] sm:$0xff] %vm1575, %v1572
        %v1578 = vld [vmem:[%s19] sm:$0xff]
        %v1579 = vld [vmem:[%s19 + $0x8] sm:$0xff]
        %v1580 = vadd.f32 %v1567, %v1578
        %v1581 = vadd.f32 %v1572, %v1579
        %v1582 = vld [vmem:[%s15] sm:$0x1]
        %v1583 = vld [vmem:[%s17] sm:$0x1]
        %v1584 = vadd.f32 %v1582, %v1583
        %v1585 = vld [vmem:[%s1462] sm:$0xff]
        %v1586 = vld [vmem:[%s1462 + $0x8] sm:$0x1f]
        %v1587 = vld [vmem:[%s9] sm:$0xff]
        %v1588 = vld [vmem:[%s9 + $0x8] sm:$0x1f]
        %1590 = vset.pattern.permute.xlu0 0
        %1591 = vperm.xlu0 %1590, %v1587
        %v1592 = vpop.permute.xlu0 %1591
        %1595 = vset.pattern.permute.xlu0 0
        %1596 = vperm.xlu0 %1595, %v1588
        %v1597 = vpop.permute.xlu0 %1596
        %v1600 = vlaneseq
        %v1601 = vshrl.u32 %v1600, 7
        %v1602 = vsub.s32 0, %v1601
        %v1603 = vrot.slane %v1584, %v1602
        %v1605 = vmul.f32 %v1592, %v1603
        %v1606 = vmul.f32 %v1597, %v1603
        %vm1607 = vcmask 130048
        %v1609 = vsel %vm1607, %v1585, 0
        %v1612 = vsel %vm1607, %v1586, 0
        %1614 = vmatprep.subr.mxu0 0.0
        %1615 = vmatpush1.msra.mxu0 0.0
        %1616 = vmatprep.subr.mxu0 0.0
        %1617 = vmatpush1.msra.mxu0 0.0
        %1618 = vmatprep.subr.mxu0 0.0
        %1619 = vmatpush1.msra.mxu0 0.0
        %1620 = vmatprep.subr.mxu0 0.0
        %1621 = vmatpush1.msra.mxu0 0.0
        %1622 = vmatprep.subr.mxu0 0.0
        %1623 = vmatpush1.msra.mxu0 0.0
        %1624 = vmatprep.subr.mxu0 0.0
        %1625 = vmatpush1.msra.mxu0 0.0
        %1626 = vmatprep.subr.mxu0 0.0
        %1627 = vmatpush1.msra.mxu0 0.0
        %1628 = vmatprep.subr.mxu0 0.0
        %1629 = vmatpush1.msra.mxu0 0.0
        %1630 = vmatprep.subr.mxu0 0.0
        %1631 = vmatpush1.msra.mxu0 0.0
        %1632 = vmatprep.subr.mxu0 0.0
        %1633 = vmatpush1.msra.mxu0 0.0
        %1634 = vmatprep.subr.mxu0 0.0
        %1635 = vmatpush1.msra.mxu0 0.0
        %1636 = vmatprep.subr.mxu0 0.0
        %1637 = vmatpush1.msra.mxu0 0.0
        %1638 = vmatprep.subr.mxu0 0.0
        %1639 = vmatpush1.msra.mxu0 0.0
        %1640 = vmatprep.subr.mxu0 0.0
        %1641 = vmatpush1.msra.mxu0 0.0
        %1642 = vmatprep.subr.mxu0 0.0
        %1643 = vmatpush1.msra.mxu0 %v1581
        %1644 = vmatprep.subr.mxu0 0.0
        %1645 = vmatpush1.msra.mxu0 %v1580
        %1646 = vmatprep.subr.mxu0 0.0
        %1647 = vmatpush2.msra.mxu0 0.0
        %1648 = vmatprep.subr.mxu0 0.0
        %1649 = vmatpush2.msra.mxu0 0.0
        %1650 = vmatprep.subr.mxu0 0.0
        %1651 = vmatpush2.msra.mxu0 0.0
        %1652 = vmatprep.subr.mxu0 0.0
        %1653 = vmatpush2.msra.mxu0 0.0
        %1654 = vmatprep.subr.mxu0 0.0
        %1655 = vmatpush2.msra.mxu0 0.0
        %1656 = vmatprep.subr.mxu0 0.0
        %1657 = vmatpush2.msra.mxu0 0.0
        %1658 = vmatprep.subr.mxu0 0.0
        %1659 = vmatpush2.msra.mxu0 0.0
        %1660 = vmatprep.subr.mxu0 0.0
        %1661 = vmatpush2.msra.mxu0 0.0
        %1662 = vmatprep.subr.mxu0 0.0
        %1663 = vmatpush2.msra.mxu0 0.0
        %1664 = vmatprep.subr.mxu0 0.0
        %1665 = vmatpush2.msra.mxu0 0.0
        %1666 = vmatprep.subr.mxu0 0.0
        %1667 = vmatpush2.msra.mxu0 0.0
        %1668 = vmatprep.subr.mxu0 0.0
        %1669 = vmatpush2.msra.mxu0 0.0
        %1670 = vmatprep.subr.mxu0 0.0
        %1671 = vmatpush2.msra.mxu0 0.0
        %1672 = vmatprep.subr.mxu0 0.0
        %1673 = vmatpush2.msra.mxu0 0.0
        %1674 = vmatprep.subr.mxu0 0.0
        %1675 = vmatpush2.msra.mxu0 0.0
        %1676 = vmatprep.subr.mxu0 0.0
        %1677 = vmatpush2.msra.mxu0 0.0
        %1678 = vmatprep.mubr.f32.mxu0 0.0
        %1679 = vmatmul.mubr.f32.gmra.mxu0 %v1609
        %v1680 = vpop.f32.mrf.mxu0
        %v1681 = vadd.f32 %v1605, %v1680
        %v1682 = vpop.f32.mrf.mxu0
        %1683 = vmatprep.mubr.f32.mxu0 0.0
        %1684 = vmatmul.mubr.f32.gmra.mxu0 %v1612
        %v1685 = vpop.f32.mrf.mxu0
        %v1686 = vadd.f32 %v1606, %v1685
        %v1687 = vpop.f32.mrf.mxu0
        %1688 = vdwg.mxu0
        %v1689 = vld [vmem:[%s21] sm:$0x1]
        %v1690 = vld [vmem:[%s23] sm:$0x1]
        %v1691 = vld [vmem:[%s25] sm:$0xff]
        %v1692 = vld [vmem:[%s25 + $0x8] sm:$0xff]
        %v1693 = vld [vmem:[%s25 + $0x10] sm:$0xff]
        %v1694 = vld [vmem:[%s25 + $0x18] sm:$0xff]
        %v1695 = vld [vmem:[%s25 + $0x20] sm:$0xff]
        %v1696 = vld [vmem:[%s25 + $0x28] sm:$0xff]
        %v1697 = vld [vmem:[%s25 + $0x30] sm:$0xff]
        %v1698 = vld [vmem:[%s25 + $0x38] sm:$0xff]
        %v1699 = vld [vmem:[%s25 + $0x40] sm:$0xff]
        %v1700 = vld [vmem:[%s25 + $0x48] sm:$0xff]
        %v1701 = vld [vmem:[%s25 + $0x50] sm:$0xff]
        %v1702 = vld [vmem:[%s25 + $0x58] sm:$0xff]
        %v1703 = vld [vmem:[%s25 + $0x60] sm:$0xff]
        %v1704 = vld [vmem:[%s25 + $0x68] sm:$0xff]
        %v1705 = vld [vmem:[%s25 + $0x70] sm:$0xff]
        %v1706 = vld [vmem:[%s25 + $0x78] sm:$0xff]
        %v1707 = vld [vmem:[%s27] sm:$0xff]
        %v1708 = vld [vmem:[%s27 + $0x8] sm:$0xff]
        %v1709 = vld [vmem:[%s27 + $0x10] sm:$0xff]
        %v1710 = vld [vmem:[%s27 + $0x18] sm:$0xff]
        %v1711 = vld [vmem:[%s27 + $0x20] sm:$0xff]
        %v1712 = vld [vmem:[%s27 + $0x28] sm:$0xff]
        %v1713 = vld [vmem:[%s27 + $0x30] sm:$0xff]
        %v1714 = vld [vmem:[%s27 + $0x38] sm:$0xff]
        %v1715 = vld [vmem:[%s27 + $0x40] sm:$0xff]
        %v1716 = vld [vmem:[%s27 + $0x48] sm:$0xff]
        %v1717 = vld [vmem:[%s27 + $0x50] sm:$0xff]
        %v1718 = vld [vmem:[%s27 + $0x58] sm:$0xff]
        %v1719 = vld [vmem:[%s27 + $0x60] sm:$0xff]
        %v1720 = vld [vmem:[%s27 + $0x68] sm:$0xff]
        %v1721 = vld [vmem:[%s27 + $0x70] sm:$0xff]
        %v1722 = vld [vmem:[%s27 + $0x78] sm:$0xff]
        %v1723 = vld [vmem:[%s29] sm:$0xff]
        %v1724 = vld [vmem:[%s29 + $0x8] sm:$0xff]
        %v1725 = vld [vmem:[%s29 + $0x10] sm:$0xff]
        %v1726 = vld [vmem:[%s29 + $0x18] sm:$0xff]
        %v1727 = vld [vmem:[%s29 + $0x20] sm:$0xff]
        %v1728 = vld [vmem:[%s29 + $0x28] sm:$0xff]
        %v1729 = vld [vmem:[%s29 + $0x30] sm:$0xff]
        %v1730 = vld [vmem:[%s29 + $0x38] sm:$0xff]
        %v1731 = vld [vmem:[%s29 + $0x40] sm:$0xff]
        %v1732 = vld [vmem:[%s29 + $0x48] sm:$0xff]
        %v1733 = vld [vmem:[%s29 + $0x50] sm:$0xff]
        %v1734 = vld [vmem:[%s29 + $0x58] sm:$0xff]
        %v1735 = vld [vmem:[%s29 + $0x60] sm:$0xff]
        %v1736 = vld [vmem:[%s29 + $0x68] sm:$0xff]
        %v1737 = vld [vmem:[%s29 + $0x70] sm:$0xff]
        %v1738 = vld [vmem:[%s29 + $0x78] sm:$0xff]
        %v1739 = vld [vmem:[%s31] sm:$0xff]
        %v1740 = vld [vmem:[%s31 + $0x8] sm:$0xff]
        %v1741 = vld [vmem:[%s31 + $0x10] sm:$0xff]
        %v1742 = vld [vmem:[%s31 + $0x18] sm:$0xff]
        %v1743 = vld [vmem:[%s33] sm:$0x1]
        %v1744 = vld [vmem:[%s35] sm:$0x1]
        %v1745 = vld [vmem:[%s37] sm:$0x1]
        %v1746 = vld [vmem:[%s39] sm:$0xff]
        %v1747 = vld [vmem:[%s39 + $0x8] sm:$0xff]
        %v1748 = vld [vmem:[%s39 + $0x10] sm:$0xff]
        %v1749 = vld [vmem:[%s39 + $0x18] sm:$0xff]
        %v1750 = vld [vmem:[%s41] sm:$0x1]
        %v1751 = vld [vmem:[%s43] sm:$0xff]
        %v1752 = vld [vmem:[%s43 + $0x8] sm:$0xff]
        %v1753 = vld [vmem:[%s43 + $0x10] sm:$0xff]
        %v1754 = vld [vmem:[%s43 + $0x18] sm:$0xff]
        %v1755 = vld [vmem:[%s43 + $0x20] sm:$0xff]
        %v1756 = vld [vmem:[%s43 + $0x28] sm:$0xff]
        %v1757 = vld [vmem:[%s43 + $0x30] sm:$0xff]
        %v1758 = vld [vmem:[%s43 + $0x38] sm:$0xff]
        %v1759 = vld [vmem:[%s43 + $0x40] sm:$0xff]
        %v1760 = vld [vmem:[%s43 + $0x48] sm:$0xff]
        %v1761 = vld [vmem:[%s43 + $0x50] sm:$0xff]
        %v1762 = vld [vmem:[%s43 + $0x58] sm:$0xff]
        %v1763 = vld [vmem:[%s43 + $0x60] sm:$0xff]
        %v1764 = vld [vmem:[%s43 + $0x68] sm:$0xff]
        %v1765 = vld [vmem:[%s43 + $0x70] sm:$0xff]
        %v1766 = vld [vmem:[%s43 + $0x78] sm:$0xff]
        %v1767 = vld [vmem:[%s45] sm:$0x1]
        %v1768 = vsel %vm1575, %v1681, 0.0
        %1769 = vadd.xlane.f32.xlu0 %v1768
        %v1770 = vpop.xlane.xlu0 %1769
        %vm1771 = vcmask 258048
        %v1772 = vsel %vm1771, %v1686, 0.0
        %1773 = vadd.xlane.f32.xlu0 %v1772
        %v1774 = vpop.xlane.xlu0 %1773
        %v1775 = vrcp.pop 32.0
        %v1776 = vmul.f32 %v1770, %v1775
        %v1777 = vmul.f32 %v1774, %v1775
        %v1778 = vsub.f32 %v1681, %v1776
        %v1779 = vsub.f32 %v1686, %v1777
        %v1780 = vmul.f32 %v1778, %v1778
        %v1781 = vmul.f32 %v1779, %v1779
        %v1782 = vsel %vm1575, %v1780, 0.0
        %1783 = vadd.xlane.f32.xlu0 %v1782
        %v1784 = vpop.xlane.xlu0 %1783
        %v1785 = vsel %vm1771, %v1781, 0.0
        %1786 = vadd.xlane.f32.xlu0 %v1785
        %v1787 = vpop.xlane.xlu0 %1786
        %v1788 = vmul.f32 %v1784, %v1775
        %v1789 = vmul.f32 %v1787, %v1775
        %v1790 = vadd.f32 %v1788, 1e-06
        %v1791 = vadd.f32 %v1789, 1e-06
        %v1792 = vrsqrt.pop %v1790
        %v1793 = vrsqrt.pop %v1791
        %v1794 = vmul.f32 %v1778, %v1792
        %v1795 = vmul.f32 %v1779, %v1793
        %v1797 = vlaneseq
        %v1798 = vshrl.u32 %v1797, 7
        %v1799 = vsub.s32 0, %v1798
        %v1800 = vrot.slane %v1689, %v1799
        %v1802 = vmul.f32 %v1794, %v1800
        %v1803 = vmul.f32 %v1795, %v1800
        %v1805 = vlaneseq
        %v1806 = vshrl.u32 %v1805, 7
        %v1807 = vsub.s32 0, %v1806
        %v1808 = vrot.slane %v1690, %v1807
        %v1810 = vadd.f32 %v1802, %v1808
        %v1811 = vadd.f32 %v1803, %v1808
        %v1813 = vsel %vm1575, %v1810, 0
        %v1816 = vsel %vm1575, %v1811, 0
        %1818 = vmatprep.subr.mxu0 0.0
        %1819 = vmatpush1.msra.mxu0 0.0
        %1820 = vmatprep.subr.mxu0 0.0
        %1821 = vmatpush1.msra.mxu0 0.0
        %1822 = vmatprep.subr.mxu0 0.0
        %1823 = vmatpush1.msra.mxu0 0.0
        %1824 = vmatprep.subr.mxu0 0.0
        %1825 = vmatpush1.msra.mxu0 0.0
        %1826 = vmatprep.subr.mxu0 0.0
        %1827 = vmatpush1.msra.mxu0 0.0
        %1828 = vmatprep.subr.mxu0 0.0
        %1829 = vmatpush1.msra.mxu0 0.0
        %1830 = vmatprep.subr.mxu0 0.0
        %1831 = vmatpush1.msra.mxu0 0.0
        %1832 = vmatprep.subr.mxu0 0.0
        %1833 = vmatpush1.msra.mxu0 0.0
        %1834 = vmatprep.subr.mxu0 0.0
        %1835 = vmatpush1.msra.mxu0 0.0
        %1836 = vmatprep.subr.mxu0 0.0
        %1837 = vmatpush1.msra.mxu0 0.0
        %1838 = vmatprep.subr.mxu0 0.0
        %1839 = vmatpush1.msra.mxu0 0.0
        %1840 = vmatprep.subr.mxu0 0.0
        %1841 = vmatpush1.msra.mxu0 0.0
        %1842 = vmatprep.subr.mxu0 0.0
        %1843 = vmatpush1.msra.mxu0 %v1694
        %1844 = vmatprep.subr.mxu0 0.0
        %1845 = vmatpush1.msra.mxu0 %v1693
        %1846 = vmatprep.subr.mxu0 0.0
        %1847 = vmatpush1.msra.mxu0 %v1692
        %1848 = vmatprep.subr.mxu0 0.0
        %1849 = vmatpush1.msra.mxu0 %v1691
        %1850 = vmatprep.subr.mxu0 0.0
        %1851 = vmatpush2.msra.mxu0 0.0
        %1852 = vmatprep.subr.mxu0 0.0
        %1853 = vmatpush2.msra.mxu0 0.0
        %1854 = vmatprep.subr.mxu0 0.0
        %1855 = vmatpush2.msra.mxu0 0.0
        %1856 = vmatprep.subr.mxu0 0.0
        %1857 = vmatpush2.msra.mxu0 0.0
        %1858 = vmatprep.subr.mxu0 0.0
        %1859 = vmatpush2.msra.mxu0 0.0
        %1860 = vmatprep.subr.mxu0 0.0
        %1861 = vmatpush2.msra.mxu0 0.0
        %1862 = vmatprep.subr.mxu0 0.0
        %1863 = vmatpush2.msra.mxu0 0.0
        %1864 = vmatprep.subr.mxu0 0.0
        %1865 = vmatpush2.msra.mxu0 0.0
        %1866 = vmatprep.subr.mxu0 0.0
        %1867 = vmatpush2.msra.mxu0 0.0
        %1868 = vmatprep.subr.mxu0 0.0
        %1869 = vmatpush2.msra.mxu0 0.0
        %1870 = vmatprep.subr.mxu0 0.0
        %1871 = vmatpush2.msra.mxu0 0.0
        %1872 = vmatprep.subr.mxu0 0.0
        %1873 = vmatpush2.msra.mxu0 0.0
        %1874 = vmatprep.subr.mxu0 0.0
        %1875 = vmatpush2.msra.mxu0 0.0
        %1876 = vmatprep.subr.mxu0 0.0
        %1877 = vmatpush2.msra.mxu0 0.0
        %1878 = vmatprep.subr.mxu0 0.0
        %1879 = vmatpush2.msra.mxu0 0.0
        %1880 = vmatprep.subr.mxu0 0.0
        %1881 = vmatpush2.msra.mxu0 0.0
        %1882 = vmatprep.mubr.f32.mxu0 0.0
        %1883 = vmatmul.mubr.f32.gmra.mxu0 %v1813
        %v1884 = vpop.f32.mrf.mxu0
        %v1885 = vadd.f32 0.0, %v1884
        %v1886 = vpop.f32.mrf.mxu0
        %1887 = vmatprep.mubr.f32.mxu0 0.0
        %1888 = vmatmul.mubr.f32.gmra.mxu0 %v1816
        %v1889 = vpop.f32.mrf.mxu0
        %v1890 = vadd.f32 0.0, %v1889
        %v1891 = vpop.f32.mrf.mxu0
        %1892 = vdwg.mxu0
        %1893 = vmatprep.subr.mxu0 0.0
        %1894 = vmatpush1.msra.mxu0 0.0
        %1895 = vmatprep.subr.mxu0 0.0
        %1896 = vmatpush1.msra.mxu0 0.0
        %1897 = vmatprep.subr.mxu0 0.0
        %1898 = vmatpush1.msra.mxu0 0.0
        %1899 = vmatprep.subr.mxu0 0.0
        %1900 = vmatpush1.msra.mxu0 0.0
        %1901 = vmatprep.subr.mxu0 0.0
        %1902 = vmatpush1.msra.mxu0 0.0
        %1903 = vmatprep.subr.mxu0 0.0
        %1904 = vmatpush1.msra.mxu0 0.0
        %1905 = vmatprep.subr.mxu0 0.0
        %1906 = vmatpush1.msra.mxu0 0.0
        %1907 = vmatprep.subr.mxu0 0.0
        %1908 = vmatpush1.msra.mxu0 0.0
        %1909 = vmatprep.subr.mxu0 0.0
        %1910 = vmatpush1.msra.mxu0 0.0
        %1911 = vmatprep.subr.mxu0 0.0
        %1912 = vmatpush1.msra.mxu0 0.0
        %1913 = vmatprep.subr.mxu0 0.0
        %1914 = vmatpush1.msra.mxu0 0.0
        %1915 = vmatprep.subr.mxu0 0.0
        %1916 = vmatpush1.msra.mxu0 0.0
        %1917 = vmatprep.subr.mxu0 0.0
        %1918 = vmatpush1.msra.mxu0 %v1698
        %1919 = vmatprep.subr.mxu0 0.0
        %1920 = vmatpush1.msra.mxu0 %v1697
        %1921 = vmatprep.subr.mxu0 0.0
        %1922 = vmatpush1.msra.mxu0 %v1696
        %1923 = vmatprep.subr.mxu0 0.0
        %1924 = vmatpush1.msra.mxu0 %v1695
        %1925 = vmatprep.subr.mxu0 0.0
        %1926 = vmatpush2.msra.mxu0 0.0
        %1927 = vmatprep.subr.mxu0 0.0
        %1928 = vmatpush2.msra.mxu0 0.0
        %1929 = vmatprep.subr.mxu0 0.0
        %1930 = vmatpush2.msra.mxu0 0.0
        %1931 = vmatprep.subr.mxu0 0.0
        %1932 = vmatpush2.msra.mxu0 0.0
        %1933 = vmatprep.subr.mxu0 0.0
        %1934 = vmatpush2.msra.mxu0 0.0
        %1935 = vmatprep.subr.mxu0 0.0
        %1936 = vmatpush2.msra.mxu0 0.0
        %1937 = vmatprep.subr.mxu0 0.0
        %1938 = vmatpush2.msra.mxu0 0.0
        %1939 = vmatprep.subr.mxu0 0.0
        %1940 = vmatpush2.msra.mxu0 0.0
        %1941 = vmatprep.subr.mxu0 0.0
        %1942 = vmatpush2.msra.mxu0 0.0
        %1943 = vmatprep.subr.mxu0 0.0
        %1944 = vmatpush2.msra.mxu0 0.0
        %1945 = vmatprep.subr.mxu0 0.0
        %1946 = vmatpush2.msra.mxu0 0.0
        %1947 = vmatprep.subr.mxu0 0.0
        %1948 = vmatpush2.msra.mxu0 0.0
        %1949 = vmatprep.subr.mxu0 0.0
        %1950 = vmatpush2.msra.mxu0 0.0
        %1951 = vmatprep.subr.mxu0 0.0
        %1952 = vmatpush2.msra.mxu0 0.0
        %1953 = vmatprep.subr.mxu0 0.0
        %1954 = vmatpush2.msra.mxu0 0.0
        %1955 = vmatprep.subr.mxu0 0.0
        %1956 = vmatpush2.msra.mxu0 0.0
        %1957 = vmatprep.mubr.f32.mxu0 0.0
        %1958 = vmatmul.mubr.f32.gmra.mxu0 %v1813
        %v1959 = vpop.f32.mrf.mxu0
        %v1960 = vadd.f32 0.0, %v1959
        %v1961 = vpop.f32.mrf.mxu0
        %1962 = vmatprep.mubr.f32.mxu0 0.0
        %1963 = vmatmul.mubr.f32.gmra.mxu0 %v1816
        %v1964 = vpop.f32.mrf.mxu0
        %v1965 = vadd.f32 0.0, %v1964
        %v1966 = vpop.f32.mrf.mxu0
        %1967 = vdwg.mxu0
        %1968 = vmatprep.subr.mxu0 0.0
        %1969 = vmatpush1.msra.mxu0 0.0
        %1970 = vmatprep.subr.mxu0 0.0
        %1971 = vmatpush1.msra.mxu0 0.0
        %1972 = vmatprep.subr.mxu0 0.0
        %1973 = vmatpush1.msra.mxu0 0.0
        %1974 = vmatprep.subr.mxu0 0.0
        %1975 = vmatpush1.msra.mxu0 0.0
        %1976 = vmatprep.subr.mxu0 0.0
        %1977 = vmatpush1.msra.mxu0 0.0
        %1978 = vmatprep.subr.mxu0 0.0
        %1979 = vmatpush1.msra.mxu0 0.0
        %1980 = vmatprep.subr.mxu0 0.0
        %1981 = vmatpush1.msra.mxu0 0.0
        %1982 = vmatprep.subr.mxu0 0.0
        %1983 = vmatpush1.msra.mxu0 0.0
        %1984 = vmatprep.subr.mxu0 0.0
        %1985 = vmatpush1.msra.mxu0 0.0
        %1986 = vmatprep.subr.mxu0 0.0
        %1987 = vmatpush1.msra.mxu0 0.0
        %1988 = vmatprep.subr.mxu0 0.0
        %1989 = vmatpush1.msra.mxu0 0.0
        %1990 = vmatprep.subr.mxu0 0.0
        %1991 = vmatpush1.msra.mxu0 0.0
        %1992 = vmatprep.subr.mxu0 0.0
        %1993 = vmatpush1.msra.mxu0 %v1702
        %1994 = vmatprep.subr.mxu0 0.0
        %1995 = vmatpush1.msra.mxu0 %v1701
        %1996 = vmatprep.subr.mxu0 0.0
        %1997 = vmatpush1.msra.mxu0 %v1700
        %1998 = vmatprep.subr.mxu0 0.0
        %1999 = vmatpush1.msra.mxu0 %v1699
        %2000 = vmatprep.subr.mxu0 0.0
        %2001 = vmatpush2.msra.mxu0 0.0
        %2002 = vmatprep.subr.mxu0 0.0
        %2003 = vmatpush2.msra.mxu0 0.0
        %2004 = vmatprep.subr.mxu0 0.0
        %2005 = vmatpush2.msra.mxu0 0.0
        %2006 = vmatprep.subr.mxu0 0.0
        %2007 = vmatpush2.msra.mxu0 0.0
        %2008 = vmatprep.subr.mxu0 0.0
        %2009 = vmatpush2.msra.mxu0 0.0
        %2010 = vmatprep.subr.mxu0 0.0
        %2011 = vmatpush2.msra.mxu0 0.0
        %2012 = vmatprep.subr.mxu0 0.0
        %2013 = vmatpush2.msra.mxu0 0.0
        %2014 = vmatprep.subr.mxu0 0.0
        %2015 = vmatpush2.msra.mxu0 0.0
        %2016 = vmatprep.subr.mxu0 0.0
        %2017 = vmatpush2.msra.mxu0 0.0
        %2018 = vmatprep.subr.mxu0 0.0
        %2019 = vmatpush2.msra.mxu0 0.0
        %2020 = vmatprep.subr.mxu0 0.0
        %2021 = vmatpush2.msra.mxu0 0.0
        %2022 = vmatprep.subr.mxu0 0.0
        %2023 = vmatpush2.msra.mxu0 0.0
        %2024 = vmatprep.subr.mxu0 0.0
        %2025 = vmatpush2.msra.mxu0 0.0
        %2026 = vmatprep.subr.mxu0 0.0
        %2027 = vmatpush2.msra.mxu0 0.0
        %2028 = vmatprep.subr.mxu0 0.0
        %2029 = vmatpush2.msra.mxu0 0.0
        %2030 = vmatprep.subr.mxu0 0.0
        %2031 = vmatpush2.msra.mxu0 0.0
        %2032 = vmatprep.mubr.f32.mxu0 0.0
        %2033 = vmatmul.mubr.f32.gmra.mxu0 %v1813
        %v2034 = vpop.f32.mrf.mxu0
        %v2035 = vadd.f32 0.0, %v2034
        %v2036 = vpop.f32.mrf.mxu0
        %2037 = vmatprep.mubr.f32.mxu0 0.0
        %2038 = vmatmul.mubr.f32.gmra.mxu0 %v1816
        %v2039 = vpop.f32.mrf.mxu0
        %v2040 = vadd.f32 0.0, %v2039
        %v2041 = vpop.f32.mrf.mxu0
        %2042 = vdwg.mxu0
        %2043 = vmatprep.subr.mxu0 0.0
        %2044 = vmatpush1.msra.mxu0 0.0
        %2045 = vmatprep.subr.mxu0 0.0
        %2046 = vmatpush1.msra.mxu0 0.0
        %2047 = vmatprep.subr.mxu0 0.0
        %2048 = vmatpush1.msra.mxu0 0.0
        %2049 = vmatprep.subr.mxu0 0.0
        %2050 = vmatpush1.msra.mxu0 0.0
        %2051 = vmatprep.subr.mxu0 0.0
        %2052 = vmatpush1.msra.mxu0 0.0
        %2053 = vmatprep.subr.mxu0 0.0
        %2054 = vmatpush1.msra.mxu0 0.0
        %2055 = vmatprep.subr.mxu0 0.0
        %2056 = vmatpush1.msra.mxu0 0.0
        %2057 = vmatprep.subr.mxu0 0.0
        %2058 = vmatpush1.msra.mxu0 0.0
        %2059 = vmatprep.subr.mxu0 0.0
        %2060 = vmatpush1.msra.mxu0 0.0
        %2061 = vmatprep.subr.mxu0 0.0
        %2062 = vmatpush1.msra.mxu0 0.0
        %2063 = vmatprep.subr.mxu0 0.0
        %2064 = vmatpush1.msra.mxu0 0.0
        %2065 = vmatprep.subr.mxu0 0.0
        %2066 = vmatpush1.msra.mxu0 0.0
        %2067 = vmatprep.subr.mxu0 0.0
        %2068 = vmatpush1.msra.mxu0 %v1706
        %2069 = vmatprep.subr.mxu0 0.0
        %2070 = vmatpush1.msra.mxu0 %v1705
        %2071 = vmatprep.subr.mxu0 0.0
        %2072 = vmatpush1.msra.mxu0 %v1704
        %2073 = vmatprep.subr.mxu0 0.0
        %2074 = vmatpush1.msra.mxu0 %v1703
        %2075 = vmatprep.subr.mxu0 0.0
        %2076 = vmatpush2.msra.mxu0 0.0
        %2077 = vmatprep.subr.mxu0 0.0
        %2078 = vmatpush2.msra.mxu0 0.0
        %2079 = vmatprep.subr.mxu0 0.0
        %2080 = vmatpush2.msra.mxu0 0.0
        %2081 = vmatprep.subr.mxu0 0.0
        %2082 = vmatpush2.msra.mxu0 0.0
        %2083 = vmatprep.subr.mxu0 0.0
        %2084 = vmatpush2.msra.mxu0 0.0
        %2085 = vmatprep.subr.mxu0 0.0
        %2086 = vmatpush2.msra.mxu0 0.0
        %2087 = vmatprep.subr.mxu0 0.0
        %2088 = vmatpush2.msra.mxu0 0.0
        %2089 = vmatprep.subr.mxu0 0.0
        %2090 = vmatpush2.msra.mxu0 0.0
        %2091 = vmatprep.subr.mxu0 0.0
        %2092 = vmatpush2.msra.mxu0 0.0
        %2093 = vmatprep.subr.mxu0 0.0
        %2094 = vmatpush2.msra.mxu0 0.0
        %2095 = vmatprep.subr.mxu0 0.0
        %2096 = vmatpush2.msra.mxu0 0.0
        %2097 = vmatprep.subr.mxu0 0.0
        %2098 = vmatpush2.msra.mxu0 0.0
        %2099 = vmatprep.subr.mxu0 0.0
        %2100 = vmatpush2.msra.mxu0 0.0
        %2101 = vmatprep.subr.mxu0 0.0
        %2102 = vmatpush2.msra.mxu0 0.0
        %2103 = vmatprep.subr.mxu0 0.0
        %2104 = vmatpush2.msra.mxu0 0.0
        %2105 = vmatprep.subr.mxu0 0.0
        %2106 = vmatpush2.msra.mxu0 0.0
        %2107 = vmatprep.mubr.f32.mxu0 0.0
        %2108 = vmatmul.mubr.f32.gmra.mxu0 %v1813
        %v2109 = vpop.f32.mrf.mxu0
        %v2110 = vadd.f32 0.0, %v2109
        %v2111 = vpop.f32.mrf.mxu0
        %2112 = vmatprep.mubr.f32.mxu0 0.0
        %2113 = vmatmul.mubr.f32.gmra.mxu0 %v1816
        %v2114 = vpop.f32.mrf.mxu0
        %v2115 = vadd.f32 0.0, %v2114
        %v2116 = vpop.f32.mrf.mxu0
        %2117 = vdwg.mxu0
        %2118 = vmatprep.subr.mxu0 0.0
        %2119 = vmatpush1.msra.mxu0 0.0
        %2120 = vmatprep.subr.mxu0 0.0
        %2121 = vmatpush1.msra.mxu0 0.0
        %2122 = vmatprep.subr.mxu0 0.0
        %2123 = vmatpush1.msra.mxu0 0.0
        %2124 = vmatprep.subr.mxu0 0.0
        %2125 = vmatpush1.msra.mxu0 0.0
        %2126 = vmatprep.subr.mxu0 0.0
        %2127 = vmatpush1.msra.mxu0 0.0
        %2128 = vmatprep.subr.mxu0 0.0
        %2129 = vmatpush1.msra.mxu0 0.0
        %2130 = vmatprep.subr.mxu0 0.0
        %2131 = vmatpush1.msra.mxu0 0.0
        %2132 = vmatprep.subr.mxu0 0.0
        %2133 = vmatpush1.msra.mxu0 0.0
        %2134 = vmatprep.subr.mxu0 0.0
        %2135 = vmatpush1.msra.mxu0 0.0
        %2136 = vmatprep.subr.mxu0 0.0
        %2137 = vmatpush1.msra.mxu0 0.0
        %2138 = vmatprep.subr.mxu0 0.0
        %2139 = vmatpush1.msra.mxu0 0.0
        %2140 = vmatprep.subr.mxu0 0.0
        %2141 = vmatpush1.msra.mxu0 0.0
        %2142 = vmatprep.subr.mxu0 0.0
        %2143 = vmatpush1.msra.mxu0 %v1710
        %2144 = vmatprep.subr.mxu0 0.0
        %2145 = vmatpush1.msra.mxu0 %v1709
        %2146 = vmatprep.subr.mxu0 0.0
        %2147 = vmatpush1.msra.mxu0 %v1708
        %2148 = vmatprep.subr.mxu0 0.0
        %2149 = vmatpush1.msra.mxu0 %v1707
        %2150 = vmatprep.subr.mxu0 0.0
        %2151 = vmatpush2.msra.mxu0 0.0
        %2152 = vmatprep.subr.mxu0 0.0
        %2153 = vmatpush2.msra.mxu0 0.0
        %2154 = vmatprep.subr.mxu0 0.0
        %2155 = vmatpush2.msra.mxu0 0.0
        %2156 = vmatprep.subr.mxu0 0.0
        %2157 = vmatpush2.msra.mxu0 0.0
        %2158 = vmatprep.subr.mxu0 0.0
        %2159 = vmatpush2.msra.mxu0 0.0
        %2160 = vmatprep.subr.mxu0 0.0
        %2161 = vmatpush2.msra.mxu0 0.0
        %2162 = vmatprep.subr.mxu0 0.0
        %2163 = vmatpush2.msra.mxu0 0.0
        %2164 = vmatprep.subr.mxu0 0.0
        %2165 = vmatpush2.msra.mxu0 0.0
        %2166 = vmatprep.subr.mxu0 0.0
        %2167 = vmatpush2.msra.mxu0 0.0
        %2168 = vmatprep.subr.mxu0 0.0
        %2169 = vmatpush2.msra.mxu0 0.0
        %2170 = vmatprep.subr.mxu0 0.0
        %2171 = vmatpush2.msra.mxu0 0.0
        %2172 = vmatprep.subr.mxu0 0.0
        %2173 = vmatpush2.msra.mxu0 0.0
        %2174 = vmatprep.subr.mxu0 0.0
        %2175 = vmatpush2.msra.mxu0 0.0
        %2176 = vmatprep.subr.mxu0 0.0
        %2177 = vmatpush2.msra.mxu0 0.0
        %2178 = vmatprep.subr.mxu0 0.0
        %2179 = vmatpush2.msra.mxu0 0.0
        %2180 = vmatprep.subr.mxu0 0.0
        %2181 = vmatpush2.msra.mxu0 0.0
        %2182 = vmatprep.mubr.f32.mxu0 0.0
        %2183 = vmatmul.mubr.f32.gmra.mxu0 %v1813
        %v2184 = vpop.f32.mrf.mxu0
        %v2185 = vadd.f32 0.0, %v2184
        %v2186 = vpop.f32.mrf.mxu0
        %2187 = vmatprep.mubr.f32.mxu0 0.0
        %2188 = vmatmul.mubr.f32.gmra.mxu0 %v1816
        %v2189 = vpop.f32.mrf.mxu0
        %v2190 = vadd.f32 0.0, %v2189
        %v2191 = vpop.f32.mrf.mxu0
        %2192 = vdwg.mxu0
        %2193 = vmatprep.subr.mxu0 0.0
        %2194 = vmatpush1.msra.mxu0 0.0
        %2195 = vmatprep.subr.mxu0 0.0
        %2196 = vmatpush1.msra.mxu0 0.0
        %2197 = vmatprep.subr.mxu0 0.0
        %2198 = vmatpush1.msra.mxu0 0.0
        %2199 = vmatprep.subr.mxu0 0.0
        %2200 = vmatpush1.msra.mxu0 0.0
        %2201 = vmatprep.subr.mxu0 0.0
        %2202 = vmatpush1.msra.mxu0 0.0
        %2203 = vmatprep.subr.mxu0 0.0
        %2204 = vmatpush1.msra.mxu0 0.0
        %2205 = vmatprep.subr.mxu0 0.0
        %2206 = vmatpush1.msra.mxu0 0.0
        %2207 = vmatprep.subr.mxu0 0.0
        %2208 = vmatpush1.msra.mxu0 0.0
        %2209 = vmatprep.subr.mxu0 0.0
        %2210 = vmatpush1.msra.mxu0 0.0
        %2211 = vmatprep.subr.mxu0 0.0
        %2212 = vmatpush1.msra.mxu0 0.0
        %2213 = vmatprep.subr.mxu0 0.0
        %2214 = vmatpush1.msra.mxu0 0.0
        %2215 = vmatprep.subr.mxu0 0.0
        %2216 = vmatpush1.msra.mxu0 0.0
        %2217 = vmatprep.subr.mxu0 0.0
        %2218 = vmatpush1.msra.mxu0 %v1714
        %2219 = vmatprep.subr.mxu0 0.0
        %2220 = vmatpush1.msra.mxu0 %v1713
        %2221 = vmatprep.subr.mxu0 0.0
        %2222 = vmatpush1.msra.mxu0 %v1712
        %2223 = vmatprep.subr.mxu0 0.0
        %2224 = vmatpush1.msra.mxu0 %v1711
        %2225 = vmatprep.subr.mxu0 0.0
        %2226 = vmatpush2.msra.mxu0 0.0
        %2227 = vmatprep.subr.mxu0 0.0
        %2228 = vmatpush2.msra.mxu0 0.0
        %2229 = vmatprep.subr.mxu0 0.0
        %2230 = vmatpush2.msra.mxu0 0.0
        %2231 = vmatprep.subr.mxu0 0.0
        %2232 = vmatpush2.msra.mxu0 0.0
        %2233 = vmatprep.subr.mxu0 0.0
        %2234 = vmatpush2.msra.mxu0 0.0
        %2235 = vmatprep.subr.mxu0 0.0
        %2236 = vmatpush2.msra.mxu0 0.0
        %2237 = vmatprep.subr.mxu0 0.0
        %2238 = vmatpush2.msra.mxu0 0.0
        %2239 = vmatprep.subr.mxu0 0.0
        %2240 = vmatpush2.msra.mxu0 0.0
        %2241 = vmatprep.subr.mxu0 0.0
        %2242 = vmatpush2.msra.mxu0 0.0
        %2243 = vmatprep.subr.mxu0 0.0
        %2244 = vmatpush2.msra.mxu0 0.0
        %2245 = vmatprep.subr.mxu0 0.0
        %2246 = vmatpush2.msra.mxu0 0.0
        %2247 = vmatprep.subr.mxu0 0.0
        %2248 = vmatpush2.msra.mxu0 0.0
        %2249 = vmatprep.subr.mxu0 0.0
        %2250 = vmatpush2.msra.mxu0 0.0
        %2251 = vmatprep.subr.mxu0 0.0
        %2252 = vmatpush2.msra.mxu0 0.0
        %2253 = vmatprep.subr.mxu0 0.0
        %2254 = vmatpush2.msra.mxu0 0.0
        %2255 = vmatprep.subr.mxu0 0.0
        %2256 = vmatpush2.msra.mxu0 0.0
        %2257 = vmatprep.mubr.f32.mxu0 0.0
        %2258 = vmatmul.mubr.f32.gmra.mxu0 %v1813
        %v2259 = vpop.f32.mrf.mxu0
        %v2260 = vadd.f32 0.0, %v2259
        %v2261 = vpop.f32.mrf.mxu0
        %2262 = vmatprep.mubr.f32.mxu0 0.0
        %2263 = vmatmul.mubr.f32.gmra.mxu0 %v1816
        %v2264 = vpop.f32.mrf.mxu0
        %v2265 = vadd.f32 0.0, %v2264
        %v2266 = vpop.f32.mrf.mxu0
        %2267 = vdwg.mxu0
        %2268 = vmatprep.subr.mxu0 0.0
        %2269 = vmatpush1.msra.mxu0 0.0
        %2270 = vmatprep.subr.mxu0 0.0
        %2271 = vmatpush1.msra.mxu0 0.0
        %2272 = vmatprep.subr.mxu0 0.0
        %2273 = vmatpush1.msra.mxu0 0.0
        %2274 = vmatprep.subr.mxu0 0.0
        %2275 = vmatpush1.msra.mxu0 0.0
        %2276 = vmatprep.subr.mxu0 0.0
        %2277 = vmatpush1.msra.mxu0 0.0
        %2278 = vmatprep.subr.mxu0 0.0
        %2279 = vmatpush1.msra.mxu0 0.0
        %2280 = vmatprep.subr.mxu0 0.0
        %2281 = vmatpush1.msra.mxu0 0.0
        %2282 = vmatprep.subr.mxu0 0.0
        %2283 = vmatpush1.msra.mxu0 0.0
        %2284 = vmatprep.subr.mxu0 0.0
        %2285 = vmatpush1.msra.mxu0 0.0
        %2286 = vmatprep.subr.mxu0 0.0
        %2287 = vmatpush1.msra.mxu0 0.0
        %2288 = vmatprep.subr.mxu0 0.0
        %2289 = vmatpush1.msra.mxu0 0.0
        %2290 = vmatprep.subr.mxu0 0.0
        %2291 = vmatpush1.msra.mxu0 0.0
        %2292 = vmatprep.subr.mxu0 0.0
        %2293 = vmatpush1.msra.mxu0 %v1718
        %2294 = vmatprep.subr.mxu0 0.0
        %2295 = vmatpush1.msra.mxu0 %v1717
        %2296 = vmatprep.subr.mxu0 0.0
        %2297 = vmatpush1.msra.mxu0 %v1716
        %2298 = vmatprep.subr.mxu0 0.0
        %2299 = vmatpush1.msra.mxu0 %v1715
        %2300 = vmatprep.subr.mxu0 0.0
        %2301 = vmatpush2.msra.mxu0 0.0
        %2302 = vmatprep.subr.mxu0 0.0
        %2303 = vmatpush2.msra.mxu0 0.0
        %2304 = vmatprep.subr.mxu0 0.0
        %2305 = vmatpush2.msra.mxu0 0.0
        %2306 = vmatprep.subr.mxu0 0.0
        %2307 = vmatpush2.msra.mxu0 0.0
        %2308 = vmatprep.subr.mxu0 0.0
        %2309 = vmatpush2.msra.mxu0 0.0
        %2310 = vmatprep.subr.mxu0 0.0
        %2311 = vmatpush2.msra.mxu0 0.0
        %2312 = vmatprep.subr.mxu0 0.0
        %2313 = vmatpush2.msra.mxu0 0.0
        %2314 = vmatprep.subr.mxu0 0.0
        %2315 = vmatpush2.msra.mxu0 0.0
        %2316 = vmatprep.subr.mxu0 0.0
        %2317 = vmatpush2.msra.mxu0 0.0
        %2318 = vmatprep.subr.mxu0 0.0
        %2319 = vmatpush2.msra.mxu0 0.0
        %2320 = vmatprep.subr.mxu0 0.0
        %2321 = vmatpush2.msra.mxu0 0.0
        %2322 = vmatprep.subr.mxu0 0.0
        %2323 = vmatpush2.msra.mxu0 0.0
        %2324 = vmatprep.subr.mxu0 0.0
        %2325 = vmatpush2.msra.mxu0 0.0
        %2326 = vmatprep.subr.mxu0 0.0
        %2327 = vmatpush2.msra.mxu0 0.0
        %2328 = vmatprep.subr.mxu0 0.0
        %2329 = vmatpush2.msra.mxu0 0.0
        %2330 = vmatprep.subr.mxu0 0.0
        %2331 = vmatpush2.msra.mxu0 0.0
        %2332 = vmatprep.mubr.f32.mxu0 0.0
        %2333 = vmatmul.mubr.f32.gmra.mxu0 %v1813
        %v2334 = vpop.f32.mrf.mxu0
        %v2335 = vadd.f32 0.0, %v2334
        %v2336 = vpop.f32.mrf.mxu0
        %2337 = vmatprep.mubr.f32.mxu0 0.0
        %2338 = vmatmul.mubr.f32.gmra.mxu0 %v1816
        %v2339 = vpop.f32.mrf.mxu0
        %v2340 = vadd.f32 0.0, %v2339
        %v2341 = vpop.f32.mrf.mxu0
        %2342 = vdwg.mxu0
        %2343 = vmatprep.subr.mxu0 0.0
        %2344 = vmatpush1.msra.mxu0 0.0
        %2345 = vmatprep.subr.mxu0 0.0
        %2346 = vmatpush1.msra.mxu0 0.0
        %2347 = vmatprep.subr.mxu0 0.0
        %2348 = vmatpush1.msra.mxu0 0.0
        %2349 = vmatprep.subr.mxu0 0.0
        %2350 = vmatpush1.msra.mxu0 0.0
        %2351 = vmatprep.subr.mxu0 0.0
        %2352 = vmatpush1.msra.mxu0 0.0
        %2353 = vmatprep.subr.mxu0 0.0
        %2354 = vmatpush1.msra.mxu0 0.0
        %2355 = vmatprep.subr.mxu0 0.0
        %2356 = vmatpush1.msra.mxu0 0.0
        %2357 = vmatprep.subr.mxu0 0.0
        %2358 = vmatpush1.msra.mxu0 0.0
        %2359 = vmatprep.subr.mxu0 0.0
        %2360 = vmatpush1.msra.mxu0 0.0
        %2361 = vmatprep.subr.mxu0 0.0
        %2362 = vmatpush1.msra.mxu0 0.0
        %2363 = vmatprep.subr.mxu0 0.0
        %2364 = vmatpush1.msra.mxu0 0.0
        %2365 = vmatprep.subr.mxu0 0.0
        %2366 = vmatpush1.msra.mxu0 0.0
        %2367 = vmatprep.subr.mxu0 0.0
        %2368 = vmatpush1.msra.mxu0 %v1722
        %2369 = vmatprep.subr.mxu0 0.0
        %2370 = vmatpush1.msra.mxu0 %v1721
        %2371 = vmatprep.subr.mxu0 0.0
        %2372 = vmatpush1.msra.mxu0 %v1720
        %2373 = vmatprep.subr.mxu0 0.0
        %2374 = vmatpush1.msra.mxu0 %v1719
        %2375 = vmatprep.subr.mxu0 0.0
        %2376 = vmatpush2.msra.mxu0 0.0
        %2377 = vmatprep.subr.mxu0 0.0
        %2378 = vmatpush2.msra.mxu0 0.0
        %2379 = vmatprep.subr.mxu0 0.0
        %2380 = vmatpush2.msra.mxu0 0.0
        %2381 = vmatprep.subr.mxu0 0.0
        %2382 = vmatpush2.msra.mxu0 0.0
        %2383 = vmatprep.subr.mxu0 0.0
        %2384 = vmatpush2.msra.mxu0 0.0
        %2385 = vmatprep.subr.mxu0 0.0
        %2386 = vmatpush2.msra.mxu0 0.0
        %2387 = vmatprep.subr.mxu0 0.0
        %2388 = vmatpush2.msra.mxu0 0.0
        %2389 = vmatprep.subr.mxu0 0.0
        %2390 = vmatpush2.msra.mxu0 0.0
        %2391 = vmatprep.subr.mxu0 0.0
        %2392 = vmatpush2.msra.mxu0 0.0
        %2393 = vmatprep.subr.mxu0 0.0
        %2394 = vmatpush2.msra.mxu0 0.0
        %2395 = vmatprep.subr.mxu0 0.0
        %2396 = vmatpush2.msra.mxu0 0.0
        %2397 = vmatprep.subr.mxu0 0.0
        %2398 = vmatpush2.msra.mxu0 0.0
        %2399 = vmatprep.subr.mxu0 0.0
        %2400 = vmatpush2.msra.mxu0 0.0
        %2401 = vmatprep.subr.mxu0 0.0
        %2402 = vmatpush2.msra.mxu0 0.0
        %2403 = vmatprep.subr.mxu0 0.0
        %2404 = vmatpush2.msra.mxu0 0.0
        %2405 = vmatprep.subr.mxu0 0.0
        %2406 = vmatpush2.msra.mxu0 0.0
        %2407 = vmatprep.mubr.f32.mxu0 0.0
        %2408 = vmatmul.mubr.f32.gmra.mxu0 %v1813
        %v2409 = vpop.f32.mrf.mxu0
        %v2410 = vadd.f32 0.0, %v2409
        %v2411 = vpop.f32.mrf.mxu0
        %2412 = vmatprep.mubr.f32.mxu0 0.0
        %2413 = vmatmul.mubr.f32.gmra.mxu0 %v1816
        %v2414 = vpop.f32.mrf.mxu0
        %v2415 = vadd.f32 0.0, %v2414
        %v2416 = vpop.f32.mrf.mxu0
        %2417 = vdwg.mxu0
        %2418 = vmatprep.subr.mxu0 0.0
        %2419 = vmatpush1.msra.mxu0 0.0
        %2420 = vmatprep.subr.mxu0 0.0
        %2421 = vmatpush1.msra.mxu0 0.0
        %2422 = vmatprep.subr.mxu0 0.0
        %2423 = vmatpush1.msra.mxu0 0.0
        %2424 = vmatprep.subr.mxu0 0.0
        %2425 = vmatpush1.msra.mxu0 0.0
        %2426 = vmatprep.subr.mxu0 0.0
        %2427 = vmatpush1.msra.mxu0 0.0
        %2428 = vmatprep.subr.mxu0 0.0
        %2429 = vmatpush1.msra.mxu0 0.0
        %2430 = vmatprep.subr.mxu0 0.0
        %2431 = vmatpush1.msra.mxu0 0.0
        %2432 = vmatprep.subr.mxu0 0.0
        %2433 = vmatpush1.msra.mxu0 0.0
        %2434 = vmatprep.subr.mxu0 0.0
        %2435 = vmatpush1.msra.mxu0 0.0
        %2436 = vmatprep.subr.mxu0 0.0
        %2437 = vmatpush1.msra.mxu0 0.0
        %2438 = vmatprep.subr.mxu0 0.0
        %2439 = vmatpush1.msra.mxu0 0.0
        %2440 = vmatprep.subr.mxu0 0.0
        %2441 = vmatpush1.msra.mxu0 0.0
        %2442 = vmatprep.subr.mxu0 0.0
        %2443 = vmatpush1.msra.mxu0 %v1726
        %2444 = vmatprep.subr.mxu0 0.0
        %2445 = vmatpush1.msra.mxu0 %v1725
        %2446 = vmatprep.subr.mxu0 0.0
        %2447 = vmatpush1.msra.mxu0 %v1724
        %2448 = vmatprep.subr.mxu0 0.0
        %2449 = vmatpush1.msra.mxu0 %v1723
        %2450 = vmatprep.subr.mxu0 0.0
        %2451 = vmatpush2.msra.mxu0 0.0
        %2452 = vmatprep.subr.mxu0 0.0
        %2453 = vmatpush2.msra.mxu0 0.0
        %2454 = vmatprep.subr.mxu0 0.0
        %2455 = vmatpush2.msra.mxu0 0.0
        %2456 = vmatprep.subr.mxu0 0.0
        %2457 = vmatpush2.msra.mxu0 0.0
        %2458 = vmatprep.subr.mxu0 0.0
        %2459 = vmatpush2.msra.mxu0 0.0
        %2460 = vmatprep.subr.mxu0 0.0
        %2461 = vmatpush2.msra.mxu0 0.0
        %2462 = vmatprep.subr.mxu0 0.0
        %2463 = vmatpush2.msra.mxu0 0.0
        %2464 = vmatprep.subr.mxu0 0.0
        %2465 = vmatpush2.msra.mxu0 0.0
        %2466 = vmatprep.subr.mxu0 0.0
        %2467 = vmatpush2.msra.mxu0 0.0
        %2468 = vmatprep.subr.mxu0 0.0
        %2469 = vmatpush2.msra.mxu0 0.0
        %2470 = vmatprep.subr.mxu0 0.0
        %2471 = vmatpush2.msra.mxu0 0.0
        %2472 = vmatprep.subr.mxu0 0.0
        %2473 = vmatpush2.msra.mxu0 0.0
        %2474 = vmatprep.subr.mxu0 0.0
        %2475 = vmatpush2.msra.mxu0 0.0
        %2476 = vmatprep.subr.mxu0 0.0
        %2477 = vmatpush2.msra.mxu0 0.0
        %2478 = vmatprep.subr.mxu0 0.0
        %2479 = vmatpush2.msra.mxu0 0.0
        %2480 = vmatprep.subr.mxu0 0.0
        %2481 = vmatpush2.msra.mxu0 0.0
        %2482 = vmatprep.mubr.f32.mxu0 0.0
        %2483 = vmatmul.mubr.f32.gmra.mxu0 %v1813
        %v2484 = vpop.f32.mrf.mxu0
        %v2485 = vadd.f32 0.0, %v2484
        %v2486 = vpop.f32.mrf.mxu0
        %2487 = vmatprep.mubr.f32.mxu0 0.0
        %2488 = vmatmul.mubr.f32.gmra.mxu0 %v1816
        %v2489 = vpop.f32.mrf.mxu0
        %v2490 = vadd.f32 0.0, %v2489
        %v2491 = vpop.f32.mrf.mxu0
        %2492 = vdwg.mxu0
        %2493 = vmatprep.subr.mxu0 0.0
        %2494 = vmatpush1.msra.mxu0 0.0
        %2495 = vmatprep.subr.mxu0 0.0
        %2496 = vmatpush1.msra.mxu0 0.0
        %2497 = vmatprep.subr.mxu0 0.0
        %2498 = vmatpush1.msra.mxu0 0.0
        %2499 = vmatprep.subr.mxu0 0.0
        %2500 = vmatpush1.msra.mxu0 0.0
        %2501 = vmatprep.subr.mxu0 0.0
        %2502 = vmatpush1.msra.mxu0 0.0
        %2503 = vmatprep.subr.mxu0 0.0
        %2504 = vmatpush1.msra.mxu0 0.0
        %2505 = vmatprep.subr.mxu0 0.0
        %2506 = vmatpush1.msra.mxu0 0.0
        %2507 = vmatprep.subr.mxu0 0.0
        %2508 = vmatpush1.msra.mxu0 0.0
        %2509 = vmatprep.subr.mxu0 0.0
        %2510 = vmatpush1.msra.mxu0 0.0
        %2511 = vmatprep.subr.mxu0 0.0
        %2512 = vmatpush1.msra.mxu0 0.0
        %2513 = vmatprep.subr.mxu0 0.0
        %2514 = vmatpush1.msra.mxu0 0.0
        %2515 = vmatprep.subr.mxu0 0.0
        %2516 = vmatpush1.msra.mxu0 0.0
        %2517 = vmatprep.subr.mxu0 0.0
        %2518 = vmatpush1.msra.mxu0 %v1730
        %2519 = vmatprep.subr.mxu0 0.0
        %2520 = vmatpush1.msra.mxu0 %v1729
        %2521 = vmatprep.subr.mxu0 0.0
        %2522 = vmatpush1.msra.mxu0 %v1728
        %2523 = vmatprep.subr.mxu0 0.0
        %2524 = vmatpush1.msra.mxu0 %v1727
        %2525 = vmatprep.subr.mxu0 0.0
        %2526 = vmatpush2.msra.mxu0 0.0
        %2527 = vmatprep.subr.mxu0 0.0
        %2528 = vmatpush2.msra.mxu0 0.0
        %2529 = vmatprep.subr.mxu0 0.0
        %2530 = vmatpush2.msra.mxu0 0.0
        %2531 = vmatprep.subr.mxu0 0.0
        %2532 = vmatpush2.msra.mxu0 0.0
        %2533 = vmatprep.subr.mxu0 0.0
        %2534 = vmatpush2.msra.mxu0 0.0
        %2535 = vmatprep.subr.mxu0 0.0
        %2536 = vmatpush2.msra.mxu0 0.0
        %2537 = vmatprep.subr.mxu0 0.0
        %2538 = vmatpush2.msra.mxu0 0.0
        %2539 = vmatprep.subr.mxu0 0.0
        %2540 = vmatpush2.msra.mxu0 0.0
        %2541 = vmatprep.subr.mxu0 0.0
        %2542 = vmatpush2.msra.mxu0 0.0
        %2543 = vmatprep.subr.mxu0 0.0
        %2544 = vmatpush2.msra.mxu0 0.0
        %2545 = vmatprep.subr.mxu0 0.0
        %2546 = vmatpush2.msra.mxu0 0.0
        %2547 = vmatprep.subr.mxu0 0.0
        %2548 = vmatpush2.msra.mxu0 0.0
        %2549 = vmatprep.subr.mxu0 0.0
        %2550 = vmatpush2.msra.mxu0 0.0
        %2551 = vmatprep.subr.mxu0 0.0
        %2552 = vmatpush2.msra.mxu0 0.0
        %2553 = vmatprep.subr.mxu0 0.0
        %2554 = vmatpush2.msra.mxu0 0.0
        %2555 = vmatprep.subr.mxu0 0.0
        %2556 = vmatpush2.msra.mxu0 0.0
        %2557 = vmatprep.mubr.f32.mxu0 0.0
        %2558 = vmatmul.mubr.f32.gmra.mxu0 %v1813
        %v2559 = vpop.f32.mrf.mxu0
        %v2560 = vadd.f32 0.0, %v2559
        %v2561 = vpop.f32.mrf.mxu0
        %2562 = vmatprep.mubr.f32.mxu0 0.0
        %2563 = vmatmul.mubr.f32.gmra.mxu0 %v1816
        %v2564 = vpop.f32.mrf.mxu0
        %v2565 = vadd.f32 0.0, %v2564
        %v2566 = vpop.f32.mrf.mxu0
        %2567 = vdwg.mxu0
        %2568 = vmatprep.subr.mxu0 0.0
        %2569 = vmatpush1.msra.mxu0 0.0
        %2570 = vmatprep.subr.mxu0 0.0
        %2571 = vmatpush1.msra.mxu0 0.0
        %2572 = vmatprep.subr.mxu0 0.0
        %2573 = vmatpush1.msra.mxu0 0.0
        %2574 = vmatprep.subr.mxu0 0.0
        %2575 = vmatpush1.msra.mxu0 0.0
        %2576 = vmatprep.subr.mxu0 0.0
        %2577 = vmatpush1.msra.mxu0 0.0
        %2578 = vmatprep.subr.mxu0 0.0
        %2579 = vmatpush1.msra.mxu0 0.0
        %2580 = vmatprep.subr.mxu0 0.0
        %2581 = vmatpush1.msra.mxu0 0.0
        %2582 = vmatprep.subr.mxu0 0.0
        %2583 = vmatpush1.msra.mxu0 0.0
        %2584 = vmatprep.subr.mxu0 0.0
        %2585 = vmatpush1.msra.mxu0 0.0
        %2586 = vmatprep.subr.mxu0 0.0
        %2587 = vmatpush1.msra.mxu0 0.0
        %2588 = vmatprep.subr.mxu0 0.0
        %2589 = vmatpush1.msra.mxu0 0.0
        %2590 = vmatprep.subr.mxu0 0.0
        %2591 = vmatpush1.msra.mxu0 0.0
        %2592 = vmatprep.subr.mxu0 0.0
        %2593 = vmatpush1.msra.mxu0 %v1734
        %2594 = vmatprep.subr.mxu0 0.0
        %2595 = vmatpush1.msra.mxu0 %v1733
        %2596 = vmatprep.subr.mxu0 0.0
        %2597 = vmatpush1.msra.mxu0 %v1732
        %2598 = vmatprep.subr.mxu0 0.0
        %2599 = vmatpush1.msra.mxu0 %v1731
        %2600 = vmatprep.subr.mxu0 0.0
        %2601 = vmatpush2.msra.mxu0 0.0
        %2602 = vmatprep.subr.mxu0 0.0
        %2603 = vmatpush2.msra.mxu0 0.0
        %2604 = vmatprep.subr.mxu0 0.0
        %2605 = vmatpush2.msra.mxu0 0.0
        %2606 = vmatprep.subr.mxu0 0.0
        %2607 = vmatpush2.msra.mxu0 0.0
        %2608 = vmatprep.subr.mxu0 0.0
        %2609 = vmatpush2.msra.mxu0 0.0
        %2610 = vmatprep.subr.mxu0 0.0
        %2611 = vmatpush2.msra.mxu0 0.0
        %2612 = vmatprep.subr.mxu0 0.0
        %2613 = vmatpush2.msra.mxu0 0.0
        %2614 = vmatprep.subr.mxu0 0.0
        %2615 = vmatpush2.msra.mxu0 0.0
        %2616 = vmatprep.subr.mxu0 0.0
        %2617 = vmatpush2.msra.mxu0 0.0
        %2618 = vmatprep.subr.mxu0 0.0
        %2619 = vmatpush2.msra.mxu0 0.0
        %2620 = vmatprep.subr.mxu0 0.0
        %2621 = vmatpush2.msra.mxu0 0.0
        %2622 = vmatprep.subr.mxu0 0.0
        %2623 = vmatpush2.msra.mxu0 0.0
        %2624 = vmatprep.subr.mxu0 0.0
        %2625 = vmatpush2.msra.mxu0 0.0
        %2626 = vmatprep.subr.mxu0 0.0
        %2627 = vmatpush2.msra.mxu0 0.0
        %2628 = vmatprep.subr.mxu0 0.0
        %2629 = vmatpush2.msra.mxu0 0.0
        %2630 = vmatprep.subr.mxu0 0.0
        %2631 = vmatpush2.msra.mxu0 0.0
        %2632 = vmatprep.mubr.f32.mxu0 0.0
        %2633 = vmatmul.mubr.f32.gmra.mxu0 %v1813
        %v2634 = vpop.f32.mrf.mxu0
        %v2635 = vadd.f32 0.0, %v2634
        %v2636 = vpop.f32.mrf.mxu0
        %2637 = vmatprep.mubr.f32.mxu0 0.0
        %2638 = vmatmul.mubr.f32.gmra.mxu0 %v1816
        %v2639 = vpop.f32.mrf.mxu0
        %v2640 = vadd.f32 0.0, %v2639
        %v2641 = vpop.f32.mrf.mxu0
        %2642 = vdwg.mxu0
        %2643 = vmatprep.subr.mxu0 0.0
        %2644 = vmatpush1.msra.mxu0 0.0
        %2645 = vmatprep.subr.mxu0 0.0
        %2646 = vmatpush1.msra.mxu0 0.0
        %2647 = vmatprep.subr.mxu0 0.0
        %2648 = vmatpush1.msra.mxu0 0.0
        %2649 = vmatprep.subr.mxu0 0.0
        %2650 = vmatpush1.msra.mxu0 0.0
        %2651 = vmatprep.subr.mxu0 0.0
        %2652 = vmatpush1.msra.mxu0 0.0
        %2653 = vmatprep.subr.mxu0 0.0
        %2654 = vmatpush1.msra.mxu0 0.0
        %2655 = vmatprep.subr.mxu0 0.0
        %2656 = vmatpush1.msra.mxu0 0.0
        %2657 = vmatprep.subr.mxu0 0.0
        %2658 = vmatpush1.msra.mxu0 0.0
        %2659 = vmatprep.subr.mxu0 0.0
        %2660 = vmatpush1.msra.mxu0 0.0
        %2661 = vmatprep.subr.mxu0 0.0
        %2662 = vmatpush1.msra.mxu0 0.0
        %2663 = vmatprep.subr.mxu0 0.0
        %2664 = vmatpush1.msra.mxu0 0.0
        %2665 = vmatprep.subr.mxu0 0.0
        %2666 = vmatpush1.msra.mxu0 0.0
        %2667 = vmatprep.subr.mxu0 0.0
        %2668 = vmatpush1.msra.mxu0 %v1738
        %2669 = vmatprep.subr.mxu0 0.0
        %2670 = vmatpush1.msra.mxu0 %v1737
        %2671 = vmatprep.subr.mxu0 0.0
        %2672 = vmatpush1.msra.mxu0 %v1736
        %2673 = vmatprep.subr.mxu0 0.0
        %2674 = vmatpush1.msra.mxu0 %v1735
        %2675 = vmatprep.subr.mxu0 0.0
        %2676 = vmatpush2.msra.mxu0 0.0
        %2677 = vmatprep.subr.mxu0 0.0
        %2678 = vmatpush2.msra.mxu0 0.0
        %2679 = vmatprep.subr.mxu0 0.0
        %2680 = vmatpush2.msra.mxu0 0.0
        %2681 = vmatprep.subr.mxu0 0.0
        %2682 = vmatpush2.msra.mxu0 0.0
        %2683 = vmatprep.subr.mxu0 0.0
        %2684 = vmatpush2.msra.mxu0 0.0
        %2685 = vmatprep.subr.mxu0 0.0
        %2686 = vmatpush2.msra.mxu0 0.0
        %2687 = vmatprep.subr.mxu0 0.0
        %2688 = vmatpush2.msra.mxu0 0.0
        %2689 = vmatprep.subr.mxu0 0.0
        %2690 = vmatpush2.msra.mxu0 0.0
        %2691 = vmatprep.subr.mxu0 0.0
        %2692 = vmatpush2.msra.mxu0 0.0
        %2693 = vmatprep.subr.mxu0 0.0
        %2694 = vmatpush2.msra.mxu0 0.0
        %2695 = vmatprep.subr.mxu0 0.0
        %2696 = vmatpush2.msra.mxu0 0.0
        %2697 = vmatprep.subr.mxu0 0.0
        %2698 = vmatpush2.msra.mxu0 0.0
        %2699 = vmatprep.subr.mxu0 0.0
        %2700 = vmatpush2.msra.mxu0 0.0
        %2701 = vmatprep.subr.mxu0 0.0
        %2702 = vmatpush2.msra.mxu0 0.0
        %2703 = vmatprep.subr.mxu0 0.0
        %2704 = vmatpush2.msra.mxu0 0.0
        %2705 = vmatprep.subr.mxu0 0.0
        %2706 = vmatpush2.msra.mxu0 0.0
        %2707 = vmatprep.mubr.f32.mxu0 0.0
        %2708 = vmatmul.mubr.f32.gmra.mxu0 %v1813
        %v2709 = vpop.f32.mrf.mxu0
        %v2710 = vadd.f32 0.0, %v2709
        %v2711 = vpop.f32.mrf.mxu0
        %2712 = vmatprep.mubr.f32.mxu0 0.0
        %2713 = vmatmul.mubr.f32.gmra.mxu0 %v1816
        %v2714 = vpop.f32.mrf.mxu0
        %v2715 = vadd.f32 0.0, %v2714
        %v2716 = vpop.f32.mrf.mxu0
        %2717 = vdwg.mxu0
        %vm2718 = vcmask 64512
        %v2720 = vsel %vm2718, %v1885, 0
        %v2723 = vsel %vm2718, %v1890, 0
        %v2726 = vsel %vm2718, %v2185, 0
        %v2729 = vsel %vm2718, %v2190, 0
        %2731 = vmatprep.subr.mxu0 0.0
        %2732 = vmatpush1.xpose.msra.mxu0 0.0
        %2733 = vmatprep.subr.mxu0 0.0
        %2734 = vmatpush1.xpose.msra.mxu0 0.0
        %2735 = vmatprep.subr.mxu0 0.0
        %2736 = vmatpush1.xpose.msra.mxu0 0.0
        %2737 = vmatprep.subr.mxu0 0.0
        %2738 = vmatpush1.xpose.msra.mxu0 0.0
        %2739 = vmatprep.subr.mxu0 0.0
        %2740 = vmatpush1.xpose.msra.mxu0 0.0
        %2741 = vmatprep.subr.mxu0 0.0
        %2742 = vmatpush1.xpose.msra.mxu0 0.0
        %2743 = vmatprep.subr.mxu0 0.0
        %2744 = vmatpush1.xpose.msra.mxu0 0.0
        %2745 = vmatprep.subr.mxu0 0.0
        %2746 = vmatpush1.xpose.msra.mxu0 0.0
        %2747 = vmatprep.subr.mxu0 0.0
        %2748 = vmatpush1.xpose.msra.mxu0 0.0
        %2749 = vmatprep.subr.mxu0 0.0
        %2750 = vmatpush1.xpose.msra.mxu0 0.0
        %2751 = vmatprep.subr.mxu0 0.0
        %2752 = vmatpush1.xpose.msra.mxu0 0.0
        %2753 = vmatprep.subr.mxu0 0.0
        %2754 = vmatpush1.xpose.msra.mxu0 0.0
        %2755 = vmatprep.subr.mxu0 0.0
        %2756 = vmatpush1.xpose.msra.mxu0 0.0
        %2757 = vmatprep.subr.mxu0 0.0
        %2758 = vmatpush1.xpose.msra.mxu0 0.0
        %2759 = vmatprep.subr.mxu0 0.0
        %2760 = vmatpush1.xpose.msra.mxu0 %v2729
        %2761 = vmatprep.subr.mxu0 0.0
        %2762 = vmatpush1.xpose.msra.mxu0 %v2726
        %2763 = vmatprep.subr.mxu0 0.0
        %2764 = vmatpush2.xpose.msra.mxu0 0.0
        %2765 = vmatprep.subr.mxu0 0.0
        %2766 = vmatpush2.xpose.msra.mxu0 0.0
        %2767 = vmatprep.subr.mxu0 0.0
        %2768 = vmatpush2.xpose.msra.mxu0 0.0
        %2769 = vmatprep.subr.mxu0 0.0
        %2770 = vmatpush2.xpose.msra.mxu0 0.0
        %2771 = vmatprep.subr.mxu0 0.0
        %2772 = vmatpush2.xpose.msra.mxu0 0.0
        %2773 = vmatprep.subr.mxu0 0.0
        %2774 = vmatpush2.xpose.msra.mxu0 0.0
        %2775 = vmatprep.subr.mxu0 0.0
        %2776 = vmatpush2.xpose.msra.mxu0 0.0
        %2777 = vmatprep.subr.mxu0 0.0
        %2778 = vmatpush2.xpose.msra.mxu0 0.0
        %2779 = vmatprep.subr.mxu0 0.0
        %2780 = vmatpush2.xpose.msra.mxu0 0.0
        %2781 = vmatprep.subr.mxu0 0.0
        %2782 = vmatpush2.xpose.msra.mxu0 0.0
        %2783 = vmatprep.subr.mxu0 0.0
        %2784 = vmatpush2.xpose.msra.mxu0 0.0
        %2785 = vmatprep.subr.mxu0 0.0
        %2786 = vmatpush2.xpose.msra.mxu0 0.0
        %2787 = vmatprep.subr.mxu0 0.0
        %2788 = vmatpush2.xpose.msra.mxu0 0.0
        %2789 = vmatprep.subr.mxu0 0.0
        %2790 = vmatpush2.xpose.msra.mxu0 0.0
        %2791 = vmatprep.subr.mxu0 0.0
        %2792 = vmatpush2.xpose.msra.mxu0 0.0
        %2793 = vmatprep.subr.mxu0 0.0
        %2794 = vmatpush2.xpose.msra.mxu0 0.0
        %2795 = vmatprep.mubr.f32.mxu0 0.0
        %2796 = vmatmul.mubr.f32.gmra.mxu0 %v2720
        %v2797 = vpop.f32.mrf.mxu0
        %v2798 = vadd.f32 0.0, %v2797
        %v2799 = vpop.f32.mrf.mxu0
        %2800 = vmatprep.mubr.f32.mxu0 0.0
        %2801 = vmatmul.mubr.f32.gmra.mxu0 %v2723
        %v2802 = vpop.f32.mrf.mxu0
        %v2803 = vadd.f32 0.0, %v2802
        %v2804 = vpop.f32.mrf.mxu0
        %2805 = vdwg.mxu0
        %v2807 = vsel %vm2718, %v1960, 0
        %v2810 = vsel %vm2718, %v1965, 0
        %v2813 = vsel %vm2718, %v2260, 0
        %v2816 = vsel %vm2718, %v2265, 0
        %2818 = vmatprep.subr.mxu0 0.0
        %2819 = vmatpush1.xpose.msra.mxu0 0.0
        %2820 = vmatprep.subr.mxu0 0.0
        %2821 = vmatpush1.xpose.msra.mxu0 0.0
        %2822 = vmatprep.subr.mxu0 0.0
        %2823 = vmatpush1.xpose.msra.mxu0 0.0
        %2824 = vmatprep.subr.mxu0 0.0
        %2825 = vmatpush1.xpose.msra.mxu0 0.0
        %2826 = vmatprep.subr.mxu0 0.0
        %2827 = vmatpush1.xpose.msra.mxu0 0.0
        %2828 = vmatprep.subr.mxu0 0.0
        %2829 = vmatpush1.xpose.msra.mxu0 0.0
        %2830 = vmatprep.subr.mxu0 0.0
        %2831 = vmatpush1.xpose.msra.mxu0 0.0
        %2832 = vmatprep.subr.mxu0 0.0
        %2833 = vmatpush1.xpose.msra.mxu0 0.0
        %2834 = vmatprep.subr.mxu0 0.0
        %2835 = vmatpush1.xpose.msra.mxu0 0.0
        %2836 = vmatprep.subr.mxu0 0.0
        %2837 = vmatpush1.xpose.msra.mxu0 0.0
        %2838 = vmatprep.subr.mxu0 0.0
        %2839 = vmatpush1.xpose.msra.mxu0 0.0
        %2840 = vmatprep.subr.mxu0 0.0
        %2841 = vmatpush1.xpose.msra.mxu0 0.0
        %2842 = vmatprep.subr.mxu0 0.0
        %2843 = vmatpush1.xpose.msra.mxu0 0.0
        %2844 = vmatprep.subr.mxu0 0.0
        %2845 = vmatpush1.xpose.msra.mxu0 0.0
        %2846 = vmatprep.subr.mxu0 0.0
        %2847 = vmatpush1.xpose.msra.mxu0 %v2816
        %2848 = vmatprep.subr.mxu0 0.0
        %2849 = vmatpush1.xpose.msra.mxu0 %v2813
        %2850 = vmatprep.subr.mxu0 0.0
        %2851 = vmatpush2.xpose.msra.mxu0 0.0
        %2852 = vmatprep.subr.mxu0 0.0
        %2853 = vmatpush2.xpose.msra.mxu0 0.0
        %2854 = vmatprep.subr.mxu0 0.0
        %2855 = vmatpush2.xpose.msra.mxu0 0.0
        %2856 = vmatprep.subr.mxu0 0.0
        %2857 = vmatpush2.xpose.msra.mxu0 0.0
        %2858 = vmatprep.subr.mxu0 0.0
        %2859 = vmatpush2.xpose.msra.mxu0 0.0
        %2860 = vmatprep.subr.mxu0 0.0
        %2861 = vmatpush2.xpose.msra.mxu0 0.0
        %2862 = vmatprep.subr.mxu0 0.0
        %2863 = vmatpush2.xpose.msra.mxu0 0.0
        %2864 = vmatprep.subr.mxu0 0.0
        %2865 = vmatpush2.xpose.msra.mxu0 0.0
        %2866 = vmatprep.subr.mxu0 0.0
        %2867 = vmatpush2.xpose.msra.mxu0 0.0
        %2868 = vmatprep.subr.mxu0 0.0
        %2869 = vmatpush2.xpose.msra.mxu0 0.0
        %2870 = vmatprep.subr.mxu0 0.0
        %2871 = vmatpush2.xpose.msra.mxu0 0.0
        %2872 = vmatprep.subr.mxu0 0.0
        %2873 = vmatpush2.xpose.msra.mxu0 0.0
        %2874 = vmatprep.subr.mxu0 0.0
        %2875 = vmatpush2.xpose.msra.mxu0 0.0
        %2876 = vmatprep.subr.mxu0 0.0
        %2877 = vmatpush2.xpose.msra.mxu0 0.0
        %2878 = vmatprep.subr.mxu0 0.0
        %2879 = vmatpush2.xpose.msra.mxu0 0.0
        %2880 = vmatprep.subr.mxu0 0.0
        %2881 = vmatpush2.xpose.msra.mxu0 0.0
        %2882 = vmatprep.mubr.f32.mxu0 0.0
        %2883 = vmatmul.mubr.f32.gmra.mxu0 %v2807
        %v2884 = vpop.f32.mrf.mxu0
        %v2885 = vadd.f32 0.0, %v2884
        %v2886 = vpop.f32.mrf.mxu0
        %2887 = vmatprep.mubr.f32.mxu0 0.0
        %2888 = vmatmul.mubr.f32.gmra.mxu0 %v2810
        %v2889 = vpop.f32.mrf.mxu0
        %v2890 = vadd.f32 0.0, %v2889
        %v2891 = vpop.f32.mrf.mxu0
        %2892 = vdwg.mxu0
        %v2894 = vsel %vm2718, %v2035, 0
        %v2897 = vsel %vm2718, %v2040, 0
        %v2900 = vsel %vm2718, %v2335, 0
        %v2903 = vsel %vm2718, %v2340, 0
        %2905 = vmatprep.subr.mxu0 0.0
        %2906 = vmatpush1.xpose.msra.mxu0 0.0
        %2907 = vmatprep.subr.mxu0 0.0
        %2908 = vmatpush1.xpose.msra.mxu0 0.0
        %2909 = vmatprep.subr.mxu0 0.0
        %2910 = vmatpush1.xpose.msra.mxu0 0.0
        %2911 = vmatprep.subr.mxu0 0.0
        %2912 = vmatpush1.xpose.msra.mxu0 0.0
        %2913 = vmatprep.subr.mxu0 0.0
        %2914 = vmatpush1.xpose.msra.mxu0 0.0
        %2915 = vmatprep.subr.mxu0 0.0
        %2916 = vmatpush1.xpose.msra.mxu0 0.0
        %2917 = vmatprep.subr.mxu0 0.0
        %2918 = vmatpush1.xpose.msra.mxu0 0.0
        %2919 = vmatprep.subr.mxu0 0.0
        %2920 = vmatpush1.xpose.msra.mxu0 0.0
        %2921 = vmatprep.subr.mxu0 0.0
        %2922 = vmatpush1.xpose.msra.mxu0 0.0
        %2923 = vmatprep.subr.mxu0 0.0
        %2924 = vmatpush1.xpose.msra.mxu0 0.0
        %2925 = vmatprep.subr.mxu0 0.0
        %2926 = vmatpush1.xpose.msra.mxu0 0.0
        %2927 = vmatprep.subr.mxu0 0.0
        %2928 = vmatpush1.xpose.msra.mxu0 0.0
        %2929 = vmatprep.subr.mxu0 0.0
        %2930 = vmatpush1.xpose.msra.mxu0 0.0
        %2931 = vmatprep.subr.mxu0 0.0
        %2932 = vmatpush1.xpose.msra.mxu0 0.0
        %2933 = vmatprep.subr.mxu0 0.0
        %2934 = vmatpush1.xpose.msra.mxu0 %v2903
        %2935 = vmatprep.subr.mxu0 0.0
        %2936 = vmatpush1.xpose.msra.mxu0 %v2900
        %2937 = vmatprep.subr.mxu0 0.0
        %2938 = vmatpush2.xpose.msra.mxu0 0.0
        %2939 = vmatprep.subr.mxu0 0.0
        %2940 = vmatpush2.xpose.msra.mxu0 0.0
        %2941 = vmatprep.subr.mxu0 0.0
        %2942 = vmatpush2.xpose.msra.mxu0 0.0
        %2943 = vmatprep.subr.mxu0 0.0
        %2944 = vmatpush2.xpose.msra.mxu0 0.0
        %2945 = vmatprep.subr.mxu0 0.0
        %2946 = vmatpush2.xpose.msra.mxu0 0.0
        %2947 = vmatprep.subr.mxu0 0.0
        %2948 = vmatpush2.xpose.msra.mxu0 0.0
        %2949 = vmatprep.subr.mxu0 0.0
        %2950 = vmatpush2.xpose.msra.mxu0 0.0
        %2951 = vmatprep.subr.mxu0 0.0
        %2952 = vmatpush2.xpose.msra.mxu0 0.0
        %2953 = vmatprep.subr.mxu0 0.0
        %2954 = vmatpush2.xpose.msra.mxu0 0.0
        %2955 = vmatprep.subr.mxu0 0.0
        %2956 = vmatpush2.xpose.msra.mxu0 0.0
        %2957 = vmatprep.subr.mxu0 0.0
        %2958 = vmatpush2.xpose.msra.mxu0 0.0
        %2959 = vmatprep.subr.mxu0 0.0
        %2960 = vmatpush2.xpose.msra.mxu0 0.0
        %2961 = vmatprep.subr.mxu0 0.0
        %2962 = vmatpush2.xpose.msra.mxu0 0.0
        %2963 = vmatprep.subr.mxu0 0.0
        %2964 = vmatpush2.xpose.msra.mxu0 0.0
        %2965 = vmatprep.subr.mxu0 0.0
        %2966 = vmatpush2.xpose.msra.mxu0 0.0
        %2967 = vmatprep.subr.mxu0 0.0
        %2968 = vmatpush2.xpose.msra.mxu0 0.0
        %2969 = vmatprep.mubr.f32.mxu0 0.0
        %2970 = vmatmul.mubr.f32.gmra.mxu0 %v2894
        %v2971 = vpop.f32.mrf.mxu0
        %v2972 = vadd.f32 0.0, %v2971
        %v2973 = vpop.f32.mrf.mxu0
        %2974 = vmatprep.mubr.f32.mxu0 0.0
        %2975 = vmatmul.mubr.f32.gmra.mxu0 %v2897
        %v2976 = vpop.f32.mrf.mxu0
        %v2977 = vadd.f32 0.0, %v2976
        %v2978 = vpop.f32.mrf.mxu0
        %2979 = vdwg.mxu0
        %v2981 = vsel %vm2718, %v2110, 0
        %v2984 = vsel %vm2718, %v2115, 0
        %v2987 = vsel %vm2718, %v2410, 0
        %v2990 = vsel %vm2718, %v2415, 0
        %2992 = vmatprep.subr.mxu0 0.0
        %2993 = vmatpush1.xpose.msra.mxu0 0.0
        %2994 = vmatprep.subr.mxu0 0.0
        %2995 = vmatpush1.xpose.msra.mxu0 0.0
        %2996 = vmatprep.subr.mxu0 0.0
        %2997 = vmatpush1.xpose.msra.mxu0 0.0
        %2998 = vmatprep.subr.mxu0 0.0
        %2999 = vmatpush1.xpose.msra.mxu0 0.0
        %3000 = vmatprep.subr.mxu0 0.0
        %3001 = vmatpush1.xpose.msra.mxu0 0.0
        %3002 = vmatprep.subr.mxu0 0.0
        %3003 = vmatpush1.xpose.msra.mxu0 0.0
        %3004 = vmatprep.subr.mxu0 0.0
        %3005 = vmatpush1.xpose.msra.mxu0 0.0
        %3006 = vmatprep.subr.mxu0 0.0
        %3007 = vmatpush1.xpose.msra.mxu0 0.0
        %3008 = vmatprep.subr.mxu0 0.0
        %3009 = vmatpush1.xpose.msra.mxu0 0.0
        %3010 = vmatprep.subr.mxu0 0.0
        %3011 = vmatpush1.xpose.msra.mxu0 0.0
        %3012 = vmatprep.subr.mxu0 0.0
        %3013 = vmatpush1.xpose.msra.mxu0 0.0
        %3014 = vmatprep.subr.mxu0 0.0
        %3015 = vmatpush1.xpose.msra.mxu0 0.0
        %3016 = vmatprep.subr.mxu0 0.0
        %3017 = vmatpush1.xpose.msra.mxu0 0.0
        %3018 = vmatprep.subr.mxu0 0.0
        %3019 = vmatpush1.xpose.msra.mxu0 0.0
        %3020 = vmatprep.subr.mxu0 0.0
        %3021 = vmatpush1.xpose.msra.mxu0 %v2990
        %3022 = vmatprep.subr.mxu0 0.0
        %3023 = vmatpush1.xpose.msra.mxu0 %v2987
        %3024 = vmatprep.subr.mxu0 0.0
        %3025 = vmatpush2.xpose.msra.mxu0 0.0
        %3026 = vmatprep.subr.mxu0 0.0
        %3027 = vmatpush2.xpose.msra.mxu0 0.0
        %3028 = vmatprep.subr.mxu0 0.0
        %3029 = vmatpush2.xpose.msra.mxu0 0.0
        %3030 = vmatprep.subr.mxu0 0.0
        %3031 = vmatpush2.xpose.msra.mxu0 0.0
        %3032 = vmatprep.subr.mxu0 0.0
        %3033 = vmatpush2.xpose.msra.mxu0 0.0
        %3034 = vmatprep.subr.mxu0 0.0
        %3035 = vmatpush2.xpose.msra.mxu0 0.0
        %3036 = vmatprep.subr.mxu0 0.0
        %3037 = vmatpush2.xpose.msra.mxu0 0.0
        %3038 = vmatprep.subr.mxu0 0.0
        %3039 = vmatpush2.xpose.msra.mxu0 0.0
        %3040 = vmatprep.subr.mxu0 0.0
        %3041 = vmatpush2.xpose.msra.mxu0 0.0
        %3042 = vmatprep.subr.mxu0 0.0
        %3043 = vmatpush2.xpose.msra.mxu0 0.0
        %3044 = vmatprep.subr.mxu0 0.0
        %3045 = vmatpush2.xpose.msra.mxu0 0.0
        %3046 = vmatprep.subr.mxu0 0.0
        %3047 = vmatpush2.xpose.msra.mxu0 0.0
        %3048 = vmatprep.subr.mxu0 0.0
        %3049 = vmatpush2.xpose.msra.mxu0 0.0
        %3050 = vmatprep.subr.mxu0 0.0
        %3051 = vmatpush2.xpose.msra.mxu0 0.0
        %3052 = vmatprep.subr.mxu0 0.0
        %3053 = vmatpush2.xpose.msra.mxu0 0.0
        %3054 = vmatprep.subr.mxu0 0.0
        %3055 = vmatpush2.xpose.msra.mxu0 0.0
        %3056 = vmatprep.mubr.f32.mxu0 0.0
        %3057 = vmatmul.mubr.f32.gmra.mxu0 %v2981
        %v3058 = vpop.f32.mrf.mxu0
        %v3059 = vadd.f32 0.0, %v3058
        %v3060 = vpop.f32.mrf.mxu0
        %3061 = vmatprep.mubr.f32.mxu0 0.0
        %3062 = vmatmul.mubr.f32.gmra.mxu0 %v2984
        %v3063 = vpop.f32.mrf.mxu0
        %v3064 = vadd.f32 0.0, %v3063
        %v3065 = vpop.f32.mrf.mxu0
        %3066 = vdwg.mxu0
        %vm3067 = vcmask 105472
        %v3068 = vsel %vm3067, %v2798, -inf
        %3069 = vmax.xlane.f32.xlu0 %v3068
        %v3070 = vpop.xlane.xlu0 %3069
        %vm3071 = vcmask 102400
        %v3072 = vsel %vm3071, %v2803, -inf
        %3073 = vmax.xlane.f32.xlu0 %v3072
        %v3074 = vpop.xlane.xlu0 %3073
        %v3075 = vsel %vm3067, %v2885, -inf
        %3076 = vmax.xlane.f32.xlu0 %v3075
        %v3077 = vpop.xlane.xlu0 %3076
        %v3078 = vsel %vm3071, %v2890, -inf
        %3079 = vmax.xlane.f32.xlu0 %v3078
        %v3080 = vpop.xlane.xlu0 %3079
        %v3081 = vsel %vm3067, %v2972, -inf
        %3082 = vmax.xlane.f32.xlu0 %v3081
        %v3083 = vpop.xlane.xlu0 %3082
        %v3084 = vsel %vm3071, %v2977, -inf
        %3085 = vmax.xlane.f32.xlu0 %v3084
        %v3086 = vpop.xlane.xlu0 %3085
        %v3087 = vsel %vm3067, %v3059, -inf
        %3088 = vmax.xlane.f32.xlu0 %v3087
        %v3089 = vpop.xlane.xlu0 %3088
        %v3090 = vsel %vm3071, %v3064, -inf
        %3091 = vmax.xlane.f32.xlu0 %v3090
        %v3092 = vpop.xlane.xlu0 %3091
        %v3093 = vsub.f32 %v2798, %v3070
        %v3094 = vsub.f32 %v2803, %v3074
        %v3095 = vsub.f32 %v2885, %v3077
        %v3096 = vsub.f32 %v2890, %v3080
        %v3097 = vsub.f32 %v2972, %v3083
        %v3098 = vsub.f32 %v2977, %v3086
        %v3099 = vsub.f32 %v3059, %v3089
        %v3100 = vsub.f32 %v3064, %v3092
        %v3101 = vmul.f32 %v3093, 1.442695
        %v3102 = vpow.pop %v3101
        %v3103 = vmul.f32 %v3094, 1.442695
        %v3104 = vpow.pop %v3103
        %v3105 = vmul.f32 %v3095, 1.442695
        %v3106 = vpow.pop %v3105
        %v3107 = vmul.f32 %v3096, 1.442695
        %v3108 = vpow.pop %v3107
        %v3109 = vmul.f32 %v3097, 1.442695
        %v3110 = vpow.pop %v3109
        %v3111 = vmul.f32 %v3098, 1.442695
        %v3112 = vpow.pop %v3111
        %v3113 = vmul.f32 %v3099, 1.442695
        %v3114 = vpow.pop %v3113
        %v3115 = vmul.f32 %v3100, 1.442695
        %v3116 = vpow.pop %v3115
        %v3117 = vsel %vm3067, %v3102, 0.0
        %3118 = vadd.xlane.f32.xlu0 %v3117
        %v3119 = vpop.xlane.xlu0 %3118
        %v3120 = vsel %vm3071, %v3104, 0.0
        %3121 = vadd.xlane.f32.xlu0 %v3120
        %v3122 = vpop.xlane.xlu0 %3121
        %v3123 = vsel %vm3067, %v3106, 0.0
        %3124 = vadd.xlane.f32.xlu0 %v3123
        %v3125 = vpop.xlane.xlu0 %3124
        %v3126 = vsel %vm3071, %v3108, 0.0
        %3127 = vadd.xlane.f32.xlu0 %v3126
        %v3128 = vpop.xlane.xlu0 %3127
        %v3129 = vsel %vm3067, %v3110, 0.0
        %3130 = vadd.xlane.f32.xlu0 %v3129
        %v3131 = vpop.xlane.xlu0 %3130
        %v3132 = vsel %vm3071, %v3112, 0.0
        %3133 = vadd.xlane.f32.xlu0 %v3132
        %v3134 = vpop.xlane.xlu0 %3133
        %v3135 = vsel %vm3067, %v3114, 0.0
        %3136 = vadd.xlane.f32.xlu0 %v3135
        %v3137 = vpop.xlane.xlu0 %3136
        %v3138 = vsel %vm3071, %v3116, 0.0
        %3139 = vadd.xlane.f32.xlu0 %v3138
        %v3140 = vpop.xlane.xlu0 %3139
        %v3141 = vrcp.pop %v3119
        %v3142 = vrcp.pop %v3122
        %v3143 = vrcp.pop %v3125
        %v3144 = vrcp.pop %v3128
        %v3145 = vrcp.pop %v3131
        %v3146 = vrcp.pop %v3134
        %v3147 = vrcp.pop %v3137
        %v3148 = vrcp.pop %v3140
        %v3149 = vmul.f32 %v3102, %v3141
        %v3150 = vmul.f32 %v3104, %v3142
        %v3151 = vmul.f32 %v3106, %v3143
        %v3152 = vmul.f32 %v3108, %v3144
        %v3153 = vmul.f32 %v3110, %v3145
        %v3154 = vmul.f32 %v3112, %v3146
        %v3155 = vmul.f32 %v3114, %v3147
        %v3156 = vmul.f32 %v3116, %v3148
        %v3158 = vsel %vm3067, %v3149, 0
        %v3161 = vsel %vm3067, %v3150, 0
        %vm3163 = vcmask 1044480
        %v3165 = vsel %vm3163, %v2490, 0
        %3167 = vmatprep.subr.mxu0 0.0
        %3168 = vmatpush1.msra.mxu0 0.0
        %3169 = vmatprep.subr.mxu0 0.0
        %3170 = vmatpush1.msra.mxu0 0.0
        %3171 = vmatprep.subr.mxu0 0.0
        %3172 = vmatpush1.msra.mxu0 0.0
        %3173 = vmatprep.subr.mxu0 0.0
        %3174 = vmatpush1.msra.mxu0 0.0
        %3175 = vmatprep.subr.mxu0 0.0
        %3176 = vmatpush1.msra.mxu0 0.0
        %3177 = vmatprep.subr.mxu0 0.0
        %3178 = vmatpush1.msra.mxu0 0.0
        %3179 = vmatprep.subr.mxu0 0.0
        %3180 = vmatpush1.msra.mxu0 0.0
        %3181 = vmatprep.subr.mxu0 0.0
        %3182 = vmatpush1.msra.mxu0 0.0
        %3183 = vmatprep.subr.mxu0 0.0
        %3184 = vmatpush1.msra.mxu0 0.0
        %3185 = vmatprep.subr.mxu0 0.0
        %3186 = vmatpush1.msra.mxu0 0.0
        %3187 = vmatprep.subr.mxu0 0.0
        %3188 = vmatpush1.msra.mxu0 0.0
        %3189 = vmatprep.subr.mxu0 0.0
        %3190 = vmatpush1.msra.mxu0 0.0
        %3191 = vmatprep.subr.mxu0 0.0
        %3192 = vmatpush1.msra.mxu0 0.0
        %3193 = vmatprep.subr.mxu0 0.0
        %3194 = vmatpush1.msra.mxu0 0.0
        %3195 = vmatprep.subr.mxu0 0.0
        %3196 = vmatpush1.msra.mxu0 %v3165
        %3197 = vmatprep.subr.mxu0 0.0
        %3198 = vmatpush1.msra.mxu0 %v2485
        %3199 = vmatprep.subr.mxu0 0.0
        %3200 = vmatpush2.msra.mxu0 0.0
        %3201 = vmatprep.subr.mxu0 0.0
        %3202 = vmatpush2.msra.mxu0 0.0
        %3203 = vmatprep.subr.mxu0 0.0
        %3204 = vmatpush2.msra.mxu0 0.0
        %3205 = vmatprep.subr.mxu0 0.0
        %3206 = vmatpush2.msra.mxu0 0.0
        %3207 = vmatprep.subr.mxu0 0.0
        %3208 = vmatpush2.msra.mxu0 0.0
        %3209 = vmatprep.subr.mxu0 0.0
        %3210 = vmatpush2.msra.mxu0 0.0
        %3211 = vmatprep.subr.mxu0 0.0
        %3212 = vmatpush2.msra.mxu0 0.0
        %3213 = vmatprep.subr.mxu0 0.0
        %3214 = vmatpush2.msra.mxu0 0.0
        %3215 = vmatprep.subr.mxu0 0.0
        %3216 = vmatpush2.msra.mxu0 0.0
        %3217 = vmatprep.subr.mxu0 0.0
        %3218 = vmatpush2.msra.mxu0 0.0
        %3219 = vmatprep.subr.mxu0 0.0
        %3220 = vmatpush2.msra.mxu0 0.0
        %3221 = vmatprep.subr.mxu0 0.0
        %3222 = vmatpush2.msra.mxu0 0.0
        %3223 = vmatprep.subr.mxu0 0.0
        %3224 = vmatpush2.msra.mxu0 0.0
        %3225 = vmatprep.subr.mxu0 0.0
        %3226 = vmatpush2.msra.mxu0 0.0
        %3227 = vmatprep.subr.mxu0 0.0
        %3228 = vmatpush2.msra.mxu0 0.0
        %3229 = vmatprep.subr.mxu0 0.0
        %3230 = vmatpush2.msra.mxu0 0.0
        %3231 = vmatprep.mubr.f32.mxu0 0.0
        %3232 = vmatmul.mubr.f32.gmra.mxu0 %v3158
        %v3233 = vpop.f32.mrf.mxu0
        %v3234 = vadd.f32 0.0, %v3233
        %v3235 = vpop.f32.mrf.mxu0
        %3236 = vmatprep.mubr.f32.mxu0 0.0
        %3237 = vmatmul.mubr.f32.gmra.mxu0 %v3161
        %v3238 = vpop.f32.mrf.mxu0
        %v3239 = vadd.f32 0.0, %v3238
        %v3240 = vpop.f32.mrf.mxu0
        %3241 = vdwg.mxu0
        %v3243 = vsel %vm3067, %v3151, 0
        %v3246 = vsel %vm3067, %v3152, 0
        %v3249 = vsel %vm3163, %v2565, 0
        %3251 = vmatprep.subr.mxu0 0.0
        %3252 = vmatpush1.msra.mxu0 0.0
        %3253 = vmatprep.subr.mxu0 0.0
        %3254 = vmatpush1.msra.mxu0 0.0
        %3255 = vmatprep.subr.mxu0 0.0
        %3256 = vmatpush1.msra.mxu0 0.0
        %3257 = vmatprep.subr.mxu0 0.0
        %3258 = vmatpush1.msra.mxu0 0.0
        %3259 = vmatprep.subr.mxu0 0.0
        %3260 = vmatpush1.msra.mxu0 0.0
        %3261 = vmatprep.subr.mxu0 0.0
        %3262 = vmatpush1.msra.mxu0 0.0
        %3263 = vmatprep.subr.mxu0 0.0
        %3264 = vmatpush1.msra.mxu0 0.0
        %3265 = vmatprep.subr.mxu0 0.0
        %3266 = vmatpush1.msra.mxu0 0.0
        %3267 = vmatprep.subr.mxu0 0.0
        %3268 = vmatpush1.msra.mxu0 0.0
        %3269 = vmatprep.subr.mxu0 0.0
        %3270 = vmatpush1.msra.mxu0 0.0
        %3271 = vmatprep.subr.mxu0 0.0
        %3272 = vmatpush1.msra.mxu0 0.0
        %3273 = vmatprep.subr.mxu0 0.0
        %3274 = vmatpush1.msra.mxu0 0.0
        %3275 = vmatprep.subr.mxu0 0.0
        %3276 = vmatpush1.msra.mxu0 0.0
        %3277 = vmatprep.subr.mxu0 0.0
        %3278 = vmatpush1.msra.mxu0 0.0
        %3279 = vmatprep.subr.mxu0 0.0
        %3280 = vmatpush1.msra.mxu0 %v3249
        %3281 = vmatprep.subr.mxu0 0.0
        %3282 = vmatpush1.msra.mxu0 %v2560
        %3283 = vmatprep.subr.mxu0 0.0
        %3284 = vmatpush2.msra.mxu0 0.0
        %3285 = vmatprep.subr.mxu0 0.0
        %3286 = vmatpush2.msra.mxu0 0.0
        %3287 = vmatprep.subr.mxu0 0.0
        %3288 = vmatpush2.msra.mxu0 0.0
        %3289 = vmatprep.subr.mxu0 0.0
        %3290 = vmatpush2.msra.mxu0 0.0
        %3291 = vmatprep.subr.mxu0 0.0
        %3292 = vmatpush2.msra.mxu0 0.0
        %3293 = vmatprep.subr.mxu0 0.0
        %3294 = vmatpush2.msra.mxu0 0.0
        %3295 = vmatprep.subr.mxu0 0.0
        %3296 = vmatpush2.msra.mxu0 0.0
        %3297 = vmatprep.subr.mxu0 0.0
        %3298 = vmatpush2.msra.mxu0 0.0
        %3299 = vmatprep.subr.mxu0 0.0
        %3300 = vmatpush2.msra.mxu0 0.0
        %3301 = vmatprep.subr.mxu0 0.0
        %3302 = vmatpush2.msra.mxu0 0.0
        %3303 = vmatprep.subr.mxu0 0.0
        %3304 = vmatpush2.msra.mxu0 0.0
        %3305 = vmatprep.subr.mxu0 0.0
        %3306 = vmatpush2.msra.mxu0 0.0
        %3307 = vmatprep.subr.mxu0 0.0
        %3308 = vmatpush2.msra.mxu0 0.0
        %3309 = vmatprep.subr.mxu0 0.0
        %3310 = vmatpush2.msra.mxu0 0.0
        %3311 = vmatprep.subr.mxu0 0.0
        %3312 = vmatpush2.msra.mxu0 0.0
        %3313 = vmatprep.subr.mxu0 0.0
        %3314 = vmatpush2.msra.mxu0 0.0
        %3315 = vmatprep.mubr.f32.mxu0 0.0
        %3316 = vmatmul.mubr.f32.gmra.mxu0 %v3243
        %v3317 = vpop.f32.mrf.mxu0
        %v3318 = vadd.f32 0.0, %v3317
        %v3319 = vpop.f32.mrf.mxu0
        %3320 = vmatprep.mubr.f32.mxu0 0.0
        %3321 = vmatmul.mubr.f32.gmra.mxu0 %v3246
        %v3322 = vpop.f32.mrf.mxu0
        %v3323 = vadd.f32 0.0, %v3322
        %v3324 = vpop.f32.mrf.mxu0
        %3325 = vdwg.mxu0
        %v3327 = vsel %vm3067, %v3153, 0
        %v3330 = vsel %vm3067, %v3154, 0
        %v3333 = vsel %vm3163, %v2640, 0
        %3335 = vmatprep.subr.mxu0 0.0
        %3336 = vmatpush1.msra.mxu0 0.0
        %3337 = vmatprep.subr.mxu0 0.0
        %3338 = vmatpush1.msra.mxu0 0.0
        %3339 = vmatprep.subr.mxu0 0.0
        %3340 = vmatpush1.msra.mxu0 0.0
        %3341 = vmatprep.subr.mxu0 0.0
        %3342 = vmatpush1.msra.mxu0 0.0
        %3343 = vmatprep.subr.mxu0 0.0
        %3344 = vmatpush1.msra.mxu0 0.0
        %3345 = vmatprep.subr.mxu0 0.0
        %3346 = vmatpush1.msra.mxu0 0.0
        %3347 = vmatprep.subr.mxu0 0.0
        %3348 = vmatpush1.msra.mxu0 0.0
        %3349 = vmatprep.subr.mxu0 0.0
        %3350 = vmatpush1.msra.mxu0 0.0
        %3351 = vmatprep.subr.mxu0 0.0
        %3352 = vmatpush1.msra.mxu0 0.0
        %3353 = vmatprep.subr.mxu0 0.0
        %3354 = vmatpush1.msra.mxu0 0.0
        %3355 = vmatprep.subr.mxu0 0.0
        %3356 = vmatpush1.msra.mxu0 0.0
        %3357 = vmatprep.subr.mxu0 0.0
        %3358 = vmatpush1.msra.mxu0 0.0
        %3359 = vmatprep.subr.mxu0 0.0
        %3360 = vmatpush1.msra.mxu0 0.0
        %3361 = vmatprep.subr.mxu0 0.0
        %3362 = vmatpush1.msra.mxu0 0.0
        %3363 = vmatprep.subr.mxu0 0.0
        %3364 = vmatpush1.msra.mxu0 %v3333
        %3365 = vmatprep.subr.mxu0 0.0
        %3366 = vmatpush1.msra.mxu0 %v2635
        %3367 = vmatprep.subr.mxu0 0.0
        %3368 = vmatpush2.msra.mxu0 0.0
        %3369 = vmatprep.subr.mxu0 0.0
        %3370 = vmatpush2.msra.mxu0 0.0
        %3371 = vmatprep.subr.mxu0 0.0
        %3372 = vmatpush2.msra.mxu0 0.0
        %3373 = vmatprep.subr.mxu0 0.0
        %3374 = vmatpush2.msra.mxu0 0.0
        %3375 = vmatprep.subr.mxu0 0.0
        %3376 = vmatpush2.msra.mxu0 0.0
        %3377 = vmatprep.subr.mxu0 0.0
        %3378 = vmatpush2.msra.mxu0 0.0
        %3379 = vmatprep.subr.mxu0 0.0
        %3380 = vmatpush2.msra.mxu0 0.0
        %3381 = vmatprep.subr.mxu0 0.0
        %3382 = vmatpush2.msra.mxu0 0.0
        %3383 = vmatprep.subr.mxu0 0.0
        %3384 = vmatpush2.msra.mxu0 0.0
        %3385 = vmatprep.subr.mxu0 0.0
        %3386 = vmatpush2.msra.mxu0 0.0
        %3387 = vmatprep.subr.mxu0 0.0
        %3388 = vmatpush2.msra.mxu0 0.0
        %3389 = vmatprep.subr.mxu0 0.0
        %3390 = vmatpush2.msra.mxu0 0.0
        %3391 = vmatprep.subr.mxu0 0.0
        %3392 = vmatpush2.msra.mxu0 0.0
        %3393 = vmatprep.subr.mxu0 0.0
        %3394 = vmatpush2.msra.mxu0 0.0
        %3395 = vmatprep.subr.mxu0 0.0
        %3396 = vmatpush2.msra.mxu0 0.0
        %3397 = vmatprep.subr.mxu0 0.0
        %3398 = vmatpush2.msra.mxu0 0.0
        %3399 = vmatprep.mubr.f32.mxu0 0.0
        %3400 = vmatmul.mubr.f32.gmra.mxu0 %v3327
        %v3401 = vpop.f32.mrf.mxu0
        %v3402 = vadd.f32 0.0, %v3401
        %v3403 = vpop.f32.mrf.mxu0
        %3404 = vmatprep.mubr.f32.mxu0 0.0
        %3405 = vmatmul.mubr.f32.gmra.mxu0 %v3330
        %v3406 = vpop.f32.mrf.mxu0
        %v3407 = vadd.f32 0.0, %v3406
        %v3408 = vpop.f32.mrf.mxu0
        %3409 = vdwg.mxu0
        %v3411 = vsel %vm3067, %v3155, 0
        %v3414 = vsel %vm3067, %v3156, 0
        %v3417 = vsel %vm3163, %v2715, 0
        %3419 = vmatprep.subr.mxu0 0.0
        %3420 = vmatpush1.msra.mxu0 0.0
        %3421 = vmatprep.subr.mxu0 0.0
        %3422 = vmatpush1.msra.mxu0 0.0
        %3423 = vmatprep.subr.mxu0 0.0
        %3424 = vmatpush1.msra.mxu0 0.0
        %3425 = vmatprep.subr.mxu0 0.0
        %3426 = vmatpush1.msra.mxu0 0.0
        %3427 = vmatprep.subr.mxu0 0.0
        %3428 = vmatpush1.msra.mxu0 0.0
        %3429 = vmatprep.subr.mxu0 0.0
        %3430 = vmatpush1.msra.mxu0 0.0
        %3431 = vmatprep.subr.mxu0 0.0
        %3432 = vmatpush1.msra.mxu0 0.0
        %3433 = vmatprep.subr.mxu0 0.0
        %3434 = vmatpush1.msra.mxu0 0.0
        %3435 = vmatprep.subr.mxu0 0.0
        %3436 = vmatpush1.msra.mxu0 0.0
        %3437 = vmatprep.subr.mxu0 0.0
        %3438 = vmatpush1.msra.mxu0 0.0
        %3439 = vmatprep.subr.mxu0 0.0
        %3440 = vmatpush1.msra.mxu0 0.0
        %3441 = vmatprep.subr.mxu0 0.0
        %3442 = vmatpush1.msra.mxu0 0.0
        %3443 = vmatprep.subr.mxu0 0.0
        %3444 = vmatpush1.msra.mxu0 0.0
        %3445 = vmatprep.subr.mxu0 0.0
        %3446 = vmatpush1.msra.mxu0 0.0
        %3447 = vmatprep.subr.mxu0 0.0
        %3448 = vmatpush1.msra.mxu0 %v3417
        %3449 = vmatprep.subr.mxu0 0.0
        %3450 = vmatpush1.msra.mxu0 %v2710
        %3451 = vmatprep.subr.mxu0 0.0
        %3452 = vmatpush2.msra.mxu0 0.0
        %3453 = vmatprep.subr.mxu0 0.0
        %3454 = vmatpush2.msra.mxu0 0.0
        %3455 = vmatprep.subr.mxu0 0.0
        %3456 = vmatpush2.msra.mxu0 0.0
        %3457 = vmatprep.subr.mxu0 0.0
        %3458 = vmatpush2.msra.mxu0 0.0
        %3459 = vmatprep.subr.mxu0 0.0
        %3460 = vmatpush2.msra.mxu0 0.0
        %3461 = vmatprep.subr.mxu0 0.0
        %3462 = vmatpush2.msra.mxu0 0.0
        %3463 = vmatprep.subr.mxu0 0.0
        %3464 = vmatpush2.msra.mxu0 0.0
        %3465 = vmatprep.subr.mxu0 0.0
        %3466 = vmatpush2.msra.mxu0 0.0
        %3467 = vmatprep.subr.mxu0 0.0
        %3468 = vmatpush2.msra.mxu0 0.0
        %3469 = vmatprep.subr.mxu0 0.0
        %3470 = vmatpush2.msra.mxu0 0.0
        %3471 = vmatprep.subr.mxu0 0.0
        %3472 = vmatpush2.msra.mxu0 0.0
        %3473 = vmatprep.subr.mxu0 0.0
        %3474 = vmatpush2.msra.mxu0 0.0
        %3475 = vmatprep.subr.mxu0 0.0
        %3476 = vmatpush2.msra.mxu0 0.0
        %3477 = vmatprep.subr.mxu0 0.0
        %3478 = vmatpush2.msra.mxu0 0.0
        %3479 = vmatprep.subr.mxu0 0.0
        %3480 = vmatpush2.msra.mxu0 0.0
        %3481 = vmatprep.subr.mxu0 0.0
        %3482 = vmatpush2.msra.mxu0 0.0
        %3483 = vmatprep.mubr.f32.mxu0 0.0
        %3484 = vmatmul.mubr.f32.gmra.mxu0 %v3411
        %v3485 = vpop.f32.mrf.mxu0
        %v3486 = vadd.f32 0.0, %v3485
        %v3487 = vpop.f32.mrf.mxu0
        %3488 = vmatprep.mubr.f32.mxu0 0.0
        %3489 = vmatmul.mubr.f32.gmra.mxu0 %v3414
        %v3490 = vpop.f32.mrf.mxu0
        %v3491 = vadd.f32 0.0, %v3490
        %v3492 = vpop.f32.mrf.mxu0
        %3493 = vdwg.mxu0
        %v3495 = vsel %vm2718, %v3234, 0
        %v3498 = vsel %vm2718, %v3239, 0
        %3500 = vmatprep.subr.mxu0 0.0
        %3501 = vmatpush1.msra.mxu0 0.0
        %3502 = vmatprep.subr.mxu0 0.0
        %3503 = vmatpush1.msra.mxu0 0.0
        %3504 = vmatprep.subr.mxu0 0.0
        %3505 = vmatpush1.msra.mxu0 0.0
        %3506 = vmatprep.subr.mxu0 0.0
        %3507 = vmatpush1.msra.mxu0 0.0
        %3508 = vmatprep.subr.mxu0 0.0
        %3509 = vmatpush1.msra.mxu0 0.0
        %3510 = vmatprep.subr.mxu0 0.0
        %3511 = vmatpush1.msra.mxu0 0.0
        %3512 = vmatprep.subr.mxu0 0.0
        %3513 = vmatpush1.msra.mxu0 0.0
        %3514 = vmatprep.subr.mxu0 0.0
        %3515 = vmatpush1.msra.mxu0 0.0
        %3516 = vmatprep.subr.mxu0 0.0
        %3517 = vmatpush1.msra.mxu0 0.0
        %3518 = vmatprep.subr.mxu0 0.0
        %3519 = vmatpush1.msra.mxu0 0.0
        %3520 = vmatprep.subr.mxu0 0.0
        %3521 = vmatpush1.msra.mxu0 0.0
        %3522 = vmatprep.subr.mxu0 0.0
        %3523 = vmatpush1.msra.mxu0 0.0
        %3524 = vmatprep.subr.mxu0 0.0
        %3525 = vmatpush1.msra.mxu0 0.0
        %3526 = vmatprep.subr.mxu0 0.0
        %3527 = vmatpush1.msra.mxu0 0.0
        %3528 = vmatprep.subr.mxu0 0.0
        %3529 = vmatpush1.msra.mxu0 0.0
        %3530 = vmatprep.subr.mxu0 0.0
        %3531 = vmatpush1.msra.mxu0 %v1739
        %3532 = vmatprep.subr.mxu0 0.0
        %3533 = vmatpush2.msra.mxu0 0.0
        %3534 = vmatprep.subr.mxu0 0.0
        %3535 = vmatpush2.msra.mxu0 0.0
        %3536 = vmatprep.subr.mxu0 0.0
        %3537 = vmatpush2.msra.mxu0 0.0
        %3538 = vmatprep.subr.mxu0 0.0
        %3539 = vmatpush2.msra.mxu0 0.0
        %3540 = vmatprep.subr.mxu0 0.0
        %3541 = vmatpush2.msra.mxu0 0.0
        %3542 = vmatprep.subr.mxu0 0.0
        %3543 = vmatpush2.msra.mxu0 0.0
        %3544 = vmatprep.subr.mxu0 0.0
        %3545 = vmatpush2.msra.mxu0 0.0
        %3546 = vmatprep.subr.mxu0 0.0
        %3547 = vmatpush2.msra.mxu0 0.0
        %3548 = vmatprep.subr.mxu0 0.0
        %3549 = vmatpush2.msra.mxu0 0.0
        %3550 = vmatprep.subr.mxu0 0.0
        %3551 = vmatpush2.msra.mxu0 0.0
        %3552 = vmatprep.subr.mxu0 0.0
        %3553 = vmatpush2.msra.mxu0 0.0
        %3554 = vmatprep.subr.mxu0 0.0
        %3555 = vmatpush2.msra.mxu0 0.0
        %3556 = vmatprep.subr.mxu0 0.0
        %3557 = vmatpush2.msra.mxu0 0.0
        %3558 = vmatprep.subr.mxu0 0.0
        %3559 = vmatpush2.msra.mxu0 0.0
        %3560 = vmatprep.subr.mxu0 0.0
        %3561 = vmatpush2.msra.mxu0 0.0
        %3562 = vmatprep.subr.mxu0 0.0
        %3563 = vmatpush2.msra.mxu0 0.0
        %3564 = vmatprep.mubr.f32.mxu0 0.0
        %3565 = vmatmul.mubr.f32.gmra.mxu0 %v3495
        %v3566 = vpop.f32.mrf.mxu0
        %v3567 = vadd.f32 0.0, %v3566
        %v3568 = vpop.f32.mrf.mxu0
        %3569 = vmatprep.mubr.f32.mxu0 0.0
        %3570 = vmatmul.mubr.f32.gmra.mxu0 %v3498
        %v3571 = vpop.f32.mrf.mxu0
        %v3572 = vadd.f32 0.0, %v3571
        %v3573 = vpop.f32.mrf.mxu0
        %3574 = vdwg.mxu0
        %v3576 = vsel %vm2718, %v3318, 0
        %v3579 = vsel %vm2718, %v3323, 0
        %3581 = vmatprep.subr.mxu0 0.0
        %3582 = vmatpush1.msra.mxu0 0.0
        %3583 = vmatprep.subr.mxu0 0.0
        %3584 = vmatpush1.msra.mxu0 0.0
        %3585 = vmatprep.subr.mxu0 0.0
        %3586 = vmatpush1.msra.mxu0 0.0
        %3587 = vmatprep.subr.mxu0 0.0
        %3588 = vmatpush1.msra.mxu0 0.0
        %3589 = vmatprep.subr.mxu0 0.0
        %3590 = vmatpush1.msra.mxu0 0.0
        %3591 = vmatprep.subr.mxu0 0.0
        %3592 = vmatpush1.msra.mxu0 0.0
        %3593 = vmatprep.subr.mxu0 0.0
        %3594 = vmatpush1.msra.mxu0 0.0
        %3595 = vmatprep.subr.mxu0 0.0
        %3596 = vmatpush1.msra.mxu0 0.0
        %3597 = vmatprep.subr.mxu0 0.0
        %3598 = vmatpush1.msra.mxu0 0.0
        %3599 = vmatprep.subr.mxu0 0.0
        %3600 = vmatpush1.msra.mxu0 0.0
        %3601 = vmatprep.subr.mxu0 0.0
        %3602 = vmatpush1.msra.mxu0 0.0
        %3603 = vmatprep.subr.mxu0 0.0
        %3604 = vmatpush1.msra.mxu0 0.0
        %3605 = vmatprep.subr.mxu0 0.0
        %3606 = vmatpush1.msra.mxu0 0.0
        %3607 = vmatprep.subr.mxu0 0.0
        %3608 = vmatpush1.msra.mxu0 0.0
        %3609 = vmatprep.subr.mxu0 0.0
        %3610 = vmatpush1.msra.mxu0 0.0
        %3611 = vmatprep.subr.mxu0 0.0
        %3612 = vmatpush1.msra.mxu0 %v1740
        %3613 = vmatprep.subr.mxu0 0.0
        %3614 = vmatpush2.msra.mxu0 0.0
        %3615 = vmatprep.subr.mxu0 0.0
        %3616 = vmatpush2.msra.mxu0 0.0
        %3617 = vmatprep.subr.mxu0 0.0
        %3618 = vmatpush2.msra.mxu0 0.0
        %3619 = vmatprep.subr.mxu0 0.0
        %3620 = vmatpush2.msra.mxu0 0.0
        %3621 = vmatprep.subr.mxu0 0.0
        %3622 = vmatpush2.msra.mxu0 0.0
        %3623 = vmatprep.subr.mxu0 0.0
        %3624 = vmatpush2.msra.mxu0 0.0
        %3625 = vmatprep.subr.mxu0 0.0
        %3626 = vmatpush2.msra.mxu0 0.0
        %3627 = vmatprep.subr.mxu0 0.0
        %3628 = vmatpush2.msra.mxu0 0.0
        %3629 = vmatprep.subr.mxu0 0.0
        %3630 = vmatpush2.msra.mxu0 0.0
        %3631 = vmatprep.subr.mxu0 0.0
        %3632 = vmatpush2.msra.mxu0 0.0
        %3633 = vmatprep.subr.mxu0 0.0
        %3634 = vmatpush2.msra.mxu0 0.0
        %3635 = vmatprep.subr.mxu0 0.0
        %3636 = vmatpush2.msra.mxu0 0.0
        %3637 = vmatprep.subr.mxu0 0.0
        %3638 = vmatpush2.msra.mxu0 0.0
        %3639 = vmatprep.subr.mxu0 0.0
        %3640 = vmatpush2.msra.mxu0 0.0
        %3641 = vmatprep.subr.mxu0 0.0
        %3642 = vmatpush2.msra.mxu0 0.0
        %3643 = vmatprep.subr.mxu0 0.0
        %3644 = vmatpush2.msra.mxu0 0.0
        %3645 = vmatprep.mubr.f32.mxu0 0.0
        %3646 = vmatmul.mubr.f32.gmra.mxu0 %v3576
        %v3647 = vpop.f32.mrf.mxu0
        %v3648 = vadd.f32 0.0, %v3647
        %v3649 = vpop.f32.mrf.mxu0
        %3650 = vmatprep.mubr.f32.mxu0 0.0
        %3651 = vmatmul.mubr.f32.gmra.mxu0 %v3579
        %v3652 = vpop.f32.mrf.mxu0
        %v3653 = vadd.f32 0.0, %v3652
        %v3654 = vpop.f32.mrf.mxu0
        %3655 = vdwg.mxu0
        %v3657 = vsel %vm2718, %v3402, 0
        %v3660 = vsel %vm2718, %v3407, 0
        %3662 = vmatprep.subr.mxu0 0.0
        %3663 = vmatpush1.msra.mxu0 0.0
        %3664 = vmatprep.subr.mxu0 0.0
        %3665 = vmatpush1.msra.mxu0 0.0
        %3666 = vmatprep.subr.mxu0 0.0
        %3667 = vmatpush1.msra.mxu0 0.0
        %3668 = vmatprep.subr.mxu0 0.0
        %3669 = vmatpush1.msra.mxu0 0.0
        %3670 = vmatprep.subr.mxu0 0.0
        %3671 = vmatpush1.msra.mxu0 0.0
        %3672 = vmatprep.subr.mxu0 0.0
        %3673 = vmatpush1.msra.mxu0 0.0
        %3674 = vmatprep.subr.mxu0 0.0
        %3675 = vmatpush1.msra.mxu0 0.0
        %3676 = vmatprep.subr.mxu0 0.0
        %3677 = vmatpush1.msra.mxu0 0.0
        %3678 = vmatprep.subr.mxu0 0.0
        %3679 = vmatpush1.msra.mxu0 0.0
        %3680 = vmatprep.subr.mxu0 0.0
        %3681 = vmatpush1.msra.mxu0 0.0
        %3682 = vmatprep.subr.mxu0 0.0
        %3683 = vmatpush1.msra.mxu0 0.0
        %3684 = vmatprep.subr.mxu0 0.0
        %3685 = vmatpush1.msra.mxu0 0.0
        %3686 = vmatprep.subr.mxu0 0.0
        %3687 = vmatpush1.msra.mxu0 0.0
        %3688 = vmatprep.subr.mxu0 0.0
        %3689 = vmatpush1.msra.mxu0 0.0
        %3690 = vmatprep.subr.mxu0 0.0
        %3691 = vmatpush1.msra.mxu0 0.0
        %3692 = vmatprep.subr.mxu0 0.0
        %3693 = vmatpush1.msra.mxu0 %v1741
        %3694 = vmatprep.subr.mxu0 0.0
        %3695 = vmatpush2.msra.mxu0 0.0
        %3696 = vmatprep.subr.mxu0 0.0
        %3697 = vmatpush2.msra.mxu0 0.0
        %3698 = vmatprep.subr.mxu0 0.0
        %3699 = vmatpush2.msra.mxu0 0.0
        %3700 = vmatprep.subr.mxu0 0.0
        %3701 = vmatpush2.msra.mxu0 0.0
        %3702 = vmatprep.subr.mxu0 0.0
        %3703 = vmatpush2.msra.mxu0 0.0
        %3704 = vmatprep.subr.mxu0 0.0
        %3705 = vmatpush2.msra.mxu0 0.0
        %3706 = vmatprep.subr.mxu0 0.0
        %3707 = vmatpush2.msra.mxu0 0.0
        %3708 = vmatprep.subr.mxu0 0.0
        %3709 = vmatpush2.msra.mxu0 0.0
        %3710 = vmatprep.subr.mxu0 0.0
        %3711 = vmatpush2.msra.mxu0 0.0
        %3712 = vmatprep.subr.mxu0 0.0
        %3713 = vmatpush2.msra.mxu0 0.0
        %3714 = vmatprep.subr.mxu0 0.0
        %3715 = vmatpush2.msra.mxu0 0.0
        %3716 = vmatprep.subr.mxu0 0.0
        %3717 = vmatpush2.msra.mxu0 0.0
        %3718 = vmatprep.subr.mxu0 0.0
        %3719 = vmatpush2.msra.mxu0 0.0
        %3720 = vmatprep.subr.mxu0 0.0
        %3721 = vmatpush2.msra.mxu0 0.0
        %3722 = vmatprep.subr.mxu0 0.0
        %3723 = vmatpush2.msra.mxu0 0.0
        %3724 = vmatprep.subr.mxu0 0.0
        %3725 = vmatpush2.msra.mxu0 0.0
        %3726 = vmatprep.mubr.f32.mxu0 0.0
        %3727 = vmatmul.mubr.f32.gmra.mxu0 %v3657
        %v3728 = vpop.f32.mrf.mxu0
        %v3729 = vadd.f32 0.0, %v3728
        %v3730 = vpop.f32.mrf.mxu0
        %3731 = vmatprep.mubr.f32.mxu0 0.0
        %3732 = vmatmul.mubr.f32.gmra.mxu0 %v3660
        %v3733 = vpop.f32.mrf.mxu0
        %v3734 = vadd.f32 0.0, %v3733
        %v3735 = vpop.f32.mrf.mxu0
        %3736 = vdwg.mxu0
        %v3738 = vsel %vm2718, %v3486, 0
        %v3741 = vsel %vm2718, %v3491, 0
        %3743 = vmatprep.subr.mxu0 0.0
        %3744 = vmatpush1.msra.mxu0 0.0
        %3745 = vmatprep.subr.mxu0 0.0
        %3746 = vmatpush1.msra.mxu0 0.0
        %3747 = vmatprep.subr.mxu0 0.0
        %3748 = vmatpush1.msra.mxu0 0.0
        %3749 = vmatprep.subr.mxu0 0.0
        %3750 = vmatpush1.msra.mxu0 0.0
        %3751 = vmatprep.subr.mxu0 0.0
        %3752 = vmatpush1.msra.mxu0 0.0
        %3753 = vmatprep.subr.mxu0 0.0
        %3754 = vmatpush1.msra.mxu0 0.0
        %3755 = vmatprep.subr.mxu0 0.0
        %3756 = vmatpush1.msra.mxu0 0.0
        %3757 = vmatprep.subr.mxu0 0.0
        %3758 = vmatpush1.msra.mxu0 0.0
        %3759 = vmatprep.subr.mxu0 0.0
        %3760 = vmatpush1.msra.mxu0 0.0
        %3761 = vmatprep.subr.mxu0 0.0
        %3762 = vmatpush1.msra.mxu0 0.0
        %3763 = vmatprep.subr.mxu0 0.0
        %3764 = vmatpush1.msra.mxu0 0.0
        %3765 = vmatprep.subr.mxu0 0.0
        %3766 = vmatpush1.msra.mxu0 0.0
        %3767 = vmatprep.subr.mxu0 0.0
        %3768 = vmatpush1.msra.mxu0 0.0
        %3769 = vmatprep.subr.mxu0 0.0
        %3770 = vmatpush1.msra.mxu0 0.0
        %3771 = vmatprep.subr.mxu0 0.0
        %3772 = vmatpush1.msra.mxu0 0.0
        %3773 = vmatprep.subr.mxu0 0.0
        %3774 = vmatpush1.msra.mxu0 %v1742
        %3775 = vmatprep.subr.mxu0 0.0
        %3776 = vmatpush2.msra.mxu0 0.0
        %3777 = vmatprep.subr.mxu0 0.0
        %3778 = vmatpush2.msra.mxu0 0.0
        %3779 = vmatprep.subr.mxu0 0.0
        %3780 = vmatpush2.msra.mxu0 0.0
        %3781 = vmatprep.subr.mxu0 0.0
        %3782 = vmatpush2.msra.mxu0 0.0
        %3783 = vmatprep.subr.mxu0 0.0
        %3784 = vmatpush2.msra.mxu0 0.0
        %3785 = vmatprep.subr.mxu0 0.0
        %3786 = vmatpush2.msra.mxu0 0.0
        %3787 = vmatprep.subr.mxu0 0.0
        %3788 = vmatpush2.msra.mxu0 0.0
        %3789 = vmatprep.subr.mxu0 0.0
        %3790 = vmatpush2.msra.mxu0 0.0
        %3791 = vmatprep.subr.mxu0 0.0
        %3792 = vmatpush2.msra.mxu0 0.0
        %3793 = vmatprep.subr.mxu0 0.0
        %3794 = vmatpush2.msra.mxu0 0.0
        %3795 = vmatprep.subr.mxu0 0.0
        %3796 = vmatpush2.msra.mxu0 0.0
        %3797 = vmatprep.subr.mxu0 0.0
        %3798 = vmatpush2.msra.mxu0 0.0
        %3799 = vmatprep.subr.mxu0 0.0
        %3800 = vmatpush2.msra.mxu0 0.0
        %3801 = vmatprep.subr.mxu0 0.0
        %3802 = vmatpush2.msra.mxu0 0.0
        %3803 = vmatprep.subr.mxu0 0.0
        %3804 = vmatpush2.msra.mxu0 0.0
        %3805 = vmatprep.subr.mxu0 0.0
        %3806 = vmatpush2.msra.mxu0 0.0
        %3807 = vmatprep.mubr.f32.mxu0 0.0
        %3808 = vmatmul.mubr.f32.gmra.mxu0 %v3738
        %v3809 = vpop.f32.mrf.mxu0
        %v3810 = vadd.f32 0.0, %v3809
        %v3811 = vpop.f32.mrf.mxu0
        %3812 = vmatprep.mubr.f32.mxu0 0.0
        %3813 = vmatmul.mubr.f32.gmra.mxu0 %v3741
        %v3814 = vpop.f32.mrf.mxu0
        %v3815 = vadd.f32 0.0, %v3814
        %v3816 = vpop.f32.mrf.mxu0
        %3817 = vdwg.mxu0
        %v3818 = vsel %vm1575, %v3567, 0.0
        %v3819 = vsel %vm1575, %v3648, 0.0
        %v3820 = vadd.f32 %v3818, %v3819
        %v3821 = vsel %vm1575, %v3729, 0.0
        %v3822 = vadd.f32 %v3820, %v3821
        %v3823 = vsel %vm1575, %v3810, 0.0
        %v3824 = vadd.f32 %v3822, %v3823
        %v3825 = vsel %vm1771, %v3572, 0.0
        %v3826 = vsel %vm1771, %v3653, 0.0
        %v3827 = vadd.f32 %v3825, %v3826
        %v3828 = vsel %vm1771, %v3734, 0.0
        %v3829 = vadd.f32 %v3827, %v3828
        %v3830 = vsel %vm1771, %v3815, 0.0
        %v3831 = vadd.f32 %v3829, %v3830
        %v3832 = vadd.f32 %v1681, %v3824
        %v3833 = vadd.f32 %v1686, %v3831
        %v3835 = vlaneseq
        %v3836 = vshrl.u32 %v3835, 7
        %v3837 = vsub.s32 0, %v3836
        %v3838 = vrot.slane %v1743, %v3837
        %v3840 = vadd.f32 %v3832, %v3838
        %v3841 = vadd.f32 %v3833, %v3838
        %v3842 = vsel %vm1575, %v3840, 0.0
        %3843 = vadd.xlane.f32.xlu0 %v3842
        %v3844 = vpop.xlane.xlu0 %3843
        %v3845 = vsel %vm1771, %v3841, 0.0
        %3846 = vadd.xlane.f32.xlu0 %v3845
        %v3847 = vpop.xlane.xlu0 %3846
        %v3848 = vmul.f32 %v3844, %v1775
        %v3849 = vmul.f32 %v3847, %v1775
        %v3850 = vsub.f32 %v3840, %v3848
        %v3851 = vsub.f32 %v3841, %v3849
        %v3852 = vmul.f32 %v3850, %v3850
        %v3853 = vmul.f32 %v3851, %v3851
        %v3854 = vsel %vm1575, %v3852, 0.0
        %3855 = vadd.xlane.f32.xlu0 %v3854
        %v3856 = vpop.xlane.xlu0 %3855
        %v3857 = vsel %vm1771, %v3853, 0.0
        %3858 = vadd.xlane.f32.xlu0 %v3857
        %v3859 = vpop.xlane.xlu0 %3858
        %v3860 = vmul.f32 %v3856, %v1775
        %v3861 = vmul.f32 %v3859, %v1775
        %v3862 = vadd.f32 %v3860, 1e-06
        %v3863 = vadd.f32 %v3861, 1e-06
        %v3864 = vrsqrt.pop %v3862
        %v3865 = vrsqrt.pop %v3863
        %v3866 = vmul.f32 %v3850, %v3864
        %v3867 = vmul.f32 %v3851, %v3865
        %v3869 = vlaneseq
        %v3870 = vshrl.u32 %v3869, 7
        %v3871 = vsub.s32 0, %v3870
        %v3872 = vrot.slane %v1744, %v3871
        %v3874 = vmul.f32 %v3866, %v3872
        %v3875 = vmul.f32 %v3867, %v3872
        %v3877 = vlaneseq
        %v3878 = vshrl.u32 %v3877, 7
        %v3879 = vsub.s32 0, %v3878
        %v3880 = vrot.slane %v1745, %v3879
        %v3882 = vadd.f32 %v3874, %v3880
        %v3883 = vadd.f32 %v3875, %v3880
        %v3885 = vlaneseq
        %v3886 = vshrl.u32 %v3885, 7
        %v3887 = vsub.s32 0, %v3886
        %v3888 = vrot.slane %v1750, %v3887
        %v3891 = vsel %vm1575, %v3882, 0
        %v3894 = vsel %vm1575, %v3883, 0
        %3896 = vmatprep.subr.mxu0 0.0
        %3897 = vmatpush1.msra.mxu0 0.0
        %3898 = vmatprep.subr.mxu0 0.0
        %3899 = vmatpush1.msra.mxu0 0.0
        %3900 = vmatprep.subr.mxu0 0.0
        %3901 = vmatpush1.msra.mxu0 0.0
        %3902 = vmatprep.subr.mxu0 0.0
        %3903 = vmatpush1.msra.mxu0 0.0
        %3904 = vmatprep.subr.mxu0 0.0
        %3905 = vmatpush1.msra.mxu0 0.0
        %3906 = vmatprep.subr.mxu0 0.0
        %3907 = vmatpush1.msra.mxu0 0.0
        %3908 = vmatprep.subr.mxu0 0.0
        %3909 = vmatpush1.msra.mxu0 0.0
        %3910 = vmatprep.subr.mxu0 0.0
        %3911 = vmatpush1.msra.mxu0 0.0
        %3912 = vmatprep.subr.mxu0 0.0
        %3913 = vmatpush1.msra.mxu0 0.0
        %3914 = vmatprep.subr.mxu0 0.0
        %3915 = vmatpush1.msra.mxu0 0.0
        %3916 = vmatprep.subr.mxu0 0.0
        %3917 = vmatpush1.msra.mxu0 0.0
        %3918 = vmatprep.subr.mxu0 0.0
        %3919 = vmatpush1.msra.mxu0 0.0
        %3920 = vmatprep.subr.mxu0 0.0
        %3921 = vmatpush1.msra.mxu0 %v1749
        %3922 = vmatprep.subr.mxu0 0.0
        %3923 = vmatpush1.msra.mxu0 %v1748
        %3924 = vmatprep.subr.mxu0 0.0
        %3925 = vmatpush1.msra.mxu0 %v1747
        %3926 = vmatprep.subr.mxu0 0.0
        %3927 = vmatpush1.msra.mxu0 %v1746
        %3928 = vmatprep.subr.mxu0 0.0
        %3929 = vmatpush2.msra.mxu0 0.0
        %3930 = vmatprep.subr.mxu0 0.0
        %3931 = vmatpush2.msra.mxu0 0.0
        %3932 = vmatprep.subr.mxu0 0.0
        %3933 = vmatpush2.msra.mxu0 0.0
        %3934 = vmatprep.subr.mxu0 0.0
        %3935 = vmatpush2.msra.mxu0 0.0
        %3936 = vmatprep.subr.mxu0 0.0
        %3937 = vmatpush2.msra.mxu0 0.0
        %3938 = vmatprep.subr.mxu0 0.0
        %3939 = vmatpush2.msra.mxu0 0.0
        %3940 = vmatprep.subr.mxu0 0.0
        %3941 = vmatpush2.msra.mxu0 0.0
        %3942 = vmatprep.subr.mxu0 0.0
        %3943 = vmatpush2.msra.mxu0 0.0
        %3944 = vmatprep.subr.mxu0 0.0
        %3945 = vmatpush2.msra.mxu0 0.0
        %3946 = vmatprep.subr.mxu0 0.0
        %3947 = vmatpush2.msra.mxu0 0.0
        %3948 = vmatprep.subr.mxu0 0.0
        %3949 = vmatpush2.msra.mxu0 0.0
        %3950 = vmatprep.subr.mxu0 0.0
        %3951 = vmatpush2.msra.mxu0 0.0
        %3952 = vmatprep.subr.mxu0 0.0
        %3953 = vmatpush2.msra.mxu0 0.0
        %3954 = vmatprep.subr.mxu0 0.0
        %3955 = vmatpush2.msra.mxu0 0.0
        %3956 = vmatprep.subr.mxu0 0.0
        %3957 = vmatpush2.msra.mxu0 0.0
        %3958 = vmatprep.subr.mxu0 0.0
        %3959 = vmatpush2.msra.mxu0 0.0
        %3960 = vmatprep.mubr.f32.mxu0 0.0
        %3961 = vmatmul.mubr.f32.gmra.mxu0 %v3891
        %v3962 = vpop.f32.mrf.mxu0
        %v3963 = vadd.f32 %v3888, %v3962
        %v3964 = vpop.f32.mrf.mxu0
        %3965 = vmatprep.mubr.f32.mxu0 0.0
        %3966 = vmatmul.mubr.f32.gmra.mxu0 %v3894
        %v3967 = vpop.f32.mrf.mxu0
        %v3968 = vadd.f32 %v3888, %v3967
        %v3969 = vpop.f32.mrf.mxu0
        %3970 = vdwg.mxu0
        %v3971 = vmul.f32 %v3963, %v3963
        %v3972 = vmul.f32 %v3968, %v3968
        %v3973 = vmul.f32 %v3963, %v3971
        %v3974 = vmul.f32 %v3968, %v3972
        %v3975 = vmul.f32 %v3973, 0.044715
        %v3976 = vmul.f32 %v3974, 0.044715
        %v3977 = vadd.f32 %v3963, %v3975
        %v3978 = vadd.f32 %v3968, %v3976
        %v3979 = vmul.f32 %v3977, 0.7978846
        %v3980 = vmul.f32 %v3978, 0.7978846
        %v3981 = vtanh.pop %v3979
        %v3982 = vtanh.pop %v3980
        %v3983 = vadd.f32 %v3981, 1.0
        %v3984 = vadd.f32 %v3982, 1.0
        %v3985 = vmul.f32 %v3983, 0.5
        %v3986 = vmul.f32 %v3984, 0.5
        %v3987 = vmul.f32 %v3963, %v3985
        %v3988 = vmul.f32 %v3968, %v3986
        %v3990 = vlaneseq
        %v3991 = vshrl.u32 %v3990, 7
        %v3992 = vsub.s32 0, %v3991
        %v3993 = vrot.slane %v1767, %v3992
        %3995 = vmatprep.subr.mxu0 0.0
        %3996 = vmatpush1.msra.mxu0 %v1766
        %3997 = vmatprep.subr.mxu0 0.0
        %3998 = vmatpush1.msra.mxu0 %v1765
        %3999 = vmatprep.subr.mxu0 0.0
        %4000 = vmatpush1.msra.mxu0 %v1764
        %4001 = vmatprep.subr.mxu0 0.0
        %4002 = vmatpush1.msra.mxu0 %v1763
        %4003 = vmatprep.subr.mxu0 0.0
        %4004 = vmatpush1.msra.mxu0 %v1762
        %4005 = vmatprep.subr.mxu0 0.0
        %4006 = vmatpush1.msra.mxu0 %v1761
        %4007 = vmatprep.subr.mxu0 0.0
        %4008 = vmatpush1.msra.mxu0 %v1760
        %4009 = vmatprep.subr.mxu0 0.0
        %4010 = vmatpush1.msra.mxu0 %v1759
        %4011 = vmatprep.subr.mxu0 0.0
        %4012 = vmatpush1.msra.mxu0 %v1758
        %4013 = vmatprep.subr.mxu0 0.0
        %4014 = vmatpush1.msra.mxu0 %v1757
        %4015 = vmatprep.subr.mxu0 0.0
        %4016 = vmatpush1.msra.mxu0 %v1756
        %4017 = vmatprep.subr.mxu0 0.0
        %4018 = vmatpush1.msra.mxu0 %v1755
        %4019 = vmatprep.subr.mxu0 0.0
        %4020 = vmatpush1.msra.mxu0 %v1754
        %4021 = vmatprep.subr.mxu0 0.0
        %4022 = vmatpush1.msra.mxu0 %v1753
        %4023 = vmatprep.subr.mxu0 0.0
        %4024 = vmatpush1.msra.mxu0 %v1752
        %4025 = vmatprep.subr.mxu0 0.0
        %4026 = vmatpush1.msra.mxu0 %v1751
        %4027 = vmatprep.subr.mxu0 0.0
        %4028 = vmatpush2.msra.mxu0 0.0
        %4029 = vmatprep.subr.mxu0 0.0
        %4030 = vmatpush2.msra.mxu0 0.0
        %4031 = vmatprep.subr.mxu0 0.0
        %4032 = vmatpush2.msra.mxu0 0.0
        %4033 = vmatprep.subr.mxu0 0.0
        %4034 = vmatpush2.msra.mxu0 0.0
        %4035 = vmatprep.subr.mxu0 0.0
        %4036 = vmatpush2.msra.mxu0 0.0
        %4037 = vmatprep.subr.mxu0 0.0
        %4038 = vmatpush2.msra.mxu0 0.0
        %4039 = vmatprep.subr.mxu0 0.0
        %4040 = vmatpush2.msra.mxu0 0.0
        %4041 = vmatprep.subr.mxu0 0.0
        %4042 = vmatpush2.msra.mxu0 0.0
        %4043 = vmatprep.subr.mxu0 0.0
        %4044 = vmatpush2.msra.mxu0 0.0
        %4045 = vmatprep.subr.mxu0 0.0
        %4046 = vmatpush2.msra.mxu0 0.0
        %4047 = vmatprep.subr.mxu0 0.0
        %4048 = vmatpush2.msra.mxu0 0.0
        %4049 = vmatprep.subr.mxu0 0.0
        %4050 = vmatpush2.msra.mxu0 0.0
        %4051 = vmatprep.subr.mxu0 0.0
        %4052 = vmatpush2.msra.mxu0 0.0
        %4053 = vmatprep.subr.mxu0 0.0
        %4054 = vmatpush2.msra.mxu0 0.0
        %4055 = vmatprep.subr.mxu0 0.0
        %4056 = vmatpush2.msra.mxu0 0.0
        %4057 = vmatprep.subr.mxu0 0.0
        %4058 = vmatpush2.msra.mxu0 0.0
        %4059 = vmatprep.mubr.f32.mxu0 0.0
        %4060 = vmatmul.mubr.f32.gmra.mxu0 %v3987
        %v4061 = vpop.f32.mrf.mxu0
        %v4062 = vadd.f32 %v3993, %v4061
        %v4063 = vpop.f32.mrf.mxu0
        %4064 = vmatprep.mubr.f32.mxu0 0.0
        %4065 = vmatmul.mubr.f32.gmra.mxu0 %v3988
        %v4066 = vpop.f32.mrf.mxu0
        %v4067 = vadd.f32 %v3993, %v4066
        %v4068 = vpop.f32.mrf.mxu0
        %4069 = vdwg.mxu0
        %v4070 = vadd.f32 %v3840, %v4062
        %v4071 = vadd.f32 %v3841, %v4067
        %s4072 = scalar_lea.vmem %s21, 1
        %v4073 = vld [vmem:[%s4072] sm:$0x1]
        %s4074 = scalar_lea.vmem %s23, 1
        %v4075 = vld [vmem:[%s4074] sm:$0x1]
        %s4076 = scalar_lea.vmem %s25, 128
        %v4077 = vld [vmem:[%s4076] sm:$0xff]
        %v4078 = vld [vmem:[%s4076 + $0x8] sm:$0xff]
        %v4079 = vld [vmem:[%s4076 + $0x10] sm:$0xff]
        %v4080 = vld [vmem:[%s4076 + $0x18] sm:$0xff]
        %v4081 = vld [vmem:[%s4076 + $0x20] sm:$0xff]
        %v4082 = vld [vmem:[%s4076 + $0x28] sm:$0xff]
        %v4083 = vld [vmem:[%s4076 + $0x30] sm:$0xff]
        %v4084 = vld [vmem:[%s4076 + $0x38] sm:$0xff]
        %v4085 = vld [vmem:[%s4076 + $0x40] sm:$0xff]
        %v4086 = vld [vmem:[%s4076 + $0x48] sm:$0xff]
        %v4087 = vld [vmem:[%s4076 + $0x50] sm:$0xff]
        %v4088 = vld [vmem:[%s4076 + $0x58] sm:$0xff]
        %v4089 = vld [vmem:[%s4076 + $0x60] sm:$0xff]
        %v4090 = vld [vmem:[%s4076 + $0x68] sm:$0xff]
        %v4091 = vld [vmem:[%s4076 + $0x70] sm:$0xff]
        %v4092 = vld [vmem:[%s4076 + $0x78] sm:$0xff]
        %s4093 = scalar_lea.vmem %s27, 128
        %v4094 = vld [vmem:[%s4093] sm:$0xff]
        %v4095 = vld [vmem:[%s4093 + $0x8] sm:$0xff]
        %v4096 = vld [vmem:[%s4093 + $0x10] sm:$0xff]
        %v4097 = vld [vmem:[%s4093 + $0x18] sm:$0xff]
        %v4098 = vld [vmem:[%s4093 + $0x20] sm:$0xff]
        %v4099 = vld [vmem:[%s4093 + $0x28] sm:$0xff]
        %v4100 = vld [vmem:[%s4093 + $0x30] sm:$0xff]
        %v4101 = vld [vmem:[%s4093 + $0x38] sm:$0xff]
        %v4102 = vld [vmem:[%s4093 + $0x40] sm:$0xff]
        %v4103 = vld [vmem:[%s4093 + $0x48] sm:$0xff]
        %v4104 = vld [vmem:[%s4093 + $0x50] sm:$0xff]
        %v4105 = vld [vmem:[%s4093 + $0x58] sm:$0xff]
        %v4106 = vld [vmem:[%s4093 + $0x60] sm:$0xff]
        %v4107 = vld [vmem:[%s4093 + $0x68] sm:$0xff]
        %v4108 = vld [vmem:[%s4093 + $0x70] sm:$0xff]
        %v4109 = vld [vmem:[%s4093 + $0x78] sm:$0xff]
        %s4110 = scalar_lea.vmem %s29, 128
        %v4111 = vld [vmem:[%s4110] sm:$0xff]
        %v4112 = vld [vmem:[%s4110 + $0x8] sm:$0xff]
        %v4113 = vld [vmem:[%s4110 + $0x10] sm:$0xff]
        %v4114 = vld [vmem:[%s4110 + $0x18] sm:$0xff]
        %v4115 = vld [vmem:[%s4110 + $0x20] sm:$0xff]
        %v4116 = vld [vmem:[%s4110 + $0x28] sm:$0xff]
        %v4117 = vld [vmem:[%s4110 + $0x30] sm:$0xff]
        %v4118 = vld [vmem:[%s4110 + $0x38] sm:$0xff]
        %v4119 = vld [vmem:[%s4110 + $0x40] sm:$0xff]
        %v4120 = vld [vmem:[%s4110 + $0x48] sm:$0xff]
        %v4121 = vld [vmem:[%s4110 + $0x50] sm:$0xff]
        %v4122 = vld [vmem:[%s4110 + $0x58] sm:$0xff]
        %v4123 = vld [vmem:[%s4110 + $0x60] sm:$0xff]
        %v4124 = vld [vmem:[%s4110 + $0x68] sm:$0xff]
        %v4125 = vld [vmem:[%s4110 + $0x70] sm:$0xff]
        %v4126 = vld [vmem:[%s4110 + $0x78] sm:$0xff]
        %s4127 = scalar_lea.vmem %s31, 32
        %v4128 = vld [vmem:[%s4127] sm:$0xff]
        %v4129 = vld [vmem:[%s4127 + $0x8] sm:$0xff]
        %v4130 = vld [vmem:[%s4127 + $0x10] sm:$0xff]
        %v4131 = vld [vmem:[%s4127 + $0x18] sm:$0xff]
        %s4132 = scalar_lea.vmem %s33, 1
        %v4133 = vld [vmem:[%s4132] sm:$0x1]
        %s4134 = scalar_lea.vmem %s35, 1
        %v4135 = vld [vmem:[%s4134] sm:$0x1]
        %s4136 = scalar_lea.vmem %s37, 1
        %v4137 = vld [vmem:[%s4136] sm:$0x1]
        %s4138 = scalar_lea.vmem %s39, 32
        %v4139 = vld [vmem:[%s4138] sm:$0xff]
        %v4140 = vld [vmem:[%s4138 + $0x8] sm:$0xff]
        %v4141 = vld [vmem:[%s4138 + $0x10] sm:$0xff]
        %v4142 = vld [vmem:[%s4138 + $0x18] sm:$0xff]
        %s4143 = scalar_lea.vmem %s41, 1
        %v4144 = vld [vmem:[%s4143] sm:$0x1]
        %s4145 = scalar_lea.vmem %s43, 128
        %v4146 = vld [vmem:[%s4145] sm:$0xff]
        %v4147 = vld [vmem:[%s4145 + $0x8] sm:$0xff]
        %v4148 = vld [vmem:[%s4145 + $0x10] sm:$0xff]
        %v4149 = vld [vmem:[%s4145 + $0x18] sm:$0xff]
        %v4150 = vld [vmem:[%s4145 + $0x20] sm:$0xff]
        %v4151 = vld [vmem:[%s4145 + $0x28] sm:$0xff]
        %v4152 = vld [vmem:[%s4145 + $0x30] sm:$0xff]
        %v4153 = vld [vmem:[%s4145 + $0x38] sm:$0xff]
        %v4154 = vld [vmem:[%s4145 + $0x40] sm:$0xff]
        %v4155 = vld [vmem:[%s4145 + $0x48] sm:$0xff]
        %v4156 = vld [vmem:[%s4145 + $0x50] sm:$0xff]
        %v4157 = vld [vmem:[%s4145 + $0x58] sm:$0xff]
        %v4158 = vld [vmem:[%s4145 + $0x60] sm:$0xff]
        %v4159 = vld [vmem:[%s4145 + $0x68] sm:$0xff]
        %v4160 = vld [vmem:[%s4145 + $0x70] sm:$0xff]
        %v4161 = vld [vmem:[%s4145 + $0x78] sm:$0xff]
        %s4162 = scalar_lea.vmem %s45, 1
        %v4163 = vld [vmem:[%s4162] sm:$0x1]
        %v4164 = vsel %vm1575, %v4070, 0.0
        %4165 = vadd.xlane.f32.xlu0 %v4164
        %v4166 = vpop.xlane.xlu0 %4165
        %v4167 = vsel %vm1771, %v4071, 0.0
        %4168 = vadd.xlane.f32.xlu0 %v4167
        %v4169 = vpop.xlane.xlu0 %4168
        %v4170 = vmul.f32 %v4166, %v1775
        %v4171 = vmul.f32 %v4169, %v1775
        %v4172 = vsub.f32 %v4070, %v4170
        %v4173 = vsub.f32 %v4071, %v4171
        %v4174 = vmul.f32 %v4172, %v4172
        %v4175 = vmul.f32 %v4173, %v4173
        %v4176 = vsel %vm1575, %v4174, 0.0
        %4177 = vadd.xlane.f32.xlu0 %v4176
        %v4178 = vpop.xlane.xlu0 %4177
        %v4179 = vsel %vm1771, %v4175, 0.0
        %4180 = vadd.xlane.f32.xlu0 %v4179
        %v4181 = vpop.xlane.xlu0 %4180
        %v4182 = vmul.f32 %v4178, %v1775
        %v4183 = vmul.f32 %v4181, %v1775
        %v4184 = vadd.f32 %v4182, 1e-06
        %v4185 = vadd.f32 %v4183, 1e-06
        %v4186 = vrsqrt.pop %v4184
        %v4187 = vrsqrt.pop %v4185
        %v4188 = vmul.f32 %v4172, %v4186
        %v4189 = vmul.f32 %v4173, %v4187
        %v4191 = vlaneseq
        %v4192 = vshrl.u32 %v4191, 7
        %v4193 = vsub.s32 0, %v4192
        %v4194 = vrot.slane %v4073, %v4193
        %v4196 = vmul.f32 %v4188, %v4194
        %v4197 = vmul.f32 %v4189, %v4194
        %v4199 = vlaneseq
        %v4200 = vshrl.u32 %v4199, 7
        %v4201 = vsub.s32 0, %v4200
        %v4202 = vrot.slane %v4075, %v4201
        %v4204 = vadd.f32 %v4196, %v4202
        %v4205 = vadd.f32 %v4197, %v4202
        %v4207 = vsel %vm1575, %v4204, 0
        %v4210 = vsel %vm1575, %v4205, 0
        %4212 = vmatprep.subr.mxu0 0.0
        %4213 = vmatpush1.msra.mxu0 0.0
        %4214 = vmatprep.subr.mxu0 0.0
        %4215 = vmatpush1.msra.mxu0 0.0
        %4216 = vmatprep.subr.mxu0 0.0
        %4217 = vmatpush1.msra.mxu0 0.0
        %4218 = vmatprep.subr.mxu0 0.0
        %4219 = vmatpush1.msra.mxu0 0.0
        %4220 = vmatprep.subr.mxu0 0.0
        %4221 = vmatpush1.msra.mxu0 0.0
        %4222 = vmatprep.subr.mxu0 0.0
        %4223 = vmatpush1.msra.mxu0 0.0
        %4224 = vmatprep.subr.mxu0 0.0
        %4225 = vmatpush1.msra.mxu0 0.0
        %4226 = vmatprep.subr.mxu0 0.0
        %4227 = vmatpush1.msra.mxu0 0.0
        %4228 = vmatprep.subr.mxu0 0.0
        %4229 = vmatpush1.msra.mxu0 0.0
        %4230 = vmatprep.subr.mxu0 0.0
        %4231 = vmatpush1.msra.mxu0 0.0
        %4232 = vmatprep.subr.mxu0 0.0
        %4233 = vmatpush1.msra.mxu0 0.0
        %4234 = vmatprep.subr.mxu0 0.0
        %4235 = vmatpush1.msra.mxu0 0.0
        %4236 = vmatprep.subr.mxu0 0.0
        %4237 = vmatpush1.msra.mxu0 %v4080
        %4238 = vmatprep.subr.mxu0 0.0
        %4239 = vmatpush1.msra.mxu0 %v4079
        %4240 = vmatprep.subr.mxu0 0.0
        %4241 = vmatpush1.msra.mxu0 %v4078
        %4242 = vmatprep.subr.mxu0 0.0
        %4243 = vmatpush1.msra.mxu0 %v4077
        %4244 = vmatprep.subr.mxu0 0.0
        %4245 = vmatpush2.msra.mxu0 0.0
        %4246 = vmatprep.subr.mxu0 0.0
        %4247 = vmatpush2.msra.mxu0 0.0
        %4248 = vmatprep.subr.mxu0 0.0
        %4249 = vmatpush2.msra.mxu0 0.0
        %4250 = vmatprep.subr.mxu0 0.0
        %4251 = vmatpush2.msra.mxu0 0.0
        %4252 = vmatprep.subr.mxu0 0.0
        %4253 = vmatpush2.msra.mxu0 0.0
        %4254 = vmatprep.subr.mxu0 0.0
        %4255 = vmatpush2.msra.mxu0 0.0
        %4256 = vmatprep.subr.mxu0 0.0
        %4257 = vmatpush2.msra.mxu0 0.0
        %4258 = vmatprep.subr.mxu0 0.0
        %4259 = vmatpush2.msra.mxu0 0.0
        %4260 = vmatprep.subr.mxu0 0.0
        %4261 = vmatpush2.msra.mxu0 0.0
        %4262 = vmatprep.subr.mxu0 0.0
        %4263 = vmatpush2.msra.mxu0 0.0
        %4264 = vmatprep.subr.mxu0 0.0
        %4265 = vmatpush2.msra.mxu0 0.0
        %4266 = vmatprep.subr.mxu0 0.0
        %4267 = vmatpush2.msra.mxu0 0.0
        %4268 = vmatprep.subr.mxu0 0.0
        %4269 = vmatpush2.msra.mxu0 0.0
        %4270 = vmatprep.subr.mxu0 0.0
        %4271 = vmatpush2.msra.mxu0 0.0
        %4272 = vmatprep.subr.mxu0 0.0
        %4273 = vmatpush2.msra.mxu0 0.0
        %4274 = vmatprep.subr.mxu0 0.0
        %4275 = vmatpush2.msra.mxu0 0.0
        %4276 = vmatprep.mubr.f32.mxu0 0.0
        %4277 = vmatmul.mubr.f32.gmra.mxu0 %v4207
        %v4278 = vpop.f32.mrf.mxu0
        %v4279 = vadd.f32 0.0, %v4278
        %v4280 = vpop.f32.mrf.mxu0
        %4281 = vmatprep.mubr.f32.mxu0 0.0
        %4282 = vmatmul.mubr.f32.gmra.mxu0 %v4210
        %v4283 = vpop.f32.mrf.mxu0
        %v4284 = vadd.f32 0.0, %v4283
        %v4285 = vpop.f32.mrf.mxu0
        %4286 = vdwg.mxu0
        %4287 = vmatprep.subr.mxu0 0.0
        %4288 = vmatpush1.msra.mxu0 0.0
        %4289 = vmatprep.subr.mxu0 0.0
        %4290 = vmatpush1.msra.mxu0 0.0
        %4291 = vmatprep.subr.mxu0 0.0
        %4292 = vmatpush1.msra.mxu0 0.0
        %4293 = vmatprep.subr.mxu0 0.0
        %4294 = vmatpush1.msra.mxu0 0.0
        %4295 = vmatprep.subr.mxu0 0.0
        %4296 = vmatpush1.msra.mxu0 0.0
        %4297 = vmatprep.subr.mxu0 0.0
        %4298 = vmatpush1.msra.mxu0 0.0
        %4299 = vmatprep.subr.mxu0 0.0
        %4300 = vmatpush1.msra.mxu0 0.0
        %4301 = vmatprep.subr.mxu0 0.0
        %4302 = vmatpush1.msra.mxu0 0.0
        %4303 = vmatprep.subr.mxu0 0.0
        %4304 = vmatpush1.msra.mxu0 0.0
        %4305 = vmatprep.subr.mxu0 0.0
        %4306 = vmatpush1.msra.mxu0 0.0
        %4307 = vmatprep.subr.mxu0 0.0
        %4308 = vmatpush1.msra.mxu0 0.0
        %4309 = vmatprep.subr.mxu0 0.0
        %4310 = vmatpush1.msra.mxu0 0.0
        %4311 = vmatprep.subr.mxu0 0.0
        %4312 = vmatpush1.msra.mxu0 %v4084
        %4313 = vmatprep.subr.mxu0 0.0
        %4314 = vmatpush1.msra.mxu0 %v4083
        %4315 = vmatprep.subr.mxu0 0.0
        %4316 = vmatpush1.msra.mxu0 %v4082
        %4317 = vmatprep.subr.mxu0 0.0
        %4318 = vmatpush1.msra.mxu0 %v4081
        %4319 = vmatprep.subr.mxu0 0.0
        %4320 = vmatpush2.msra.mxu0 0.0
        %4321 = vmatprep.subr.mxu0 0.0
        %4322 = vmatpush2.msra.mxu0 0.0
        %4323 = vmatprep.subr.mxu0 0.0
        %4324 = vmatpush2.msra.mxu0 0.0
        %4325 = vmatprep.subr.mxu0 0.0
        %4326 = vmatpush2.msra.mxu0 0.0
        %4327 = vmatprep.subr.mxu0 0.0
        %4328 = vmatpush2.msra.mxu0 0.0
        %4329 = vmatprep.subr.mxu0 0.0
        %4330 = vmatpush2.msra.mxu0 0.0
        %4331 = vmatprep.subr.mxu0 0.0
        %4332 = vmatpush2.msra.mxu0 0.0
        %4333 = vmatprep.subr.mxu0 0.0
        %4334 = vmatpush2.msra.mxu0 0.0
        %4335 = vmatprep.subr.mxu0 0.0
        %4336 = vmatpush2.msra.mxu0 0.0
        %4337 = vmatprep.subr.mxu0 0.0
        %4338 = vmatpush2.msra.mxu0 0.0
        %4339 = vmatprep.subr.mxu0 0.0
        %4340 = vmatpush2.msra.mxu0 0.0
        %4341 = vmatprep.subr.mxu0 0.0
        %4342 = vmatpush2.msra.mxu0 0.0
        %4343 = vmatprep.subr.mxu0 0.0
        %4344 = vmatpush2.msra.mxu0 0.0
        %4345 = vmatprep.subr.mxu0 0.0
        %4346 = vmatpush2.msra.mxu0 0.0
        %4347 = vmatprep.subr.mxu0 0.0
        %4348 = vmatpush2.msra.mxu0 0.0
        %4349 = vmatprep.subr.mxu0 0.0
        %4350 = vmatpush2.msra.mxu0 0.0
        %4351 = vmatprep.mubr.f32.mxu0 0.0
        %4352 = vmatmul.mubr.f32.gmra.mxu0 %v4207
        %v4353 = vpop.f32.mrf.mxu0
        %v4354 = vadd.f32 0.0, %v4353
        %v4355 = vpop.f32.mrf.mxu0
        %4356 = vmatprep.mubr.f32.mxu0 0.0
        %4357 = vmatmul.mubr.f32.gmra.mxu0 %v4210
        %v4358 = vpop.f32.mrf.mxu0
        %v4359 = vadd.f32 0.0, %v4358
        %v4360 = vpop.f32.mrf.mxu0
        %4361 = vdwg.mxu0
        %4362 = vmatprep.subr.mxu0 0.0
        %4363 = vmatpush1.msra.mxu0 0.0
        %4364 = vmatprep.subr.mxu0 0.0
        %4365 = vmatpush1.msra.mxu0 0.0
        %4366 = vmatprep.subr.mxu0 0.0
        %4367 = vmatpush1.msra.mxu0 0.0
        %4368 = vmatprep.subr.mxu0 0.0
        %4369 = vmatpush1.msra.mxu0 0.0
        %4370 = vmatprep.subr.mxu0 0.0
        %4371 = vmatpush1.msra.mxu0 0.0
        %4372 = vmatprep.subr.mxu0 0.0
        %4373 = vmatpush1.msra.mxu0 0.0
        %4374 = vmatprep.subr.mxu0 0.0
        %4375 = vmatpush1.msra.mxu0 0.0
        %4376 = vmatprep.subr.mxu0 0.0
        %4377 = vmatpush1.msra.mxu0 0.0
        %4378 = vmatprep.subr.mxu0 0.0
        %4379 = vmatpush1.msra.mxu0 0.0
        %4380 = vmatprep.subr.mxu0 0.0
        %4381 = vmatpush1.msra.mxu0 0.0
        %4382 = vmatprep.subr.mxu0 0.0
        %4383 = vmatpush1.msra.mxu0 0.0
        %4384 = vmatprep.subr.mxu0 0.0
        %4385 = vmatpush1.msra.mxu0 0.0
        %4386 = vmatprep.subr.mxu0 0.0
        %4387 = vmatpush1.msra.mxu0 %v4088
        %4388 = vmatprep.subr.mxu0 0.0
        %4389 = vmatpush1.msra.mxu0 %v4087
        %4390 = vmatprep.subr.mxu0 0.0
        %4391 = vmatpush1.msra.mxu0 %v4086
        %4392 = vmatprep.subr.mxu0 0.0
        %4393 = vmatpush1.msra.mxu0 %v4085
        %4394 = vmatprep.subr.mxu0 0.0
        %4395 = vmatpush2.msra.mxu0 0.0
        %4396 = vmatprep.subr.mxu0 0.0
        %4397 = vmatpush2.msra.mxu0 0.0
        %4398 = vmatprep.subr.mxu0 0.0
        %4399 = vmatpush2.msra.mxu0 0.0
        %4400 = vmatprep.subr.mxu0 0.0
        %4401 = vmatpush2.msra.mxu0 0.0
        %4402 = vmatprep.subr.mxu0 0.0
        %4403 = vmatpush2.msra.mxu0 0.0
        %4404 = vmatprep.subr.mxu0 0.0
        %4405 = vmatpush2.msra.mxu0 0.0
        %4406 = vmatprep.subr.mxu0 0.0
        %4407 = vmatpush2.msra.mxu0 0.0
        %4408 = vmatprep.subr.mxu0 0.0
        %4409 = vmatpush2.msra.mxu0 0.0
        %4410 = vmatprep.subr.mxu0 0.0
        %4411 = vmatpush2.msra.mxu0 0.0
        %4412 = vmatprep.subr.mxu0 0.0
        %4413 = vmatpush2.msra.mxu0 0.0
        %4414 = vmatprep.subr.mxu0 0.0
        %4415 = vmatpush2.msra.mxu0 0.0
        %4416 = vmatprep.subr.mxu0 0.0
        %4417 = vmatpush2.msra.mxu0 0.0
        %4418 = vmatprep.subr.mxu0 0.0
        %4419 = vmatpush2.msra.mxu0 0.0
        %4420 = vmatprep.subr.mxu0 0.0
        %4421 = vmatpush2.msra.mxu0 0.0
        %4422 = vmatprep.subr.mxu0 0.0
        %4423 = vmatpush2.msra.mxu0 0.0
        %4424 = vmatprep.subr.mxu0 0.0
        %4425 = vmatpush2.msra.mxu0 0.0
        %4426 = vmatprep.mubr.f32.mxu0 0.0
        %4427 = vmatmul.mubr.f32.gmra.mxu0 %v4207
        %v4428 = vpop.f32.mrf.mxu0
        %v4429 = vadd.f32 0.0, %v4428
        %v4430 = vpop.f32.mrf.mxu0
        %4431 = vmatprep.mubr.f32.mxu0 0.0
        %4432 = vmatmul.mubr.f32.gmra.mxu0 %v4210
        %v4433 = vpop.f32.mrf.mxu0
        %v4434 = vadd.f32 0.0, %v4433
        %v4435 = vpop.f32.mrf.mxu0
        %4436 = vdwg.mxu0
        %4437 = vmatprep.subr.mxu0 0.0
        %4438 = vmatpush1.msra.mxu0 0.0
        %4439 = vmatprep.subr.mxu0 0.0
        %4440 = vmatpush1.msra.mxu0 0.0
        %4441 = vmatprep.subr.mxu0 0.0
        %4442 = vmatpush1.msra.mxu0 0.0
        %4443 = vmatprep.subr.mxu0 0.0
        %4444 = vmatpush1.msra.mxu0 0.0
        %4445 = vmatprep.subr.mxu0 0.0
        %4446 = vmatpush1.msra.mxu0 0.0
        %4447 = vmatprep.subr.mxu0 0.0
        %4448 = vmatpush1.msra.mxu0 0.0
        %4449 = vmatprep.subr.mxu0 0.0
        %4450 = vmatpush1.msra.mxu0 0.0
        %4451 = vmatprep.subr.mxu0 0.0
        %4452 = vmatpush1.msra.mxu0 0.0
        %4453 = vmatprep.subr.mxu0 0.0
        %4454 = vmatpush1.msra.mxu0 0.0
        %4455 = vmatprep.subr.mxu0 0.0
        %4456 = vmatpush1.msra.mxu0 0.0
        %4457 = vmatprep.subr.mxu0 0.0
        %4458 = vmatpush1.msra.mxu0 0.0
        %4459 = vmatprep.subr.mxu0 0.0
        %4460 = vmatpush1.msra.mxu0 0.0
        %4461 = vmatprep.subr.mxu0 0.0
        %4462 = vmatpush1.msra.mxu0 %v4092
        %4463 = vmatprep.subr.mxu0 0.0
        %4464 = vmatpush1.msra.mxu0 %v4091
        %4465 = vmatprep.subr.mxu0 0.0
        %4466 = vmatpush1.msra.mxu0 %v4090
        %4467 = vmatprep.subr.mxu0 0.0
        %4468 = vmatpush1.msra.mxu0 %v4089
        %4469 = vmatprep.subr.mxu0 0.0
        %4470 = vmatpush2.msra.mxu0 0.0
        %4471 = vmatprep.subr.mxu0 0.0
        %4472 = vmatpush2.msra.mxu0 0.0
        %4473 = vmatprep.subr.mxu0 0.0
        %4474 = vmatpush2.msra.mxu0 0.0
        %4475 = vmatprep.subr.mxu0 0.0
        %4476 = vmatpush2.msra.mxu0 0.0
        %4477 = vmatprep.subr.mxu0 0.0
        %4478 = vmatpush2.msra.mxu0 0.0
        %4479 = vmatprep.subr.mxu0 0.0
        %4480 = vmatpush2.msra.mxu0 0.0
        %4481 = vmatprep.subr.mxu0 0.0
        %4482 = vmatpush2.msra.mxu0 0.0
        %4483 = vmatprep.subr.mxu0 0.0
        %4484 = vmatpush2.msra.mxu0 0.0
        %4485 = vmatprep.subr.mxu0 0.0
        %4486 = vmatpush2.msra.mxu0 0.0
        %4487 = vmatprep.subr.mxu0 0.0
        %4488 = vmatpush2.msra.mxu0 0.0
        %4489 = vmatprep.subr.mxu0 0.0
        %4490 = vmatpush2.msra.mxu0 0.0
        %4491 = vmatprep.subr.mxu0 0.0
        %4492 = vmatpush2.msra.mxu0 0.0
        %4493 = vmatprep.subr.mxu0 0.0
        %4494 = vmatpush2.msra.mxu0 0.0
        %4495 = vmatprep.subr.mxu0 0.0
        %4496 = vmatpush2.msra.mxu0 0.0
        %4497 = vmatprep.subr.mxu0 0.0
        %4498 = vmatpush2.msra.mxu0 0.0
        %4499 = vmatprep.subr.mxu0 0.0
        %4500 = vmatpush2.msra.mxu0 0.0
        %4501 = vmatprep.mubr.f32.mxu0 0.0
        %4502 = vmatmul.mubr.f32.gmra.mxu0 %v4207
        %v4503 = vpop.f32.mrf.mxu0
        %v4504 = vadd.f32 0.0, %v4503
        %v4505 = vpop.f32.mrf.mxu0
        %4506 = vmatprep.mubr.f32.mxu0 0.0
        %4507 = vmatmul.mubr.f32.gmra.mxu0 %v4210
        %v4508 = vpop.f32.mrf.mxu0
        %v4509 = vadd.f32 0.0, %v4508
        %v4510 = vpop.f32.mrf.mxu0
        %4511 = vdwg.mxu0
        %4512 = vmatprep.subr.mxu0 0.0
        %4513 = vmatpush1.msra.mxu0 0.0
        %4514 = vmatprep.subr.mxu0 0.0
        %4515 = vmatpush1.msra.mxu0 0.0
        %4516 = vmatprep.subr.mxu0 0.0
        %4517 = vmatpush1.msra.mxu0 0.0
        %4518 = vmatprep.subr.mxu0 0.0
        %4519 = vmatpush1.msra.mxu0 0.0
        %4520 = vmatprep.subr.mxu0 0.0
        %4521 = vmatpush1.msra.mxu0 0.0
        %4522 = vmatprep.subr.mxu0 0.0
        %4523 = vmatpush1.msra.mxu0 0.0
        %4524 = vmatprep.subr.mxu0 0.0
        %4525 = vmatpush1.msra.mxu0 0.0
        %4526 = vmatprep.subr.mxu0 0.0
        %4527 = vmatpush1.msra.mxu0 0.0
        %4528 = vmatprep.subr.mxu0 0.0
        %4529 = vmatpush1.msra.mxu0 0.0
        %4530 = vmatprep.subr.mxu0 0.0
        %4531 = vmatpush1.msra.mxu0 0.0
        %4532 = vmatprep.subr.mxu0 0.0
        %4533 = vmatpush1.msra.mxu0 0.0
        %4534 = vmatprep.subr.mxu0 0.0
        %4535 = vmatpush1.msra.mxu0 0.0
        %4536 = vmatprep.subr.mxu0 0.0
        %4537 = vmatpush1.msra.mxu0 %v4097
        %4538 = vmatprep.subr.mxu0 0.0
        %4539 = vmatpush1.msra.mxu0 %v4096
        %4540 = vmatprep.subr.mxu0 0.0
        %4541 = vmatpush1.msra.mxu0 %v4095
        %4542 = vmatprep.subr.mxu0 0.0
        %4543 = vmatpush1.msra.mxu0 %v4094
        %4544 = vmatprep.subr.mxu0 0.0
        %4545 = vmatpush2.msra.mxu0 0.0
        %4546 = vmatprep.subr.mxu0 0.0
        %4547 = vmatpush2.msra.mxu0 0.0
        %4548 = vmatprep.subr.mxu0 0.0
        %4549 = vmatpush2.msra.mxu0 0.0
        %4550 = vmatprep.subr.mxu0 0.0
        %4551 = vmatpush2.msra.mxu0 0.0
        %4552 = vmatprep.subr.mxu0 0.0
        %4553 = vmatpush2.msra.mxu0 0.0
        %4554 = vmatprep.subr.mxu0 0.0
        %4555 = vmatpush2.msra.mxu0 0.0
        %4556 = vmatprep.subr.mxu0 0.0
        %4557 = vmatpush2.msra.mxu0 0.0
        %4558 = vmatprep.subr.mxu0 0.0
        %4559 = vmatpush2.msra.mxu0 0.0
        %4560 = vmatprep.subr.mxu0 0.0
        %4561 = vmatpush2.msra.mxu0 0.0
        %4562 = vmatprep.subr.mxu0 0.0
        %4563 = vmatpush2.msra.mxu0 0.0
        %4564 = vmatprep.subr.mxu0 0.0
        %4565 = vmatpush2.msra.mxu0 0.0
        %4566 = vmatprep.subr.mxu0 0.0
        %4567 = vmatpush2.msra.mxu0 0.0
        %4568 = vmatprep.subr.mxu0 0.0
        %4569 = vmatpush2.msra.mxu0 0.0
        %4570 = vmatprep.subr.mxu0 0.0
        %4571 = vmatpush2.msra.mxu0 0.0
        %4572 = vmatprep.subr.mxu0 0.0
        %4573 = vmatpush2.msra.mxu0 0.0
        %4574 = vmatprep.subr.mxu0 0.0
        %4575 = vmatpush2.msra.mxu0 0.0
        %4576 = vmatprep.mubr.f32.mxu0 0.0
        %4577 = vmatmul.mubr.f32.gmra.mxu0 %v4207
        %v4578 = vpop.f32.mrf.mxu0
        %v4579 = vadd.f32 0.0, %v4578
        %v4580 = vpop.f32.mrf.mxu0
        %4581 = vmatprep.mubr.f32.mxu0 0.0
        %4582 = vmatmul.mubr.f32.gmra.mxu0 %v4210
        %v4583 = vpop.f32.mrf.mxu0
        %v4584 = vadd.f32 0.0, %v4583
        %v4585 = vpop.f32.mrf.mxu0
        %4586 = vdwg.mxu0
        %4587 = vmatprep.subr.mxu0 0.0
        %4588 = vmatpush1.msra.mxu0 0.0
        %4589 = vmatprep.subr.mxu0 0.0
        %4590 = vmatpush1.msra.mxu0 0.0
        %4591 = vmatprep.subr.mxu0 0.0
        %4592 = vmatpush1.msra.mxu0 0.0
        %4593 = vmatprep.subr.mxu0 0.0
        %4594 = vmatpush1.msra.mxu0 0.0
        %4595 = vmatprep.subr.mxu0 0.0
        %4596 = vmatpush1.msra.mxu0 0.0
        %4597 = vmatprep.subr.mxu0 0.0
        %4598 = vmatpush1.msra.mxu0 0.0
        %4599 = vmatprep.subr.mxu0 0.0
        %4600 = vmatpush1.msra.mxu0 0.0
        %4601 = vmatprep.subr.mxu0 0.0
        %4602 = vmatpush1.msra.mxu0 0.0
        %4603 = vmatprep.subr.mxu0 0.0
        %4604 = vmatpush1.msra.mxu0 0.0
        %4605 = vmatprep.subr.mxu0 0.0
        %4606 = vmatpush1.msra.mxu0 0.0
        %4607 = vmatprep.subr.mxu0 0.0
        %4608 = vmatpush1.msra.mxu0 0.0
        %4609 = vmatprep.subr.mxu0 0.0
        %4610 = vmatpush1.msra.mxu0 0.0
        %4611 = vmatprep.subr.mxu0 0.0
        %4612 = vmatpush1.msra.mxu0 %v4101
        %4613 = vmatprep.subr.mxu0 0.0
        %4614 = vmatpush1.msra.mxu0 %v4100
        %4615 = vmatprep.subr.mxu0 0.0
        %4616 = vmatpush1.msra.mxu0 %v4099
        %4617 = vmatprep.subr.mxu0 0.0
        %4618 = vmatpush1.msra.mxu0 %v4098
        %4619 = vmatprep.subr.mxu0 0.0
        %4620 = vmatpush2.msra.mxu0 0.0
        %4621 = vmatprep.subr.mxu0 0.0
        %4622 = vmatpush2.msra.mxu0 0.0
        %4623 = vmatprep.subr.mxu0 0.0
        %4624 = vmatpush2.msra.mxu0 0.0
        %4625 = vmatprep.subr.mxu0 0.0
        %4626 = vmatpush2.msra.mxu0 0.0
        %4627 = vmatprep.subr.mxu0 0.0
        %4628 = vmatpush2.msra.mxu0 0.0
        %4629 = vmatprep.subr.mxu0 0.0
        %4630 = vmatpush2.msra.mxu0 0.0
        %4631 = vmatprep.subr.mxu0 0.0
        %4632 = vmatpush2.msra.mxu0 0.0
        %4633 = vmatprep.subr.mxu0 0.0
        %4634 = vmatpush2.msra.mxu0 0.0
        %4635 = vmatprep.subr.mxu0 0.0
        %4636 = vmatpush2.msra.mxu0 0.0
        %4637 = vmatprep.subr.mxu0 0.0
        %4638 = vmatpush2.msra.mxu0 0.0
        %4639 = vmatprep.subr.mxu0 0.0
        %4640 = vmatpush2.msra.mxu0 0.0
        %4641 = vmatprep.subr.mxu0 0.0
        %4642 = vmatpush2.msra.mxu0 0.0
        %4643 = vmatprep.subr.mxu0 0.0
        %4644 = vmatpush2.msra.mxu0 0.0
        %4645 = vmatprep.subr.mxu0 0.0
        %4646 = vmatpush2.msra.mxu0 0.0
        %4647 = vmatprep.subr.mxu0 0.0
        %4648 = vmatpush2.msra.mxu0 0.0
        %4649 = vmatprep.subr.mxu0 0.0
        %4650 = vmatpush2.msra.mxu0 0.0
        %4651 = vmatprep.mubr.f32.mxu0 0.0
        %4652 = vmatmul.mubr.f32.gmra.mxu0 %v4207
        %v4653 = vpop.f32.mrf.mxu0
        %v4654 = vadd.f32 0.0, %v4653
        %v4655 = vpop.f32.mrf.mxu0
        %4656 = vmatprep.mubr.f32.mxu0 0.0
        %4657 = vmatmul.mubr.f32.gmra.mxu0 %v4210
        %v4658 = vpop.f32.mrf.mxu0
        %v4659 = vadd.f32 0.0, %v4658
        %v4660 = vpop.f32.mrf.mxu0
        %4661 = vdwg.mxu0
        %4662 = vmatprep.subr.mxu0 0.0
        %4663 = vmatpush1.msra.mxu0 0.0
        %4664 = vmatprep.subr.mxu0 0.0
        %4665 = vmatpush1.msra.mxu0 0.0
        %4666 = vmatprep.subr.mxu0 0.0
        %4667 = vmatpush1.msra.mxu0 0.0
        %4668 = vmatprep.subr.mxu0 0.0
        %4669 = vmatpush1.msra.mxu0 0.0
        %4670 = vmatprep.subr.mxu0 0.0
        %4671 = vmatpush1.msra.mxu0 0.0
        %4672 = vmatprep.subr.mxu0 0.0
        %4673 = vmatpush1.msra.mxu0 0.0
        %4674 = vmatprep.subr.mxu0 0.0
        %4675 = vmatpush1.msra.mxu0 0.0
        %4676 = vmatprep.subr.mxu0 0.0
        %4677 = vmatpush1.msra.mxu0 0.0
        %4678 = vmatprep.subr.mxu0 0.0
        %4679 = vmatpush1.msra.mxu0 0.0
        %4680 = vmatprep.subr.mxu0 0.0
        %4681 = vmatpush1.msra.mxu0 0.0
        %4682 = vmatprep.subr.mxu0 0.0
        %4683 = vmatpush1.msra.mxu0 0.0
        %4684 = vmatprep.subr.mxu0 0.0
        %4685 = vmatpush1.msra.mxu0 0.0
        %4686 = vmatprep.subr.mxu0 0.0
        %4687 = vmatpush1.msra.mxu0 %v4105
        %4688 = vmatprep.subr.mxu0 0.0
        %4689 = vmatpush1.msra.mxu0 %v4104
        %4690 = vmatprep.subr.mxu0 0.0
        %4691 = vmatpush1.msra.mxu0 %v4103
        %4692 = vmatprep.subr.mxu0 0.0
        %4693 = vmatpush1.msra.mxu0 %v4102
        %4694 = vmatprep.subr.mxu0 0.0
        %4695 = vmatpush2.msra.mxu0 0.0
        %4696 = vmatprep.subr.mxu0 0.0
        %4697 = vmatpush2.msra.mxu0 0.0
        %4698 = vmatprep.subr.mxu0 0.0
        %4699 = vmatpush2.msra.mxu0 0.0
        %4700 = vmatprep.subr.mxu0 0.0
        %4701 = vmatpush2.msra.mxu0 0.0
        %4702 = vmatprep.subr.mxu0 0.0
        %4703 = vmatpush2.msra.mxu0 0.0
        %4704 = vmatprep.subr.mxu0 0.0
        %4705 = vmatpush2.msra.mxu0 0.0
        %4706 = vmatprep.subr.mxu0 0.0
        %4707 = vmatpush2.msra.mxu0 0.0
        %4708 = vmatprep.subr.mxu0 0.0
        %4709 = vmatpush2.msra.mxu0 0.0
        %4710 = vmatprep.subr.mxu0 0.0
        %4711 = vmatpush2.msra.mxu0 0.0
        %4712 = vmatprep.subr.mxu0 0.0
        %4713 = vmatpush2.msra.mxu0 0.0
        %4714 = vmatprep.subr.mxu0 0.0
        %4715 = vmatpush2.msra.mxu0 0.0
        %4716 = vmatprep.subr.mxu0 0.0
        %4717 = vmatpush2.msra.mxu0 0.0
        %4718 = vmatprep.subr.mxu0 0.0
        %4719 = vmatpush2.msra.mxu0 0.0
        %4720 = vmatprep.subr.mxu0 0.0
        %4721 = vmatpush2.msra.mxu0 0.0
        %4722 = vmatprep.subr.mxu0 0.0
        %4723 = vmatpush2.msra.mxu0 0.0
        %4724 = vmatprep.subr.mxu0 0.0
        %4725 = vmatpush2.msra.mxu0 0.0
        %4726 = vmatprep.mubr.f32.mxu0 0.0
        %4727 = vmatmul.mubr.f32.gmra.mxu0 %v4207
        %v4728 = vpop.f32.mrf.mxu0
        %v4729 = vadd.f32 0.0, %v4728
        %v4730 = vpop.f32.mrf.mxu0
        %4731 = vmatprep.mubr.f32.mxu0 0.0
        %4732 = vmatmul.mubr.f32.gmra.mxu0 %v4210
        %v4733 = vpop.f32.mrf.mxu0
        %v4734 = vadd.f32 0.0, %v4733
        %v4735 = vpop.f32.mrf.mxu0
        %4736 = vdwg.mxu0
        %4737 = vmatprep.subr.mxu0 0.0
        %4738 = vmatpush1.msra.mxu0 0.0
        %4739 = vmatprep.subr.mxu0 0.0
        %4740 = vmatpush1.msra.mxu0 0.0
        %4741 = vmatprep.subr.mxu0 0.0
        %4742 = vmatpush1.msra.mxu0 0.0
        %4743 = vmatprep.subr.mxu0 0.0
        %4744 = vmatpush1.msra.mxu0 0.0
        %4745 = vmatprep.subr.mxu0 0.0
        %4746 = vmatpush1.msra.mxu0 0.0
        %4747 = vmatprep.subr.mxu0 0.0
        %4748 = vmatpush1.msra.mxu0 0.0
        %4749 = vmatprep.subr.mxu0 0.0
        %4750 = vmatpush1.msra.mxu0 0.0
        %4751 = vmatprep.subr.mxu0 0.0
        %4752 = vmatpush1.msra.mxu0 0.0
        %4753 = vmatprep.subr.mxu0 0.0
        %4754 = vmatpush1.msra.mxu0 0.0
        %4755 = vmatprep.subr.mxu0 0.0
        %4756 = vmatpush1.msra.mxu0 0.0
        %4757 = vmatprep.subr.mxu0 0.0
        %4758 = vmatpush1.msra.mxu0 0.0
        %4759 = vmatprep.subr.mxu0 0.0
        %4760 = vmatpush1.msra.mxu0 0.0
        %4761 = vmatprep.subr.mxu0 0.0
        %4762 = vmatpush1.msra.mxu0 %v4109
        %4763 = vmatprep.subr.mxu0 0.0
        %4764 = vmatpush1.msra.mxu0 %v4108
        %4765 = vmatprep.subr.mxu0 0.0
        %4766 = vmatpush1.msra.mxu0 %v4107
        %4767 = vmatprep.subr.mxu0 0.0
        %4768 = vmatpush1.msra.mxu0 %v4106
        %4769 = vmatprep.subr.mxu0 0.0
        %4770 = vmatpush2.msra.mxu0 0.0
        %4771 = vmatprep.subr.mxu0 0.0
        %4772 = vmatpush2.msra.mxu0 0.0
        %4773 = vmatprep.subr.mxu0 0.0
        %4774 = vmatpush2.msra.mxu0 0.0
        %4775 = vmatprep.subr.mxu0 0.0
        %4776 = vmatpush2.msra.mxu0 0.0
        %4777 = vmatprep.subr.mxu0 0.0
        %4778 = vmatpush2.msra.mxu0 0.0
        %4779 = vmatprep.subr.mxu0 0.0
        %4780 = vmatpush2.msra.mxu0 0.0
        %4781 = vmatprep.subr.mxu0 0.0
        %4782 = vmatpush2.msra.mxu0 0.0
        %4783 = vmatprep.subr.mxu0 0.0
        %4784 = vmatpush2.msra.mxu0 0.0
        %4785 = vmatprep.subr.mxu0 0.0
        %4786 = vmatpush2.msra.mxu0 0.0
        %4787 = vmatprep.subr.mxu0 0.0
        %4788 = vmatpush2.msra.mxu0 0.0
        %4789 = vmatprep.subr.mxu0 0.0
        %4790 = vmatpush2.msra.mxu0 0.0
        %4791 = vmatprep.subr.mxu0 0.0
        %4792 = vmatpush2.msra.mxu0 0.0
        %4793 = vmatprep.subr.mxu0 0.0
        %4794 = vmatpush2.msra.mxu0 0.0
        %4795 = vmatprep.subr.mxu0 0.0
        %4796 = vmatpush2.msra.mxu0 0.0
        %4797 = vmatprep.subr.mxu0 0.0
        %4798 = vmatpush2.msra.mxu0 0.0
        %4799 = vmatprep.subr.mxu0 0.0
        %4800 = vmatpush2.msra.mxu0 0.0
        %4801 = vmatprep.mubr.f32.mxu0 0.0
        %4802 = vmatmul.mubr.f32.gmra.mxu0 %v4207
        %v4803 = vpop.f32.mrf.mxu0
        %v4804 = vadd.f32 0.0, %v4803
        %v4805 = vpop.f32.mrf.mxu0
        %4806 = vmatprep.mubr.f32.mxu0 0.0
        %4807 = vmatmul.mubr.f32.gmra.mxu0 %v4210
        %v4808 = vpop.f32.mrf.mxu0
        %v4809 = vadd.f32 0.0, %v4808
        %v4810 = vpop.f32.mrf.mxu0
        %4811 = vdwg.mxu0
        %4812 = vmatprep.subr.mxu0 0.0
        %4813 = vmatpush1.msra.mxu0 0.0
        %4814 = vmatprep.subr.mxu0 0.0
        %4815 = vmatpush1.msra.mxu0 0.0
        %4816 = vmatprep.subr.mxu0 0.0
        %4817 = vmatpush1.msra.mxu0 0.0
        %4818 = vmatprep.subr.mxu0 0.0
        %4819 = vmatpush1.msra.mxu0 0.0
        %4820 = vmatprep.subr.mxu0 0.0
        %4821 = vmatpush1.msra.mxu0 0.0
        %4822 = vmatprep.subr.mxu0 0.0
        %4823 = vmatpush1.msra.mxu0 0.0
        %4824 = vmatprep.subr.mxu0 0.0
        %4825 = vmatpush1.msra.mxu0 0.0
        %4826 = vmatprep.subr.mxu0 0.0
        %4827 = vmatpush1.msra.mxu0 0.0
        %4828 = vmatprep.subr.mxu0 0.0
        %4829 = vmatpush1.msra.mxu0 0.0
        %4830 = vmatprep.subr.mxu0 0.0
        %4831 = vmatpush1.msra.mxu0 0.0
        %4832 = vmatprep.subr.mxu0 0.0
        %4833 = vmatpush1.msra.mxu0 0.0
        %4834 = vmatprep.subr.mxu0 0.0
        %4835 = vmatpush1.msra.mxu0 0.0
        %4836 = vmatprep.subr.mxu0 0.0
        %4837 = vmatpush1.msra.mxu0 %v4114
        %4838 = vmatprep.subr.mxu0 0.0
        %4839 = vmatpush1.msra.mxu0 %v4113
        %4840 = vmatprep.subr.mxu0 0.0
        %4841 = vmatpush1.msra.mxu0 %v4112
        %4842 = vmatprep.subr.mxu0 0.0
        %4843 = vmatpush1.msra.mxu0 %v4111
        %4844 = vmatprep.subr.mxu0 0.0
        %4845 = vmatpush2.msra.mxu0 0.0
        %4846 = vmatprep.subr.mxu0 0.0
        %4847 = vmatpush2.msra.mxu0 0.0
        %4848 = vmatprep.subr.mxu0 0.0
        %4849 = vmatpush2.msra.mxu0 0.0
        %4850 = vmatprep.subr.mxu0 0.0
        %4851 = vmatpush2.msra.mxu0 0.0
        %4852 = vmatprep.subr.mxu0 0.0
        %4853 = vmatpush2.msra.mxu0 0.0
        %4854 = vmatprep.subr.mxu0 0.0
        %4855 = vmatpush2.msra.mxu0 0.0
        %4856 = vmatprep.subr.mxu0 0.0
        %4857 = vmatpush2.msra.mxu0 0.0
        %4858 = vmatprep.subr.mxu0 0.0
        %4859 = vmatpush2.msra.mxu0 0.0
        %4860 = vmatprep.subr.mxu0 0.0
        %4861 = vmatpush2.msra.mxu0 0.0
        %4862 = vmatprep.subr.mxu0 0.0
        %4863 = vmatpush2.msra.mxu0 0.0
        %4864 = vmatprep.subr.mxu0 0.0
        %4865 = vmatpush2.msra.mxu0 0.0
        %4866 = vmatprep.subr.mxu0 0.0
        %4867 = vmatpush2.msra.mxu0 0.0
        %4868 = vmatprep.subr.mxu0 0.0
        %4869 = vmatpush2.msra.mxu0 0.0
        %4870 = vmatprep.subr.mxu0 0.0
        %4871 = vmatpush2.msra.mxu0 0.0
        %4872 = vmatprep.subr.mxu0 0.0
        %4873 = vmatpush2.msra.mxu0 0.0
        %4874 = vmatprep.subr.mxu0 0.0
        %4875 = vmatpush2.msra.mxu0 0.0
        %4876 = vmatprep.mubr.f32.mxu0 0.0
        %4877 = vmatmul.mubr.f32.gmra.mxu0 %v4207
        %v4878 = vpop.f32.mrf.mxu0
        %v4879 = vadd.f32 0.0, %v4878
        %v4880 = vpop.f32.mrf.mxu0
        %4881 = vmatprep.mubr.f32.mxu0 0.0
        %4882 = vmatmul.mubr.f32.gmra.mxu0 %v4210
        %v4883 = vpop.f32.mrf.mxu0
        %v4884 = vadd.f32 0.0, %v4883
        %v4885 = vpop.f32.mrf.mxu0
        %4886 = vdwg.mxu0
        %4887 = vmatprep.subr.mxu0 0.0
        %4888 = vmatpush1.msra.mxu0 0.0
        %4889 = vmatprep.subr.mxu0 0.0
        %4890 = vmatpush1.msra.mxu0 0.0
        %4891 = vmatprep.subr.mxu0 0.0
        %4892 = vmatpush1.msra.mxu0 0.0
        %4893 = vmatprep.subr.mxu0 0.0
        %4894 = vmatpush1.msra.mxu0 0.0
        %4895 = vmatprep.subr.mxu0 0.0
        %4896 = vmatpush1.msra.mxu0 0.0
        %4897 = vmatprep.subr.mxu0 0.0
        %4898 = vmatpush1.msra.mxu0 0.0
        %4899 = vmatprep.subr.mxu0 0.0
        %4900 = vmatpush1.msra.mxu0 0.0
        %4901 = vmatprep.subr.mxu0 0.0
        %4902 = vmatpush1.msra.mxu0 0.0
        %4903 = vmatprep.subr.mxu0 0.0
        %4904 = vmatpush1.msra.mxu0 0.0
        %4905 = vmatprep.subr.mxu0 0.0
        %4906 = vmatpush1.msra.mxu0 0.0
        %4907 = vmatprep.subr.mxu0 0.0
        %4908 = vmatpush1.msra.mxu0 0.0
        %4909 = vmatprep.subr.mxu0 0.0
        %4910 = vmatpush1.msra.mxu0 0.0
        %4911 = vmatprep.subr.mxu0 0.0
        %4912 = vmatpush1.msra.mxu0 %v4118
        %4913 = vmatprep.subr.mxu0 0.0
        %4914 = vmatpush1.msra.mxu0 %v4117
        %4915 = vmatprep.subr.mxu0 0.0
        %4916 = vmatpush1.msra.mxu0 %v4116
        %4917 = vmatprep.subr.mxu0 0.0
        %4918 = vmatpush1.msra.mxu0 %v4115
        %4919 = vmatprep.subr.mxu0 0.0
        %4920 = vmatpush2.msra.mxu0 0.0
        %4921 = vmatprep.subr.mxu0 0.0
        %4922 = vmatpush2.msra.mxu0 0.0
        %4923 = vmatprep.subr.mxu0 0.0
        %4924 = vmatpush2.msra.mxu0 0.0
        %4925 = vmatprep.subr.mxu0 0.0
        %4926 = vmatpush2.msra.mxu0 0.0
        %4927 = vmatprep.subr.mxu0 0.0
        %4928 = vmatpush2.msra.mxu0 0.0
        %4929 = vmatprep.subr.mxu0 0.0
        %4930 = vmatpush2.msra.mxu0 0.0
        %4931 = vmatprep.subr.mxu0 0.0
        %4932 = vmatpush2.msra.mxu0 0.0
        %4933 = vmatprep.subr.mxu0 0.0
        %4934 = vmatpush2.msra.mxu0 0.0
        %4935 = vmatprep.subr.mxu0 0.0
        %4936 = vmatpush2.msra.mxu0 0.0
        %4937 = vmatprep.subr.mxu0 0.0
        %4938 = vmatpush2.msra.mxu0 0.0
        %4939 = vmatprep.subr.mxu0 0.0
        %4940 = vmatpush2.msra.mxu0 0.0
        %4941 = vmatprep.subr.mxu0 0.0
        %4942 = vmatpush2.msra.mxu0 0.0
        %4943 = vmatprep.subr.mxu0 0.0
        %4944 = vmatpush2.msra.mxu0 0.0
        %4945 = vmatprep.subr.mxu0 0.0
        %4946 = vmatpush2.msra.mxu0 0.0
        %4947 = vmatprep.subr.mxu0 0.0
        %4948 = vmatpush2.msra.mxu0 0.0
        %4949 = vmatprep.subr.mxu0 0.0
        %4950 = vmatpush2.msra.mxu0 0.0
        %4951 = vmatprep.mubr.f32.mxu0 0.0
        %4952 = vmatmul.mubr.f32.gmra.mxu0 %v4207
        %v4953 = vpop.f32.mrf.mxu0
        %v4954 = vadd.f32 0.0, %v4953
        %v4955 = vpop.f32.mrf.mxu0
        %4956 = vmatprep.mubr.f32.mxu0 0.0
        %4957 = vmatmul.mubr.f32.gmra.mxu0 %v4210
        %v4958 = vpop.f32.mrf.mxu0
        %v4959 = vadd.f32 0.0, %v4958
        %v4960 = vpop.f32.mrf.mxu0
        %4961 = vdwg.mxu0
        %4962 = vmatprep.subr.mxu0 0.0
        %4963 = vmatpush1.msra.mxu0 0.0
        %4964 = vmatprep.subr.mxu0 0.0
        %4965 = vmatpush1.msra.mxu0 0.0
        %4966 = vmatprep.subr.mxu0 0.0
        %4967 = vmatpush1.msra.mxu0 0.0
        %4968 = vmatprep.subr.mxu0 0.0
        %4969 = vmatpush1.msra.mxu0 0.0
        %4970 = vmatprep.subr.mxu0 0.0
        %4971 = vmatpush1.msra.mxu0 0.0
        %4972 = vmatprep.subr.mxu0 0.0
        %4973 = vmatpush1.msra.mxu0 0.0
        %4974 = vmatprep.subr.mxu0 0.0
        %4975 = vmatpush1.msra.mxu0 0.0
        %4976 = vmatprep.subr.mxu0 0.0
        %4977 = vmatpush1.msra.mxu0 0.0
        %4978 = vmatprep.subr.mxu0 0.0
        %4979 = vmatpush1.msra.mxu0 0.0
        %4980 = vmatprep.subr.mxu0 0.0
        %4981 = vmatpush1.msra.mxu0 0.0
        %4982 = vmatprep.subr.mxu0 0.0
        %4983 = vmatpush1.msra.mxu0 0.0
        %4984 = vmatprep.subr.mxu0 0.0
        %4985 = vmatpush1.msra.mxu0 0.0
        %4986 = vmatprep.subr.mxu0 0.0
        %4987 = vmatpush1.msra.mxu0 %v4122
        %4988 = vmatprep.subr.mxu0 0.0
        %4989 = vmatpush1.msra.mxu0 %v4121
        %4990 = vmatprep.subr.mxu0 0.0
        %4991 = vmatpush1.msra.mxu0 %v4120
        %4992 = vmatprep.subr.mxu0 0.0
        %4993 = vmatpush1.msra.mxu0 %v4119
        %4994 = vmatprep.subr.mxu0 0.0
        %4995 = vmatpush2.msra.mxu0 0.0
        %4996 = vmatprep.subr.mxu0 0.0
        %4997 = vmatpush2.msra.mxu0 0.0
        %4998 = vmatprep.subr.mxu0 0.0
        %4999 = vmatpush2.msra.mxu0 0.0
        %5000 = vmatprep.subr.mxu0 0.0
        %5001 = vmatpush2.msra.mxu0 0.0
        %5002 = vmatprep.subr.mxu0 0.0
        %5003 = vmatpush2.msra.mxu0 0.0
        %5004 = vmatprep.subr.mxu0 0.0
        %5005 = vmatpush2.msra.mxu0 0.0
        %5006 = vmatprep.subr.mxu0 0.0
        %5007 = vmatpush2.msra.mxu0 0.0
        %5008 = vmatprep.subr.mxu0 0.0
        %5009 = vmatpush2.msra.mxu0 0.0
        %5010 = vmatprep.subr.mxu0 0.0
        %5011 = vmatpush2.msra.mxu0 0.0
        %5012 = vmatprep.subr.mxu0 0.0
        %5013 = vmatpush2.msra.mxu0 0.0
        %5014 = vmatprep.subr.mxu0 0.0
        %5015 = vmatpush2.msra.mxu0 0.0
        %5016 = vmatprep.subr.mxu0 0.0
        %5017 = vmatpush2.msra.mxu0 0.0
        %5018 = vmatprep.subr.mxu0 0.0
        %5019 = vmatpush2.msra.mxu0 0.0
        %5020 = vmatprep.subr.mxu0 0.0
        %5021 = vmatpush2.msra.mxu0 0.0
        %5022 = vmatprep.subr.mxu0 0.0
        %5023 = vmatpush2.msra.mxu0 0.0
        %5024 = vmatprep.subr.mxu0 0.0
        %5025 = vmatpush2.msra.mxu0 0.0
        %5026 = vmatprep.mubr.f32.mxu0 0.0
        %5027 = vmatmul.mubr.f32.gmra.mxu0 %v4207
        %v5028 = vpop.f32.mrf.mxu0
        %v5029 = vadd.f32 0.0, %v5028
        %v5030 = vpop.f32.mrf.mxu0
        %5031 = vmatprep.mubr.f32.mxu0 0.0
        %5032 = vmatmul.mubr.f32.gmra.mxu0 %v4210
        %v5033 = vpop.f32.mrf.mxu0
        %v5034 = vadd.f32 0.0, %v5033
        %v5035 = vpop.f32.mrf.mxu0
        %5036 = vdwg.mxu0
        %5037 = vmatprep.subr.mxu0 0.0
        %5038 = vmatpush1.msra.mxu0 0.0
        %5039 = vmatprep.subr.mxu0 0.0
        %5040 = vmatpush1.msra.mxu0 0.0
        %5041 = vmatprep.subr.mxu0 0.0
        %5042 = vmatpush1.msra.mxu0 0.0
        %5043 = vmatprep.subr.mxu0 0.0
        %5044 = vmatpush1.msra.mxu0 0.0
        %5045 = vmatprep.subr.mxu0 0.0
        %5046 = vmatpush1.msra.mxu0 0.0
        %5047 = vmatprep.subr.mxu0 0.0
        %5048 = vmatpush1.msra.mxu0 0.0
        %5049 = vmatprep.subr.mxu0 0.0
        %5050 = vmatpush1.msra.mxu0 0.0
        %5051 = vmatprep.subr.mxu0 0.0
        %5052 = vmatpush1.msra.mxu0 0.0
        %5053 = vmatprep.subr.mxu0 0.0
        %5054 = vmatpush1.msra.mxu0 0.0
        %5055 = vmatprep.subr.mxu0 0.0
        %5056 = vmatpush1.msra.mxu0 0.0
        %5057 = vmatprep.subr.mxu0 0.0
        %5058 = vmatpush1.msra.mxu0 0.0
        %5059 = vmatprep.subr.mxu0 0.0
        %5060 = vmatpush1.msra.mxu0 0.0
        %5061 = vmatprep.subr.mxu0 0.0
        %5062 = vmatpush1.msra.mxu0 %v4126
        %5063 = vmatprep.subr.mxu0 0.0
        %5064 = vmatpush1.msra.mxu0 %v4125
        %5065 = vmatprep.subr.mxu0 0.0
        %5066 = vmatpush1.msra.mxu0 %v4124
        %5067 = vmatprep.subr.mxu0 0.0
        %5068 = vmatpush1.msra.mxu0 %v4123
        %5069 = vmatprep.subr.mxu0 0.0
        %5070 = vmatpush2.msra.mxu0 0.0
        %5071 = vmatprep.subr.mxu0 0.0
        %5072 = vmatpush2.msra.mxu0 0.0
        %5073 = vmatprep.subr.mxu0 0.0
        %5074 = vmatpush2.msra.mxu0 0.0
        %5075 = vmatprep.subr.mxu0 0.0
        %5076 = vmatpush2.msra.mxu0 0.0
        %5077 = vmatprep.subr.mxu0 0.0
        %5078 = vmatpush2.msra.mxu0 0.0
        %5079 = vmatprep.subr.mxu0 0.0
        %5080 = vmatpush2.msra.mxu0 0.0
        %5081 = vmatprep.subr.mxu0 0.0
        %5082 = vmatpush2.msra.mxu0 0.0
        %5083 = vmatprep.subr.mxu0 0.0
        %5084 = vmatpush2.msra.mxu0 0.0
        %5085 = vmatprep.subr.mxu0 0.0
        %5086 = vmatpush2.msra.mxu0 0.0
        %5087 = vmatprep.subr.mxu0 0.0
        %5088 = vmatpush2.msra.mxu0 0.0
        %5089 = vmatprep.subr.mxu0 0.0
        %5090 = vmatpush2.msra.mxu0 0.0
        %5091 = vmatprep.subr.mxu0 0.0
        %5092 = vmatpush2.msra.mxu0 0.0
        %5093 = vmatprep.subr.mxu0 0.0
        %5094 = vmatpush2.msra.mxu0 0.0
        %5095 = vmatprep.subr.mxu0 0.0
        %5096 = vmatpush2.msra.mxu0 0.0
        %5097 = vmatprep.subr.mxu0 0.0
        %5098 = vmatpush2.msra.mxu0 0.0
        %5099 = vmatprep.subr.mxu0 0.0
        %5100 = vmatpush2.msra.mxu0 0.0
        %5101 = vmatprep.mubr.f32.mxu0 0.0
        %5102 = vmatmul.mubr.f32.gmra.mxu0 %v4207
        %v5103 = vpop.f32.mrf.mxu0
        %v5104 = vadd.f32 0.0, %v5103
        %v5105 = vpop.f32.mrf.mxu0
        %5106 = vmatprep.mubr.f32.mxu0 0.0
        %5107 = vmatmul.mubr.f32.gmra.mxu0 %v4210
        %v5108 = vpop.f32.mrf.mxu0
        %v5109 = vadd.f32 0.0, %v5108
        %v5110 = vpop.f32.mrf.mxu0
        %5111 = vdwg.mxu0
        %v5113 = vsel %vm2718, %v4279, 0
        %v5116 = vsel %vm2718, %v4284, 0
        %v5119 = vsel %vm2718, %v4579, 0
        %v5122 = vsel %vm2718, %v4584, 0
        %5124 = vmatprep.subr.mxu0 0.0
        %5125 = vmatpush1.xpose.msra.mxu0 0.0
        %5126 = vmatprep.subr.mxu0 0.0
        %5127 = vmatpush1.xpose.msra.mxu0 0.0
        %5128 = vmatprep.subr.mxu0 0.0
        %5129 = vmatpush1.xpose.msra.mxu0 0.0
        %5130 = vmatprep.subr.mxu0 0.0
        %5131 = vmatpush1.xpose.msra.mxu0 0.0
        %5132 = vmatprep.subr.mxu0 0.0
        %5133 = vmatpush1.xpose.msra.mxu0 0.0
        %5134 = vmatprep.subr.mxu0 0.0
        %5135 = vmatpush1.xpose.msra.mxu0 0.0
        %5136 = vmatprep.subr.mxu0 0.0
        %5137 = vmatpush1.xpose.msra.mxu0 0.0
        %5138 = vmatprep.subr.mxu0 0.0
        %5139 = vmatpush1.xpose.msra.mxu0 0.0
        %5140 = vmatprep.subr.mxu0 0.0
        %5141 = vmatpush1.xpose.msra.mxu0 0.0
        %5142 = vmatprep.subr.mxu0 0.0
        %5143 = vmatpush1.xpose.msra.mxu0 0.0
        %5144 = vmatprep.subr.mxu0 0.0
        %5145 = vmatpush1.xpose.msra.mxu0 0.0
        %5146 = vmatprep.subr.mxu0 0.0
        %5147 = vmatpush1.xpose.msra.mxu0 0.0
        %5148 = vmatprep.subr.mxu0 0.0
        %5149 = vmatpush1.xpose.msra.mxu0 0.0
        %5150 = vmatprep.subr.mxu0 0.0
        %5151 = vmatpush1.xpose.msra.mxu0 0.0
        %5152 = vmatprep.subr.mxu0 0.0
        %5153 = vmatpush1.xpose.msra.mxu0 %v5122
        %5154 = vmatprep.subr.mxu0 0.0
        %5155 = vmatpush1.xpose.msra.mxu0 %v5119
        %5156 = vmatprep.subr.mxu0 0.0
        %5157 = vmatpush2.xpose.msra.mxu0 0.0
        %5158 = vmatprep.subr.mxu0 0.0
        %5159 = vmatpush2.xpose.msra.mxu0 0.0
        %5160 = vmatprep.subr.mxu0 0.0
        %5161 = vmatpush2.xpose.msra.mxu0 0.0
        %5162 = vmatprep.subr.mxu0 0.0
        %5163 = vmatpush2.xpose.msra.mxu0 0.0
        %5164 = vmatprep.subr.mxu0 0.0
        %5165 = vmatpush2.xpose.msra.mxu0 0.0
        %5166 = vmatprep.subr.mxu0 0.0
        %5167 = vmatpush2.xpose.msra.mxu0 0.0
        %5168 = vmatprep.subr.mxu0 0.0
        %5169 = vmatpush2.xpose.msra.mxu0 0.0
        %5170 = vmatprep.subr.mxu0 0.0
        %5171 = vmatpush2.xpose.msra.mxu0 0.0
        %5172 = vmatprep.subr.mxu0 0.0
        %5173 = vmatpush2.xpose.msra.mxu0 0.0
        %5174 = vmatprep.subr.mxu0 0.0
        %5175 = vmatpush2.xpose.msra.mxu0 0.0
        %5176 = vmatprep.subr.mxu0 0.0
        %5177 = vmatpush2.xpose.msra.mxu0 0.0
        %5178 = vmatprep.subr.mxu0 0.0
        %5179 = vmatpush2.xpose.msra.mxu0 0.0
        %5180 = vmatprep.subr.mxu0 0.0
        %5181 = vmatpush2.xpose.msra.mxu0 0.0
        %5182 = vmatprep.subr.mxu0 0.0
        %5183 = vmatpush2.xpose.msra.mxu0 0.0
        %5184 = vmatprep.subr.mxu0 0.0
        %5185 = vmatpush2.xpose.msra.mxu0 0.0
        %5186 = vmatprep.subr.mxu0 0.0
        %5187 = vmatpush2.xpose.msra.mxu0 0.0
        %5188 = vmatprep.mubr.f32.mxu0 0.0
        %5189 = vmatmul.mubr.f32.gmra.mxu0 %v5113
        %v5190 = vpop.f32.mrf.mxu0
        %v5191 = vadd.f32 0.0, %v5190
        %v5192 = vpop.f32.mrf.mxu0
        %5193 = vmatprep.mubr.f32.mxu0 0.0
        %5194 = vmatmul.mubr.f32.gmra.mxu0 %v5116
        %v5195 = vpop.f32.mrf.mxu0
        %v5196 = vadd.f32 0.0, %v5195
        %v5197 = vpop.f32.mrf.mxu0
        %5198 = vdwg.mxu0
        %v5200 = vsel %vm2718, %v4354, 0
        %v5203 = vsel %vm2718, %v4359, 0
        %v5206 = vsel %vm2718, %v4654, 0
        %v5209 = vsel %vm2718, %v4659, 0
        %5211 = vmatprep.subr.mxu0 0.0
        %5212 = vmatpush1.xpose.msra.mxu0 0.0
        %5213 = vmatprep.subr.mxu0 0.0
        %5214 = vmatpush1.xpose.msra.mxu0 0.0
        %5215 = vmatprep.subr.mxu0 0.0
        %5216 = vmatpush1.xpose.msra.mxu0 0.0
        %5217 = vmatprep.subr.mxu0 0.0
        %5218 = vmatpush1.xpose.msra.mxu0 0.0
        %5219 = vmatprep.subr.mxu0 0.0
        %5220 = vmatpush1.xpose.msra.mxu0 0.0
        %5221 = vmatprep.subr.mxu0 0.0
        %5222 = vmatpush1.xpose.msra.mxu0 0.0
        %5223 = vmatprep.subr.mxu0 0.0
        %5224 = vmatpush1.xpose.msra.mxu0 0.0
        %5225 = vmatprep.subr.mxu0 0.0
        %5226 = vmatpush1.xpose.msra.mxu0 0.0
        %5227 = vmatprep.subr.mxu0 0.0
        %5228 = vmatpush1.xpose.msra.mxu0 0.0
        %5229 = vmatprep.subr.mxu0 0.0
        %5230 = vmatpush1.xpose.msra.mxu0 0.0
        %5231 = vmatprep.subr.mxu0 0.0
        %5232 = vmatpush1.xpose.msra.mxu0 0.0
        %5233 = vmatprep.subr.mxu0 0.0
        %5234 = vmatpush1.xpose.msra.mxu0 0.0
        %5235 = vmatprep.subr.mxu0 0.0
        %5236 = vmatpush1.xpose.msra.mxu0 0.0
        %5237 = vmatprep.subr.mxu0 0.0
        %5238 = vmatpush1.xpose.msra.mxu0 0.0
        %5239 = vmatprep.subr.mxu0 0.0
        %5240 = vmatpush1.xpose.msra.mxu0 %v5209
        %5241 = vmatprep.subr.mxu0 0.0
        %5242 = vmatpush1.xpose.msra.mxu0 %v5206
        %5243 = vmatprep.subr.mxu0 0.0
        %5244 = vmatpush2.xpose.msra.mxu0 0.0
        %5245 = vmatprep.subr.mxu0 0.0
        %5246 = vmatpush2.xpose.msra.mxu0 0.0
        %5247 = vmatprep.subr.mxu0 0.0
        %5248 = vmatpush2.xpose.msra.mxu0 0.0
        %5249 = vmatprep.subr.mxu0 0.0
        %5250 = vmatpush2.xpose.msra.mxu0 0.0
        %5251 = vmatprep.subr.mxu0 0.0
        %5252 = vmatpush2.xpose.msra.mxu0 0.0
        %5253 = vmatprep.subr.mxu0 0.0
        %5254 = vmatpush2.xpose.msra.mxu0 0.0
        %5255 = vmatprep.subr.mxu0 0.0
        %5256 = vmatpush2.xpose.msra.mxu0 0.0
        %5257 = vmatprep.subr.mxu0 0.0
        %5258 = vmatpush2.xpose.msra.mxu0 0.0
        %5259 = vmatprep.subr.mxu0 0.0
        %5260 = vmatpush2.xpose.msra.mxu0 0.0
        %5261 = vmatprep.subr.mxu0 0.0
        %5262 = vmatpush2.xpose.msra.mxu0 0.0
        %5263 = vmatprep.subr.mxu0 0.0
        %5264 = vmatpush2.xpose.msra.mxu0 0.0
        %5265 = vmatprep.subr.mxu0 0.0
        %5266 = vmatpush2.xpose.msra.mxu0 0.0
        %5267 = vmatprep.subr.mxu0 0.0
        %5268 = vmatpush2.xpose.msra.mxu0 0.0
        %5269 = vmatprep.subr.mxu0 0.0
        %5270 = vmatpush2.xpose.msra.mxu0 0.0
        %5271 = vmatprep.subr.mxu0 0.0
        %5272 = vmatpush2.xpose.msra.mxu0 0.0
        %5273 = vmatprep.subr.mxu0 0.0
        %5274 = vmatpush2.xpose.msra.mxu0 0.0
        %5275 = vmatprep.mubr.f32.mxu0 0.0
        %5276 = vmatmul.mubr.f32.gmra.mxu0 %v5200
        %v5277 = vpop.f32.mrf.mxu0
        %v5278 = vadd.f32 0.0, %v5277
        %v5279 = vpop.f32.mrf.mxu0
        %5280 = vmatprep.mubr.f32.mxu0 0.0
        %5281 = vmatmul.mubr.f32.gmra.mxu0 %v5203
        %v5282 = vpop.f32.mrf.mxu0
        %v5283 = vadd.f32 0.0, %v5282
        %v5284 = vpop.f32.mrf.mxu0
        %5285 = vdwg.mxu0
        %v5287 = vsel %vm2718, %v4429, 0
        %v5290 = vsel %vm2718, %v4434, 0
        %v5293 = vsel %vm2718, %v4729, 0
        %v5296 = vsel %vm2718, %v4734, 0
        %5298 = vmatprep.subr.mxu0 0.0
        %5299 = vmatpush1.xpose.msra.mxu0 0.0
        %5300 = vmatprep.subr.mxu0 0.0
        %5301 = vmatpush1.xpose.msra.mxu0 0.0
        %5302 = vmatprep.subr.mxu0 0.0
        %5303 = vmatpush1.xpose.msra.mxu0 0.0
        %5304 = vmatprep.subr.mxu0 0.0
        %5305 = vmatpush1.xpose.msra.mxu0 0.0
        %5306 = vmatprep.subr.mxu0 0.0
        %5307 = vmatpush1.xpose.msra.mxu0 0.0
        %5308 = vmatprep.subr.mxu0 0.0
        %5309 = vmatpush1.xpose.msra.mxu0 0.0
        %5310 = vmatprep.subr.mxu0 0.0
        %5311 = vmatpush1.xpose.msra.mxu0 0.0
        %5312 = vmatprep.subr.mxu0 0.0
        %5313 = vmatpush1.xpose.msra.mxu0 0.0
        %5314 = vmatprep.subr.mxu0 0.0
        %5315 = vmatpush1.xpose.msra.mxu0 0.0
        %5316 = vmatprep.subr.mxu0 0.0
        %5317 = vmatpush1.xpose.msra.mxu0 0.0
        %5318 = vmatprep.subr.mxu0 0.0
        %5319 = vmatpush1.xpose.msra.mxu0 0.0
        %5320 = vmatprep.subr.mxu0 0.0
        %5321 = vmatpush1.xpose.msra.mxu0 0.0
        %5322 = vmatprep.subr.mxu0 0.0
        %5323 = vmatpush1.xpose.msra.mxu0 0.0
        %5324 = vmatprep.subr.mxu0 0.0
        %5325 = vmatpush1.xpose.msra.mxu0 0.0
        %5326 = vmatprep.subr.mxu0 0.0
        %5327 = vmatpush1.xpose.msra.mxu0 %v5296
        %5328 = vmatprep.subr.mxu0 0.0
        %5329 = vmatpush1.xpose.msra.mxu0 %v5293
        %5330 = vmatprep.subr.mxu0 0.0
        %5331 = vmatpush2.xpose.msra.mxu0 0.0
        %5332 = vmatprep.subr.mxu0 0.0
        %5333 = vmatpush2.xpose.msra.mxu0 0.0
        %5334 = vmatprep.subr.mxu0 0.0
        %5335 = vmatpush2.xpose.msra.mxu0 0.0
        %5336 = vmatprep.subr.mxu0 0.0
        %5337 = vmatpush2.xpose.msra.mxu0 0.0
        %5338 = vmatprep.subr.mxu0 0.0
        %5339 = vmatpush2.xpose.msra.mxu0 0.0
        %5340 = vmatprep.subr.mxu0 0.0
        %5341 = vmatpush2.xpose.msra.mxu0 0.0
        %5342 = vmatprep.subr.mxu0 0.0
        %5343 = vmatpush2.xpose.msra.mxu0 0.0
        %5344 = vmatprep.subr.mxu0 0.0
        %5345 = vmatpush2.xpose.msra.mxu0 0.0
        %5346 = vmatprep.subr.mxu0 0.0
        %5347 = vmatpush2.xpose.msra.mxu0 0.0
        %5348 = vmatprep.subr.mxu0 0.0
        %5349 = vmatpush2.xpose.msra.mxu0 0.0
        %5350 = vmatprep.subr.mxu0 0.0
        %5351 = vmatpush2.xpose.msra.mxu0 0.0
        %5352 = vmatprep.subr.mxu0 0.0
        %5353 = vmatpush2.xpose.msra.mxu0 0.0
        %5354 = vmatprep.subr.mxu0 0.0
        %5355 = vmatpush2.xpose.msra.mxu0 0.0
        %5356 = vmatprep.subr.mxu0 0.0
        %5357 = vmatpush2.xpose.msra.mxu0 0.0
        %5358 = vmatprep.subr.mxu0 0.0
        %5359 = vmatpush2.xpose.msra.mxu0 0.0
        %5360 = vmatprep.subr.mxu0 0.0
        %5361 = vmatpush2.xpose.msra.mxu0 0.0
        %5362 = vmatprep.mubr.f32.mxu0 0.0
        %5363 = vmatmul.mubr.f32.gmra.mxu0 %v5287
        %v5364 = vpop.f32.mrf.mxu0
        %v5365 = vadd.f32 0.0, %v5364
        %v5366 = vpop.f32.mrf.mxu0
        %5367 = vmatprep.mubr.f32.mxu0 0.0
        %5368 = vmatmul.mubr.f32.gmra.mxu0 %v5290
        %v5369 = vpop.f32.mrf.mxu0
        %v5370 = vadd.f32 0.0, %v5369
        %v5371 = vpop.f32.mrf.mxu0
        %5372 = vdwg.mxu0
        %v5374 = vsel %vm2718, %v4504, 0
        %v5377 = vsel %vm2718, %v4509, 0
        %v5380 = vsel %vm2718, %v4804, 0
        %v5383 = vsel %vm2718, %v4809, 0
        %5385 = vmatprep.subr.mxu0 0.0
        %5386 = vmatpush1.xpose.msra.mxu0 0.0
        %5387 = vmatprep.subr.mxu0 0.0
        %5388 = vmatpush1.xpose.msra.mxu0 0.0
        %5389 = vmatprep.subr.mxu0 0.0
        %5390 = vmatpush1.xpose.msra.mxu0 0.0
        %5391 = vmatprep.subr.mxu0 0.0
        %5392 = vmatpush1.xpose.msra.mxu0 0.0
        %5393 = vmatprep.subr.mxu0 0.0
        %5394 = vmatpush1.xpose.msra.mxu0 0.0
        %5395 = vmatprep.subr.mxu0 0.0
        %5396 = vmatpush1.xpose.msra.mxu0 0.0
        %5397 = vmatprep.subr.mxu0 0.0
        %5398 = vmatpush1.xpose.msra.mxu0 0.0
        %5399 = vmatprep.subr.mxu0 0.0
        %5400 = vmatpush1.xpose.msra.mxu0 0.0
        %5401 = vmatprep.subr.mxu0 0.0
        %5402 = vmatpush1.xpose.msra.mxu0 0.0
        %5403 = vmatprep.subr.mxu0 0.0
        %5404 = vmatpush1.xpose.msra.mxu0 0.0
        %5405 = vmatprep.subr.mxu0 0.0
        %5406 = vmatpush1.xpose.msra.mxu0 0.0
        %5407 = vmatprep.subr.mxu0 0.0
        %5408 = vmatpush1.xpose.msra.mxu0 0.0
        %5409 = vmatprep.subr.mxu0 0.0
        %5410 = vmatpush1.xpose.msra.mxu0 0.0
        %5411 = vmatprep.subr.mxu0 0.0
        %5412 = vmatpush1.xpose.msra.mxu0 0.0
        %5413 = vmatprep.subr.mxu0 0.0
        %5414 = vmatpush1.xpose.msra.mxu0 %v5383
        %5415 = vmatprep.subr.mxu0 0.0
        %5416 = vmatpush1.xpose.msra.mxu0 %v5380
        %5417 = vmatprep.subr.mxu0 0.0
        %5418 = vmatpush2.xpose.msra.mxu0 0.0
        %5419 = vmatprep.subr.mxu0 0.0
        %5420 = vmatpush2.xpose.msra.mxu0 0.0
        %5421 = vmatprep.subr.mxu0 0.0
        %5422 = vmatpush2.xpose.msra.mxu0 0.0
        %5423 = vmatprep.subr.mxu0 0.0
        %5424 = vmatpush2.xpose.msra.mxu0 0.0
        %5425 = vmatprep.subr.mxu0 0.0
        %5426 = vmatpush2.xpose.msra.mxu0 0.0
        %5427 = vmatprep.subr.mxu0 0.0
        %5428 = vmatpush2.xpose.msra.mxu0 0.0
        %5429 = vmatprep.subr.mxu0 0.0
        %5430 = vmatpush2.xpose.msra.mxu0 0.0
        %5431 = vmatprep.subr.mxu0 0.0
        %5432 = vmatpush2.xpose.msra.mxu0 0.0
        %5433 = vmatprep.subr.mxu0 0.0
        %5434 = vmatpush2.xpose.msra.mxu0 0.0
        %5435 = vmatprep.subr.mxu0 0.0
        %5436 = vmatpush2.xpose.msra.mxu0 0.0
        %5437 = vmatprep.subr.mxu0 0.0
        %5438 = vmatpush2.xpose.msra.mxu0 0.0
        %5439 = vmatprep.subr.mxu0 0.0
        %5440 = vmatpush2.xpose.msra.mxu0 0.0
        %5441 = vmatprep.subr.mxu0 0.0
        %5442 = vmatpush2.xpose.msra.mxu0 0.0
        %5443 = vmatprep.subr.mxu0 0.0
        %5444 = vmatpush2.xpose.msra.mxu0 0.0
        %5445 = vmatprep.subr.mxu0 0.0
        %5446 = vmatpush2.xpose.msra.mxu0 0.0
        %5447 = vmatprep.subr.mxu0 0.0
        %5448 = vmatpush2.xpose.msra.mxu0 0.0
        %5449 = vmatprep.mubr.f32.mxu0 0.0
        %5450 = vmatmul.mubr.f32.gmra.mxu0 %v5374
        %v5451 = vpop.f32.mrf.mxu0
        %v5452 = vadd.f32 0.0, %v5451
        %v5453 = vpop.f32.mrf.mxu0
        %5454 = vmatprep.mubr.f32.mxu0 0.0
        %5455 = vmatmul.mubr.f32.gmra.mxu0 %v5377
        %v5456 = vpop.f32.mrf.mxu0
        %v5457 = vadd.f32 0.0, %v5456
        %v5458 = vpop.f32.mrf.mxu0
        %5459 = vdwg.mxu0
        %v5460 = vsel %vm3067, %v5191, -inf
        %5461 = vmax.xlane.f32.xlu0 %v5460
        %v5462 = vpop.xlane.xlu0 %5461
        %v5463 = vsel %vm3071, %v5196, -inf
        %5464 = vmax.xlane.f32.xlu0 %v5463
        %v5465 = vpop.xlane.xlu0 %5464
        %v5466 = vsel %vm3067, %v5278, -inf
        %5467 = vmax.xlane.f32.xlu0 %v5466
        %v5468 = vpop.xlane.xlu0 %5467
        %v5469 = vsel %vm3071, %v5283, -inf
        %5470 = vmax.xlane.f32.xlu0 %v5469
        %v5471 = vpop.xlane.xlu0 %5470
        %v5472 = vsel %vm3067, %v5365, -inf
        %5473 = vmax.xlane.f32.xlu0 %v5472
        %v5474 = vpop.xlane.xlu0 %5473
        %v5475 = vsel %vm3071, %v5370, -inf
        %5476 = vmax.xlane.f32.xlu0 %v5475
        %v5477 = vpop.xlane.xlu0 %5476
        %v5478 = vsel %vm3067, %v5452, -inf
        %5479 = vmax.xlane.f32.xlu0 %v5478
        %v5480 = vpop.xlane.xlu0 %5479
        %v5481 = vsel %vm3071, %v5457, -inf
        %5482 = vmax.xlane.f32.xlu0 %v5481
        %v5483 = vpop.xlane.xlu0 %5482
        %v5484 = vsub.f32 %v5191, %v5462
        %v5485 = vsub.f32 %v5196, %v5465
        %v5486 = vsub.f32 %v5278, %v5468
        %v5487 = vsub.f32 %v5283, %v5471
        %v5488 = vsub.f32 %v5365, %v5474
        %v5489 = vsub.f32 %v5370, %v5477
        %v5490 = vsub.f32 %v5452, %v5480
        %v5491 = vsub.f32 %v5457, %v5483
        %v5492 = vmul.f32 %v5484, 1.442695
        %v5493 = vpow.pop %v5492
        %v5494 = vmul.f32 %v5485, 1.442695
        %v5495 = vpow.pop %v5494
        %v5496 = vmul.f32 %v5486, 1.442695
        %v5497 = vpow.pop %v5496
        %v5498 = vmul.f32 %v5487, 1.442695
        %v5499 = vpow.pop %v5498
        %v5500 = vmul.f32 %v5488, 1.442695
        %v5501 = vpow.pop %v5500
        %v5502 = vmul.f32 %v5489, 1.442695
        %v5503 = vpow.pop %v5502
        %v5504 = vmul.f32 %v5490, 1.442695
        %v5505 = vpow.pop %v5504
        %v5506 = vmul.f32 %v5491, 1.442695
        %v5507 = vpow.pop %v5506
        %v5508 = vsel %vm3067, %v5493, 0.0
        %5509 = vadd.xlane.f32.xlu0 %v5508
        %v5510 = vpop.xlane.xlu0 %5509
        %v5511 = vsel %vm3071, %v5495, 0.0
        %5512 = vadd.xlane.f32.xlu0 %v5511
        %v5513 = vpop.xlane.xlu0 %5512
        %v5514 = vsel %vm3067, %v5497, 0.0
        %5515 = vadd.xlane.f32.xlu0 %v5514
        %v5516 = vpop.xlane.xlu0 %5515
        %v5517 = vsel %vm3071, %v5499, 0.0
        %5518 = vadd.xlane.f32.xlu0 %v5517
        %v5519 = vpop.xlane.xlu0 %5518
        %v5520 = vsel %vm3067, %v5501, 0.0
        %5521 = vadd.xlane.f32.xlu0 %v5520
        %v5522 = vpop.xlane.xlu0 %5521
        %v5523 = vsel %vm3071, %v5503, 0.0
        %5524 = vadd.xlane.f32.xlu0 %v5523
        %v5525 = vpop.xlane.xlu0 %5524
        %v5526 = vsel %vm3067, %v5505, 0.0
        %5527 = vadd.xlane.f32.xlu0 %v5526
        %v5528 = vpop.xlane.xlu0 %5527
        %v5529 = vsel %vm3071, %v5507, 0.0
        %5530 = vadd.xlane.f32.xlu0 %v5529
        %v5531 = vpop.xlane.xlu0 %5530
        %v5532 = vrcp.pop %v5510
        %v5533 = vrcp.pop %v5513
        %v5534 = vrcp.pop %v5516
        %v5535 = vrcp.pop %v5519
        %v5536 = vrcp.pop %v5522
        %v5537 = vrcp.pop %v5525
        %v5538 = vrcp.pop %v5528
        %v5539 = vrcp.pop %v5531
        %v5540 = vmul.f32 %v5493, %v5532
        %v5541 = vmul.f32 %v5495, %v5533
        %v5542 = vmul.f32 %v5497, %v5534
        %v5543 = vmul.f32 %v5499, %v5535
        %v5544 = vmul.f32 %v5501, %v5536
        %v5545 = vmul.f32 %v5503, %v5537
        %v5546 = vmul.f32 %v5505, %v5538
        %v5547 = vmul.f32 %v5507, %v5539
        %v5549 = vsel %vm3067, %v5540, 0
        %v5552 = vsel %vm3067, %v5541, 0
        %v5555 = vsel %vm3163, %v4884, 0
        %5557 = vmatprep.subr.mxu0 0.0
        %5558 = vmatpush1.msra.mxu0 0.0
        %5559 = vmatprep.subr.mxu0 0.0
        %5560 = vmatpush1.msra.mxu0 0.0
        %5561 = vmatprep.subr.mxu0 0.0
        %5562 = vmatpush1.msra.mxu0 0.0
        %5563 = vmatprep.subr.mxu0 0.0
        %5564 = vmatpush1.msra.mxu0 0.0
        %5565 = vmatprep.subr.mxu0 0.0
        %5566 = vmatpush1.msra.mxu0 0.0
        %5567 = vmatprep.subr.mxu0 0.0
        %5568 = vmatpush1.msra.mxu0 0.0
        %5569 = vmatprep.subr.mxu0 0.0
        %5570 = vmatpush1.msra.mxu0 0.0
        %5571 = vmatprep.subr.mxu0 0.0
        %5572 = vmatpush1.msra.mxu0 0.0
        %5573 = vmatprep.subr.mxu0 0.0
        %5574 = vmatpush1.msra.mxu0 0.0
        %5575 = vmatprep.subr.mxu0 0.0
        %5576 = vmatpush1.msra.mxu0 0.0
        %5577 = vmatprep.subr.mxu0 0.0
        %5578 = vmatpush1.msra.mxu0 0.0
        %5579 = vmatprep.subr.mxu0 0.0
        %5580 = vmatpush1.msra.mxu0 0.0
        %5581 = vmatprep.subr.mxu0 0.0
        %5582 = vmatpush1.msra.mxu0 0.0
        %5583 = vmatprep.subr.mxu0 0.0
        %5584 = vmatpush1.msra.mxu0 0.0
        %5585 = vmatprep.subr.mxu0 0.0
        %5586 = vmatpush1.msra.mxu0 %v5555
        %5587 = vmatprep.subr.mxu0 0.0
        %5588 = vmatpush1.msra.mxu0 %v4879
        %5589 = vmatprep.subr.mxu0 0.0
        %5590 = vmatpush2.msra.mxu0 0.0
        %5591 = vmatprep.subr.mxu0 0.0
        %5592 = vmatpush2.msra.mxu0 0.0
        %5593 = vmatprep.subr.mxu0 0.0
        %5594 = vmatpush2.msra.mxu0 0.0
        %5595 = vmatprep.subr.mxu0 0.0
        %5596 = vmatpush2.msra.mxu0 0.0
        %5597 = vmatprep.subr.mxu0 0.0
        %5598 = vmatpush2.msra.mxu0 0.0
        %5599 = vmatprep.subr.mxu0 0.0
        %5600 = vmatpush2.msra.mxu0 0.0
        %5601 = vmatprep.subr.mxu0 0.0
        %5602 = vmatpush2.msra.mxu0 0.0
        %5603 = vmatprep.subr.mxu0 0.0
        %5604 = vmatpush2.msra.mxu0 0.0
        %5605 = vmatprep.subr.mxu0 0.0
        %5606 = vmatpush2.msra.mxu0 0.0
        %5607 = vmatprep.subr.mxu0 0.0
        %5608 = vmatpush2.msra.mxu0 0.0
        %5609 = vmatprep.subr.mxu0 0.0
        %5610 = vmatpush2.msra.mxu0 0.0
        %5611 = vmatprep.subr.mxu0 0.0
        %5612 = vmatpush2.msra.mxu0 0.0
        %5613 = vmatprep.subr.mxu0 0.0
        %5614 = vmatpush2.msra.mxu0 0.0
        %5615 = vmatprep.subr.mxu0 0.0
        %5616 = vmatpush2.msra.mxu0 0.0
        %5617 = vmatprep.subr.mxu0 0.0
        %5618 = vmatpush2.msra.mxu0 0.0
        %5619 = vmatprep.subr.mxu0 0.0
        %5620 = vmatpush2.msra.mxu0 0.0
        %5621 = vmatprep.mubr.f32.mxu0 0.0
        %5622 = vmatmul.mubr.f32.gmra.mxu0 %v5549
        %v5623 = vpop.f32.mrf.mxu0
        %v5624 = vadd.f32 0.0, %v5623
        %v5625 = vpop.f32.mrf.mxu0
        %5626 = vmatprep.mubr.f32.mxu0 0.0
        %5627 = vmatmul.mubr.f32.gmra.mxu0 %v5552
        %v5628 = vpop.f32.mrf.mxu0
        %v5629 = vadd.f32 0.0, %v5628
        %v5630 = vpop.f32.mrf.mxu0
        %5631 = vdwg.mxu0
        %v5633 = vsel %vm3067, %v5542, 0
        %v5636 = vsel %vm3067, %v5543, 0
        %v5639 = vsel %vm3163, %v4959, 0
        %5641 = vmatprep.subr.mxu0 0.0
        %5642 = vmatpush1.msra.mxu0 0.0
        %5643 = vmatprep.subr.mxu0 0.0
        %5644 = vmatpush1.msra.mxu0 0.0
        %5645 = vmatprep.subr.mxu0 0.0
        %5646 = vmatpush1.msra.mxu0 0.0
        %5647 = vmatprep.subr.mxu0 0.0
        %5648 = vmatpush1.msra.mxu0 0.0
        %5649 = vmatprep.subr.mxu0 0.0
        %5650 = vmatpush1.msra.mxu0 0.0
        %5651 = vmatprep.subr.mxu0 0.0
        %5652 = vmatpush1.msra.mxu0 0.0
        %5653 = vmatprep.subr.mxu0 0.0
        %5654 = vmatpush1.msra.mxu0 0.0
        %5655 = vmatprep.subr.mxu0 0.0
        %5656 = vmatpush1.msra.mxu0 0.0
        %5657 = vmatprep.subr.mxu0 0.0
        %5658 = vmatpush1.msra.mxu0 0.0
        %5659 = vmatprep.subr.mxu0 0.0
        %5660 = vmatpush1.msra.mxu0 0.0
        %5661 = vmatprep.subr.mxu0 0.0
        %5662 = vmatpush1.msra.mxu0 0.0
        %5663 = vmatprep.subr.mxu0 0.0
        %5664 = vmatpush1.msra.mxu0 0.0
        %5665 = vmatprep.subr.mxu0 0.0
        %5666 = vmatpush1.msra.mxu0 0.0
        %5667 = vmatprep.subr.mxu0 0.0
        %5668 = vmatpush1.msra.mxu0 0.0
        %5669 = vmatprep.subr.mxu0 0.0
        %5670 = vmatpush1.msra.mxu0 %v5639
        %5671 = vmatprep.subr.mxu0 0.0
        %5672 = vmatpush1.msra.mxu0 %v4954
        %5673 = vmatprep.subr.mxu0 0.0
        %5674 = vmatpush2.msra.mxu0 0.0
        %5675 = vmatprep.subr.mxu0 0.0
        %5676 = vmatpush2.msra.mxu0 0.0
        %5677 = vmatprep.subr.mxu0 0.0
        %5678 = vmatpush2.msra.mxu0 0.0
        %5679 = vmatprep.subr.mxu0 0.0
        %5680 = vmatpush2.msra.mxu0 0.0
        %5681 = vmatprep.subr.mxu0 0.0
        %5682 = vmatpush2.msra.mxu0 0.0
        %5683 = vmatprep.subr.mxu0 0.0
        %5684 = vmatpush2.msra.mxu0 0.0
        %5685 = vmatprep.subr.mxu0 0.0
        %5686 = vmatpush2.msra.mxu0 0.0
        %5687 = vmatprep.subr.mxu0 0.0
        %5688 = vmatpush2.msra.mxu0 0.0
        %5689 = vmatprep.subr.mxu0 0.0
        %5690 = vmatpush2.msra.mxu0 0.0
        %5691 = vmatprep.subr.mxu0 0.0
        %5692 = vmatpush2.msra.mxu0 0.0
        %5693 = vmatprep.subr.mxu0 0.0
        %5694 = vmatpush2.msra.mxu0 0.0
        %5695 = vmatprep.subr.mxu0 0.0
        %5696 = vmatpush2.msra.mxu0 0.0
        %5697 = vmatprep.subr.mxu0 0.0
        %5698 = vmatpush2.msra.mxu0 0.0
        %5699 = vmatprep.subr.mxu0 0.0
        %5700 = vmatpush2.msra.mxu0 0.0
        %5701 = vmatprep.subr.mxu0 0.0
        %5702 = vmatpush2.msra.mxu0 0.0
        %5703 = vmatprep.subr.mxu0 0.0
        %5704 = vmatpush2.msra.mxu0 0.0
        %5705 = vmatprep.mubr.f32.mxu0 0.0
        %5706 = vmatmul.mubr.f32.gmra.mxu0 %v5633
        %v5707 = vpop.f32.mrf.mxu0
        %v5708 = vadd.f32 0.0, %v5707
        %v5709 = vpop.f32.mrf.mxu0
        %5710 = vmatprep.mubr.f32.mxu0 0.0
        %5711 = vmatmul.mubr.f32.gmra.mxu0 %v5636
        %v5712 = vpop.f32.mrf.mxu0
        %v5713 = vadd.f32 0.0, %v5712
        %v5714 = vpop.f32.mrf.mxu0
        %5715 = vdwg.mxu0
        %v5717 = vsel %vm3067, %v5544, 0
        %v5720 = vsel %vm3067, %v5545, 0
        %v5723 = vsel %vm3163, %v5034, 0
        %5725 = vmatprep.subr.mxu0 0.0
        %5726 = vmatpush1.msra.mxu0 0.0
        %5727 = vmatprep.subr.mxu0 0.0
        %5728 = vmatpush1.msra.mxu0 0.0
        %5729 = vmatprep.subr.mxu0 0.0
        %5730 = vmatpush1.msra.mxu0 0.0
        %5731 = vmatprep.subr.mxu0 0.0
        %5732 = vmatpush1.msra.mxu0 0.0
        %5733 = vmatprep.subr.mxu0 0.0
        %5734 = vmatpush1.msra.mxu0 0.0
        %5735 = vmatprep.subr.mxu0 0.0
        %5736 = vmatpush1.msra.mxu0 0.0
        %5737 = vmatprep.subr.mxu0 0.0
        %5738 = vmatpush1.msra.mxu0 0.0
        %5739 = vmatprep.subr.mxu0 0.0
        %5740 = vmatpush1.msra.mxu0 0.0
        %5741 = vmatprep.subr.mxu0 0.0
        %5742 = vmatpush1.msra.mxu0 0.0
        %5743 = vmatprep.subr.mxu0 0.0
        %5744 = vmatpush1.msra.mxu0 0.0
        %5745 = vmatprep.subr.mxu0 0.0
        %5746 = vmatpush1.msra.mxu0 0.0
        %5747 = vmatprep.subr.mxu0 0.0
        %5748 = vmatpush1.msra.mxu0 0.0
        %5749 = vmatprep.subr.mxu0 0.0
        %5750 = vmatpush1.msra.mxu0 0.0
        %5751 = vmatprep.subr.mxu0 0.0
        %5752 = vmatpush1.msra.mxu0 0.0
        %5753 = vmatprep.subr.mxu0 0.0
        %5754 = vmatpush1.msra.mxu0 %v5723
        %5755 = vmatprep.subr.mxu0 0.0
        %5756 = vmatpush1.msra.mxu0 %v5029
        %5757 = vmatprep.subr.mxu0 0.0
        %5758 = vmatpush2.msra.mxu0 0.0
        %5759 = vmatprep.subr.mxu0 0.0
        %5760 = vmatpush2.msra.mxu0 0.0
        %5761 = vmatprep.subr.mxu0 0.0
        %5762 = vmatpush2.msra.mxu0 0.0
        %5763 = vmatprep.subr.mxu0 0.0
        %5764 = vmatpush2.msra.mxu0 0.0
        %5765 = vmatprep.subr.mxu0 0.0
        %5766 = vmatpush2.msra.mxu0 0.0
        %5767 = vmatprep.subr.mxu0 0.0
        %5768 = vmatpush2.msra.mxu0 0.0
        %5769 = vmatprep.subr.mxu0 0.0
        %5770 = vmatpush2.msra.mxu0 0.0
        %5771 = vmatprep.subr.mxu0 0.0
        %5772 = vmatpush2.msra.mxu0 0.0
        %5773 = vmatprep.subr.mxu0 0.0
        %5774 = vmatpush2.msra.mxu0 0.0
        %5775 = vmatprep.subr.mxu0 0.0
        %5776 = vmatpush2.msra.mxu0 0.0
        %5777 = vmatprep.subr.mxu0 0.0
        %5778 = vmatpush2.msra.mxu0 0.0
        %5779 = vmatprep.subr.mxu0 0.0
        %5780 = vmatpush2.msra.mxu0 0.0
        %5781 = vmatprep.subr.mxu0 0.0
        %5782 = vmatpush2.msra.mxu0 0.0
        %5783 = vmatprep.subr.mxu0 0.0
        %5784 = vmatpush2.msra.mxu0 0.0
        %5785 = vmatprep.subr.mxu0 0.0
        %5786 = vmatpush2.msra.mxu0 0.0
        %5787 = vmatprep.subr.mxu0 0.0
        %5788 = vmatpush2.msra.mxu0 0.0
        %5789 = vmatprep.mubr.f32.mxu0 0.0
        %5790 = vmatmul.mubr.f32.gmra.mxu0 %v5717
        %v5791 = vpop.f32.mrf.mxu0
        %v5792 = vadd.f32 0.0, %v5791
        %v5793 = vpop.f32.mrf.mxu0
        %5794 = vmatprep.mubr.f32.mxu0 0.0
        %5795 = vmatmul.mubr.f32.gmra.mxu0 %v5720
        %v5796 = vpop.f32.mrf.mxu0
        %v5797 = vadd.f32 0.0, %v5796
        %v5798 = vpop.f32.mrf.mxu0
        %5799 = vdwg.mxu0
        %v5801 = vsel %vm3067, %v5546, 0
        %v5804 = vsel %vm3067, %v5547, 0
        %v5807 = vsel %vm3163, %v5109, 0
        %5809 = vmatprep.subr.mxu0 0.0
        %5810 = vmatpush1.msra.mxu0 0.0
        %5811 = vmatprep.subr.mxu0 0.0
        %5812 = vmatpush1.msra.mxu0 0.0
        %5813 = vmatprep.subr.mxu0 0.0
        %5814 = vmatpush1.msra.mxu0 0.0
        %5815 = vmatprep.subr.mxu0 0.0
        %5816 = vmatpush1.msra.mxu0 0.0
        %5817 = vmatprep.subr.mxu0 0.0
        %5818 = vmatpush1.msra.mxu0 0.0
        %5819 = vmatprep.subr.mxu0 0.0
        %5820 = vmatpush1.msra.mxu0 0.0
        %5821 = vmatprep.subr.mxu0 0.0
        %5822 = vmatpush1.msra.mxu0 0.0
        %5823 = vmatprep.subr.mxu0 0.0
        %5824 = vmatpush1.msra.mxu0 0.0
        %5825 = vmatprep.subr.mxu0 0.0
        %5826 = vmatpush1.msra.mxu0 0.0
        %5827 = vmatprep.subr.mxu0 0.0
        %5828 = vmatpush1.msra.mxu0 0.0
        %5829 = vmatprep.subr.mxu0 0.0
        %5830 = vmatpush1.msra.mxu0 0.0
        %5831 = vmatprep.subr.mxu0 0.0
        %5832 = vmatpush1.msra.mxu0 0.0
        %5833 = vmatprep.subr.mxu0 0.0
        %5834 = vmatpush1.msra.mxu0 0.0
        %5835 = vmatprep.subr.mxu0 0.0
        %5836 = vmatpush1.msra.mxu0 0.0
        %5837 = vmatprep.subr.mxu0 0.0
        %5838 = vmatpush1.msra.mxu0 %v5807
        %5839 = vmatprep.subr.mxu0 0.0
        %5840 = vmatpush1.msra.mxu0 %v5104
        %5841 = vmatprep.subr.mxu0 0.0
        %5842 = vmatpush2.msra.mxu0 0.0
        %5843 = vmatprep.subr.mxu0 0.0
        %5844 = vmatpush2.msra.mxu0 0.0
        %5845 = vmatprep.subr.mxu0 0.0
        %5846 = vmatpush2.msra.mxu0 0.0
        %5847 = vmatprep.subr.mxu0 0.0
        %5848 = vmatpush2.msra.mxu0 0.0
        %5849 = vmatprep.subr.mxu0 0.0
        %5850 = vmatpush2.msra.mxu0 0.0
        %5851 = vmatprep.subr.mxu0 0.0
        %5852 = vmatpush2.msra.mxu0 0.0
        %5853 = vmatprep.subr.mxu0 0.0
        %5854 = vmatpush2.msra.mxu0 0.0
        %5855 = vmatprep.subr.mxu0 0.0
        %5856 = vmatpush2.msra.mxu0 0.0
        %5857 = vmatprep.subr.mxu0 0.0
        %5858 = vmatpush2.msra.mxu0 0.0
        %5859 = vmatprep.subr.mxu0 0.0
        %5860 = vmatpush2.msra.mxu0 0.0
        %5861 = vmatprep.subr.mxu0 0.0
        %5862 = vmatpush2.msra.mxu0 0.0
        %5863 = vmatprep.subr.mxu0 0.0
        %5864 = vmatpush2.msra.mxu0 0.0
        %5865 = vmatprep.subr.mxu0 0.0
        %5866 = vmatpush2.msra.mxu0 0.0
        %5867 = vmatprep.subr.mxu0 0.0
        %5868 = vmatpush2.msra.mxu0 0.0
        %5869 = vmatprep.subr.mxu0 0.0
        %5870 = vmatpush2.msra.mxu0 0.0
        %5871 = vmatprep.subr.mxu0 0.0
        %5872 = vmatpush2.msra.mxu0 0.0
        %5873 = vmatprep.mubr.f32.mxu0 0.0
        %5874 = vmatmul.mubr.f32.gmra.mxu0 %v5801
        %v5875 = vpop.f32.mrf.mxu0
        %v5876 = vadd.f32 0.0, %v5875
        %v5877 = vpop.f32.mrf.mxu0
        %5878 = vmatprep.mubr.f32.mxu0 0.0
        %5879 = vmatmul.mubr.f32.gmra.mxu0 %v5804
        %v5880 = vpop.f32.mrf.mxu0
        %v5881 = vadd.f32 0.0, %v5880
        %v5882 = vpop.f32.mrf.mxu0
        %5883 = vdwg.mxu0
        %v5885 = vsel %vm2718, %v5624, 0
        %v5888 = vsel %vm2718, %v5629, 0
        %5890 = vmatprep.subr.mxu0 0.0
        %5891 = vmatpush1.msra.mxu0 0.0
        %5892 = vmatprep.subr.mxu0 0.0
        %5893 = vmatpush1.msra.mxu0 0.0
        %5894 = vmatprep.subr.mxu0 0.0
        %5895 = vmatpush1.msra.mxu0 0.0
        %5896 = vmatprep.subr.mxu0 0.0
        %5897 = vmatpush1.msra.mxu0 0.0
        %5898 = vmatprep.subr.mxu0 0.0
        %5899 = vmatpush1.msra.mxu0 0.0
        %5900 = vmatprep.subr.mxu0 0.0
        %5901 = vmatpush1.msra.mxu0 0.0
        %5902 = vmatprep.subr.mxu0 0.0
        %5903 = vmatpush1.msra.mxu0 0.0
        %5904 = vmatprep.subr.mxu0 0.0
        %5905 = vmatpush1.msra.mxu0 0.0
        %5906 = vmatprep.subr.mxu0 0.0
        %5907 = vmatpush1.msra.mxu0 0.0
        %5908 = vmatprep.subr.mxu0 0.0
        %5909 = vmatpush1.msra.mxu0 0.0
        %5910 = vmatprep.subr.mxu0 0.0
        %5911 = vmatpush1.msra.mxu0 0.0
        %5912 = vmatprep.subr.mxu0 0.0
        %5913 = vmatpush1.msra.mxu0 0.0
        %5914 = vmatprep.subr.mxu0 0.0
        %5915 = vmatpush1.msra.mxu0 0.0
        %5916 = vmatprep.subr.mxu0 0.0
        %5917 = vmatpush1.msra.mxu0 0.0
        %5918 = vmatprep.subr.mxu0 0.0
        %5919 = vmatpush1.msra.mxu0 0.0
        %5920 = vmatprep.subr.mxu0 0.0
        %5921 = vmatpush1.msra.mxu0 %v4128
        %5922 = vmatprep.subr.mxu0 0.0
        %5923 = vmatpush2.msra.mxu0 0.0
        %5924 = vmatprep.subr.mxu0 0.0
        %5925 = vmatpush2.msra.mxu0 0.0
        %5926 = vmatprep.subr.mxu0 0.0
        %5927 = vmatpush2.msra.mxu0 0.0
        %5928 = vmatprep.subr.mxu0 0.0
        %5929 = vmatpush2.msra.mxu0 0.0
        %5930 = vmatprep.subr.mxu0 0.0
        %5931 = vmatpush2.msra.mxu0 0.0
        %5932 = vmatprep.subr.mxu0 0.0
        %5933 = vmatpush2.msra.mxu0 0.0
        %5934 = vmatprep.subr.mxu0 0.0
        %5935 = vmatpush2.msra.mxu0 0.0
        %5936 = vmatprep.subr.mxu0 0.0
        %5937 = vmatpush2.msra.mxu0 0.0
        %5938 = vmatprep.subr.mxu0 0.0
        %5939 = vmatpush2.msra.mxu0 0.0
        %5940 = vmatprep.subr.mxu0 0.0
        %5941 = vmatpush2.msra.mxu0 0.0
        %5942 = vmatprep.subr.mxu0 0.0
        %5943 = vmatpush2.msra.mxu0 0.0
        %5944 = vmatprep.subr.mxu0 0.0
        %5945 = vmatpush2.msra.mxu0 0.0
        %5946 = vmatprep.subr.mxu0 0.0
        %5947 = vmatpush2.msra.mxu0 0.0
        %5948 = vmatprep.subr.mxu0 0.0
        %5949 = vmatpush2.msra.mxu0 0.0
        %5950 = vmatprep.subr.mxu0 0.0
        %5951 = vmatpush2.msra.mxu0 0.0
        %5952 = vmatprep.subr.mxu0 0.0
        %5953 = vmatpush2.msra.mxu0 0.0
        %5954 = vmatprep.mubr.f32.mxu0 0.0
        %5955 = vmatmul.mubr.f32.gmra.mxu0 %v5885
        %v5956 = vpop.f32.mrf.mxu0
        %v5957 = vadd.f32 0.0, %v5956
        %v5958 = vpop.f32.mrf.mxu0
        %5959 = vmatprep.mubr.f32.mxu0 0.0
        %5960 = vmatmul.mubr.f32.gmra.mxu0 %v5888
        %v5961 = vpop.f32.mrf.mxu0
        %v5962 = vadd.f32 0.0, %v5961
        %v5963 = vpop.f32.mrf.mxu0
        %5964 = vdwg.mxu0
        %v5966 = vsel %vm2718, %v5708, 0
        %v5969 = vsel %vm2718, %v5713, 0
        %5971 = vmatprep.subr.mxu0 0.0
        %5972 = vmatpush1.msra.mxu0 0.0
        %5973 = vmatprep.subr.mxu0 0.0
        %5974 = vmatpush1.msra.mxu0 0.0
        %5975 = vmatprep.subr.mxu0 0.0
        %5976 = vmatpush1.msra.mxu0 0.0
        %5977 = vmatprep.subr.mxu0 0.0
        %5978 = vmatpush1.msra.mxu0 0.0
        %5979 = vmatprep.subr.mxu0 0.0
        %5980 = vmatpush1.msra.mxu0 0.0
        %5981 = vmatprep.subr.mxu0 0.0
        %5982 = vmatpush1.msra.mxu0 0.0
        %5983 = vmatprep.subr.mxu0 0.0
        %5984 = vmatpush1.msra.mxu0 0.0
        %5985 = vmatprep.subr.mxu0 0.0
        %5986 = vmatpush1.msra.mxu0 0.0
        %5987 = vmatprep.subr.mxu0 0.0
        %5988 = vmatpush1.msra.mxu0 0.0
        %5989 = vmatprep.subr.mxu0 0.0
        %5990 = vmatpush1.msra.mxu0 0.0
        %5991 = vmatprep.subr.mxu0 0.0
        %5992 = vmatpush1.msra.mxu0 0.0
        %5993 = vmatprep.subr.mxu0 0.0
        %5994 = vmatpush1.msra.mxu0 0.0
        %5995 = vmatprep.subr.mxu0 0.0
        %5996 = vmatpush1.msra.mxu0 0.0
        %5997 = vmatprep.subr.mxu0 0.0
        %5998 = vmatpush1.msra.mxu0 0.0
        %5999 = vmatprep.subr.mxu0 0.0
        %6000 = vmatpush1.msra.mxu0 0.0
        %6001 = vmatprep.subr.mxu0 0.0
        %6002 = vmatpush1.msra.mxu0 %v4129
        %6003 = vmatprep.subr.mxu0 0.0
        %6004 = vmatpush2.msra.mxu0 0.0
        %6005 = vmatprep.subr.mxu0 0.0
        %6006 = vmatpush2.msra.mxu0 0.0
        %6007 = vmatprep.subr.mxu0 0.0
        %6008 = vmatpush2.msra.mxu0 0.0
        %6009 = vmatprep.subr.mxu0 0.0
        %6010 = vmatpush2.msra.mxu0 0.0
        %6011 = vmatprep.subr.mxu0 0.0
        %6012 = vmatpush2.msra.mxu0 0.0
        %6013 = vmatprep.subr.mxu0 0.0
        %6014 = vmatpush2.msra.mxu0 0.0
        %6015 = vmatprep.subr.mxu0 0.0
        %6016 = vmatpush2.msra.mxu0 0.0
        %6017 = vmatprep.subr.mxu0 0.0
        %6018 = vmatpush2.msra.mxu0 0.0
        %6019 = vmatprep.subr.mxu0 0.0
        %6020 = vmatpush2.msra.mxu0 0.0
        %6021 = vmatprep.subr.mxu0 0.0
        %6022 = vmatpush2.msra.mxu0 0.0
        %6023 = vmatprep.subr.mxu0 0.0
        %6024 = vmatpush2.msra.mxu0 0.0
        %6025 = vmatprep.subr.mxu0 0.0
        %6026 = vmatpush2.msra.mxu0 0.0
        %6027 = vmatprep.subr.mxu0 0.0
        %6028 = vmatpush2.msra.mxu0 0.0
        %6029 = vmatprep.subr.mxu0 0.0
        %6030 = vmatpush2.msra.mxu0 0.0
        %6031 = vmatprep.subr.mxu0 0.0
        %6032 = vmatpush2.msra.mxu0 0.0
        %6033 = vmatprep.subr.mxu0 0.0
        %6034 = vmatpush2.msra.mxu0 0.0
        %6035 = vmatprep.mubr.f32.mxu0 0.0
        %6036 = vmatmul.mubr.f32.gmra.mxu0 %v5966
        %v6037 = vpop.f32.mrf.mxu0
        %v6038 = vadd.f32 0.0, %v6037
        %v6039 = vpop.f32.mrf.mxu0
        %6040 = vmatprep.mubr.f32.mxu0 0.0
        %6041 = vmatmul.mubr.f32.gmra.mxu0 %v5969
        %v6042 = vpop.f32.mrf.mxu0
        %v6043 = vadd.f32 0.0, %v6042
        %v6044 = vpop.f32.mrf.mxu0
        %6045 = vdwg.mxu0
        %v6047 = vsel %vm2718, %v5792, 0
        %v6050 = vsel %vm2718, %v5797, 0
        %6052 = vmatprep.subr.mxu0 0.0
        %6053 = vmatpush1.msra.mxu0 0.0
        %6054 = vmatprep.subr.mxu0 0.0
        %6055 = vmatpush1.msra.mxu0 0.0
        %6056 = vmatprep.subr.mxu0 0.0
        %6057 = vmatpush1.msra.mxu0 0.0
        %6058 = vmatprep.subr.mxu0 0.0
        %6059 = vmatpush1.msra.mxu0 0.0
        %6060 = vmatprep.subr.mxu0 0.0
        %6061 = vmatpush1.msra.mxu0 0.0
        %6062 = vmatprep.subr.mxu0 0.0
        %6063 = vmatpush1.msra.mxu0 0.0
        %6064 = vmatprep.subr.mxu0 0.0
        %6065 = vmatpush1.msra.mxu0 0.0
        %6066 = vmatprep.subr.mxu0 0.0
        %6067 = vmatpush1.msra.mxu0 0.0
        %6068 = vmatprep.subr.mxu0 0.0
        %6069 = vmatpush1.msra.mxu0 0.0
        %6070 = vmatprep.subr.mxu0 0.0
        %6071 = vmatpush1.msra.mxu0 0.0
        %6072 = vmatprep.subr.mxu0 0.0
        %6073 = vmatpush1.msra.mxu0 0.0
        %6074 = vmatprep.subr.mxu0 0.0
        %6075 = vmatpush1.msra.mxu0 0.0
        %6076 = vmatprep.subr.mxu0 0.0
        %6077 = vmatpush1.msra.mxu0 0.0
        %6078 = vmatprep.subr.mxu0 0.0
        %6079 = vmatpush1.msra.mxu0 0.0
        %6080 = vmatprep.subr.mxu0 0.0
        %6081 = vmatpush1.msra.mxu0 0.0
        %6082 = vmatprep.subr.mxu0 0.0
        %6083 = vmatpush1.msra.mxu0 %v4130
        %6084 = vmatprep.subr.mxu0 0.0
        %6085 = vmatpush2.msra.mxu0 0.0
        %6086 = vmatprep.subr.mxu0 0.0
        %6087 = vmatpush2.msra.mxu0 0.0
        %6088 = vmatprep.subr.mxu0 0.0
        %6089 = vmatpush2.msra.mxu0 0.0
        %6090 = vmatprep.subr.mxu0 0.0
        %6091 = vmatpush2.msra.mxu0 0.0
        %6092 = vmatprep.subr.mxu0 0.0
        %6093 = vmatpush2.msra.mxu0 0.0
        %6094 = vmatprep.subr.mxu0 0.0
        %6095 = vmatpush2.msra.mxu0 0.0
        %6096 = vmatprep.subr.mxu0 0.0
        %6097 = vmatpush2.msra.mxu0 0.0
        %6098 = vmatprep.subr.mxu0 0.0
        %6099 = vmatpush2.msra.mxu0 0.0
        %6100 = vmatprep.subr.mxu0 0.0
        %6101 = vmatpush2.msra.mxu0 0.0
        %6102 = vmatprep.subr.mxu0 0.0
        %6103 = vmatpush2.msra.mxu0 0.0
        %6104 = vmatprep.subr.mxu0 0.0
        %6105 = vmatpush2.msra.mxu0 0.0
        %6106 = vmatprep.subr.mxu0 0.0
        %6107 = vmatpush2.msra.mxu0 0.0
        %6108 = vmatprep.subr.mxu0 0.0
        %6109 = vmatpush2.msra.mxu0 0.0
        %6110 = vmatprep.subr.mxu0 0.0
        %6111 = vmatpush2.msra.mxu0 0.0
        %6112 = vmatprep.subr.mxu0 0.0
        %6113 = vmatpush2.msra.mxu0 0.0
        %6114 = vmatprep.subr.mxu0 0.0
        %6115 = vmatpush2.msra.mxu0 0.0
        %6116 = vmatprep.mubr.f32.mxu0 0.0
        %6117 = vmatmul.mubr.f32.gmra.mxu0 %v6047
        %v6118 = vpop.f32.mrf.mxu0
        %v6119 = vadd.f32 0.0, %v6118
        %v6120 = vpop.f32.mrf.mxu0
        %6121 = vmatprep.mubr.f32.mxu0 0.0
        %6122 = vmatmul.mubr.f32.gmra.mxu0 %v6050
        %v6123 = vpop.f32.mrf.mxu0
        %v6124 = vadd.f32 0.0, %v6123
        %v6125 = vpop.f32.mrf.mxu0
        %6126 = vdwg.mxu0
        %v6128 = vsel %vm2718, %v5876, 0
        %v6131 = vsel %vm2718, %v5881, 0
        %6133 = vmatprep.subr.mxu0 0.0
        %6134 = vmatpush1.msra.mxu0 0.0
        %6135 = vmatprep.subr.mxu0 0.0
        %6136 = vmatpush1.msra.mxu0 0.0
        %6137 = vmatprep.subr.mxu0 0.0
        %6138 = vmatpush1.msra.mxu0 0.0
        %6139 = vmatprep.subr.mxu0 0.0
        %6140 = vmatpush1.msra.mxu0 0.0
        %6141 = vmatprep.subr.mxu0 0.0
        %6142 = vmatpush1.msra.mxu0 0.0
        %6143 = vmatprep.subr.mxu0 0.0
        %6144 = vmatpush1.msra.mxu0 0.0
        %6145 = vmatprep.subr.mxu0 0.0
        %6146 = vmatpush1.msra.mxu0 0.0
        %6147 = vmatprep.subr.mxu0 0.0
        %6148 = vmatpush1.msra.mxu0 0.0
        %6149 = vmatprep.subr.mxu0 0.0
        %6150 = vmatpush1.msra.mxu0 0.0
        %6151 = vmatprep.subr.mxu0 0.0
        %6152 = vmatpush1.msra.mxu0 0.0
        %6153 = vmatprep.subr.mxu0 0.0
        %6154 = vmatpush1.msra.mxu0 0.0
        %6155 = vmatprep.subr.mxu0 0.0
        %6156 = vmatpush1.msra.mxu0 0.0
        %6157 = vmatprep.subr.mxu0 0.0
        %6158 = vmatpush1.msra.mxu0 0.0
        %6159 = vmatprep.subr.mxu0 0.0
        %6160 = vmatpush1.msra.mxu0 0.0
        %6161 = vmatprep.subr.mxu0 0.0
        %6162 = vmatpush1.msra.mxu0 0.0
        %6163 = vmatprep.subr.mxu0 0.0
        %6164 = vmatpush1.msra.mxu0 %v4131
        %6165 = vmatprep.subr.mxu0 0.0
        %6166 = vmatpush2.msra.mxu0 0.0
        %6167 = vmatprep.subr.mxu0 0.0
        %6168 = vmatpush2.msra.mxu0 0.0
        %6169 = vmatprep.subr.mxu0 0.0
        %6170 = vmatpush2.msra.mxu0 0.0
        %6171 = vmatprep.subr.mxu0 0.0
        %6172 = vmatpush2.msra.mxu0 0.0
        %6173 = vmatprep.subr.mxu0 0.0
        %6174 = vmatpush2.msra.mxu0 0.0
        %6175 = vmatprep.subr.mxu0 0.0
        %6176 = vmatpush2.msra.mxu0 0.0
        %6177 = vmatprep.subr.mxu0 0.0
        %6178 = vmatpush2.msra.mxu0 0.0
        %6179 = vmatprep.subr.mxu0 0.0
        %6180 = vmatpush2.msra.mxu0 0.0
        %6181 = vmatprep.subr.mxu0 0.0
        %6182 = vmatpush2.msra.mxu0 0.0
        %6183 = vmatprep.subr.mxu0 0.0
        %6184 = vmatpush2.msra.mxu0 0.0
        %6185 = vmatprep.subr.mxu0 0.0
        %6186 = vmatpush2.msra.mxu0 0.0
        %6187 = vmatprep.subr.mxu0 0.0
        %6188 = vmatpush2.msra.mxu0 0.0
        %6189 = vmatprep.subr.mxu0 0.0
        %6190 = vmatpush2.msra.mxu0 0.0
        %6191 = vmatprep.subr.mxu0 0.0
        %6192 = vmatpush2.msra.mxu0 0.0
        %6193 = vmatprep.subr.mxu0 0.0
        %6194 = vmatpush2.msra.mxu0 0.0
        %6195 = vmatprep.subr.mxu0 0.0
        %6196 = vmatpush2.msra.mxu0 0.0
        %6197 = vmatprep.mubr.f32.mxu0 0.0
        %6198 = vmatmul.mubr.f32.gmra.mxu0 %v6128
        %v6199 = vpop.f32.mrf.mxu0
        %v6200 = vadd.f32 0.0, %v6199
        %v6201 = vpop.f32.mrf.mxu0
        %6202 = vmatprep.mubr.f32.mxu0 0.0
        %6203 = vmatmul.mubr.f32.gmra.mxu0 %v6131
        %v6204 = vpop.f32.mrf.mxu0
        %v6205 = vadd.f32 0.0, %v6204
        %v6206 = vpop.f32.mrf.mxu0
        %6207 = vdwg.mxu0
        %v6208 = vsel %vm1575, %v5957, 0.0
        %v6209 = vsel %vm1575, %v6038, 0.0
        %v6210 = vadd.f32 %v6208, %v6209
        %v6211 = vsel %vm1575, %v6119, 0.0
        %v6212 = vadd.f32 %v6210, %v6211
        %v6213 = vsel %vm1575, %v6200, 0.0
        %v6214 = vadd.f32 %v6212, %v6213
        %v6215 = vsel %vm1771, %v5962, 0.0
        %v6216 = vsel %vm1771, %v6043, 0.0
        %v6217 = vadd.f32 %v6215, %v6216
        %v6218 = vsel %vm1771, %v6124, 0.0
        %v6219 = vadd.f32 %v6217, %v6218
        %v6220 = vsel %vm1771, %v6205, 0.0
        %v6221 = vadd.f32 %v6219, %v6220
        %v6222 = vadd.f32 %v4070, %v6214
        %v6223 = vadd.f32 %v4071, %v6221
        %v6225 = vlaneseq
        %v6226 = vshrl.u32 %v6225, 7
        %v6227 = vsub.s32 0, %v6226
        %v6228 = vrot.slane %v4133, %v6227
        %v6230 = vadd.f32 %v6222, %v6228
        %v6231 = vadd.f32 %v6223, %v6228
        %v6232 = vsel %vm1575, %v6230, 0.0
        %6233 = vadd.xlane.f32.xlu0 %v6232
        %v6234 = vpop.xlane.xlu0 %6233
        %v6235 = vsel %vm1771, %v6231, 0.0
        %6236 = vadd.xlane.f32.xlu0 %v6235
        %v6237 = vpop.xlane.xlu0 %6236
        %v6238 = vmul.f32 %v6234, %v1775
        %v6239 = vmul.f32 %v6237, %v1775
        %v6240 = vsub.f32 %v6230, %v6238
        %v6241 = vsub.f32 %v6231, %v6239
        %v6242 = vmul.f32 %v6240, %v6240
        %v6243 = vmul.f32 %v6241, %v6241
        %v6244 = vsel %vm1575, %v6242, 0.0
        %6245 = vadd.xlane.f32.xlu0 %v6244
        %v6246 = vpop.xlane.xlu0 %6245
        %v6247 = vsel %vm1771, %v6243, 0.0
        %6248 = vadd.xlane.f32.xlu0 %v6247
        %v6249 = vpop.xlane.xlu0 %6248
        %v6250 = vmul.f32 %v6246, %v1775
        %v6251 = vmul.f32 %v6249, %v1775
        %v6252 = vadd.f32 %v6250, 1e-06
        %v6253 = vadd.f32 %v6251, 1e-06
        %v6254 = vrsqrt.pop %v6252
        %v6255 = vrsqrt.pop %v6253
        %v6256 = vmul.f32 %v6240, %v6254
        %v6257 = vmul.f32 %v6241, %v6255
        %v6259 = vlaneseq
        %v6260 = vshrl.u32 %v6259, 7
        %v6261 = vsub.s32 0, %v6260
        %v6262 = vrot.slane %v4135, %v6261
        %v6264 = vmul.f32 %v6256, %v6262
        %v6265 = vmul.f32 %v6257, %v6262
        %v6267 = vlaneseq
        %v6268 = vshrl.u32 %v6267, 7
        %v6269 = vsub.s32 0, %v6268
        %v6270 = vrot.slane %v4137, %v6269
        %v6272 = vadd.f32 %v6264, %v6270
        %v6273 = vadd.f32 %v6265, %v6270
        %v6275 = vlaneseq
        %v6276 = vshrl.u32 %v6275, 7
        %v6277 = vsub.s32 0, %v6276
        %v6278 = vrot.slane %v4144, %v6277
        %v6281 = vsel %vm1575, %v6272, 0
        %v6284 = vsel %vm1575, %v6273, 0
        %6286 = vmatprep.subr.mxu0 0.0
        %6287 = vmatpush1.msra.mxu0 0.0
        %6288 = vmatprep.subr.mxu0 0.0
        %6289 = vmatpush1.msra.mxu0 0.0
        %6290 = vmatprep.subr.mxu0 0.0
        %6291 = vmatpush1.msra.mxu0 0.0
        %6292 = vmatprep.subr.mxu0 0.0
        %6293 = vmatpush1.msra.mxu0 0.0
        %6294 = vmatprep.subr.mxu0 0.0
        %6295 = vmatpush1.msra.mxu0 0.0
        %6296 = vmatprep.subr.mxu0 0.0
        %6297 = vmatpush1.msra.mxu0 0.0
        %6298 = vmatprep.subr.mxu0 0.0
        %6299 = vmatpush1.msra.mxu0 0.0
        %6300 = vmatprep.subr.mxu0 0.0
        %6301 = vmatpush1.msra.mxu0 0.0
        %6302 = vmatprep.subr.mxu0 0.0
        %6303 = vmatpush1.msra.mxu0 0.0
        %6304 = vmatprep.subr.mxu0 0.0
        %6305 = vmatpush1.msra.mxu0 0.0
        %6306 = vmatprep.subr.mxu0 0.0
        %6307 = vmatpush1.msra.mxu0 0.0
        %6308 = vmatprep.subr.mxu0 0.0
        %6309 = vmatpush1.msra.mxu0 0.0
        %6310 = vmatprep.subr.mxu0 0.0
        %6311 = vmatpush1.msra.mxu0 %v4142
        %6312 = vmatprep.subr.mxu0 0.0
        %6313 = vmatpush1.msra.mxu0 %v4141
        %6314 = vmatprep.subr.mxu0 0.0
        %6315 = vmatpush1.msra.mxu0 %v4140
        %6316 = vmatprep.subr.mxu0 0.0
        %6317 = vmatpush1.msra.mxu0 %v4139
        %6318 = vmatprep.subr.mxu0 0.0
        %6319 = vmatpush2.msra.mxu0 0.0
        %6320 = vmatprep.subr.mxu0 0.0
        %6321 = vmatpush2.msra.mxu0 0.0
        %6322 = vmatprep.subr.mxu0 0.0
        %6323 = vmatpush2.msra.mxu0 0.0
        %6324 = vmatprep.subr.mxu0 0.0
        %6325 = vmatpush2.msra.mxu0 0.0
        %6326 = vmatprep.subr.mxu0 0.0
        %6327 = vmatpush2.msra.mxu0 0.0
        %6328 = vmatprep.subr.mxu0 0.0
        %6329 = vmatpush2.msra.mxu0 0.0
        %6330 = vmatprep.subr.mxu0 0.0
        %6331 = vmatpush2.msra.mxu0 0.0
        %6332 = vmatprep.subr.mxu0 0.0
        %6333 = vmatpush2.msra.mxu0 0.0
        %6334 = vmatprep.subr.mxu0 0.0
        %6335 = vmatpush2.msra.mxu0 0.0
        %6336 = vmatprep.subr.mxu0 0.0
        %6337 = vmatpush2.msra.mxu0 0.0
        %6338 = vmatprep.subr.mxu0 0.0
        %6339 = vmatpush2.msra.mxu0 0.0
        %6340 = vmatprep.subr.mxu0 0.0
        %6341 = vmatpush2.msra.mxu0 0.0
        %6342 = vmatprep.subr.mxu0 0.0
        %6343 = vmatpush2.msra.mxu0 0.0
        %6344 = vmatprep.subr.mxu0 0.0
        %6345 = vmatpush2.msra.mxu0 0.0
        %6346 = vmatprep.subr.mxu0 0.0
        %6347 = vmatpush2.msra.mxu0 0.0
        %6348 = vmatprep.subr.mxu0 0.0
        %6349 = vmatpush2.msra.mxu0 0.0
        %6350 = vmatprep.mubr.f32.mxu0 0.0
        %6351 = vmatmul.mubr.f32.gmra.mxu0 %v6281
        %v6352 = vpop.f32.mrf.mxu0
        %v6353 = vadd.f32 %v6278, %v6352
        %v6354 = vpop.f32.mrf.mxu0
        %6355 = vmatprep.mubr.f32.mxu0 0.0
        %6356 = vmatmul.mubr.f32.gmra.mxu0 %v6284
        %v6357 = vpop.f32.mrf.mxu0
        %v6358 = vadd.f32 %v6278, %v6357
        %v6359 = vpop.f32.mrf.mxu0
        %6360 = vdwg.mxu0
        %v6361 = vmul.f32 %v6353, %v6353
        %v6362 = vmul.f32 %v6358, %v6358
        %v6363 = vmul.f32 %v6353, %v6361
        %v6364 = vmul.f32 %v6358, %v6362
        %v6365 = vmul.f32 %v6363, 0.044715
        %v6366 = vmul.f32 %v6364, 0.044715
        %v6367 = vadd.f32 %v6353, %v6365
        %v6368 = vadd.f32 %v6358, %v6366
        %v6369 = vmul.f32 %v6367, 0.7978846
        %v6370 = vmul.f32 %v6368, 0.7978846
        %v6371 = vtanh.pop %v6369
        %v6372 = vtanh.pop %v6370
        %v6373 = vadd.f32 %v6371, 1.0
        %v6374 = vadd.f32 %v6372, 1.0
        %v6375 = vmul.f32 %v6373, 0.5
        %v6376 = vmul.f32 %v6374, 0.5
        %v6377 = vmul.f32 %v6353, %v6375
        %v6378 = vmul.f32 %v6358, %v6376
        %v6380 = vlaneseq
        %v6381 = vshrl.u32 %v6380, 7
        %v6382 = vsub.s32 0, %v6381
        %v6383 = vrot.slane %v4163, %v6382
        %6385 = vmatprep.subr.mxu0 0.0
        %6386 = vmatpush1.msra.mxu0 %v4161
        %6387 = vmatprep.subr.mxu0 0.0
        %6388 = vmatpush1.msra.mxu0 %v4160
        %6389 = vmatprep.subr.mxu0 0.0
        %6390 = vmatpush1.msra.mxu0 %v4159
        %6391 = vmatprep.subr.mxu0 0.0
        %6392 = vmatpush1.msra.mxu0 %v4158
        %6393 = vmatprep.subr.mxu0 0.0
        %6394 = vmatpush1.msra.mxu0 %v4157
        %6395 = vmatprep.subr.mxu0 0.0
        %6396 = vmatpush1.msra.mxu0 %v4156
        %6397 = vmatprep.subr.mxu0 0.0
        %6398 = vmatpush1.msra.mxu0 %v4155
        %6399 = vmatprep.subr.mxu0 0.0
        %6400 = vmatpush1.msra.mxu0 %v4154
        %6401 = vmatprep.subr.mxu0 0.0
        %6402 = vmatpush1.msra.mxu0 %v4153
        %6403 = vmatprep.subr.mxu0 0.0
        %6404 = vmatpush1.msra.mxu0 %v4152
        %6405 = vmatprep.subr.mxu0 0.0
        %6406 = vmatpush1.msra.mxu0 %v4151
        %6407 = vmatprep.subr.mxu0 0.0
        %6408 = vmatpush1.msra.mxu0 %v4150
        %6409 = vmatprep.subr.mxu0 0.0
        %6410 = vmatpush1.msra.mxu0 %v4149
        %6411 = vmatprep.subr.mxu0 0.0
        %6412 = vmatpush1.msra.mxu0 %v4148
        %6413 = vmatprep.subr.mxu0 0.0
        %6414 = vmatpush1.msra.mxu0 %v4147
        %6415 = vmatprep.subr.mxu0 0.0
        %6416 = vmatpush1.msra.mxu0 %v4146
        %6417 = vmatprep.subr.mxu0 0.0
        %6418 = vmatpush2.msra.mxu0 0.0
        %6419 = vmatprep.subr.mxu0 0.0
        %6420 = vmatpush2.msra.mxu0 0.0
        %6421 = vmatprep.subr.mxu0 0.0
        %6422 = vmatpush2.msra.mxu0 0.0
        %6423 = vmatprep.subr.mxu0 0.0
        %6424 = vmatpush2.msra.mxu0 0.0
        %6425 = vmatprep.subr.mxu0 0.0
        %6426 = vmatpush2.msra.mxu0 0.0
        %6427 = vmatprep.subr.mxu0 0.0
        %6428 = vmatpush2.msra.mxu0 0.0
        %6429 = vmatprep.subr.mxu0 0.0
        %6430 = vmatpush2.msra.mxu0 0.0
        %6431 = vmatprep.subr.mxu0 0.0
        %6432 = vmatpush2.msra.mxu0 0.0
        %6433 = vmatprep.subr.mxu0 0.0
        %6434 = vmatpush2.msra.mxu0 0.0
        %6435 = vmatprep.subr.mxu0 0.0
        %6436 = vmatpush2.msra.mxu0 0.0
        %6437 = vmatprep.subr.mxu0 0.0
        %6438 = vmatpush2.msra.mxu0 0.0
        %6439 = vmatprep.subr.mxu0 0.0
        %6440 = vmatpush2.msra.mxu0 0.0
        %6441 = vmatprep.subr.mxu0 0.0
        %6442 = vmatpush2.msra.mxu0 0.0
        %6443 = vmatprep.subr.mxu0 0.0
        %6444 = vmatpush2.msra.mxu0 0.0
        %6445 = vmatprep.subr.mxu0 0.0
        %6446 = vmatpush2.msra.mxu0 0.0
        %6447 = vmatprep.subr.mxu0 0.0
        %6448 = vmatpush2.msra.mxu0 0.0
        %6449 = vmatprep.mubr.f32.mxu0 0.0
        %6450 = vmatmul.mubr.f32.gmra.mxu0 %v6377
        %v6451 = vpop.f32.mrf.mxu0
        %v6452 = vadd.f32 %v6383, %v6451
        %v6453 = vpop.f32.mrf.mxu0
        %6454 = vmatprep.mubr.f32.mxu0 0.0
        %6455 = vmatmul.mubr.f32.gmra.mxu0 %v6378
        %v6456 = vpop.f32.mrf.mxu0
        %v6457 = vadd.f32 %v6383, %v6456
        %v6458 = vpop.f32.mrf.mxu0
        %6459 = vdwg.mxu0
        %v6460 = vadd.f32 %v6230, %v6452
        %v6461 = vadd.f32 %v6231, %v6457
        %v6462 = vld [vmem:[%s47] sm:$0x1]
        %v6463 = vld [vmem:[%s49] sm:$0x1]
        %v6464 = vsel %vm1575, %v6460, 0.0
        %6465 = vadd.xlane.f32.xlu0 %v6464
        %v6466 = vpop.xlane.xlu0 %6465
        %v6467 = vsel %vm1771, %v6461, 0.0
        %6468 = vadd.xlane.f32.xlu0 %v6467
        %v6469 = vpop.xlane.xlu0 %6468
        %v6470 = vmul.f32 %v6466, %v1775
        %v6471 = vmul.f32 %v6469, %v1775
        %v6472 = vsub.f32 %v6460, %v6470
        %v6473 = vsub.f32 %v6461, %v6471
        %v6474 = vmul.f32 %v6472, %v6472
        %v6475 = vmul.f32 %v6473, %v6473
        %v6476 = vsel %vm1575, %v6474, 0.0
        %6477 = vadd.xlane.f32.xlu0 %v6476
        %v6478 = vpop.xlane.xlu0 %6477
        %v6479 = vsel %vm1771, %v6475, 0.0
        %6480 = vadd.xlane.f32.xlu0 %v6479
        %v6481 = vpop.xlane.xlu0 %6480
        %v6482 = vmul.f32 %v6478, %v1775
        %v6483 = vmul.f32 %v6481, %v1775
        %v6484 = vadd.f32 %v6482, 1e-06
        %v6485 = vadd.f32 %v6483, 1e-06
        %v6486 = vrsqrt.pop %v6484
        %v6487 = vrsqrt.pop %v6485
        %v6488 = vmul.f32 %v6472, %v6486
        %v6489 = vmul.f32 %v6473, %v6487
        %v6491 = vlaneseq
        %v6492 = vshrl.u32 %v6491, 7
        %v6493 = vsub.s32 0, %v6492
        %v6494 = vrot.slane %v6462, %v6493
        %v6496 = vmul.f32 %v6488, %v6494
        %v6497 = vmul.f32 %v6489, %v6494
        %v6499 = vlaneseq
        %v6500 = vshrl.u32 %v6499, 7
        %v6501 = vsub.s32 0, %v6500
        %v6502 = vrot.slane %v6463, %v6501
        %v6504 = vadd.f32 %v6496, %v6502
        %v6505 = vadd.f32 %v6497, %v6502
        %v6506 = vld [vmem:[%s51] sm:$0xff]
        %v6507 = vld [vmem:[%s51 + $0x8] sm:$0xff]
        %v6508 = vld [vmem:[%s51 + $0x10] sm:$0xff]
        %v6509 = vld [vmem:[%s51 + $0x18] sm:$0xff]
        %v6510 = vld [vmem:[%s53] sm:$0x1]
        %v6512 = vlaneseq
        %v6513 = vshrl.u32 %v6512, 7
        %v6514 = vsub.s32 0, %v6513
        %v6515 = vrot.slane %v6510, %v6514
        %v6518 = vsel %vm1575, %v6504, 0
        %v6521 = vsel %vm1575, %v6505, 0
        %6523 = vmatprep.subr.mxu0 0.0
        %6524 = vmatpush1.msra.mxu0 0.0
        %6525 = vmatprep.subr.mxu0 0.0
        %6526 = vmatpush1.msra.mxu0 0.0
        %6527 = vmatprep.subr.mxu0 0.0
        %6528 = vmatpush1.msra.mxu0 0.0
        %6529 = vmatprep.subr.mxu0 0.0
        %6530 = vmatpush1.msra.mxu0 0.0
        %6531 = vmatprep.subr.mxu0 0.0
        %6532 = vmatpush1.msra.mxu0 0.0
        %6533 = vmatprep.subr.mxu0 0.0
        %6534 = vmatpush1.msra.mxu0 0.0
        %6535 = vmatprep.subr.mxu0 0.0
        %6536 = vmatpush1.msra.mxu0 0.0
        %6537 = vmatprep.subr.mxu0 0.0
        %6538 = vmatpush1.msra.mxu0 0.0
        %6539 = vmatprep.subr.mxu0 0.0
        %6540 = vmatpush1.msra.mxu0 0.0
        %6541 = vmatprep.subr.mxu0 0.0
        %6542 = vmatpush1.msra.mxu0 0.0
        %6543 = vmatprep.subr.mxu0 0.0
        %6544 = vmatpush1.msra.mxu0 0.0
        %6545 = vmatprep.subr.mxu0 0.0
        %6546 = vmatpush1.msra.mxu0 0.0
        %6547 = vmatprep.subr.mxu0 0.0
        %6548 = vmatpush1.msra.mxu0 %v6509
        %6549 = vmatprep.subr.mxu0 0.0
        %6550 = vmatpush1.msra.mxu0 %v6508
        %6551 = vmatprep.subr.mxu0 0.0
        %6552 = vmatpush1.msra.mxu0 %v6507
        %6553 = vmatprep.subr.mxu0 0.0
        %6554 = vmatpush1.msra.mxu0 %v6506
        %6555 = vmatprep.subr.mxu0 0.0
        %6556 = vmatpush2.msra.mxu0 0.0
        %6557 = vmatprep.subr.mxu0 0.0
        %6558 = vmatpush2.msra.mxu0 0.0
        %6559 = vmatprep.subr.mxu0 0.0
        %6560 = vmatpush2.msra.mxu0 0.0
        %6561 = vmatprep.subr.mxu0 0.0
        %6562 = vmatpush2.msra.mxu0 0.0
        %6563 = vmatprep.subr.mxu0 0.0
        %6564 = vmatpush2.msra.mxu0 0.0
        %6565 = vmatprep.subr.mxu0 0.0
        %6566 = vmatpush2.msra.mxu0 0.0
        %6567 = vmatprep.subr.mxu0 0.0
        %6568 = vmatpush2.msra.mxu0 0.0
        %6569 = vmatprep.subr.mxu0 0.0
        %6570 = vmatpush2.msra.mxu0 0.0
        %6571 = vmatprep.subr.mxu0 0.0
        %6572 = vmatpush2.msra.mxu0 0.0
        %6573 = vmatprep.subr.mxu0 0.0
        %6574 = vmatpush2.msra.mxu0 0.0
        %6575 = vmatprep.subr.mxu0 0.0
        %6576 = vmatpush2.msra.mxu0 0.0
        %6577 = vmatprep.subr.mxu0 0.0
        %6578 = vmatpush2.msra.mxu0 0.0
        %6579 = vmatprep.subr.mxu0 0.0
        %6580 = vmatpush2.msra.mxu0 0.0
        %6581 = vmatprep.subr.mxu0 0.0
        %6582 = vmatpush2.msra.mxu0 0.0
        %6583 = vmatprep.subr.mxu0 0.0
        %6584 = vmatpush2.msra.mxu0 0.0
        %6585 = vmatprep.subr.mxu0 0.0
        %6586 = vmatpush2.msra.mxu0 0.0
        %6587 = vmatprep.mubr.f32.mxu0 0.0
        %6588 = vmatmul.mubr.f32.gmra.mxu0 %v6518
        %v6589 = vpop.f32.mrf.mxu0
        %v6590 = vadd.f32 %v6515, %v6589
        %v6591 = vpop.f32.mrf.mxu0
        %6592 = vmatprep.mubr.f32.mxu0 0.0
        %6593 = vmatmul.mubr.f32.gmra.mxu0 %v6521
        %v6594 = vpop.f32.mrf.mxu0
        %v6595 = vadd.f32 %v6515, %v6594
        %v6596 = vpop.f32.mrf.mxu0
        %6597 = vdwg.mxu0
        %v6598 = vld [vmem:[%s1467] sm:$0xff]
        %v6599 = vld [vmem:[%s1467 + $0x8] sm:$0xff]
        %v6600 = vld [vmem:[%s1467 + $0x10] sm:$0x1]
        %v6601 = vld [vmem:[%s1472] sm:$0xff]
        %v6602 = vld [vmem:[%s1472 + $0x8] sm:$0xff]
        %v6603 = vld [vmem:[%s1472 + $0x10] sm:$0x1]
        %v6604 = vld [vmem:[%s55] sm:$0x1]
        %6606 = vset.pattern.permute.xlu0 0
        %6607 = vperm.xlu0 %6606, %v6601
        %v6608 = vpop.permute.xlu0 %6607
        %6611 = vset.pattern.permute.xlu0 0
        %6612 = vperm.xlu0 %6611, %v6602
        %v6613 = vpop.permute.xlu0 %6612
        %6616 = vset.pattern.permute.xlu0 0
        %6617 = vperm.xlu0 %6616, %v6603
        %v6618 = vpop.permute.xlu0 %6617
        %v6621 = vlaneseq
        %v6622 = vshrl.u32 %v6621, 7
        %v6623 = vsub.s32 0, %v6622
        %v6624 = vrot.slane %v6604, %v6623
        %v6626 = vmul.f32 %v6608, %v6624
        %v6627 = vmul.f32 %v6613, %v6624
        %v6628 = vmul.f32 %v6618, %v6624
        %v6630 = vsel %vm3067, %v6598, 0
        %v6633 = vsel %vm3067, %v6599, 0
        %v6636 = vsel %vm3067, %v6600, 0
        %v6639 = vsel %vm3163, %v6595, 0
        %6641 = vmatprep.subr.mxu0 0.0
        %6642 = vmatpush1.msra.mxu0 0.0
        %6643 = vmatprep.subr.mxu0 0.0
        %6644 = vmatpush1.msra.mxu0 0.0
        %6645 = vmatprep.subr.mxu0 0.0
        %6646 = vmatpush1.msra.mxu0 0.0
        %6647 = vmatprep.subr.mxu0 0.0
        %6648 = vmatpush1.msra.mxu0 0.0
        %6649 = vmatprep.subr.mxu0 0.0
        %6650 = vmatpush1.msra.mxu0 0.0
        %6651 = vmatprep.subr.mxu0 0.0
        %6652 = vmatpush1.msra.mxu0 0.0
        %6653 = vmatprep.subr.mxu0 0.0
        %6654 = vmatpush1.msra.mxu0 0.0
        %6655 = vmatprep.subr.mxu0 0.0
        %6656 = vmatpush1.msra.mxu0 0.0
        %6657 = vmatprep.subr.mxu0 0.0
        %6658 = vmatpush1.msra.mxu0 0.0
        %6659 = vmatprep.subr.mxu0 0.0
        %6660 = vmatpush1.msra.mxu0 0.0
        %6661 = vmatprep.subr.mxu0 0.0
        %6662 = vmatpush1.msra.mxu0 0.0
        %6663 = vmatprep.subr.mxu0 0.0
        %6664 = vmatpush1.msra.mxu0 0.0
        %6665 = vmatprep.subr.mxu0 0.0
        %6666 = vmatpush1.msra.mxu0 0.0
        %6667 = vmatprep.subr.mxu0 0.0
        %6668 = vmatpush1.msra.mxu0 0.0
        %6669 = vmatprep.subr.mxu0 0.0
        %6670 = vmatpush1.msra.mxu0 %v6639
        %6671 = vmatprep.subr.mxu0 0.0
        %6672 = vmatpush1.msra.mxu0 %v6590
        %6673 = vmatprep.subr.mxu0 0.0
        %6674 = vmatpush2.msra.mxu0 0.0
        %6675 = vmatprep.subr.mxu0 0.0
        %6676 = vmatpush2.msra.mxu0 0.0
        %6677 = vmatprep.subr.mxu0 0.0
        %6678 = vmatpush2.msra.mxu0 0.0
        %6679 = vmatprep.subr.mxu0 0.0
        %6680 = vmatpush2.msra.mxu0 0.0
        %6681 = vmatprep.subr.mxu0 0.0
        %6682 = vmatpush2.msra.mxu0 0.0
        %6683 = vmatprep.subr.mxu0 0.0
        %6684 = vmatpush2.msra.mxu0 0.0
        %6685 = vmatprep.subr.mxu0 0.0
        %6686 = vmatpush2.msra.mxu0 0.0
        %6687 = vmatprep.subr.mxu0 0.0
        %6688 = vmatpush2.msra.mxu0 0.0
        %6689 = vmatprep.subr.mxu0 0.0
        %6690 = vmatpush2.msra.mxu0 0.0
        %6691 = vmatprep.subr.mxu0 0.0
        %6692 = vmatpush2.msra.mxu0 0.0
        %6693 = vmatprep.subr.mxu0 0.0
        %6694 = vmatpush2.msra.mxu0 0.0
        %6695 = vmatprep.subr.mxu0 0.0
        %6696 = vmatpush2.msra.mxu0 0.0
        %6697 = vmatprep.subr.mxu0 0.0
        %6698 = vmatpush2.msra.mxu0 0.0
        %6699 = vmatprep.subr.mxu0 0.0
        %6700 = vmatpush2.msra.mxu0 0.0
        %6701 = vmatprep.subr.mxu0 0.0
        %6702 = vmatpush2.msra.mxu0 0.0
        %6703 = vmatprep.subr.mxu0 0.0
        %6704 = vmatpush2.msra.mxu0 0.0
        %6705 = vmatprep.mubr.f32.mxu0 0.0
        %6706 = vmatmul.mubr.f32.gmra.mxu0 %v6630
        %v6707 = vpop.f32.mrf.mxu0
        %v6708 = vadd.f32 %v6626, %v6707
        %v6709 = vpop.f32.mrf.mxu0
        %6710 = vmatprep.mubr.f32.mxu0 0.0
        %6711 = vmatmul.mubr.f32.gmra.mxu0 %v6633
        %v6712 = vpop.f32.mrf.mxu0
        %v6713 = vadd.f32 %v6627, %v6712
        %v6714 = vpop.f32.mrf.mxu0
        %6715 = vmatprep.mubr.f32.mxu0 0.0
        %6716 = vmatmul.mubr.f32.gmra.mxu0 %v6636
        %v6717 = vpop.f32.mrf.mxu0
        %v6718 = vadd.f32 %v6628, %v6717
        %v6719 = vpop.f32.mrf.mxu0
        %6720 = vdwg.mxu0
        %v6721 = vld [vmem:[%s57] sm:$0xff]
        %v6722 = vld [vmem:[%s57 + $0x8] sm:$0xff]
        %v6723 = vld [vmem:[%s57 + $0x10] sm:$0x1]
        %v6724 = vadd.f32 %v6708, %v6721
        %v6725 = vadd.f32 %v6713, %v6722
        %v6726 = vadd.f32 %v6718, %v6723
        %v6727 = vld [vmem:[%s59] sm:$0x1]
        %v6728 = vld [vmem:[%s61] sm:$0x1]
        %v6729 = vld [vmem:[%s63] sm:$0xff]
        %v6730 = vld [vmem:[%s63 + $0x8] sm:$0xff]
        %v6731 = vld [vmem:[%s63 + $0x10] sm:$0xff]
        %v6732 = vld [vmem:[%s63 + $0x18] sm:$0xff]
        %v6733 = vld [vmem:[%s63 + $0x20] sm:$0xff]
        %v6734 = vld [vmem:[%s63 + $0x28] sm:$0xff]
        %v6735 = vld [vmem:[%s63 + $0x30] sm:$0xff]
        %v6736 = vld [vmem:[%s63 + $0x38] sm:$0xff]
        %v6737 = vld [vmem:[%s63 + $0x40] sm:$0xff]
        %v6738 = vld [vmem:[%s63 + $0x48] sm:$0xff]
        %v6739 = vld [vmem:[%s63 + $0x50] sm:$0xff]
        %v6740 = vld [vmem:[%s63 + $0x58] sm:$0xff]
        %v6741 = vld [vmem:[%s63 + $0x60] sm:$0xff]
        %v6742 = vld [vmem:[%s63 + $0x68] sm:$0xff]
        %v6743 = vld [vmem:[%s63 + $0x70] sm:$0xff]
        %v6744 = vld [vmem:[%s63 + $0x78] sm:$0xff]
        %v6745 = vld [vmem:[%s65] sm:$0xff]
        %v6746 = vld [vmem:[%s65 + $0x8] sm:$0xff]
        %v6747 = vld [vmem:[%s65 + $0x10] sm:$0xff]
        %v6748 = vld [vmem:[%s65 + $0x18] sm:$0xff]
        %v6749 = vld [vmem:[%s65 + $0x20] sm:$0xff]
        %v6750 = vld [vmem:[%s65 + $0x28] sm:$0xff]
        %v6751 = vld [vmem:[%s65 + $0x30] sm:$0xff]
        %v6752 = vld [vmem:[%s65 + $0x38] sm:$0xff]
        %v6753 = vld [vmem:[%s65 + $0x40] sm:$0xff]
        %v6754 = vld [vmem:[%s65 + $0x48] sm:$0xff]
        %v6755 = vld [vmem:[%s65 + $0x50] sm:$0xff]
        %v6756 = vld [vmem:[%s65 + $0x58] sm:$0xff]
        %v6757 = vld [vmem:[%s65 + $0x60] sm:$0xff]
        %v6758 = vld [vmem:[%s65 + $0x68] sm:$0xff]
        %v6759 = vld [vmem:[%s65 + $0x70] sm:$0xff]
        %v6760 = vld [vmem:[%s65 + $0x78] sm:$0xff]
        %v6761 = vld [vmem:[%s67] sm:$0xff]
        %v6762 = vld [vmem:[%s67 + $0x8] sm:$0xff]
        %v6763 = vld [vmem:[%s67 + $0x10] sm:$0xff]
        %v6764 = vld [vmem:[%s67 + $0x18] sm:$0xff]
        %v6765 = vld [vmem:[%s67 + $0x20] sm:$0xff]
        %v6766 = vld [vmem:[%s67 + $0x28] sm:$0xff]
        %v6767 = vld [vmem:[%s67 + $0x30] sm:$0xff]
        %v6768 = vld [vmem:[%s67 + $0x38] sm:$0xff]
        %v6769 = vld [vmem:[%s67 + $0x40] sm:$0xff]
        %v6770 = vld [vmem:[%s67 + $0x48] sm:$0xff]
        %v6771 = vld [vmem:[%s67 + $0x50] sm:$0xff]
        %v6772 = vld [vmem:[%s67 + $0x58] sm:$0xff]
        %v6773 = vld [vmem:[%s67 + $0x60] sm:$0xff]
        %v6774 = vld [vmem:[%s67 + $0x68] sm:$0xff]
        %v6775 = vld [vmem:[%s67 + $0x70] sm:$0xff]
        %v6776 = vld [vmem:[%s67 + $0x78] sm:$0xff]
        %v6777 = vld [vmem:[%s69] sm:$0xff]
        %v6778 = vld [vmem:[%s69 + $0x8] sm:$0xff]
        %v6779 = vld [vmem:[%s69 + $0x10] sm:$0xff]
        %v6780 = vld [vmem:[%s69 + $0x18] sm:$0xff]
        %v6781 = vld [vmem:[%s71] sm:$0x1]
        %v6782 = vld [vmem:[%s73] sm:$0x1]
        %v6783 = vld [vmem:[%s75] sm:$0x1]
        %v6784 = vld [vmem:[%s77] sm:$0xff]
        %v6785 = vld [vmem:[%s77 + $0x8] sm:$0xff]
        %v6786 = vld [vmem:[%s77 + $0x10] sm:$0xff]
        %v6787 = vld [vmem:[%s77 + $0x18] sm:$0xff]
        %v6788 = vld [vmem:[%s79] sm:$0x1]
        %v6789 = vld [vmem:[%s81] sm:$0xff]
        %v6790 = vld [vmem:[%s81 + $0x8] sm:$0xff]
        %v6791 = vld [vmem:[%s81 + $0x10] sm:$0xff]
        %v6792 = vld [vmem:[%s81 + $0x18] sm:$0xff]
        %v6793 = vld [vmem:[%s81 + $0x20] sm:$0xff]
        %v6794 = vld [vmem:[%s81 + $0x28] sm:$0xff]
        %v6795 = vld [vmem:[%s81 + $0x30] sm:$0xff]
        %v6796 = vld [vmem:[%s81 + $0x38] sm:$0xff]
        %v6797 = vld [vmem:[%s81 + $0x40] sm:$0xff]
        %v6798 = vld [vmem:[%s81 + $0x48] sm:$0xff]
        %v6799 = vld [vmem:[%s81 + $0x50] sm:$0xff]
        %v6800 = vld [vmem:[%s81 + $0x58] sm:$0xff]
        %v6801 = vld [vmem:[%s81 + $0x60] sm:$0xff]
        %v6802 = vld [vmem:[%s81 + $0x68] sm:$0xff]
        %v6803 = vld [vmem:[%s81 + $0x70] sm:$0xff]
        %v6804 = vld [vmem:[%s81 + $0x78] sm:$0xff]
        %v6805 = vld [vmem:[%s83] sm:$0x1]
        %v6806 = vsel %vm1575, %v6724, 0.0
        %6807 = vadd.xlane.f32.xlu0 %v6806
        %v6808 = vpop.xlane.xlu0 %6807
        %v6809 = vsel %vm1575, %v6725, 0.0
        %6810 = vadd.xlane.f32.xlu0 %v6809
        %v6811 = vpop.xlane.xlu0 %6810
        %vm6812 = vcmask 253952
        %v6813 = vsel %vm6812, %v6726, 0.0
        %6814 = vadd.xlane.f32.xlu0 %v6813
        %v6815 = vpop.xlane.xlu0 %6814
        %v6816 = vmul.f32 %v6808, %v1775
        %v6817 = vmul.f32 %v6811, %v1775
        %v6818 = vmul.f32 %v6815, %v1775
        %v6819 = vsub.f32 %v6724, %v6816
        %v6820 = vsub.f32 %v6725, %v6817
        %v6821 = vsub.f32 %v6726, %v6818
        %v6822 = vmul.f32 %v6819, %v6819
        %v6823 = vmul.f32 %v6820, %v6820
        %v6824 = vmul.f32 %v6821, %v6821
        %v6825 = vsel %vm1575, %v6822, 0.0
        %6826 = vadd.xlane.f32.xlu0 %v6825
        %v6827 = vpop.xlane.xlu0 %6826
        %v6828 = vsel %vm1575, %v6823, 0.0
        %6829 = vadd.xlane.f32.xlu0 %v6828
        %v6830 = vpop.xlane.xlu0 %6829
        %v6831 = vsel %vm6812, %v6824, 0.0
        %6832 = vadd.xlane.f32.xlu0 %v6831
        %v6833 = vpop.xlane.xlu0 %6832
        %v6834 = vmul.f32 %v6827, %v1775
        %v6835 = vmul.f32 %v6830, %v1775
        %v6836 = vmul.f32 %v6833, %v1775
        %v6837 = vadd.f32 %v6834, 1e-06
        %v6838 = vadd.f32 %v6835, 1e-06
        %v6839 = vadd.f32 %v6836, 1e-06
        %v6840 = vrsqrt.pop %v6837
        %v6841 = vrsqrt.pop %v6838
        %v6842 = vrsqrt.pop %v6839
        %v6843 = vmul.f32 %v6819, %v6840
        %v6844 = vmul.f32 %v6820, %v6841
        %v6845 = vmul.f32 %v6821, %v6842
        %v6847 = vlaneseq
        %v6848 = vshrl.u32 %v6847, 7
        %v6849 = vsub.s32 0, %v6848
        %v6850 = vrot.slane %v6727, %v6849
        %v6852 = vmul.f32 %v6843, %v6850
        %v6853 = vmul.f32 %v6844, %v6850
        %v6854 = vmul.f32 %v6845, %v6850
        %v6856 = vlaneseq
        %v6857 = vshrl.u32 %v6856, 7
        %v6858 = vsub.s32 0, %v6857
        %v6859 = vrot.slane %v6728, %v6858
        %v6861 = vadd.f32 %v6852, %v6859
        %v6862 = vadd.f32 %v6853, %v6859
        %v6863 = vadd.f32 %v6854, %v6859
        %v6865 = vsel %vm1575, %v6861, 0
        %v6868 = vsel %vm1575, %v6862, 0
        %v6871 = vsel %vm1575, %v6863, 0
        %6873 = vmatprep.subr.mxu0 0.0
        %6874 = vmatpush1.msra.mxu0 0.0
        %6875 = vmatprep.subr.mxu0 0.0
        %6876 = vmatpush1.msra.mxu0 0.0
        %6877 = vmatprep.subr.mxu0 0.0
        %6878 = vmatpush1.msra.mxu0 0.0
        %6879 = vmatprep.subr.mxu0 0.0
        %6880 = vmatpush1.msra.mxu0 0.0
        %6881 = vmatprep.subr.mxu0 0.0
        %6882 = vmatpush1.msra.mxu0 0.0
        %6883 = vmatprep.subr.mxu0 0.0
        %6884 = vmatpush1.msra.mxu0 0.0
        %6885 = vmatprep.subr.mxu0 0.0
        %6886 = vmatpush1.msra.mxu0 0.0
        %6887 = vmatprep.subr.mxu0 0.0
        %6888 = vmatpush1.msra.mxu0 0.0
        %6889 = vmatprep.subr.mxu0 0.0
        %6890 = vmatpush1.msra.mxu0 0.0
        %6891 = vmatprep.subr.mxu0 0.0
        %6892 = vmatpush1.msra.mxu0 0.0
        %6893 = vmatprep.subr.mxu0 0.0
        %6894 = vmatpush1.msra.mxu0 0.0
        %6895 = vmatprep.subr.mxu0 0.0
        %6896 = vmatpush1.msra.mxu0 0.0
        %6897 = vmatprep.subr.mxu0 0.0
        %6898 = vmatpush1.msra.mxu0 %v6732
        %6899 = vmatprep.subr.mxu0 0.0
        %6900 = vmatpush1.msra.mxu0 %v6731
        %6901 = vmatprep.subr.mxu0 0.0
        %6902 = vmatpush1.msra.mxu0 %v6730
        %6903 = vmatprep.subr.mxu0 0.0
        %6904 = vmatpush1.msra.mxu0 %v6729
        %6905 = vmatprep.subr.mxu0 0.0
        %6906 = vmatpush2.msra.mxu0 0.0
        %6907 = vmatprep.subr.mxu0 0.0
        %6908 = vmatpush2.msra.mxu0 0.0
        %6909 = vmatprep.subr.mxu0 0.0
        %6910 = vmatpush2.msra.mxu0 0.0
        %6911 = vmatprep.subr.mxu0 0.0
        %6912 = vmatpush2.msra.mxu0 0.0
        %6913 = vmatprep.subr.mxu0 0.0
        %6914 = vmatpush2.msra.mxu0 0.0
        %6915 = vmatprep.subr.mxu0 0.0
        %6916 = vmatpush2.msra.mxu0 0.0
        %6917 = vmatprep.subr.mxu0 0.0
        %6918 = vmatpush2.msra.mxu0 0.0
        %6919 = vmatprep.subr.mxu0 0.0
        %6920 = vmatpush2.msra.mxu0 0.0
        %6921 = vmatprep.subr.mxu0 0.0
        %6922 = vmatpush2.msra.mxu0 0.0
        %6923 = vmatprep.subr.mxu0 0.0
        %6924 = vmatpush2.msra.mxu0 0.0
        %6925 = vmatprep.subr.mxu0 0.0
        %6926 = vmatpush2.msra.mxu0 0.0
        %6927 = vmatprep.subr.mxu0 0.0
        %6928 = vmatpush2.msra.mxu0 0.0
        %6929 = vmatprep.subr.mxu0 0.0
        %6930 = vmatpush2.msra.mxu0 0.0
        %6931 = vmatprep.subr.mxu0 0.0
        %6932 = vmatpush2.msra.mxu0 0.0
        %6933 = vmatprep.subr.mxu0 0.0
        %6934 = vmatpush2.msra.mxu0 0.0
        %6935 = vmatprep.subr.mxu0 0.0
        %6936 = vmatpush2.msra.mxu0 0.0
        %6937 = vmatprep.mubr.f32.mxu0 0.0
        %6938 = vmatmul.mubr.f32.gmra.mxu0 %v6865
        %v6939 = vpop.f32.mrf.mxu0
        %v6940 = vadd.f32 0.0, %v6939
        %v6941 = vpop.f32.mrf.mxu0
        %6942 = vmatprep.mubr.f32.mxu0 0.0
        %6943 = vmatmul.mubr.f32.gmra.mxu0 %v6868
        %v6944 = vpop.f32.mrf.mxu0
        %v6945 = vadd.f32 0.0, %v6944
        %v6946 = vpop.f32.mrf.mxu0
        %6947 = vmatprep.mubr.f32.mxu0 0.0
        %6948 = vmatmul.mubr.f32.gmra.mxu0 %v6871
        %v6949 = vpop.f32.mrf.mxu0
        %v6950 = vadd.f32 0.0, %v6949
        %v6951 = vpop.f32.mrf.mxu0
        %6952 = vdwg.mxu0
        %6953 = vmatprep.subr.mxu0 0.0
        %6954 = vmatpush1.msra.mxu0 0.0
        %6955 = vmatprep.subr.mxu0 0.0
        %6956 = vmatpush1.msra.mxu0 0.0
        %6957 = vmatprep.subr.mxu0 0.0
        %6958 = vmatpush1.msra.mxu0 0.0
        %6959 = vmatprep.subr.mxu0 0.0
        %6960 = vmatpush1.msra.mxu0 0.0
        %6961 = vmatprep.subr.mxu0 0.0
        %6962 = vmatpush1.msra.mxu0 0.0
        %6963 = vmatprep.subr.mxu0 0.0
        %6964 = vmatpush1.msra.mxu0 0.0
        %6965 = vmatprep.subr.mxu0 0.0
        %6966 = vmatpush1.msra.mxu0 0.0
        %6967 = vmatprep.subr.mxu0 0.0
        %6968 = vmatpush1.msra.mxu0 0.0
        %6969 = vmatprep.subr.mxu0 0.0
        %6970 = vmatpush1.msra.mxu0 0.0
        %6971 = vmatprep.subr.mxu0 0.0
        %6972 = vmatpush1.msra.mxu0 0.0
        %6973 = vmatprep.subr.mxu0 0.0
        %6974 = vmatpush1.msra.mxu0 0.0
        %6975 = vmatprep.subr.mxu0 0.0
        %6976 = vmatpush1.msra.mxu0 0.0
        %6977 = vmatprep.subr.mxu0 0.0
        %6978 = vmatpush1.msra.mxu0 %v6736
        %6979 = vmatprep.subr.mxu0 0.0
        %6980 = vmatpush1.msra.mxu0 %v6735
        %6981 = vmatprep.subr.mxu0 0.0
        %6982 = vmatpush1.msra.mxu0 %v6734
        %6983 = vmatprep.subr.mxu0 0.0
        %6984 = vmatpush1.msra.mxu0 %v6733
        %6985 = vmatprep.subr.mxu0 0.0
        %6986 = vmatpush2.msra.mxu0 0.0
        %6987 = vmatprep.subr.mxu0 0.0
        %6988 = vmatpush2.msra.mxu0 0.0
        %6989 = vmatprep.subr.mxu0 0.0
        %6990 = vmatpush2.msra.mxu0 0.0
        %6991 = vmatprep.subr.mxu0 0.0
        %6992 = vmatpush2.msra.mxu0 0.0
        %6993 = vmatprep.subr.mxu0 0.0
        %6994 = vmatpush2.msra.mxu0 0.0
        %6995 = vmatprep.subr.mxu0 0.0
        %6996 = vmatpush2.msra.mxu0 0.0
        %6997 = vmatprep.subr.mxu0 0.0
        %6998 = vmatpush2.msra.mxu0 0.0
        %6999 = vmatprep.subr.mxu0 0.0
        %7000 = vmatpush2.msra.mxu0 0.0
        %7001 = vmatprep.subr.mxu0 0.0
        %7002 = vmatpush2.msra.mxu0 0.0
        %7003 = vmatprep.subr.mxu0 0.0
        %7004 = vmatpush2.msra.mxu0 0.0
        %7005 = vmatprep.subr.mxu0 0.0
        %7006 = vmatpush2.msra.mxu0 0.0
        %7007 = vmatprep.subr.mxu0 0.0
        %7008 = vmatpush2.msra.mxu0 0.0
        %7009 = vmatprep.subr.mxu0 0.0
        %7010 = vmatpush2.msra.mxu0 0.0
        %7011 = vmatprep.subr.mxu0 0.0
        %7012 = vmatpush2.msra.mxu0 0.0
        %7013 = vmatprep.subr.mxu0 0.0
        %7014 = vmatpush2.msra.mxu0 0.0
        %7015 = vmatprep.subr.mxu0 0.0
        %7016 = vmatpush2.msra.mxu0 0.0
        %7017 = vmatprep.mubr.f32.mxu0 0.0
        %7018 = vmatmul.mubr.f32.gmra.mxu0 %v6865
        %v7019 = vpop.f32.mrf.mxu0
        %v7020 = vadd.f32 0.0, %v7019
        %v7021 = vpop.f32.mrf.mxu0
        %7022 = vmatprep.mubr.f32.mxu0 0.0
        %7023 = vmatmul.mubr.f32.gmra.mxu0 %v6868
        %v7024 = vpop.f32.mrf.mxu0
        %v7025 = vadd.f32 0.0, %v7024
        %v7026 = vpop.f32.mrf.mxu0
        %7027 = vmatprep.mubr.f32.mxu0 0.0
        %7028 = vmatmul.mubr.f32.gmra.mxu0 %v6871
        %v7029 = vpop.f32.mrf.mxu0
        %v7030 = vadd.f32 0.0, %v7029
        %v7031 = vpop.f32.mrf.mxu0
        %7032 = vdwg.mxu0
        %7033 = vmatprep.subr.mxu0 0.0
        %7034 = vmatpush1.msra.mxu0 0.0
        %7035 = vmatprep.subr.mxu0 0.0
        %7036 = vmatpush1.msra.mxu0 0.0
        %7037 = vmatprep.subr.mxu0 0.0
        %7038 = vmatpush1.msra.mxu0 0.0
        %7039 = vmatprep.subr.mxu0 0.0
        %7040 = vmatpush1.msra.mxu0 0.0
        %7041 = vmatprep.subr.mxu0 0.0
        %7042 = vmatpush1.msra.mxu0 0.0
        %7043 = vmatprep.subr.mxu0 0.0
        %7044 = vmatpush1.msra.mxu0 0.0
        %7045 = vmatprep.subr.mxu0 0.0
        %7046 = vmatpush1.msra.mxu0 0.0
        %7047 = vmatprep.subr.mxu0 0.0
        %7048 = vmatpush1.msra.mxu0 0.0
        %7049 = vmatprep.subr.mxu0 0.0
        %7050 = vmatpush1.msra.mxu0 0.0
        %7051 = vmatprep.subr.mxu0 0.0
        %7052 = vmatpush1.msra.mxu0 0.0
        %7053 = vmatprep.subr.mxu0 0.0
        %7054 = vmatpush1.msra.mxu0 0.0
        %7055 = vmatprep.subr.mxu0 0.0
        %7056 = vmatpush1.msra.mxu0 0.0
        %7057 = vmatprep.subr.mxu0 0.0
        %7058 = vmatpush1.msra.mxu0 %v6740
        %7059 = vmatprep.subr.mxu0 0.0
        %7060 = vmatpush1.msra.mxu0 %v6739
        %7061 = vmatprep.subr.mxu0 0.0
        %7062 = vmatpush1.msra.mxu0 %v6738
        %7063 = vmatprep.subr.mxu0 0.0
        %7064 = vmatpush1.msra.mxu0 %v6737
        %7065 = vmatprep.subr.mxu0 0.0
        %7066 = vmatpush2.msra.mxu0 0.0
        %7067 = vmatprep.subr.mxu0 0.0
        %7068 = vmatpush2.msra.mxu0 0.0
        %7069 = vmatprep.subr.mxu0 0.0
        %7070 = vmatpush2.msra.mxu0 0.0
        %7071 = vmatprep.subr.mxu0 0.0
        %7072 = vmatpush2.msra.mxu0 0.0
        %7073 = vmatprep.subr.mxu0 0.0
        %7074 = vmatpush2.msra.mxu0 0.0
        %7075 = vmatprep.subr.mxu0 0.0
        %7076 = vmatpush2.msra.mxu0 0.0
        %7077 = vmatprep.subr.mxu0 0.0
        %7078 = vmatpush2.msra.mxu0 0.0
        %7079 = vmatprep.subr.mxu0 0.0
        %7080 = vmatpush2.msra.mxu0 0.0
        %7081 = vmatprep.subr.mxu0 0.0
        %7082 = vmatpush2.msra.mxu0 0.0
        %7083 = vmatprep.subr.mxu0 0.0
        %7084 = vmatpush2.msra.mxu0 0.0
        %7085 = vmatprep.subr.mxu0 0.0
        %7086 = vmatpush2.msra.mxu0 0.0
        %7087 = vmatprep.subr.mxu0 0.0
        %7088 = vmatpush2.msra.mxu0 0.0
        %7089 = vmatprep.subr.mxu0 0.0
        %7090 = vmatpush2.msra.mxu0 0.0
        %7091 = vmatprep.subr.mxu0 0.0
        %7092 = vmatpush2.msra.mxu0 0.0
        %7093 = vmatprep.subr.mxu0 0.0
        %7094 = vmatpush2.msra.mxu0 0.0
        %7095 = vmatprep.subr.mxu0 0.0
        %7096 = vmatpush2.msra.mxu0 0.0
        %7097 = vmatprep.mubr.f32.mxu0 0.0
        %7098 = vmatmul.mubr.f32.gmra.mxu0 %v6865
        %v7099 = vpop.f32.mrf.mxu0
        %v7100 = vadd.f32 0.0, %v7099
        %v7101 = vpop.f32.mrf.mxu0
        %7102 = vmatprep.mubr.f32.mxu0 0.0
        %7103 = vmatmul.mubr.f32.gmra.mxu0 %v6868
        %v7104 = vpop.f32.mrf.mxu0
        %v7105 = vadd.f32 0.0, %v7104
        %v7106 = vpop.f32.mrf.mxu0
        %7107 = vmatprep.mubr.f32.mxu0 0.0
        %7108 = vmatmul.mubr.f32.gmra.mxu0 %v6871
        %v7109 = vpop.f32.mrf.mxu0
        %v7110 = vadd.f32 0.0, %v7109
        %v7111 = vpop.f32.mrf.mxu0
        %7112 = vdwg.mxu0
        %7113 = vmatprep.subr.mxu0 0.0
        %7114 = vmatpush1.msra.mxu0 0.0
        %7115 = vmatprep.subr.mxu0 0.0
        %7116 = vmatpush1.msra.mxu0 0.0
        %7117 = vmatprep.subr.mxu0 0.0
        %7118 = vmatpush1.msra.mxu0 0.0
        %7119 = vmatprep.subr.mxu0 0.0
        %7120 = vmatpush1.msra.mxu0 0.0
        %7121 = vmatprep.subr.mxu0 0.0
        %7122 = vmatpush1.msra.mxu0 0.0
        %7123 = vmatprep.subr.mxu0 0.0
        %7124 = vmatpush1.msra.mxu0 0.0
        %7125 = vmatprep.subr.mxu0 0.0
        %7126 = vmatpush1.msra.mxu0 0.0
        %7127 = vmatprep.subr.mxu0 0.0
        %7128 = vmatpush1.msra.mxu0 0.0
        %7129 = vmatprep.subr.mxu0 0.0
        %7130 = vmatpush1.msra.mxu0 0.0
        %7131 = vmatprep.subr.mxu0 0.0
        %7132 = vmatpush1.msra.mxu0 0.0
        %7133 = vmatprep.subr.mxu0 0.0
        %7134 = vmatpush1.msra.mxu0 0.0
        %7135 = vmatprep.subr.mxu0 0.0
        %7136 = vmatpush1.msra.mxu0 0.0
        %7137 = vmatprep.subr.mxu0 0.0
        %7138 = vmatpush1.msra.mxu0 %v6744
        %7139 = vmatprep.subr.mxu0 0.0
        %7140 = vmatpush1.msra.mxu0 %v6743
        %7141 = vmatprep.subr.mxu0 0.0
        %7142 = vmatpush1.msra.mxu0 %v6742
        %7143 = vmatprep.subr.mxu0 0.0
        %7144 = vmatpush1.msra.mxu0 %v6741
        %7145 = vmatprep.subr.mxu0 0.0
        %7146 = vmatpush2.msra.mxu0 0.0
        %7147 = vmatprep.subr.mxu0 0.0
        %7148 = vmatpush2.msra.mxu0 0.0
        %7149 = vmatprep.subr.mxu0 0.0
        %7150 = vmatpush2.msra.mxu0 0.0
        %7151 = vmatprep.subr.mxu0 0.0
        %7152 = vmatpush2.msra.mxu0 0.0
        %7153 = vmatprep.subr.mxu0 0.0
        %7154 = vmatpush2.msra.mxu0 0.0
        %7155 = vmatprep.subr.mxu0 0.0
        %7156 = vmatpush2.msra.mxu0 0.0
        %7157 = vmatprep.subr.mxu0 0.0
        %7158 = vmatpush2.msra.mxu0 0.0
        %7159 = vmatprep.subr.mxu0 0.0
        %7160 = vmatpush2.msra.mxu0 0.0
        %7161 = vmatprep.subr.mxu0 0.0
        %7162 = vmatpush2.msra.mxu0 0.0
        %7163 = vmatprep.subr.mxu0 0.0
        %7164 = vmatpush2.msra.mxu0 0.0
        %7165 = vmatprep.subr.mxu0 0.0
        %7166 = vmatpush2.msra.mxu0 0.0
        %7167 = vmatprep.subr.mxu0 0.0
        %7168 = vmatpush2.msra.mxu0 0.0
        %7169 = vmatprep.subr.mxu0 0.0
        %7170 = vmatpush2.msra.mxu0 0.0
        %7171 = vmatprep.subr.mxu0 0.0
        %7172 = vmatpush2.msra.mxu0 0.0
        %7173 = vmatprep.subr.mxu0 0.0
        %7174 = vmatpush2.msra.mxu0 0.0
        %7175 = vmatprep.subr.mxu0 0.0
        %7176 = vmatpush2.msra.mxu0 0.0
        %7177 = vmatprep.mubr.f32.mxu0 0.0
        %7178 = vmatmul.mubr.f32.gmra.mxu0 %v6865
        %v7179 = vpop.f32.mrf.mxu0
        %v7180 = vadd.f32 0.0, %v7179
        %v7181 = vpop.f32.mrf.mxu0
        %7182 = vmatprep.mubr.f32.mxu0 0.0
        %7183 = vmatmul.mubr.f32.gmra.mxu0 %v6868
        %v7184 = vpop.f32.mrf.mxu0
        %v7185 = vadd.f32 0.0, %v7184
        %v7186 = vpop.f32.mrf.mxu0
        %7187 = vmatprep.mubr.f32.mxu0 0.0
        %7188 = vmatmul.mubr.f32.gmra.mxu0 %v6871
        %v7189 = vpop.f32.mrf.mxu0
        %v7190 = vadd.f32 0.0, %v7189
        %v7191 = vpop.f32.mrf.mxu0
        %7192 = vdwg.mxu0
        %7193 = vmatprep.subr.mxu0 0.0
        %7194 = vmatpush1.msra.mxu0 0.0
        %7195 = vmatprep.subr.mxu0 0.0
        %7196 = vmatpush1.msra.mxu0 0.0
        %7197 = vmatprep.subr.mxu0 0.0
        %7198 = vmatpush1.msra.mxu0 0.0
        %7199 = vmatprep.subr.mxu0 0.0
        %7200 = vmatpush1.msra.mxu0 0.0
        %7201 = vmatprep.subr.mxu0 0.0
        %7202 = vmatpush1.msra.mxu0 0.0
        %7203 = vmatprep.subr.mxu0 0.0
        %7204 = vmatpush1.msra.mxu0 0.0
        %7205 = vmatprep.subr.mxu0 0.0
        %7206 = vmatpush1.msra.mxu0 0.0
        %7207 = vmatprep.subr.mxu0 0.0
        %7208 = vmatpush1.msra.mxu0 0.0
        %7209 = vmatprep.subr.mxu0 0.0
        %7210 = vmatpush1.msra.mxu0 0.0
        %7211 = vmatprep.subr.mxu0 0.0
        %7212 = vmatpush1.msra.mxu0 0.0
        %7213 = vmatprep.subr.mxu0 0.0
        %7214 = vmatpush1.msra.mxu0 0.0
        %7215 = vmatprep.subr.mxu0 0.0
        %7216 = vmatpush1.msra.mxu0 0.0
        %7217 = vmatprep.subr.mxu0 0.0
        %7218 = vmatpush1.msra.mxu0 %v6748
        %7219 = vmatprep.subr.mxu0 0.0
        %7220 = vmatpush1.msra.mxu0 %v6747
        %7221 = vmatprep.subr.mxu0 0.0
        %7222 = vmatpush1.msra.mxu0 %v6746
        %7223 = vmatprep.subr.mxu0 0.0
        %7224 = vmatpush1.msra.mxu0 %v6745
        %7225 = vmatprep.subr.mxu0 0.0
        %7226 = vmatpush2.msra.mxu0 0.0
        %7227 = vmatprep.subr.mxu0 0.0
        %7228 = vmatpush2.msra.mxu0 0.0
        %7229 = vmatprep.subr.mxu0 0.0
        %7230 = vmatpush2.msra.mxu0 0.0
        %7231 = vmatprep.subr.mxu0 0.0
        %7232 = vmatpush2.msra.mxu0 0.0
        %7233 = vmatprep.subr.mxu0 0.0
        %7234 = vmatpush2.msra.mxu0 0.0
        %7235 = vmatprep.subr.mxu0 0.0
        %7236 = vmatpush2.msra.mxu0 0.0
        %7237 = vmatprep.subr.mxu0 0.0
        %7238 = vmatpush2.msra.mxu0 0.0
        %7239 = vmatprep.subr.mxu0 0.0
        %7240 = vmatpush2.msra.mxu0 0.0
        %7241 = vmatprep.subr.mxu0 0.0
        %7242 = vmatpush2.msra.mxu0 0.0
        %7243 = vmatprep.subr.mxu0 0.0
        %7244 = vmatpush2.msra.mxu0 0.0
        %7245 = vmatprep.subr.mxu0 0.0
        %7246 = vmatpush2.msra.mxu0 0.0
        %7247 = vmatprep.subr.mxu0 0.0
        %7248 = vmatpush2.msra.mxu0 0.0
        %7249 = vmatprep.subr.mxu0 0.0
        %7250 = vmatpush2.msra.mxu0 0.0
        %7251 = vmatprep.subr.mxu0 0.0
        %7252 = vmatpush2.msra.mxu0 0.0
        %7253 = vmatprep.subr.mxu0 0.0
        %7254 = vmatpush2.msra.mxu0 0.0
        %7255 = vmatprep.subr.mxu0 0.0
        %7256 = vmatpush2.msra.mxu0 0.0
        %7257 = vmatprep.mubr.f32.mxu0 0.0
        %7258 = vmatmul.mubr.f32.gmra.mxu0 %v6865
        %v7259 = vpop.f32.mrf.mxu0
        %v7260 = vadd.f32 0.0, %v7259
        %v7261 = vpop.f32.mrf.mxu0
        %7262 = vmatprep.mubr.f32.mxu0 0.0
        %7263 = vmatmul.mubr.f32.gmra.mxu0 %v6868
        %v7264 = vpop.f32.mrf.mxu0
        %v7265 = vadd.f32 0.0, %v7264
        %v7266 = vpop.f32.mrf.mxu0
        %7267 = vmatprep.mubr.f32.mxu0 0.0
        %7268 = vmatmul.mubr.f32.gmra.mxu0 %v6871
        %v7269 = vpop.f32.mrf.mxu0
        %v7270 = vadd.f32 0.0, %v7269
        %v7271 = vpop.f32.mrf.mxu0
        %7272 = vdwg.mxu0
        %7273 = vmatprep.subr.mxu0 0.0
        %7274 = vmatpush1.msra.mxu0 0.0
        %7275 = vmatprep.subr.mxu0 0.0
        %7276 = vmatpush1.msra.mxu0 0.0
        %7277 = vmatprep.subr.mxu0 0.0
        %7278 = vmatpush1.msra.mxu0 0.0
        %7279 = vmatprep.subr.mxu0 0.0
        %7280 = vmatpush1.msra.mxu0 0.0
        %7281 = vmatprep.subr.mxu0 0.0
        %7282 = vmatpush1.msra.mxu0 0.0
        %7283 = vmatprep.subr.mxu0 0.0
        %7284 = vmatpush1.msra.mxu0 0.0
        %7285 = vmatprep.subr.mxu0 0.0
        %7286 = vmatpush1.msra.mxu0 0.0
        %7287 = vmatprep.subr.mxu0 0.0
        %7288 = vmatpush1.msra.mxu0 0.0
        %7289 = vmatprep.subr.mxu0 0.0
        %7290 = vmatpush1.msra.mxu0 0.0
        %7291 = vmatprep.subr.mxu0 0.0
        %7292 = vmatpush1.msra.mxu0 0.0
        %7293 = vmatprep.subr.mxu0 0.0
        %7294 = vmatpush1.msra.mxu0 0.0
        %7295 = vmatprep.subr.mxu0 0.0
        %7296 = vmatpush1.msra.mxu0 0.0
        %7297 = vmatprep.subr.mxu0 0.0
        %7298 = vmatpush1.msra.mxu0 %v6752
        %7299 = vmatprep.subr.mxu0 0.0
        %7300 = vmatpush1.msra.mxu0 %v6751
        %7301 = vmatprep.subr.mxu0 0.0
        %7302 = vmatpush1.msra.mxu0 %v6750
        %7303 = vmatprep.subr.mxu0 0.0
        %7304 = vmatpush1.msra.mxu0 %v6749
        %7305 = vmatprep.subr.mxu0 0.0
        %7306 = vmatpush2.msra.mxu0 0.0
        %7307 = vmatprep.subr.mxu0 0.0
        %7308 = vmatpush2.msra.mxu0 0.0
        %7309 = vmatprep.subr.mxu0 0.0
        %7310 = vmatpush2.msra.mxu0 0.0
        %7311 = vmatprep.subr.mxu0 0.0
        %7312 = vmatpush2.msra.mxu0 0.0
        %7313 = vmatprep.subr.mxu0 0.0
        %7314 = vmatpush2.msra.mxu0 0.0
        %7315 = vmatprep.subr.mxu0 0.0
        %7316 = vmatpush2.msra.mxu0 0.0
        %7317 = vmatprep.subr.mxu0 0.0
        %7318 = vmatpush2.msra.mxu0 0.0
        %7319 = vmatprep.subr.mxu0 0.0
        %7320 = vmatpush2.msra.mxu0 0.0
        %7321 = vmatprep.subr.mxu0 0.0
        %7322 = vmatpush2.msra.mxu0 0.0
        %7323 = vmatprep.subr.mxu0 0.0
        %7324 = vmatpush2.msra.mxu0 0.0
        %7325 = vmatprep.subr.mxu0 0.0
        %7326 = vmatpush2.msra.mxu0 0.0
        %7327 = vmatprep.subr.mxu0 0.0
        %7328 = vmatpush2.msra.mxu0 0.0
        %7329 = vmatprep.subr.mxu0 0.0
        %7330 = vmatpush2.msra.mxu0 0.0
        %7331 = vmatprep.subr.mxu0 0.0
        %7332 = vmatpush2.msra.mxu0 0.0
        %7333 = vmatprep.subr.mxu0 0.0
        %7334 = vmatpush2.msra.mxu0 0.0
        %7335 = vmatprep.subr.mxu0 0.0
        %7336 = vmatpush2.msra.mxu0 0.0
        %7337 = vmatprep.mubr.f32.mxu0 0.0
        %7338 = vmatmul.mubr.f32.gmra.mxu0 %v6865
        %v7339 = vpop.f32.mrf.mxu0
        %v7340 = vadd.f32 0.0, %v7339
        %v7341 = vpop.f32.mrf.mxu0
        %7342 = vmatprep.mubr.f32.mxu0 0.0
        %7343 = vmatmul.mubr.f32.gmra.mxu0 %v6868
        %v7344 = vpop.f32.mrf.mxu0
        %v7345 = vadd.f32 0.0, %v7344
        %v7346 = vpop.f32.mrf.mxu0
        %7347 = vmatprep.mubr.f32.mxu0 0.0
        %7348 = vmatmul.mubr.f32.gmra.mxu0 %v6871
        %v7349 = vpop.f32.mrf.mxu0
        %v7350 = vadd.f32 0.0, %v7349
        %v7351 = vpop.f32.mrf.mxu0
        %7352 = vdwg.mxu0
        %7353 = vmatprep.subr.mxu0 0.0
        %7354 = vmatpush1.msra.mxu0 0.0
        %7355 = vmatprep.subr.mxu0 0.0
        %7356 = vmatpush1.msra.mxu0 0.0
        %7357 = vmatprep.subr.mxu0 0.0
        %7358 = vmatpush1.msra.mxu0 0.0
        %7359 = vmatprep.subr.mxu0 0.0
        %7360 = vmatpush1.msra.mxu0 0.0
        %7361 = vmatprep.subr.mxu0 0.0
        %7362 = vmatpush1.msra.mxu0 0.0
        %7363 = vmatprep.subr.mxu0 0.0
        %7364 = vmatpush1.msra.mxu0 0.0
        %7365 = vmatprep.subr.mxu0 0.0
        %7366 = vmatpush1.msra.mxu0 0.0
        %7367 = vmatprep.subr.mxu0 0.0
        %7368 = vmatpush1.msra.mxu0 0.0
        %7369 = vmatprep.subr.mxu0 0.0
        %7370 = vmatpush1.msra.mxu0 0.0
        %7371 = vmatprep.subr.mxu0 0.0
        %7372 = vmatpush1.msra.mxu0 0.0
        %7373 = vmatprep.subr.mxu0 0.0
        %7374 = vmatpush1.msra.mxu0 0.0
        %7375 = vmatprep.subr.mxu0 0.0
        %7376 = vmatpush1.msra.mxu0 0.0
        %7377 = vmatprep.subr.mxu0 0.0
        %7378 = vmatpush1.msra.mxu0 %v6756
        %7379 = vmatprep.subr.mxu0 0.0
        %7380 = vmatpush1.msra.mxu0 %v6755
        %7381 = vmatprep.subr.mxu0 0.0
        %7382 = vmatpush1.msra.mxu0 %v6754
        %7383 = vmatprep.subr.mxu0 0.0
        %7384 = vmatpush1.msra.mxu0 %v6753
        %7385 = vmatprep.subr.mxu0 0.0
        %7386 = vmatpush2.msra.mxu0 0.0
        %7387 = vmatprep.subr.mxu0 0.0
        %7388 = vmatpush2.msra.mxu0 0.0
        %7389 = vmatprep.subr.mxu0 0.0
        %7390 = vmatpush2.msra.mxu0 0.0
        %7391 = vmatprep.subr.mxu0 0.0
        %7392 = vmatpush2.msra.mxu0 0.0
        %7393 = vmatprep.subr.mxu0 0.0
        %7394 = vmatpush2.msra.mxu0 0.0
        %7395 = vmatprep.subr.mxu0 0.0
        %7396 = vmatpush2.msra.mxu0 0.0
        %7397 = vmatprep.subr.mxu0 0.0
        %7398 = vmatpush2.msra.mxu0 0.0
        %7399 = vmatprep.subr.mxu0 0.0
        %7400 = vmatpush2.msra.mxu0 0.0
        %7401 = vmatprep.subr.mxu0 0.0
        %7402 = vmatpush2.msra.mxu0 0.0
        %7403 = vmatprep.subr.mxu0 0.0
        %7404 = vmatpush2.msra.mxu0 0.0
        %7405 = vmatprep.subr.mxu0 0.0
        %7406 = vmatpush2.msra.mxu0 0.0
        %7407 = vmatprep.subr.mxu0 0.0
        %7408 = vmatpush2.msra.mxu0 0.0
        %7409 = vmatprep.subr.mxu0 0.0
        %7410 = vmatpush2.msra.mxu0 0.0
        %7411 = vmatprep.subr.mxu0 0.0
        %7412 = vmatpush2.msra.mxu0 0.0
        %7413 = vmatprep.subr.mxu0 0.0
        %7414 = vmatpush2.msra.mxu0 0.0
        %7415 = vmatprep.subr.mxu0 0.0
        %7416 = vmatpush2.msra.mxu0 0.0
        %7417 = vmatprep.mubr.f32.mxu0 0.0
        %7418 = vmatmul.mubr.f32.gmra.mxu0 %v6865
        %v7419 = vpop.f32.mrf.mxu0
        %v7420 = vadd.f32 0.0, %v7419
        %v7421 = vpop.f32.mrf.mxu0
        %7422 = vmatprep.mubr.f32.mxu0 0.0
        %7423 = vmatmul.mubr.f32.gmra.mxu0 %v6868
        %v7424 = vpop.f32.mrf.mxu0
        %v7425 = vadd.f32 0.0, %v7424
        %v7426 = vpop.f32.mrf.mxu0
        %7427 = vmatprep.mubr.f32.mxu0 0.0
        %7428 = vmatmul.mubr.f32.gmra.mxu0 %v6871
        %v7429 = vpop.f32.mrf.mxu0
        %v7430 = vadd.f32 0.0, %v7429
        %v7431 = vpop.f32.mrf.mxu0
        %7432 = vdwg.mxu0
        %7433 = vmatprep.subr.mxu0 0.0
        %7434 = vmatpush1.msra.mxu0 0.0
        %7435 = vmatprep.subr.mxu0 0.0
        %7436 = vmatpush1.msra.mxu0 0.0
        %7437 = vmatprep.subr.mxu0 0.0
        %7438 = vmatpush1.msra.mxu0 0.0
        %7439 = vmatprep.subr.mxu0 0.0
        %7440 = vmatpush1.msra.mxu0 0.0
        %7441 = vmatprep.subr.mxu0 0.0
        %7442 = vmatpush1.msra.mxu0 0.0
        %7443 = vmatprep.subr.mxu0 0.0
        %7444 = vmatpush1.msra.mxu0 0.0
        %7445 = vmatprep.subr.mxu0 0.0
        %7446 = vmatpush1.msra.mxu0 0.0
        %7447 = vmatprep.subr.mxu0 0.0
        %7448 = vmatpush1.msra.mxu0 0.0
        %7449 = vmatprep.subr.mxu0 0.0
        %7450 = vmatpush1.msra.mxu0 0.0
        %7451 = vmatprep.subr.mxu0 0.0
        %7452 = vmatpush1.msra.mxu0 0.0
        %7453 = vmatprep.subr.mxu0 0.0
        %7454 = vmatpush1.msra.mxu0 0.0
        %7455 = vmatprep.subr.mxu0 0.0
        %7456 = vmatpush1.msra.mxu0 0.0
        %7457 = vmatprep.subr.mxu0 0.0
        %7458 = vmatpush1.msra.mxu0 %v6760
        %7459 = vmatprep.subr.mxu0 0.0
        %7460 = vmatpush1.msra.mxu0 %v6759
        %7461 = vmatprep.subr.mxu0 0.0
        %7462 = vmatpush1.msra.mxu0 %v6758
        %7463 = vmatprep.subr.mxu0 0.0
        %7464 = vmatpush1.msra.mxu0 %v6757
        %7465 = vmatprep.subr.mxu0 0.0
        %7466 = vmatpush2.msra.mxu0 0.0
        %7467 = vmatprep.subr.mxu0 0.0
        %7468 = vmatpush2.msra.mxu0 0.0
        %7469 = vmatprep.subr.mxu0 0.0
        %7470 = vmatpush2.msra.mxu0 0.0
        %7471 = vmatprep.subr.mxu0 0.0
        %7472 = vmatpush2.msra.mxu0 0.0
        %7473 = vmatprep.subr.mxu0 0.0
        %7474 = vmatpush2.msra.mxu0 0.0
        %7475 = vmatprep.subr.mxu0 0.0
        %7476 = vmatpush2.msra.mxu0 0.0
        %7477 = vmatprep.subr.mxu0 0.0
        %7478 = vmatpush2.msra.mxu0 0.0
        %7479 = vmatprep.subr.mxu0 0.0
        %7480 = vmatpush2.msra.mxu0 0.0
        %7481 = vmatprep.subr.mxu0 0.0
        %7482 = vmatpush2.msra.mxu0 0.0
        %7483 = vmatprep.subr.mxu0 0.0
        %7484 = vmatpush2.msra.mxu0 0.0
        %7485 = vmatprep.subr.mxu0 0.0
        %7486 = vmatpush2.msra.mxu0 0.0
        %7487 = vmatprep.subr.mxu0 0.0
        %7488 = vmatpush2.msra.mxu0 0.0
        %7489 = vmatprep.subr.mxu0 0.0
        %7490 = vmatpush2.msra.mxu0 0.0
        %7491 = vmatprep.subr.mxu0 0.0
        %7492 = vmatpush2.msra.mxu0 0.0
        %7493 = vmatprep.subr.mxu0 0.0
        %7494 = vmatpush2.msra.mxu0 0.0
        %7495 = vmatprep.subr.mxu0 0.0
        %7496 = vmatpush2.msra.mxu0 0.0
        %7497 = vmatprep.mubr.f32.mxu0 0.0
        %7498 = vmatmul.mubr.f32.gmra.mxu0 %v6865
        %v7499 = vpop.f32.mrf.mxu0
        %v7500 = vadd.f32 0.0, %v7499
        %v7501 = vpop.f32.mrf.mxu0
        %7502 = vmatprep.mubr.f32.mxu0 0.0
        %7503 = vmatmul.mubr.f32.gmra.mxu0 %v6868
        %v7504 = vpop.f32.mrf.mxu0
        %v7505 = vadd.f32 0.0, %v7504
        %v7506 = vpop.f32.mrf.mxu0
        %7507 = vmatprep.mubr.f32.mxu0 0.0
        %7508 = vmatmul.mubr.f32.gmra.mxu0 %v6871
        %v7509 = vpop.f32.mrf.mxu0
        %v7510 = vadd.f32 0.0, %v7509
        %v7511 = vpop.f32.mrf.mxu0
        %7512 = vdwg.mxu0
        %7513 = vmatprep.subr.mxu0 0.0
        %7514 = vmatpush1.msra.mxu0 0.0
        %7515 = vmatprep.subr.mxu0 0.0
        %7516 = vmatpush1.msra.mxu0 0.0
        %7517 = vmatprep.subr.mxu0 0.0
        %7518 = vmatpush1.msra.mxu0 0.0
        %7519 = vmatprep.subr.mxu0 0.0
        %7520 = vmatpush1.msra.mxu0 0.0
        %7521 = vmatprep.subr.mxu0 0.0
        %7522 = vmatpush1.msra.mxu0 0.0
        %7523 = vmatprep.subr.mxu0 0.0
        %7524 = vmatpush1.msra.mxu0 0.0
        %7525 = vmatprep.subr.mxu0 0.0
        %7526 = vmatpush1.msra.mxu0 0.0
        %7527 = vmatprep.subr.mxu0 0.0
        %7528 = vmatpush1.msra.mxu0 0.0
        %7529 = vmatprep.subr.mxu0 0.0
        %7530 = vmatpush1.msra.mxu0 0.0
        %7531 = vmatprep.subr.mxu0 0.0
        %7532 = vmatpush1.msra.mxu0 0.0
        %7533 = vmatprep.subr.mxu0 0.0
        %7534 = vmatpush1.msra.mxu0 0.0
        %7535 = vmatprep.subr.mxu0 0.0
        %7536 = vmatpush1.msra.mxu0 0.0
        %7537 = vmatprep.subr.mxu0 0.0
        %7538 = vmatpush1.msra.mxu0 %v6764
        %7539 = vmatprep.subr.mxu0 0.0
        %7540 = vmatpush1.msra.mxu0 %v6763
        %7541 = vmatprep.subr.mxu0 0.0
        %7542 = vmatpush1.msra.mxu0 %v6762
        %7543 = vmatprep.subr.mxu0 0.0
        %7544 = vmatpush1.msra.mxu0 %v6761
        %7545 = vmatprep.subr.mxu0 0.0
        %7546 = vmatpush2.msra.mxu0 0.0
        %7547 = vmatprep.subr.mxu0 0.0
        %7548 = vmatpush2.msra.mxu0 0.0
        %7549 = vmatprep.subr.mxu0 0.0
        %7550 = vmatpush2.msra.mxu0 0.0
        %7551 = vmatprep.subr.mxu0 0.0
        %7552 = vmatpush2.msra.mxu0 0.0
        %7553 = vmatprep.subr.mxu0 0.0
        %7554 = vmatpush2.msra.mxu0 0.0
        %7555 = vmatprep.subr.mxu0 0.0
        %7556 = vmatpush2.msra.mxu0 0.0
        %7557 = vmatprep.subr.mxu0 0.0
        %7558 = vmatpush2.msra.mxu0 0.0
        %7559 = vmatprep.subr.mxu0 0.0
        %7560 = vmatpush2.msra.mxu0 0.0
        %7561 = vmatprep.subr.mxu0 0.0
        %7562 = vmatpush2.msra.mxu0 0.0
        %7563 = vmatprep.subr.mxu0 0.0
        %7564 = vmatpush2.msra.mxu0 0.0
        %7565 = vmatprep.subr.mxu0 0.0
        %7566 = vmatpush2.msra.mxu0 0.0
        %7567 = vmatprep.subr.mxu0 0.0
        %7568 = vmatpush2.msra.mxu0 0.0
        %7569 = vmatprep.subr.mxu0 0.0
        %7570 = vmatpush2.msra.mxu0 0.0
        %7571 = vmatprep.subr.mxu0 0.0
        %7572 = vmatpush2.msra.mxu0 0.0
        %7573 = vmatprep.subr.mxu0 0.0
        %7574 = vmatpush2.msra.mxu0 0.0
        %7575 = vmatprep.subr.mxu0 0.0
        %7576 = vmatpush2.msra.mxu0 0.0
        %7577 = vmatprep.mubr.f32.mxu0 0.0
        %7578 = vmatmul.mubr.f32.gmra.mxu0 %v6865
        %v7579 = vpop.f32.mrf.mxu0
        %v7580 = vadd.f32 0.0, %v7579
        %v7581 = vpop.f32.mrf.mxu0
        %7582 = vmatprep.mubr.f32.mxu0 0.0
        %7583 = vmatmul.mubr.f32.gmra.mxu0 %v6868
        %v7584 = vpop.f32.mrf.mxu0
        %v7585 = vadd.f32 0.0, %v7584
        %v7586 = vpop.f32.mrf.mxu0
        %7587 = vmatprep.mubr.f32.mxu0 0.0
        %7588 = vmatmul.mubr.f32.gmra.mxu0 %v6871
        %v7589 = vpop.f32.mrf.mxu0
        %v7590 = vadd.f32 0.0, %v7589
        %v7591 = vpop.f32.mrf.mxu0
        %7592 = vdwg.mxu0
        %7593 = vmatprep.subr.mxu0 0.0
        %7594 = vmatpush1.msra.mxu0 0.0
        %7595 = vmatprep.subr.mxu0 0.0
        %7596 = vmatpush1.msra.mxu0 0.0
        %7597 = vmatprep.subr.mxu0 0.0
        %7598 = vmatpush1.msra.mxu0 0.0
        %7599 = vmatprep.subr.mxu0 0.0
        %7600 = vmatpush1.msra.mxu0 0.0
        %7601 = vmatprep.subr.mxu0 0.0
        %7602 = vmatpush1.msra.mxu0 0.0
        %7603 = vmatprep.subr.mxu0 0.0
        %7604 = vmatpush1.msra.mxu0 0.0
        %7605 = vmatprep.subr.mxu0 0.0
        %7606 = vmatpush1.msra.mxu0 0.0
        %7607 = vmatprep.subr.mxu0 0.0
        %7608 = vmatpush1.msra.mxu0 0.0
        %7609 = vmatprep.subr.mxu0 0.0
        %7610 = vmatpush1.msra.mxu0 0.0
        %7611 = vmatprep.subr.mxu0 0.0
        %7612 = vmatpush1.msra.mxu0 0.0
        %7613 = vmatprep.subr.mxu0 0.0
        %7614 = vmatpush1.msra.mxu0 0.0
        %7615 = vmatprep.subr.mxu0 0.0
        %7616 = vmatpush1.msra.mxu0 0.0
        %7617 = vmatprep.subr.mxu0 0.0
        %7618 = vmatpush1.msra.mxu0 %v6768
        %7619 = vmatprep.subr.mxu0 0.0
        %7620 = vmatpush1.msra.mxu0 %v6767
        %7621 = vmatprep.subr.mxu0 0.0
        %7622 = vmatpush1.msra.mxu0 %v6766
        %7623 = vmatprep.subr.mxu0 0.0
        %7624 = vmatpush1.msra.mxu0 %v6765
        %7625 = vmatprep.subr.mxu0 0.0
        %7626 = vmatpush2.msra.mxu0 0.0
        %7627 = vmatprep.subr.mxu0 0.0
        %7628 = vmatpush2.msra.mxu0 0.0
        %7629 = vmatprep.subr.mxu0 0.0
        %7630 = vmatpush2.msra.mxu0 0.0
        %7631 = vmatprep.subr.mxu0 0.0
        %7632 = vmatpush2.msra.mxu0 0.0
        %7633 = vmatprep.subr.mxu0 0.0
        %7634 = vmatpush2.msra.mxu0 0.0
        %7635 = vmatprep.subr.mxu0 0.0
        %7636 = vmatpush2.msra.mxu0 0.0
        %7637 = vmatprep.subr.mxu0 0.0
        %7638 = vmatpush2.msra.mxu0 0.0
        %7639 = vmatprep.subr.mxu0 0.0
        %7640 = vmatpush2.msra.mxu0 0.0
        %7641 = vmatprep.subr.mxu0 0.0
        %7642 = vmatpush2.msra.mxu0 0.0
        %7643 = vmatprep.subr.mxu0 0.0
        %7644 = vmatpush2.msra.mxu0 0.0
        %7645 = vmatprep.subr.mxu0 0.0
        %7646 = vmatpush2.msra.mxu0 0.0
        %7647 = vmatprep.subr.mxu0 0.0
        %7648 = vmatpush2.msra.mxu0 0.0
        %7649 = vmatprep.subr.mxu0 0.0
        %7650 = vmatpush2.msra.mxu0 0.0
        %7651 = vmatprep.subr.mxu0 0.0
        %7652 = vmatpush2.msra.mxu0 0.0
        %7653 = vmatprep.subr.mxu0 0.0
        %7654 = vmatpush2.msra.mxu0 0.0
        %7655 = vmatprep.subr.mxu0 0.0
        %7656 = vmatpush2.msra.mxu0 0.0
        %7657 = vmatprep.mubr.f32.mxu0 0.0
        %7658 = vmatmul.mubr.f32.gmra.mxu0 %v6865
        %v7659 = vpop.f32.mrf.mxu0
        %v7660 = vadd.f32 0.0, %v7659
        %v7661 = vpop.f32.mrf.mxu0
        %7662 = vmatprep.mubr.f32.mxu0 0.0
        %7663 = vmatmul.mubr.f32.gmra.mxu0 %v6868
        %v7664 = vpop.f32.mrf.mxu0
        %v7665 = vadd.f32 0.0, %v7664
        %v7666 = vpop.f32.mrf.mxu0
        %7667 = vmatprep.mubr.f32.mxu0 0.0
        %7668 = vmatmul.mubr.f32.gmra.mxu0 %v6871
        %v7669 = vpop.f32.mrf.mxu0
        %v7670 = vadd.f32 0.0, %v7669
        %v7671 = vpop.f32.mrf.mxu0
        %7672 = vdwg.mxu0
        %7673 = vmatprep.subr.mxu0 0.0
        %7674 = vmatpush1.msra.mxu0 0.0
        %7675 = vmatprep.subr.mxu0 0.0
        %7676 = vmatpush1.msra.mxu0 0.0
        %7677 = vmatprep.subr.mxu0 0.0
        %7678 = vmatpush1.msra.mxu0 0.0
        %7679 = vmatprep.subr.mxu0 0.0
        %7680 = vmatpush1.msra.mxu0 0.0
        %7681 = vmatprep.subr.mxu0 0.0
        %7682 = vmatpush1.msra.mxu0 0.0
        %7683 = vmatprep.subr.mxu0 0.0
        %7684 = vmatpush1.msra.mxu0 0.0
        %7685 = vmatprep.subr.mxu0 0.0
        %7686 = vmatpush1.msra.mxu0 0.0
        %7687 = vmatprep.subr.mxu0 0.0
        %7688 = vmatpush1.msra.mxu0 0.0
        %7689 = vmatprep.subr.mxu0 0.0
        %7690 = vmatpush1.msra.mxu0 0.0
        %7691 = vmatprep.subr.mxu0 0.0
        %7692 = vmatpush1.msra.mxu0 0.0
        %7693 = vmatprep.subr.mxu0 0.0
        %7694 = vmatpush1.msra.mxu0 0.0
        %7695 = vmatprep.subr.mxu0 0.0
        %7696 = vmatpush1.msra.mxu0 0.0
        %7697 = vmatprep.subr.mxu0 0.0
        %7698 = vmatpush1.msra.mxu0 %v6772
        %7699 = vmatprep.subr.mxu0 0.0
        %7700 = vmatpush1.msra.mxu0 %v6771
        %7701 = vmatprep.subr.mxu0 0.0
        %7702 = vmatpush1.msra.mxu0 %v6770
        %7703 = vmatprep.subr.mxu0 0.0
        %7704 = vmatpush1.msra.mxu0 %v6769
        %7705 = vmatprep.subr.mxu0 0.0
        %7706 = vmatpush2.msra.mxu0 0.0
        %7707 = vmatprep.subr.mxu0 0.0
        %7708 = vmatpush2.msra.mxu0 0.0
        %7709 = vmatprep.subr.mxu0 0.0
        %7710 = vmatpush2.msra.mxu0 0.0
        %7711 = vmatprep.subr.mxu0 0.0
        %7712 = vmatpush2.msra.mxu0 0.0
        %7713 = vmatprep.subr.mxu0 0.0
        %7714 = vmatpush2.msra.mxu0 0.0
        %7715 = vmatprep.subr.mxu0 0.0
        %7716 = vmatpush2.msra.mxu0 0.0
        %7717 = vmatprep.subr.mxu0 0.0
        %7718 = vmatpush2.msra.mxu0 0.0
        %7719 = vmatprep.subr.mxu0 0.0
        %7720 = vmatpush2.msra.mxu0 0.0
        %7721 = vmatprep.subr.mxu0 0.0
        %7722 = vmatpush2.msra.mxu0 0.0
        %7723 = vmatprep.subr.mxu0 0.0
        %7724 = vmatpush2.msra.mxu0 0.0
        %7725 = vmatprep.subr.mxu0 0.0
        %7726 = vmatpush2.msra.mxu0 0.0
        %7727 = vmatprep.subr.mxu0 0.0
        %7728 = vmatpush2.msra.mxu0 0.0
        %7729 = vmatprep.subr.mxu0 0.0
        %7730 = vmatpush2.msra.mxu0 0.0
        %7731 = vmatprep.subr.mxu0 0.0
        %7732 = vmatpush2.msra.mxu0 0.0
        %7733 = vmatprep.subr.mxu0 0.0
        %7734 = vmatpush2.msra.mxu0 0.0
        %7735 = vmatprep.subr.mxu0 0.0
        %7736 = vmatpush2.msra.mxu0 0.0
        %7737 = vmatprep.mubr.f32.mxu0 0.0
        %7738 = vmatmul.mubr.f32.gmra.mxu0 %v6865
        %v7739 = vpop.f32.mrf.mxu0
        %v7740 = vadd.f32 0.0, %v7739
        %v7741 = vpop.f32.mrf.mxu0
        %7742 = vmatprep.mubr.f32.mxu0 0.0
        %7743 = vmatmul.mubr.f32.gmra.mxu0 %v6868
        %v7744 = vpop.f32.mrf.mxu0
        %v7745 = vadd.f32 0.0, %v7744
        %v7746 = vpop.f32.mrf.mxu0
        %7747 = vmatprep.mubr.f32.mxu0 0.0
        %7748 = vmatmul.mubr.f32.gmra.mxu0 %v6871
        %v7749 = vpop.f32.mrf.mxu0
        %v7750 = vadd.f32 0.0, %v7749
        %v7751 = vpop.f32.mrf.mxu0
        %7752 = vdwg.mxu0
        %7753 = vmatprep.subr.mxu0 0.0
        %7754 = vmatpush1.msra.mxu0 0.0
        %7755 = vmatprep.subr.mxu0 0.0
        %7756 = vmatpush1.msra.mxu0 0.0
        %7757 = vmatprep.subr.mxu0 0.0
        %7758 = vmatpush1.msra.mxu0 0.0
        %7759 = vmatprep.subr.mxu0 0.0
        %7760 = vmatpush1.msra.mxu0 0.0
        %7761 = vmatprep.subr.mxu0 0.0
        %7762 = vmatpush1.msra.mxu0 0.0
        %7763 = vmatprep.subr.mxu0 0.0
        %7764 = vmatpush1.msra.mxu0 0.0
        %7765 = vmatprep.subr.mxu0 0.0
        %7766 = vmatpush1.msra.mxu0 0.0
        %7767 = vmatprep.subr.mxu0 0.0
        %7768 = vmatpush1.msra.mxu0 0.0
        %7769 = vmatprep.subr.mxu0 0.0
        %7770 = vmatpush1.msra.mxu0 0.0
        %7771 = vmatprep.subr.mxu0 0.0
        %7772 = vmatpush1.msra.mxu0 0.0
        %7773 = vmatprep.subr.mxu0 0.0
        %7774 = vmatpush1.msra.mxu0 0.0
        %7775 = vmatprep.subr.mxu0 0.0
        %7776 = vmatpush1.msra.mxu0 0.0
        %7777 = vmatprep.subr.mxu0 0.0
        %7778 = vmatpush1.msra.mxu0 %v6776
        %7779 = vmatprep.subr.mxu0 0.0
        %7780 = vmatpush1.msra.mxu0 %v6775
        %7781 = vmatprep.subr.mxu0 0.0
        %7782 = vmatpush1.msra.mxu0 %v6774
        %7783 = vmatprep.subr.mxu0 0.0
        %7784 = vmatpush1.msra.mxu0 %v6773
        %7785 = vmatprep.subr.mxu0 0.0
        %7786 = vmatpush2.msra.mxu0 0.0
        %7787 = vmatprep.subr.mxu0 0.0
        %7788 = vmatpush2.msra.mxu0 0.0
        %7789 = vmatprep.subr.mxu0 0.0
        %7790 = vmatpush2.msra.mxu0 0.0
        %7791 = vmatprep.subr.mxu0 0.0
        %7792 = vmatpush2.msra.mxu0 0.0
        %7793 = vmatprep.subr.mxu0 0.0
        %7794 = vmatpush2.msra.mxu0 0.0
        %7795 = vmatprep.subr.mxu0 0.0
        %7796 = vmatpush2.msra.mxu0 0.0
        %7797 = vmatprep.subr.mxu0 0.0
        %7798 = vmatpush2.msra.mxu0 0.0
        %7799 = vmatprep.subr.mxu0 0.0
        %7800 = vmatpush2.msra.mxu0 0.0
        %7801 = vmatprep.subr.mxu0 0.0
        %7802 = vmatpush2.msra.mxu0 0.0
        %7803 = vmatprep.subr.mxu0 0.0
        %7804 = vmatpush2.msra.mxu0 0.0
        %7805 = vmatprep.subr.mxu0 0.0
        %7806 = vmatpush2.msra.mxu0 0.0
        %7807 = vmatprep.subr.mxu0 0.0
        %7808 = vmatpush2.msra.mxu0 0.0
        %7809 = vmatprep.subr.mxu0 0.0
        %7810 = vmatpush2.msra.mxu0 0.0
        %7811 = vmatprep.subr.mxu0 0.0
        %7812 = vmatpush2.msra.mxu0 0.0
        %7813 = vmatprep.subr.mxu0 0.0
        %7814 = vmatpush2.msra.mxu0 0.0
        %7815 = vmatprep.subr.mxu0 0.0
        %7816 = vmatpush2.msra.mxu0 0.0
        %7817 = vmatprep.mubr.f32.mxu0 0.0
        %7818 = vmatmul.mubr.f32.gmra.mxu0 %v6865
        %v7819 = vpop.f32.mrf.mxu0
        %v7820 = vadd.f32 0.0, %v7819
        %v7821 = vpop.f32.mrf.mxu0
        %7822 = vmatprep.mubr.f32.mxu0 0.0
        %7823 = vmatmul.mubr.f32.gmra.mxu0 %v6868
        %v7824 = vpop.f32.mrf.mxu0
        %v7825 = vadd.f32 0.0, %v7824
        %v7826 = vpop.f32.mrf.mxu0
        %7827 = vmatprep.mubr.f32.mxu0 0.0
        %7828 = vmatmul.mubr.f32.gmra.mxu0 %v6871
        %v7829 = vpop.f32.mrf.mxu0
        %v7830 = vadd.f32 0.0, %v7829
        %v7831 = vpop.f32.mrf.mxu0
        %7832 = vdwg.mxu0
        %v7834 = vsel %vm2718, %v6940, 0
        %v7837 = vsel %vm2718, %v6945, 0
        %v7840 = vsel %vm2718, %v6950, 0
        %v7843 = vsel %vm2718, %v7260, 0
        %v7846 = vsel %vm2718, %v7265, 0
        %v7849 = vsel %vm2718, %v7270, 0
        %7851 = vmatprep.subr.mxu0 0.0
        %7852 = vmatpush1.xpose.msra.mxu0 0.0
        %7853 = vmatprep.subr.mxu0 0.0
        %7854 = vmatpush1.xpose.msra.mxu0 0.0
        %7855 = vmatprep.subr.mxu0 0.0
        %7856 = vmatpush1.xpose.msra.mxu0 0.0
        %7857 = vmatprep.subr.mxu0 0.0
        %7858 = vmatpush1.xpose.msra.mxu0 0.0
        %7859 = vmatprep.subr.mxu0 0.0
        %7860 = vmatpush1.xpose.msra.mxu0 0.0
        %7861 = vmatprep.subr.mxu0 0.0
        %7862 = vmatpush1.xpose.msra.mxu0 0.0
        %7863 = vmatprep.subr.mxu0 0.0
        %7864 = vmatpush1.xpose.msra.mxu0 0.0
        %7865 = vmatprep.subr.mxu0 0.0
        %7866 = vmatpush1.xpose.msra.mxu0 0.0
        %7867 = vmatprep.subr.mxu0 0.0
        %7868 = vmatpush1.xpose.msra.mxu0 0.0
        %7869 = vmatprep.subr.mxu0 0.0
        %7870 = vmatpush1.xpose.msra.mxu0 0.0
        %7871 = vmatprep.subr.mxu0 0.0
        %7872 = vmatpush1.xpose.msra.mxu0 0.0
        %7873 = vmatprep.subr.mxu0 0.0
        %7874 = vmatpush1.xpose.msra.mxu0 0.0
        %7875 = vmatprep.subr.mxu0 0.0
        %7876 = vmatpush1.xpose.msra.mxu0 0.0
        %7877 = vmatprep.subr.mxu0 0.0
        %7878 = vmatpush1.xpose.msra.mxu0 %v7849
        %7879 = vmatprep.subr.mxu0 0.0
        %7880 = vmatpush1.xpose.msra.mxu0 %v7846
        %7881 = vmatprep.subr.mxu0 0.0
        %7882 = vmatpush1.xpose.msra.mxu0 %v7843
        %7883 = vmatprep.subr.mxu0 0.0
        %7884 = vmatpush2.xpose.msra.mxu0 0.0
        %7885 = vmatprep.subr.mxu0 0.0
        %7886 = vmatpush2.xpose.msra.mxu0 0.0
        %7887 = vmatprep.subr.mxu0 0.0
        %7888 = vmatpush2.xpose.msra.mxu0 0.0
        %7889 = vmatprep.subr.mxu0 0.0
        %7890 = vmatpush2.xpose.msra.mxu0 0.0
        %7891 = vmatprep.subr.mxu0 0.0
        %7892 = vmatpush2.xpose.msra.mxu0 0.0
        %7893 = vmatprep.subr.mxu0 0.0
        %7894 = vmatpush2.xpose.msra.mxu0 0.0
        %7895 = vmatprep.subr.mxu0 0.0
        %7896 = vmatpush2.xpose.msra.mxu0 0.0
        %7897 = vmatprep.subr.mxu0 0.0
        %7898 = vmatpush2.xpose.msra.mxu0 0.0
        %7899 = vmatprep.subr.mxu0 0.0
        %7900 = vmatpush2.xpose.msra.mxu0 0.0
        %7901 = vmatprep.subr.mxu0 0.0
        %7902 = vmatpush2.xpose.msra.mxu0 0.0
        %7903 = vmatprep.subr.mxu0 0.0
        %7904 = vmatpush2.xpose.msra.mxu0 0.0
        %7905 = vmatprep.subr.mxu0 0.0
        %7906 = vmatpush2.xpose.msra.mxu0 0.0
        %7907 = vmatprep.subr.mxu0 0.0
        %7908 = vmatpush2.xpose.msra.mxu0 0.0
        %7909 = vmatprep.subr.mxu0 0.0
        %7910 = vmatpush2.xpose.msra.mxu0 0.0
        %7911 = vmatprep.subr.mxu0 0.0
        %7912 = vmatpush2.xpose.msra.mxu0 0.0
        %7913 = vmatprep.subr.mxu0 0.0
        %7914 = vmatpush2.xpose.msra.mxu0 0.0
        %7915 = vmatprep.mubr.f32.mxu0 0.0
        %7916 = vmatmul.mubr.f32.gmra.mxu0 %v7834
        %v7917 = vpop.f32.mrf.mxu0
        %v7918 = vadd.f32 0.0, %v7917
        %v7919 = vpop.f32.mrf.mxu0
        %7920 = vmatprep.mubr.f32.mxu0 0.0
        %7921 = vmatmul.mubr.f32.gmra.mxu0 %v7837
        %v7922 = vpop.f32.mrf.mxu0
        %v7923 = vadd.f32 0.0, %v7922
        %v7924 = vpop.f32.mrf.mxu0
        %7925 = vmatprep.mubr.f32.mxu0 0.0
        %7926 = vmatmul.mubr.f32.gmra.mxu0 %v7840
        %v7927 = vpop.f32.mrf.mxu0
        %v7928 = vadd.f32 0.0, %v7927
        %v7929 = vpop.f32.mrf.mxu0
        %7930 = vdwg.mxu0
        %v7932 = vsel %vm2718, %v7020, 0
        %v7935 = vsel %vm2718, %v7025, 0
        %v7938 = vsel %vm2718, %v7030, 0
        %v7941 = vsel %vm2718, %v7340, 0
        %v7944 = vsel %vm2718, %v7345, 0
        %v7947 = vsel %vm2718, %v7350, 0
        %7949 = vmatprep.subr.mxu0 0.0
        %7950 = vmatpush1.xpose.msra.mxu0 0.0
        %7951 = vmatprep.subr.mxu0 0.0
        %7952 = vmatpush1.xpose.msra.mxu0 0.0
        %7953 = vmatprep.subr.mxu0 0.0
        %7954 = vmatpush1.xpose.msra.mxu0 0.0
        %7955 = vmatprep.subr.mxu0 0.0
        %7956 = vmatpush1.xpose.msra.mxu0 0.0
        %7957 = vmatprep.subr.mxu0 0.0
        %7958 = vmatpush1.xpose.msra.mxu0 0.0
        %7959 = vmatprep.subr.mxu0 0.0
        %7960 = vmatpush1.xpose.msra.mxu0 0.0
        %7961 = vmatprep.subr.mxu0 0.0
        %7962 = vmatpush1.xpose.msra.mxu0 0.0
        %7963 = vmatprep.subr.mxu0 0.0
        %7964 = vmatpush1.xpose.msra.mxu0 0.0
        %7965 = vmatprep.subr.mxu0 0.0
        %7966 = vmatpush1.xpose.msra.mxu0 0.0
        %7967 = vmatprep.subr.mxu0 0.0
        %7968 = vmatpush1.xpose.msra.mxu0 0.0
        %7969 = vmatprep.subr.mxu0 0.0
        %7970 = vmatpush1.xpose.msra.mxu0 0.0
        %7971 = vmatprep.subr.mxu0 0.0
        %7972 = vmatpush1.xpose.msra.mxu0 0.0
        %7973 = vmatprep.subr.mxu0 0.0
        %7974 = vmatpush1.xpose.msra.mxu0 0.0
        %7975 = vmatprep.subr.mxu0 0.0
        %7976 = vmatpush1.xpose.msra.mxu0 %v7947
        %7977 = vmatprep.subr.mxu0 0.0
        %7978 = vmatpush1.xpose.msra.mxu0 %v7944
        %7979 = vmatprep.subr.mxu0 0.0
        %7980 = vmatpush1.xpose.msra.mxu0 %v7941
        %7981 = vmatprep.subr.mxu0 0.0
        %7982 = vmatpush2.xpose.msra.mxu0 0.0
        %7983 = vmatprep.subr.mxu0 0.0
        %7984 = vmatpush2.xpose.msra.mxu0 0.0
        %7985 = vmatprep.subr.mxu0 0.0
        %7986 = vmatpush2.xpose.msra.mxu0 0.0
        %7987 = vmatprep.subr.mxu0 0.0
        %7988 = vmatpush2.xpose.msra.mxu0 0.0
        %7989 = vmatprep.subr.mxu0 0.0
        %7990 = vmatpush2.xpose.msra.mxu0 0.0
        %7991 = vmatprep.subr.mxu0 0.0
        %7992 = vmatpush2.xpose.msra.mxu0 0.0
        %7993 = vmatprep.subr.mxu0 0.0
        %7994 = vmatpush2.xpose.msra.mxu0 0.0
        %7995 = vmatprep.subr.mxu0 0.0
        %7996 = vmatpush2.xpose.msra.mxu0 0.0
        %7997 = vmatprep.subr.mxu0 0.0
        %7998 = vmatpush2.xpose.msra.mxu0 0.0
        %7999 = vmatprep.subr.mxu0 0.0
        %8000 = vmatpush2.xpose.msra.mxu0 0.0
        %8001 = vmatprep.subr.mxu0 0.0
        %8002 = vmatpush2.xpose.msra.mxu0 0.0
        %8003 = vmatprep.subr.mxu0 0.0
        %8004 = vmatpush2.xpose.msra.mxu0 0.0
        %8005 = vmatprep.subr.mxu0 0.0
        %8006 = vmatpush2.xpose.msra.mxu0 0.0
        %8007 = vmatprep.subr.mxu0 0.0
        %8008 = vmatpush2.xpose.msra.mxu0 0.0
        %8009 = vmatprep.subr.mxu0 0.0
        %8010 = vmatpush2.xpose.msra.mxu0 0.0
        %8011 = vmatprep.subr.mxu0 0.0
        %8012 = vmatpush2.xpose.msra.mxu0 0.0
        %8013 = vmatprep.mubr.f32.mxu0 0.0
        %8014 = vmatmul.mubr.f32.gmra.mxu0 %v7932
        %v8015 = vpop.f32.mrf.mxu0
        %v8016 = vadd.f32 0.0, %v8015
        %v8017 = vpop.f32.mrf.mxu0
        %8018 = vmatprep.mubr.f32.mxu0 0.0
        %8019 = vmatmul.mubr.f32.gmra.mxu0 %v7935
        %v8020 = vpop.f32.mrf.mxu0
        %v8021 = vadd.f32 0.0, %v8020
        %v8022 = vpop.f32.mrf.mxu0
        %8023 = vmatprep.mubr.f32.mxu0 0.0
        %8024 = vmatmul.mubr.f32.gmra.mxu0 %v7938
        %v8025 = vpop.f32.mrf.mxu0
        %v8026 = vadd.f32 0.0, %v8025
        %v8027 = vpop.f32.mrf.mxu0
        %8028 = vdwg.mxu0
        %v8030 = vsel %vm2718, %v7100, 0
        %v8033 = vsel %vm2718, %v7105, 0
        %v8036 = vsel %vm2718, %v7110, 0
        %v8039 = vsel %vm2718, %v7420, 0
        %v8042 = vsel %vm2718, %v7425, 0
        %v8045 = vsel %vm2718, %v7430, 0
        %8047 = vmatprep.subr.mxu0 0.0
        %8048 = vmatpush1.xpose.msra.mxu0 0.0
        %8049 = vmatprep.subr.mxu0 0.0
        %8050 = vmatpush1.xpose.msra.mxu0 0.0
        %8051 = vmatprep.subr.mxu0 0.0
        %8052 = vmatpush1.xpose.msra.mxu0 0.0
        %8053 = vmatprep.subr.mxu0 0.0
        %8054 = vmatpush1.xpose.msra.mxu0 0.0
        %8055 = vmatprep.subr.mxu0 0.0
        %8056 = vmatpush1.xpose.msra.mxu0 0.0
        %8057 = vmatprep.subr.mxu0 0.0
        %8058 = vmatpush1.xpose.msra.mxu0 0.0
        %8059 = vmatprep.subr.mxu0 0.0
        %8060 = vmatpush1.xpose.msra.mxu0 0.0
        %8061 = vmatprep.subr.mxu0 0.0
        %8062 = vmatpush1.xpose.msra.mxu0 0.0
        %8063 = vmatprep.subr.mxu0 0.0
        %8064 = vmatpush1.xpose.msra.mxu0 0.0
        %8065 = vmatprep.subr.mxu0 0.0
        %8066 = vmatpush1.xpose.msra.mxu0 0.0
        %8067 = vmatprep.subr.mxu0 0.0
        %8068 = vmatpush1.xpose.msra.mxu0 0.0
        %8069 = vmatprep.subr.mxu0 0.0
        %8070 = vmatpush1.xpose.msra.mxu0 0.0
        %8071 = vmatprep.subr.mxu0 0.0
        %8072 = vmatpush1.xpose.msra.mxu0 0.0
        %8073 = vmatprep.subr.mxu0 0.0
        %8074 = vmatpush1.xpose.msra.mxu0 %v8045
        %8075 = vmatprep.subr.mxu0 0.0
        %8076 = vmatpush1.xpose.msra.mxu0 %v8042
        %8077 = vmatprep.subr.mxu0 0.0
        %8078 = vmatpush1.xpose.msra.mxu0 %v8039
        %8079 = vmatprep.subr.mxu0 0.0
        %8080 = vmatpush2.xpose.msra.mxu0 0.0
        %8081 = vmatprep.subr.mxu0 0.0
        %8082 = vmatpush2.xpose.msra.mxu0 0.0
        %8083 = vmatprep.subr.mxu0 0.0
        %8084 = vmatpush2.xpose.msra.mxu0 0.0
        %8085 = vmatprep.subr.mxu0 0.0
        %8086 = vmatpush2.xpose.msra.mxu0 0.0
        %8087 = vmatprep.subr.mxu0 0.0
        %8088 = vmatpush2.xpose.msra.mxu0 0.0
        %8089 = vmatprep.subr.mxu0 0.0
        %8090 = vmatpush2.xpose.msra.mxu0 0.0
        %8091 = vmatprep.subr.mxu0 0.0
        %8092 = vmatpush2.xpose.msra.mxu0 0.0
        %8093 = vmatprep.subr.mxu0 0.0
        %8094 = vmatpush2.xpose.msra.mxu0 0.0
        %8095 = vmatprep.subr.mxu0 0.0
        %8096 = vmatpush2.xpose.msra.mxu0 0.0
        %8097 = vmatprep.subr.mxu0 0.0
        %8098 = vmatpush2.xpose.msra.mxu0 0.0
        %8099 = vmatprep.subr.mxu0 0.0
        %8100 = vmatpush2.xpose.msra.mxu0 0.0
        %8101 = vmatprep.subr.mxu0 0.0
        %8102 = vmatpush2.xpose.msra.mxu0 0.0
        %8103 = vmatprep.subr.mxu0 0.0
        %8104 = vmatpush2.xpose.msra.mxu0 0.0
        %8105 = vmatprep.subr.mxu0 0.0
        %8106 = vmatpush2.xpose.msra.mxu0 0.0
        %8107 = vmatprep.subr.mxu0 0.0
        %8108 = vmatpush2.xpose.msra.mxu0 0.0
        %8109 = vmatprep.subr.mxu0 0.0
        %8110 = vmatpush2.xpose.msra.mxu0 0.0
        %8111 = vmatprep.mubr.f32.mxu0 0.0
        %8112 = vmatmul.mubr.f32.gmra.mxu0 %v8030
        %v8113 = vpop.f32.mrf.mxu0
        %v8114 = vadd.f32 0.0, %v8113
        %v8115 = vpop.f32.mrf.mxu0
        %8116 = vmatprep.mubr.f32.mxu0 0.0
        %8117 = vmatmul.mubr.f32.gmra.mxu0 %v8033
        %v8118 = vpop.f32.mrf.mxu0
        %v8119 = vadd.f32 0.0, %v8118
        %v8120 = vpop.f32.mrf.mxu0
        %8121 = vmatprep.mubr.f32.mxu0 0.0
        %8122 = vmatmul.mubr.f32.gmra.mxu0 %v8036
        %v8123 = vpop.f32.mrf.mxu0
        %v8124 = vadd.f32 0.0, %v8123
        %v8125 = vpop.f32.mrf.mxu0
        %8126 = vdwg.mxu0
        %v8128 = vsel %vm2718, %v7180, 0
        %v8131 = vsel %vm2718, %v7185, 0
        %v8134 = vsel %vm2718, %v7190, 0
        %v8137 = vsel %vm2718, %v7500, 0
        %v8140 = vsel %vm2718, %v7505, 0
        %v8143 = vsel %vm2718, %v7510, 0
        %8145 = vmatprep.subr.mxu0 0.0
        %8146 = vmatpush1.xpose.msra.mxu0 0.0
        %8147 = vmatprep.subr.mxu0 0.0
        %8148 = vmatpush1.xpose.msra.mxu0 0.0
        %8149 = vmatprep.subr.mxu0 0.0
        %8150 = vmatpush1.xpose.msra.mxu0 0.0
        %8151 = vmatprep.subr.mxu0 0.0
        %8152 = vmatpush1.xpose.msra.mxu0 0.0
        %8153 = vmatprep.subr.mxu0 0.0
        %8154 = vmatpush1.xpose.msra.mxu0 0.0
        %8155 = vmatprep.subr.mxu0 0.0
        %8156 = vmatpush1.xpose.msra.mxu0 0.0
        %8157 = vmatprep.subr.mxu0 0.0
        %8158 = vmatpush1.xpose.msra.mxu0 0.0
        %8159 = vmatprep.subr.mxu0 0.0
        %8160 = vmatpush1.xpose.msra.mxu0 0.0
        %8161 = vmatprep.subr.mxu0 0.0
        %8162 = vmatpush1.xpose.msra.mxu0 0.0
        %8163 = vmatprep.subr.mxu0 0.0
        %8164 = vmatpush1.xpose.msra.mxu0 0.0
        %8165 = vmatprep.subr.mxu0 0.0
        %8166 = vmatpush1.xpose.msra.mxu0 0.0
        %8167 = vmatprep.subr.mxu0 0.0
        %8168 = vmatpush1.xpose.msra.mxu0 0.0
        %8169 = vmatprep.subr.mxu0 0.0
        %8170 = vmatpush1.xpose.msra.mxu0 0.0
        %8171 = vmatprep.subr.mxu0 0.0
        %8172 = vmatpush1.xpose.msra.mxu0 %v8143
        %8173 = vmatprep.subr.mxu0 0.0
        %8174 = vmatpush1.xpose.msra.mxu0 %v8140
        %8175 = vmatprep.subr.mxu0 0.0
        %8176 = vmatpush1.xpose.msra.mxu0 %v8137
        %8177 = vmatprep.subr.mxu0 0.0
        %8178 = vmatpush2.xpose.msra.mxu0 0.0
        %8179 = vmatprep.subr.mxu0 0.0
        %8180 = vmatpush2.xpose.msra.mxu0 0.0
        %8181 = vmatprep.subr.mxu0 0.0
        %8182 = vmatpush2.xpose.msra.mxu0 0.0
        %8183 = vmatprep.subr.mxu0 0.0
        %8184 = vmatpush2.xpose.msra.mxu0 0.0
        %8185 = vmatprep.subr.mxu0 0.0
        %8186 = vmatpush2.xpose.msra.mxu0 0.0
        %8187 = vmatprep.subr.mxu0 0.0
        %8188 = vmatpush2.xpose.msra.mxu0 0.0
        %8189 = vmatprep.subr.mxu0 0.0
        %8190 = vmatpush2.xpose.msra.mxu0 0.0
        %8191 = vmatprep.subr.mxu0 0.0
        %8192 = vmatpush2.xpose.msra.mxu0 0.0
        %8193 = vmatprep.subr.mxu0 0.0
        %8194 = vmatpush2.xpose.msra.mxu0 0.0
        %8195 = vmatprep.subr.mxu0 0.0
        %8196 = vmatpush2.xpose.msra.mxu0 0.0
        %8197 = vmatprep.subr.mxu0 0.0
        %8198 = vmatpush2.xpose.msra.mxu0 0.0
        %8199 = vmatprep.subr.mxu0 0.0
        %8200 = vmatpush2.xpose.msra.mxu0 0.0
        %8201 = vmatprep.subr.mxu0 0.0
        %8202 = vmatpush2.xpose.msra.mxu0 0.0
        %8203 = vmatprep.subr.mxu0 0.0
        %8204 = vmatpush2.xpose.msra.mxu0 0.0
        %8205 = vmatprep.subr.mxu0 0.0
        %8206 = vmatpush2.xpose.msra.mxu0 0.0
        %8207 = vmatprep.subr.mxu0 0.0
        %8208 = vmatpush2.xpose.msra.mxu0 0.0
        %8209 = vmatprep.mubr.f32.mxu0 0.0
        %8210 = vmatmul.mubr.f32.gmra.mxu0 %v8128
        %v8211 = vpop.f32.mrf.mxu0
        %v8212 = vadd.f32 0.0, %v8211
        %v8213 = vpop.f32.mrf.mxu0
        %8214 = vmatprep.mubr.f32.mxu0 0.0
        %8215 = vmatmul.mubr.f32.gmra.mxu0 %v8131
        %v8216 = vpop.f32.mrf.mxu0
        %v8217 = vadd.f32 0.0, %v8216
        %v8218 = vpop.f32.mrf.mxu0
        %8219 = vmatprep.mubr.f32.mxu0 0.0
        %8220 = vmatmul.mubr.f32.gmra.mxu0 %v8134
        %v8221 = vpop.f32.mrf.mxu0
        %v8222 = vadd.f32 0.0, %v8221
        %v8223 = vpop.f32.mrf.mxu0
        %8224 = vdwg.mxu0
        %vm8225 = vcmask 138240
        %v8226 = vsel %vm8225, %v7918, -inf
        %8227 = vmax.xlane.f32.xlu0 %v8226
        %v8228 = vpop.xlane.xlu0 %8227
        %v8229 = vsel %vm8225, %v7923, -inf
        %8230 = vmax.xlane.f32.xlu0 %v8229
        %v8231 = vpop.xlane.xlu0 %8230
        %vm8232 = vcmask 131072
        %v8233 = vsel %vm8232, %v7928, -inf
        %8234 = vmax.xlane.f32.xlu0 %v8233
        %v8235 = vpop.xlane.xlu0 %8234
        %v8236 = vsel %vm8225, %v8016, -inf
        %8237 = vmax.xlane.f32.xlu0 %v8236
        %v8238 = vpop.xlane.xlu0 %8237
        %v8239 = vsel %vm8225, %v8021, -inf
        %8240 = vmax.xlane.f32.xlu0 %v8239
        %v8241 = vpop.xlane.xlu0 %8240
        %v8242 = vsel %vm8232, %v8026, -inf
        %8243 = vmax.xlane.f32.xlu0 %v8242
        %v8244 = vpop.xlane.xlu0 %8243
        %v8245 = vsel %vm8225, %v8114, -inf
        %8246 = vmax.xlane.f32.xlu0 %v8245
        %v8247 = vpop.xlane.xlu0 %8246
        %v8248 = vsel %vm8225, %v8119, -inf
        %8249 = vmax.xlane.f32.xlu0 %v8248
        %v8250 = vpop.xlane.xlu0 %8249
        %v8251 = vsel %vm8232, %v8124, -inf
        %8252 = vmax.xlane.f32.xlu0 %v8251
        %v8253 = vpop.xlane.xlu0 %8252
        %v8254 = vsel %vm8225, %v8212, -inf
        %8255 = vmax.xlane.f32.xlu0 %v8254
        %v8256 = vpop.xlane.xlu0 %8255
        %v8257 = vsel %vm8225, %v8217, -inf
        %8258 = vmax.xlane.f32.xlu0 %v8257
        %v8259 = vpop.xlane.xlu0 %8258
        %v8260 = vsel %vm8232, %v8222, -inf
        %8261 = vmax.xlane.f32.xlu0 %v8260
        %v8262 = vpop.xlane.xlu0 %8261
        %v8263 = vsub.f32 %v7918, %v8228
        %v8264 = vsub.f32 %v7923, %v8231
        %v8265 = vsub.f32 %v7928, %v8235
        %v8266 = vsub.f32 %v8016, %v8238
        %v8267 = vsub.f32 %v8021, %v8241
        %v8268 = vsub.f32 %v8026, %v8244
        %v8269 = vsub.f32 %v8114, %v8247
        %v8270 = vsub.f32 %v8119, %v8250
        %v8271 = vsub.f32 %v8124, %v8253
        %v8272 = vsub.f32 %v8212, %v8256
        %v8273 = vsub.f32 %v8217, %v8259
        %v8274 = vsub.f32 %v8222, %v8262
        %v8275 = vmul.f32 %v8263, 1.442695
        %v8276 = vpow.pop %v8275
        %v8277 = vmul.f32 %v8264, 1.442695
        %v8278 = vpow.pop %v8277
        %v8279 = vmul.f32 %v8265, 1.442695
        %v8280 = vpow.pop %v8279
        %v8281 = vmul.f32 %v8266, 1.442695
        %v8282 = vpow.pop %v8281
        %v8283 = vmul.f32 %v8267, 1.442695
        %v8284 = vpow.pop %v8283
        %v8285 = vmul.f32 %v8268, 1.442695
        %v8286 = vpow.pop %v8285
        %v8287 = vmul.f32 %v8269, 1.442695
        %v8288 = vpow.pop %v8287
        %v8289 = vmul.f32 %v8270, 1.442695
        %v8290 = vpow.pop %v8289
        %v8291 = vmul.f32 %v8271, 1.442695
        %v8292 = vpow.pop %v8291
        %v8293 = vmul.f32 %v8272, 1.442695
        %v8294 = vpow.pop %v8293
        %v8295 = vmul.f32 %v8273, 1.442695
        %v8296 = vpow.pop %v8295
        %v8297 = vmul.f32 %v8274, 1.442695
        %v8298 = vpow.pop %v8297
        %v8299 = vsel %vm8225, %v8276, 0.0
        %8300 = vadd.xlane.f32.xlu0 %v8299
        %v8301 = vpop.xlane.xlu0 %8300
        %v8302 = vsel %vm8225, %v8278, 0.0
        %8303 = vadd.xlane.f32.xlu0 %v8302
        %v8304 = vpop.xlane.xlu0 %8303
        %v8305 = vsel %vm8232, %v8280, 0.0
        %8306 = vadd.xlane.f32.xlu0 %v8305
        %v8307 = vpop.xlane.xlu0 %8306
        %v8308 = vsel %vm8225, %v8282, 0.0
        %8309 = vadd.xlane.f32.xlu0 %v8308
        %v8310 = vpop.xlane.xlu0 %8309
        %v8311 = vsel %vm8225, %v8284, 0.0
        %8312 = vadd.xlane.f32.xlu0 %v8311
        %v8313 = vpop.xlane.xlu0 %8312
        %v8314 = vsel %vm8232, %v8286, 0.0
        %8315 = vadd.xlane.f32.xlu0 %v8314
        %v8316 = vpop.xlane.xlu0 %8315
        %v8317 = vsel %vm8225, %v8288, 0.0
        %8318 = vadd.xlane.f32.xlu0 %v8317
        %v8319 = vpop.xlane.xlu0 %8318
        %v8320 = vsel %vm8225, %v8290, 0.0
        %8321 = vadd.xlane.f32.xlu0 %v8320
        %v8322 = vpop.xlane.xlu0 %8321
        %v8323 = vsel %vm8232, %v8292, 0.0
        %8324 = vadd.xlane.f32.xlu0 %v8323
        %v8325 = vpop.xlane.xlu0 %8324
        %v8326 = vsel %vm8225, %v8294, 0.0
        %8327 = vadd.xlane.f32.xlu0 %v8326
        %v8328 = vpop.xlane.xlu0 %8327
        %v8329 = vsel %vm8225, %v8296, 0.0
        %8330 = vadd.xlane.f32.xlu0 %v8329
        %v8331 = vpop.xlane.xlu0 %8330
        %v8332 = vsel %vm8232, %v8298, 0.0
        %8333 = vadd.xlane.f32.xlu0 %v8332
        %v8334 = vpop.xlane.xlu0 %8333
        %v8335 = vrcp.pop %v8301
        %v8336 = vrcp.pop %v8304
        %v8337 = vrcp.pop %v8307
        %v8338 = vrcp.pop %v8310
        %v8339 = vrcp.pop %v8313
        %v8340 = vrcp.pop %v8316
        %v8341 = vrcp.pop %v8319
        %v8342 = vrcp.pop %v8322
        %v8343 = vrcp.pop %v8325
        %v8344 = vrcp.pop %v8328
        %v8345 = vrcp.pop %v8331
        %v8346 = vrcp.pop %v8334
        %v8347 = vmul.f32 %v8276, %v8335
        %v8348 = vmul.f32 %v8278, %v8336
        %v8349 = vmul.f32 %v8280, %v8337
        %v8350 = vmul.f32 %v8282, %v8338
        %v8351 = vmul.f32 %v8284, %v8339
        %v8352 = vmul.f32 %v8286, %v8340
        %v8353 = vmul.f32 %v8288, %v8341
        %v8354 = vmul.f32 %v8290, %v8342
        %v8355 = vmul.f32 %v8292, %v8343
        %v8356 = vmul.f32 %v8294, %v8344
        %v8357 = vmul.f32 %v8296, %v8345
        %v8358 = vmul.f32 %v8298, %v8346
        %v8360 = vsel %vm8225, %v8347, 0
        %v8363 = vsel %vm8225, %v8348, 0
        %v8366 = vsel %vm8225, %v8349, 0
        %vm8368 = vcmask 1040384
        %v8370 = vsel %vm8368, %v7590, 0
        %8372 = vmatprep.subr.mxu0 0.0
        %8373 = vmatpush1.msra.mxu0 0.0
        %8374 = vmatprep.subr.mxu0 0.0
        %8375 = vmatpush1.msra.mxu0 0.0
        %8376 = vmatprep.subr.mxu0 0.0
        %8377 = vmatpush1.msra.mxu0 0.0
        %8378 = vmatprep.subr.mxu0 0.0
        %8379 = vmatpush1.msra.mxu0 0.0
        %8380 = vmatprep.subr.mxu0 0.0
        %8381 = vmatpush1.msra.mxu0 0.0
        %8382 = vmatprep.subr.mxu0 0.0
        %8383 = vmatpush1.msra.mxu0 0.0
        %8384 = vmatprep.subr.mxu0 0.0
        %8385 = vmatpush1.msra.mxu0 0.0
        %8386 = vmatprep.subr.mxu0 0.0
        %8387 = vmatpush1.msra.mxu0 0.0
        %8388 = vmatprep.subr.mxu0 0.0
        %8389 = vmatpush1.msra.mxu0 0.0
        %8390 = vmatprep.subr.mxu0 0.0
        %8391 = vmatpush1.msra.mxu0 0.0
        %8392 = vmatprep.subr.mxu0 0.0
        %8393 = vmatpush1.msra.mxu0 0.0
        %8394 = vmatprep.subr.mxu0 0.0
        %8395 = vmatpush1.msra.mxu0 0.0
        %8396 = vmatprep.subr.mxu0 0.0
        %8397 = vmatpush1.msra.mxu0 0.0
        %8398 = vmatprep.subr.mxu0 0.0
        %8399 = vmatpush1.msra.mxu0 %v8370
        %8400 = vmatprep.subr.mxu0 0.0
        %8401 = vmatpush1.msra.mxu0 %v7585
        %8402 = vmatprep.subr.mxu0 0.0
        %8403 = vmatpush1.msra.mxu0 %v7580
        %8404 = vmatprep.subr.mxu0 0.0
        %8405 = vmatpush2.msra.mxu0 0.0
        %8406 = vmatprep.subr.mxu0 0.0
        %8407 = vmatpush2.msra.mxu0 0.0
        %8408 = vmatprep.subr.mxu0 0.0
        %8409 = vmatpush2.msra.mxu0 0.0
        %8410 = vmatprep.subr.mxu0 0.0
        %8411 = vmatpush2.msra.mxu0 0.0
        %8412 = vmatprep.subr.mxu0 0.0
        %8413 = vmatpush2.msra.mxu0 0.0
        %8414 = vmatprep.subr.mxu0 0.0
        %8415 = vmatpush2.msra.mxu0 0.0
        %8416 = vmatprep.subr.mxu0 0.0
        %8417 = vmatpush2.msra.mxu0 0.0
        %8418 = vmatprep.subr.mxu0 0.0
        %8419 = vmatpush2.msra.mxu0 0.0
        %8420 = vmatprep.subr.mxu0 0.0
        %8421 = vmatpush2.msra.mxu0 0.0
        %8422 = vmatprep.subr.mxu0 0.0
        %8423 = vmatpush2.msra.mxu0 0.0
        %8424 = vmatprep.subr.mxu0 0.0
        %8425 = vmatpush2.msra.mxu0 0.0
        %8426 = vmatprep.subr.mxu0 0.0
        %8427 = vmatpush2.msra.mxu0 0.0
        %8428 = vmatprep.subr.mxu0 0.0
        %8429 = vmatpush2.msra.mxu0 0.0
        %8430 = vmatprep.subr.mxu0 0.0
        %8431 = vmatpush2.msra.mxu0 0.0
        %8432 = vmatprep.subr.mxu0 0.0
        %8433 = vmatpush2.msra.mxu0 0.0
        %8434 = vmatprep.subr.mxu0 0.0
        %8435 = vmatpush2.msra.mxu0 0.0
        %8436 = vmatprep.mubr.f32.mxu0 0.0
        %8437 = vmatmul.mubr.f32.gmra.mxu0 %v8360
        %v8438 = vpop.f32.mrf.mxu0
        %v8439 = vadd.f32 0.0, %v8438
        %v8440 = vpop.f32.mrf.mxu0
        %8441 = vmatprep.mubr.f32.mxu0 0.0
        %8442 = vmatmul.mubr.f32.gmra.mxu0 %v8363
        %v8443 = vpop.f32.mrf.mxu0
        %v8444 = vadd.f32 0.0, %v8443
        %v8445 = vpop.f32.mrf.mxu0
        %8446 = vmatprep.mubr.f32.mxu0 0.0
        %8447 = vmatmul.mubr.f32.gmra.mxu0 %v8366
        %v8448 = vpop.f32.mrf.mxu0
        %v8449 = vadd.f32 0.0, %v8448
        %v8450 = vpop.f32.mrf.mxu0
        %8451 = vdwg.mxu0
        %v8453 = vsel %vm8225, %v8350, 0
        %v8456 = vsel %vm8225, %v8351, 0
        %v8459 = vsel %vm8225, %v8352, 0
        %v8462 = vsel %vm8368, %v7670, 0
        %8464 = vmatprep.subr.mxu0 0.0
        %8465 = vmatpush1.msra.mxu0 0.0
        %8466 = vmatprep.subr.mxu0 0.0
        %8467 = vmatpush1.msra.mxu0 0.0
        %8468 = vmatprep.subr.mxu0 0.0
        %8469 = vmatpush1.msra.mxu0 0.0
        %8470 = vmatprep.subr.mxu0 0.0
        %8471 = vmatpush1.msra.mxu0 0.0
        %8472 = vmatprep.subr.mxu0 0.0
        %8473 = vmatpush1.msra.mxu0 0.0
        %8474 = vmatprep.subr.mxu0 0.0
        %8475 = vmatpush1.msra.mxu0 0.0
        %8476 = vmatprep.subr.mxu0 0.0
        %8477 = vmatpush1.msra.mxu0 0.0
        %8478 = vmatprep.subr.mxu0 0.0
        %8479 = vmatpush1.msra.mxu0 0.0
        %8480 = vmatprep.subr.mxu0 0.0
        %8481 = vmatpush1.msra.mxu0 0.0
        %8482 = vmatprep.subr.mxu0 0.0
        %8483 = vmatpush1.msra.mxu0 0.0
        %8484 = vmatprep.subr.mxu0 0.0
        %8485 = vmatpush1.msra.mxu0 0.0
        %8486 = vmatprep.subr.mxu0 0.0
        %8487 = vmatpush1.msra.mxu0 0.0
        %8488 = vmatprep.subr.mxu0 0.0
        %8489 = vmatpush1.msra.mxu0 0.0
        %8490 = vmatprep.subr.mxu0 0.0
        %8491 = vmatpush1.msra.mxu0 %v8462
        %8492 = vmatprep.subr.mxu0 0.0
        %8493 = vmatpush1.msra.mxu0 %v7665
        %8494 = vmatprep.subr.mxu0 0.0
        %8495 = vmatpush1.msra.mxu0 %v7660
        %8496 = vmatprep.subr.mxu0 0.0
        %8497 = vmatpush2.msra.mxu0 0.0
        %8498 = vmatprep.subr.mxu0 0.0
        %8499 = vmatpush2.msra.mxu0 0.0
        %8500 = vmatprep.subr.mxu0 0.0
        %8501 = vmatpush2.msra.mxu0 0.0
        %8502 = vmatprep.subr.mxu0 0.0
        %8503 = vmatpush2.msra.mxu0 0.0
        %8504 = vmatprep.subr.mxu0 0.0
        %8505 = vmatpush2.msra.mxu0 0.0
        %8506 = vmatprep.subr.mxu0 0.0
        %8507 = vmatpush2.msra.mxu0 0.0
        %8508 = vmatprep.subr.mxu0 0.0
        %8509 = vmatpush2.msra.mxu0 0.0
        %8510 = vmatprep.subr.mxu0 0.0
        %8511 = vmatpush2.msra.mxu0 0.0
        %8512 = vmatprep.subr.mxu0 0.0
        %8513 = vmatpush2.msra.mxu0 0.0
        %8514 = vmatprep.subr.mxu0 0.0
        %8515 = vmatpush2.msra.mxu0 0.0
        %8516 = vmatprep.subr.mxu0 0.0
        %8517 = vmatpush2.msra.mxu0 0.0
        %8518 = vmatprep.subr.mxu0 0.0
        %8519 = vmatpush2.msra.mxu0 0.0
        %8520 = vmatprep.subr.mxu0 0.0
        %8521 = vmatpush2.msra.mxu0 0.0
        %8522 = vmatprep.subr.mxu0 0.0
        %8523 = vmatpush2.msra.mxu0 0.0
        %8524 = vmatprep.subr.mxu0 0.0
        %8525 = vmatpush2.msra.mxu0 0.0
        %8526 = vmatprep.subr.mxu0 0.0
        %8527 = vmatpush2.msra.mxu0 0.0
        %8528 = vmatprep.mubr.f32.mxu0 0.0
        %8529 = vmatmul.mubr.f32.gmra.mxu0 %v8453
        %v8530 = vpop.f32.mrf.mxu0
        %v8531 = vadd.f32 0.0, %v8530
        %v8532 = vpop.f32.mrf.mxu0
        %8533 = vmatprep.mubr.f32.mxu0 0.0
        %8534 = vmatmul.mubr.f32.gmra.mxu0 %v8456
        %v8535 = vpop.f32.mrf.mxu0
        %v8536 = vadd.f32 0.0, %v8535
        %v8537 = vpop.f32.mrf.mxu0
        %8538 = vmatprep.mubr.f32.mxu0 0.0
        %8539 = vmatmul.mubr.f32.gmra.mxu0 %v8459
        %v8540 = vpop.f32.mrf.mxu0
        %v8541 = vadd.f32 0.0, %v8540
        %v8542 = vpop.f32.mrf.mxu0
        %8543 = vdwg.mxu0
        %v8545 = vsel %vm8225, %v8353, 0
        %v8548 = vsel %vm8225, %v8354, 0
        %v8551 = vsel %vm8225, %v8355, 0
        %v8554 = vsel %vm8368, %v7750, 0
        %8556 = vmatprep.subr.mxu0 0.0
        %8557 = vmatpush1.msra.mxu0 0.0
        %8558 = vmatprep.subr.mxu0 0.0
        %8559 = vmatpush1.msra.mxu0 0.0
        %8560 = vmatprep.subr.mxu0 0.0
        %8561 = vmatpush1.msra.mxu0 0.0
        %8562 = vmatprep.subr.mxu0 0.0
        %8563 = vmatpush1.msra.mxu0 0.0
        %8564 = vmatprep.subr.mxu0 0.0
        %8565 = vmatpush1.msra.mxu0 0.0
        %8566 = vmatprep.subr.mxu0 0.0
        %8567 = vmatpush1.msra.mxu0 0.0
        %8568 = vmatprep.subr.mxu0 0.0
        %8569 = vmatpush1.msra.mxu0 0.0
        %8570 = vmatprep.subr.mxu0 0.0
        %8571 = vmatpush1.msra.mxu0 0.0
        %8572 = vmatprep.subr.mxu0 0.0
        %8573 = vmatpush1.msra.mxu0 0.0
        %8574 = vmatprep.subr.mxu0 0.0
        %8575 = vmatpush1.msra.mxu0 0.0
        %8576 = vmatprep.subr.mxu0 0.0
        %8577 = vmatpush1.msra.mxu0 0.0
        %8578 = vmatprep.subr.mxu0 0.0
        %8579 = vmatpush1.msra.mxu0 0.0
        %8580 = vmatprep.subr.mxu0 0.0
        %8581 = vmatpush1.msra.mxu0 0.0
        %8582 = vmatprep.subr.mxu0 0.0
        %8583 = vmatpush1.msra.mxu0 %v8554
        %8584 = vmatprep.subr.mxu0 0.0
        %8585 = vmatpush1.msra.mxu0 %v7745
        %8586 = vmatprep.subr.mxu0 0.0
        %8587 = vmatpush1.msra.mxu0 %v7740
        %8588 = vmatprep.subr.mxu0 0.0
        %8589 = vmatpush2.msra.mxu0 0.0
        %8590 = vmatprep.subr.mxu0 0.0
        %8591 = vmatpush2.msra.mxu0 0.0
        %8592 = vmatprep.subr.mxu0 0.0
        %8593 = vmatpush2.msra.mxu0 0.0
        %8594 = vmatprep.subr.mxu0 0.0
        %8595 = vmatpush2.msra.mxu0 0.0
        %8596 = vmatprep.subr.mxu0 0.0
        %8597 = vmatpush2.msra.mxu0 0.0
        %8598 = vmatprep.subr.mxu0 0.0
        %8599 = vmatpush2.msra.mxu0 0.0
        %8600 = vmatprep.subr.mxu0 0.0
        %8601 = vmatpush2.msra.mxu0 0.0
        %8602 = vmatprep.subr.mxu0 0.0
        %8603 = vmatpush2.msra.mxu0 0.0
        %8604 = vmatprep.subr.mxu0 0.0
        %8605 = vmatpush2.msra.mxu0 0.0
        %8606 = vmatprep.subr.mxu0 0.0
        %8607 = vmatpush2.msra.mxu0 0.0
        %8608 = vmatprep.subr.mxu0 0.0
        %8609 = vmatpush2.msra.mxu0 0.0
        %8610 = vmatprep.subr.mxu0 0.0
        %8611 = vmatpush2.msra.mxu0 0.0
        %8612 = vmatprep.subr.mxu0 0.0
        %8613 = vmatpush2.msra.mxu0 0.0
        %8614 = vmatprep.subr.mxu0 0.0
        %8615 = vmatpush2.msra.mxu0 0.0
        %8616 = vmatprep.subr.mxu0 0.0
        %8617 = vmatpush2.msra.mxu0 0.0
        %8618 = vmatprep.subr.mxu0 0.0
        %8619 = vmatpush2.msra.mxu0 0.0
        %8620 = vmatprep.mubr.f32.mxu0 0.0
        %8621 = vmatmul.mubr.f32.gmra.mxu0 %v8545
        %v8622 = vpop.f32.mrf.mxu0
        %v8623 = vadd.f32 0.0, %v8622
        %v8624 = vpop.f32.mrf.mxu0
        %8625 = vmatprep.mubr.f32.mxu0 0.0
        %8626 = vmatmul.mubr.f32.gmra.mxu0 %v8548
        %v8627 = vpop.f32.mrf.mxu0
        %v8628 = vadd.f32 0.0, %v8627
        %v8629 = vpop.f32.mrf.mxu0
        %8630 = vmatprep.mubr.f32.mxu0 0.0
        %8631 = vmatmul.mubr.f32.gmra.mxu0 %v8551
        %v8632 = vpop.f32.mrf.mxu0
        %v8633 = vadd.f32 0.0, %v8632
        %v8634 = vpop.f32.mrf.mxu0
        %8635 = vdwg.mxu0
        %v8637 = vsel %vm8225, %v8356, 0
        %v8640 = vsel %vm8225, %v8357, 0
        %v8643 = vsel %vm8225, %v8358, 0
        %v8646 = vsel %vm8368, %v7830, 0
        %8648 = vmatprep.subr.mxu0 0.0
        %8649 = vmatpush1.msra.mxu0 0.0
        %8650 = vmatprep.subr.mxu0 0.0
        %8651 = vmatpush1.msra.mxu0 0.0
        %8652 = vmatprep.subr.mxu0 0.0
        %8653 = vmatpush1.msra.mxu0 0.0
        %8654 = vmatprep.subr.mxu0 0.0
        %8655 = vmatpush1.msra.mxu0 0.0
        %8656 = vmatprep.subr.mxu0 0.0
        %8657 = vmatpush1.msra.mxu0 0.0
        %8658 = vmatprep.subr.mxu0 0.0
        %8659 = vmatpush1.msra.mxu0 0.0
        %8660 = vmatprep.subr.mxu0 0.0
        %8661 = vmatpush1.msra.mxu0 0.0
        %8662 = vmatprep.subr.mxu0 0.0
        %8663 = vmatpush1.msra.mxu0 0.0
        %8664 = vmatprep.subr.mxu0 0.0
        %8665 = vmatpush1.msra.mxu0 0.0
        %8666 = vmatprep.subr.mxu0 0.0
        %8667 = vmatpush1.msra.mxu0 0.0
        %8668 = vmatprep.subr.mxu0 0.0
        %8669 = vmatpush1.msra.mxu0 0.0
        %8670 = vmatprep.subr.mxu0 0.0
        %8671 = vmatpush1.msra.mxu0 0.0
        %8672 = vmatprep.subr.mxu0 0.0
        %8673 = vmatpush1.msra.mxu0 0.0
        %8674 = vmatprep.subr.mxu0 0.0
        %8675 = vmatpush1.msra.mxu0 %v8646
        %8676 = vmatprep.subr.mxu0 0.0
        %8677 = vmatpush1.msra.mxu0 %v7825
        %8678 = vmatprep.subr.mxu0 0.0
        %8679 = vmatpush1.msra.mxu0 %v7820
        %8680 = vmatprep.subr.mxu0 0.0
        %8681 = vmatpush2.msra.mxu0 0.0
        %8682 = vmatprep.subr.mxu0 0.0
        %8683 = vmatpush2.msra.mxu0 0.0
        %8684 = vmatprep.subr.mxu0 0.0
        %8685 = vmatpush2.msra.mxu0 0.0
        %8686 = vmatprep.subr.mxu0 0.0
        %8687 = vmatpush2.msra.mxu0 0.0
        %8688 = vmatprep.subr.mxu0 0.0
        %8689 = vmatpush2.msra.mxu0 0.0
        %8690 = vmatprep.subr.mxu0 0.0
        %8691 = vmatpush2.msra.mxu0 0.0
        %8692 = vmatprep.subr.mxu0 0.0
        %8693 = vmatpush2.msra.mxu0 0.0
        %8694 = vmatprep.subr.mxu0 0.0
        %8695 = vmatpush2.msra.mxu0 0.0
        %8696 = vmatprep.subr.mxu0 0.0
        %8697 = vmatpush2.msra.mxu0 0.0
        %8698 = vmatprep.subr.mxu0 0.0
        %8699 = vmatpush2.msra.mxu0 0.0
        %8700 = vmatprep.subr.mxu0 0.0
        %8701 = vmatpush2.msra.mxu0 0.0
        %8702 = vmatprep.subr.mxu0 0.0
        %8703 = vmatpush2.msra.mxu0 0.0
        %8704 = vmatprep.subr.mxu0 0.0
        %8705 = vmatpush2.msra.mxu0 0.0
        %8706 = vmatprep.subr.mxu0 0.0
        %8707 = vmatpush2.msra.mxu0 0.0
        %8708 = vmatprep.subr.mxu0 0.0
        %8709 = vmatpush2.msra.mxu0 0.0
        %8710 = vmatprep.subr.mxu0 0.0
        %8711 = vmatpush2.msra.mxu0 0.0
        %8712 = vmatprep.mubr.f32.mxu0 0.0
        %8713 = vmatmul.mubr.f32.gmra.mxu0 %v8637
        %v8714 = vpop.f32.mrf.mxu0
        %v8715 = vadd.f32 0.0, %v8714
        %v8716 = vpop.f32.mrf.mxu0
        %8717 = vmatprep.mubr.f32.mxu0 0.0
        %8718 = vmatmul.mubr.f32.gmra.mxu0 %v8640
        %v8719 = vpop.f32.mrf.mxu0
        %v8720 = vadd.f32 0.0, %v8719
        %v8721 = vpop.f32.mrf.mxu0
        %8722 = vmatprep.mubr.f32.mxu0 0.0
        %8723 = vmatmul.mubr.f32.gmra.mxu0 %v8643
        %v8724 = vpop.f32.mrf.mxu0
        %v8725 = vadd.f32 0.0, %v8724
        %v8726 = vpop.f32.mrf.mxu0
        %8727 = vdwg.mxu0
        %v8729 = vsel %vm2718, %v8439, 0
        %v8732 = vsel %vm2718, %v8444, 0
        %v8735 = vsel %vm2718, %v8449, 0
        %8737 = vmatprep.subr.mxu0 0.0
        %8738 = vmatpush1.msra.mxu0 0.0
        %8739 = vmatprep.subr.mxu0 0.0
        %8740 = vmatpush1.msra.mxu0 0.0
        %8741 = vmatprep.subr.mxu0 0.0
        %8742 = vmatpush1.msra.mxu0 0.0
        %8743 = vmatprep.subr.mxu0 0.0
        %8744 = vmatpush1.msra.mxu0 0.0
        %8745 = vmatprep.subr.mxu0 0.0
        %8746 = vmatpush1.msra.mxu0 0.0
        %8747 = vmatprep.subr.mxu0 0.0
        %8748 = vmatpush1.msra.mxu0 0.0
        %8749 = vmatprep.subr.mxu0 0.0
        %8750 = vmatpush1.msra.mxu0 0.0
        %8751 = vmatprep.subr.mxu0 0.0
        %8752 = vmatpush1.msra.mxu0 0.0
        %8753 = vmatprep.subr.mxu0 0.0
        %8754 = vmatpush1.msra.mxu0 0.0
        %8755 = vmatprep.subr.mxu0 0.0
        %8756 = vmatpush1.msra.mxu0 0.0
        %8757 = vmatprep.subr.mxu0 0.0
        %8758 = vmatpush1.msra.mxu0 0.0
        %8759 = vmatprep.subr.mxu0 0.0
        %8760 = vmatpush1.msra.mxu0 0.0
        %8761 = vmatprep.subr.mxu0 0.0
        %8762 = vmatpush1.msra.mxu0 0.0
        %8763 = vmatprep.subr.mxu0 0.0
        %8764 = vmatpush1.msra.mxu0 0.0
        %8765 = vmatprep.subr.mxu0 0.0
        %8766 = vmatpush1.msra.mxu0 0.0
        %8767 = vmatprep.subr.mxu0 0.0
        %8768 = vmatpush1.msra.mxu0 %v6777
        %8769 = vmatprep.subr.mxu0 0.0
        %8770 = vmatpush2.msra.mxu0 0.0
        %8771 = vmatprep.subr.mxu0 0.0
        %8772 = vmatpush2.msra.mxu0 0.0
        %8773 = vmatprep.subr.mxu0 0.0
        %8774 = vmatpush2.msra.mxu0 0.0
        %8775 = vmatprep.subr.mxu0 0.0
        %8776 = vmatpush2.msra.mxu0 0.0
        %8777 = vmatprep.subr.mxu0 0.0
        %8778 = vmatpush2.msra.mxu0 0.0
        %8779 = vmatprep.subr.mxu0 0.0
        %8780 = vmatpush2.msra.mxu0 0.0
        %8781 = vmatprep.subr.mxu0 0.0
        %8782 = vmatpush2.msra.mxu0 0.0
        %8783 = vmatprep.subr.mxu0 0.0
        %8784 = vmatpush2.msra.mxu0 0.0
        %8785 = vmatprep.subr.mxu0 0.0
        %8786 = vmatpush2.msra.mxu0 0.0
        %8787 = vmatprep.subr.mxu0 0.0
        %8788 = vmatpush2.msra.mxu0 0.0
        %8789 = vmatprep.subr.mxu0 0.0
        %8790 = vmatpush2.msra.mxu0 0.0
        %8791 = vmatprep.subr.mxu0 0.0
        %8792 = vmatpush2.msra.mxu0 0.0
        %8793 = vmatprep.subr.mxu0 0.0
        %8794 = vmatpush2.msra.mxu0 0.0
        %8795 = vmatprep.subr.mxu0 0.0
        %8796 = vmatpush2.msra.mxu0 0.0
        %8797 = vmatprep.subr.mxu0 0.0
        %8798 = vmatpush2.msra.mxu0 0.0
        %8799 = vmatprep.subr.mxu0 0.0
        %8800 = vmatpush2.msra.mxu0 0.0
        %8801 = vmatprep.mubr.f32.mxu0 0.0
        %8802 = vmatmul.mubr.f32.gmra.mxu0 %v8729
        %v8803 = vpop.f32.mrf.mxu0
        %v8804 = vadd.f32 0.0, %v8803
        %v8805 = vpop.f32.mrf.mxu0
        %8806 = vmatprep.mubr.f32.mxu0 0.0
        %8807 = vmatmul.mubr.f32.gmra.mxu0 %v8732
        %v8808 = vpop.f32.mrf.mxu0
        %v8809 = vadd.f32 0.0, %v8808
        %v8810 = vpop.f32.mrf.mxu0
        %8811 = vmatprep.mubr.f32.mxu0 0.0
        %8812 = vmatmul.mubr.f32.gmra.mxu0 %v8735
        %v8813 = vpop.f32.mrf.mxu0
        %v8814 = vadd.f32 0.0, %v8813
        %v8815 = vpop.f32.mrf.mxu0
        %8816 = vdwg.mxu0
        %v8818 = vsel %vm2718, %v8531, 0
        %v8821 = vsel %vm2718, %v8536, 0
        %v8824 = vsel %vm2718, %v8541, 0
        %8826 = vmatprep.subr.mxu0 0.0
        %8827 = vmatpush1.msra.mxu0 0.0
        %8828 = vmatprep.subr.mxu0 0.0
        %8829 = vmatpush1.msra.mxu0 0.0
        %8830 = vmatprep.subr.mxu0 0.0
        %8831 = vmatpush1.msra.mxu0 0.0
        %8832 = vmatprep.subr.mxu0 0.0
        %8833 = vmatpush1.msra.mxu0 0.0
        %8834 = vmatprep.subr.mxu0 0.0
        %8835 = vmatpush1.msra.mxu0 0.0
        %8836 = vmatprep.subr.mxu0 0.0
        %8837 = vmatpush1.msra.mxu0 0.0
        %8838 = vmatprep.subr.mxu0 0.0
        %8839 = vmatpush1.msra.mxu0 0.0
        %8840 = vmatprep.subr.mxu0 0.0
        %8841 = vmatpush1.msra.mxu0 0.0
        %8842 = vmatprep.subr.mxu0 0.0
        %8843 = vmatpush1.msra.mxu0 0.0
        %8844 = vmatprep.subr.mxu0 0.0
        %8845 = vmatpush1.msra.mxu0 0.0
        %8846 = vmatprep.subr.mxu0 0.0
        %8847 = vmatpush1.msra.mxu0 0.0
        %8848 = vmatprep.subr.mxu0 0.0
        %8849 = vmatpush1.msra.mxu0 0.0
        %8850 = vmatprep.subr.mxu0 0.0
        %8851 = vmatpush1.msra.mxu0 0.0
        %8852 = vmatprep.subr.mxu0 0.0
        %8853 = vmatpush1.msra.mxu0 0.0
        %8854 = vmatprep.subr.mxu0 0.0
        %8855 = vmatpush1.msra.mxu0 0.0
        %8856 = vmatprep.subr.mxu0 0.0
        %8857 = vmatpush1.msra.mxu0 %v6778
        %8858 = vmatprep.subr.mxu0 0.0
        %8859 = vmatpush2.msra.mxu0 0.0
        %8860 = vmatprep.subr.mxu0 0.0
        %8861 = vmatpush2.msra.mxu0 0.0
        %8862 = vmatprep.subr.mxu0 0.0
        %8863 = vmatpush2.msra.mxu0 0.0
        %8864 = vmatprep.subr.mxu0 0.0
        %8865 = vmatpush2.msra.mxu0 0.0
        %8866 = vmatprep.subr.mxu0 0.0
        %8867 = vmatpush2.msra.mxu0 0.0
        %8868 = vmatprep.subr.mxu0 0.0
        %8869 = vmatpush2.msra.mxu0 0.0
        %8870 = vmatprep.subr.mxu0 0.0
        %8871 = vmatpush2.msra.mxu0 0.0
        %8872 = vmatprep.subr.mxu0 0.0
        %8873 = vmatpush2.msra.mxu0 0.0
        %8874 = vmatprep.subr.mxu0 0.0
        %8875 = vmatpush2.msra.mxu0 0.0
        %8876 = vmatprep.subr.mxu0 0.0
        %8877 = vmatpush2.msra.mxu0 0.0
        %8878 = vmatprep.subr.mxu0 0.0
        %8879 = vmatpush2.msra.mxu0 0.0
        %8880 = vmatprep.subr.mxu0 0.0
        %8881 = vmatpush2.msra.mxu0 0.0
        %8882 = vmatprep.subr.mxu0 0.0
        %8883 = vmatpush2.msra.mxu0 0.0
        %8884 = vmatprep.subr.mxu0 0.0
        %8885 = vmatpush2.msra.mxu0 0.0
        %8886 = vmatprep.subr.mxu0 0.0
        %8887 = vmatpush2.msra.mxu0 0.0
        %8888 = vmatprep.subr.mxu0 0.0
        %8889 = vmatpush2.msra.mxu0 0.0
        %8890 = vmatprep.mubr.f32.mxu0 0.0
        %8891 = vmatmul.mubr.f32.gmra.mxu0 %v8818
        %v8892 = vpop.f32.mrf.mxu0
        %v8893 = vadd.f32 0.0, %v8892
        %v8894 = vpop.f32.mrf.mxu0
        %8895 = vmatprep.mubr.f32.mxu0 0.0
        %8896 = vmatmul.mubr.f32.gmra.mxu0 %v8821
        %v8897 = vpop.f32.mrf.mxu0
        %v8898 = vadd.f32 0.0, %v8897
        %v8899 = vpop.f32.mrf.mxu0
        %8900 = vmatprep.mubr.f32.mxu0 0.0
        %8901 = vmatmul.mubr.f32.gmra.mxu0 %v8824
        %v8902 = vpop.f32.mrf.mxu0
        %v8903 = vadd.f32 0.0, %v8902
        %v8904 = vpop.f32.mrf.mxu0
        %8905 = vdwg.mxu0
        %v8907 = vsel %vm2718, %v8623, 0
        %v8910 = vsel %vm2718, %v8628, 0
        %v8913 = vsel %vm2718, %v8633, 0
        %8915 = vmatprep.subr.mxu0 0.0
        %8916 = vmatpush1.msra.mxu0 0.0
        %8917 = vmatprep.subr.mxu0 0.0
        %8918 = vmatpush1.msra.mxu0 0.0
        %8919 = vmatprep.subr.mxu0 0.0
        %8920 = vmatpush1.msra.mxu0 0.0
        %8921 = vmatprep.subr.mxu0 0.0
        %8922 = vmatpush1.msra.mxu0 0.0
        %8923 = vmatprep.subr.mxu0 0.0
        %8924 = vmatpush1.msra.mxu0 0.0
        %8925 = vmatprep.subr.mxu0 0.0
        %8926 = vmatpush1.msra.mxu0 0.0
        %8927 = vmatprep.subr.mxu0 0.0
        %8928 = vmatpush1.msra.mxu0 0.0
        %8929 = vmatprep.subr.mxu0 0.0
        %8930 = vmatpush1.msra.mxu0 0.0
        %8931 = vmatprep.subr.mxu0 0.0
        %8932 = vmatpush1.msra.mxu0 0.0
        %8933 = vmatprep.subr.mxu0 0.0
        %8934 = vmatpush1.msra.mxu0 0.0
        %8935 = vmatprep.subr.mxu0 0.0
        %8936 = vmatpush1.msra.mxu0 0.0
        %8937 = vmatprep.subr.mxu0 0.0
        %8938 = vmatpush1.msra.mxu0 0.0
        %8939 = vmatprep.subr.mxu0 0.0
        %8940 = vmatpush1.msra.mxu0 0.0
        %8941 = vmatprep.subr.mxu0 0.0
        %8942 = vmatpush1.msra.mxu0 0.0
        %8943 = vmatprep.subr.mxu0 0.0
        %8944 = vmatpush1.msra.mxu0 0.0
        %8945 = vmatprep.subr.mxu0 0.0
        %8946 = vmatpush1.msra.mxu0 %v6779
        %8947 = vmatprep.subr.mxu0 0.0
        %8948 = vmatpush2.msra.mxu0 0.0
        %8949 = vmatprep.subr.mxu0 0.0
        %8950 = vmatpush2.msra.mxu0 0.0
        %8951 = vmatprep.subr.mxu0 0.0
        %8952 = vmatpush2.msra.mxu0 0.0
        %8953 = vmatprep.subr.mxu0 0.0
        %8954 = vmatpush2.msra.mxu0 0.0
        %8955 = vmatprep.subr.mxu0 0.0
        %8956 = vmatpush2.msra.mxu0 0.0
        %8957 = vmatprep.subr.mxu0 0.0
        %8958 = vmatpush2.msra.mxu0 0.0
        %8959 = vmatprep.subr.mxu0 0.0
        %8960 = vmatpush2.msra.mxu0 0.0
        %8961 = vmatprep.subr.mxu0 0.0
        %8962 = vmatpush2.msra.mxu0 0.0
        %8963 = vmatprep.subr.mxu0 0.0
        %8964 = vmatpush2.msra.mxu0 0.0
        %8965 = vmatprep.subr.mxu0 0.0
        %8966 = vmatpush2.msra.mxu0 0.0
        %8967 = vmatprep.subr.mxu0 0.0
        %8968 = vmatpush2.msra.mxu0 0.0
        %8969 = vmatprep.subr.mxu0 0.0
        %8970 = vmatpush2.msra.mxu0 0.0
        %8971 = vmatprep.subr.mxu0 0.0
        %8972 = vmatpush2.msra.mxu0 0.0
        %8973 = vmatprep.subr.mxu0 0.0
        %8974 = vmatpush2.msra.mxu0 0.0
        %8975 = vmatprep.subr.mxu0 0.0
        %8976 = vmatpush2.msra.mxu0 0.0
        %8977 = vmatprep.subr.mxu0 0.0
        %8978 = vmatpush2.msra.mxu0 0.0
        %8979 = vmatprep.mubr.f32.mxu0 0.0
        %8980 = vmatmul.mubr.f32.gmra.mxu0 %v8907
        %v8981 = vpop.f32.mrf.mxu0
        %v8982 = vadd.f32 0.0, %v8981
        %v8983 = vpop.f32.mrf.mxu0
        %8984 = vmatprep.mubr.f32.mxu0 0.0
        %8985 = vmatmul.mubr.f32.gmra.mxu0 %v8910
        %v8986 = vpop.f32.mrf.mxu0
        %v8987 = vadd.f32 0.0, %v8986
        %v8988 = vpop.f32.mrf.mxu0
        %8989 = vmatprep.mubr.f32.mxu0 0.0
        %8990 = vmatmul.mubr.f32.gmra.mxu0 %v8913
        %v8991 = vpop.f32.mrf.mxu0
        %v8992 = vadd.f32 0.0, %v8991
        %v8993 = vpop.f32.mrf.mxu0
        %8994 = vdwg.mxu0
        %v8996 = vsel %vm2718, %v8715, 0
        %v8999 = vsel %vm2718, %v8720, 0
        %v9002 = vsel %vm2718, %v8725, 0
        %9004 = vmatprep.subr.mxu0 0.0
        %9005 = vmatpush1.msra.mxu0 0.0
        %9006 = vmatprep.subr.mxu0 0.0
        %9007 = vmatpush1.msra.mxu0 0.0
        %9008 = vmatprep.subr.mxu0 0.0
        %9009 = vmatpush1.msra.mxu0 0.0
        %9010 = vmatprep.subr.mxu0 0.0
        %9011 = vmatpush1.msra.mxu0 0.0
        %9012 = vmatprep.subr.mxu0 0.0
        %9013 = vmatpush1.msra.mxu0 0.0
        %9014 = vmatprep.subr.mxu0 0.0
        %9015 = vmatpush1.msra.mxu0 0.0
        %9016 = vmatprep.subr.mxu0 0.0
        %9017 = vmatpush1.msra.mxu0 0.0
        %9018 = vmatprep.subr.mxu0 0.0
        %9019 = vmatpush1.msra.mxu0 0.0
        %9020 = vmatprep.subr.mxu0 0.0
        %9021 = vmatpush1.msra.mxu0 0.0
        %9022 = vmatprep.subr.mxu0 0.0
        %9023 = vmatpush1.msra.mxu0 0.0
        %9024 = vmatprep.subr.mxu0 0.0
        %9025 = vmatpush1.msra.mxu0 0.0
        %9026 = vmatprep.subr.mxu0 0.0
        %9027 = vmatpush1.msra.mxu0 0.0
        %9028 = vmatprep.subr.mxu0 0.0
        %9029 = vmatpush1.msra.mxu0 0.0
        %9030 = vmatprep.subr.mxu0 0.0
        %9031 = vmatpush1.msra.mxu0 0.0
        %9032 = vmatprep.subr.mxu0 0.0
        %9033 = vmatpush1.msra.mxu0 0.0
        %9034 = vmatprep.subr.mxu0 0.0
        %9035 = vmatpush1.msra.mxu0 %v6780
        %9036 = vmatprep.subr.mxu0 0.0
        %9037 = vmatpush2.msra.mxu0 0.0
        %9038 = vmatprep.subr.mxu0 0.0
        %9039 = vmatpush2.msra.mxu0 0.0
        %9040 = vmatprep.subr.mxu0 0.0
        %9041 = vmatpush2.msra.mxu0 0.0
        %9042 = vmatprep.subr.mxu0 0.0
        %9043 = vmatpush2.msra.mxu0 0.0
        %9044 = vmatprep.subr.mxu0 0.0
        %9045 = vmatpush2.msra.mxu0 0.0
        %9046 = vmatprep.subr.mxu0 0.0
        %9047 = vmatpush2.msra.mxu0 0.0
        %9048 = vmatprep.subr.mxu0 0.0
        %9049 = vmatpush2.msra.mxu0 0.0
        %9050 = vmatprep.subr.mxu0 0.0
        %9051 = vmatpush2.msra.mxu0 0.0
        %9052 = vmatprep.subr.mxu0 0.0
        %9053 = vmatpush2.msra.mxu0 0.0
        %9054 = vmatprep.subr.mxu0 0.0
        %9055 = vmatpush2.msra.mxu0 0.0
        %9056 = vmatprep.subr.mxu0 0.0
        %9057 = vmatpush2.msra.mxu0 0.0
        %9058 = vmatprep.subr.mxu0 0.0
        %9059 = vmatpush2.msra.mxu0 0.0
        %9060 = vmatprep.subr.mxu0 0.0
        %9061 = vmatpush2.msra.mxu0 0.0
        %9062 = vmatprep.subr.mxu0 0.0
        %9063 = vmatpush2.msra.mxu0 0.0
        %9064 = vmatprep.subr.mxu0 0.0
        %9065 = vmatpush2.msra.mxu0 0.0
        %9066 = vmatprep.subr.mxu0 0.0
        %9067 = vmatpush2.msra.mxu0 0.0
        %9068 = vmatprep.mubr.f32.mxu0 0.0
        %9069 = vmatmul.mubr.f32.gmra.mxu0 %v8996
        %v9070 = vpop.f32.mrf.mxu0
        %v9071 = vadd.f32 0.0, %v9070
        %v9072 = vpop.f32.mrf.mxu0
        %9073 = vmatprep.mubr.f32.mxu0 0.0
        %9074 = vmatmul.mubr.f32.gmra.mxu0 %v8999
        %v9075 = vpop.f32.mrf.mxu0
        %v9076 = vadd.f32 0.0, %v9075
        %v9077 = vpop.f32.mrf.mxu0
        %9078 = vmatprep.mubr.f32.mxu0 0.0
        %9079 = vmatmul.mubr.f32.gmra.mxu0 %v9002
        %v9080 = vpop.f32.mrf.mxu0
        %v9081 = vadd.f32 0.0, %v9080
        %v9082 = vpop.f32.mrf.mxu0
        %9083 = vdwg.mxu0
        %v9084 = vsel %vm1575, %v8804, 0.0
        %v9085 = vsel %vm1575, %v8893, 0.0
        %v9086 = vadd.f32 %v9084, %v9085
        %v9087 = vsel %vm1575, %v8982, 0.0
        %v9088 = vadd.f32 %v9086, %v9087
        %v9089 = vsel %vm1575, %v9071, 0.0
        %v9090 = vadd.f32 %v9088, %v9089
        %v9091 = vsel %vm1575, %v8809, 0.0
        %v9092 = vsel %vm1575, %v8898, 0.0
        %v9093 = vadd.f32 %v9091, %v9092
        %v9094 = vsel %vm1575, %v8987, 0.0
        %v9095 = vadd.f32 %v9093, %v9094
        %v9096 = vsel %vm1575, %v9076, 0.0
        %v9097 = vadd.f32 %v9095, %v9096
        %v9098 = vsel %vm6812, %v8814, 0.0
        %v9099 = vsel %vm6812, %v8903, 0.0
        %v9100 = vadd.f32 %v9098, %v9099
        %v9101 = vsel %vm6812, %v8992, 0.0
        %v9102 = vadd.f32 %v9100, %v9101
        %v9103 = vsel %vm6812, %v9081, 0.0
        %v9104 = vadd.f32 %v9102, %v9103
        %v9105 = vadd.f32 %v6724, %v9090
        %v9106 = vadd.f32 %v6725, %v9097
        %v9107 = vadd.f32 %v6726, %v9104
        %v9109 = vlaneseq
        %v9110 = vshrl.u32 %v9109, 7
        %v9111 = vsub.s32 0, %v9110
        %v9112 = vrot.slane %v6781, %v9111
        %v9114 = vadd.f32 %v9105, %v9112
        %v9115 = vadd.f32 %v9106, %v9112
        %v9116 = vadd.f32 %v9107, %v9112
        %v9117 = vsel %vm1575, %v9114, 0.0
        %9118 = vadd.xlane.f32.xlu0 %v9117
        %v9119 = vpop.xlane.xlu0 %9118
        %v9120 = vsel %vm1575, %v9115, 0.0
        %9121 = vadd.xlane.f32.xlu0 %v9120
        %v9122 = vpop.xlane.xlu0 %9121
        %v9123 = vsel %vm6812, %v9116, 0.0
        %9124 = vadd.xlane.f32.xlu0 %v9123
        %v9125 = vpop.xlane.xlu0 %9124
        %v9126 = vmul.f32 %v9119, %v1775
        %v9127 = vmul.f32 %v9122, %v1775
        %v9128 = vmul.f32 %v9125, %v1775
        %v9129 = vsub.f32 %v9114, %v9126
        %v9130 = vsub.f32 %v9115, %v9127
        %v9131 = vsub.f32 %v9116, %v9128
        %v9132 = vmul.f32 %v9129, %v9129
        %v9133 = vmul.f32 %v9130, %v9130
        %v9134 = vmul.f32 %v9131, %v9131
        %v9135 = vsel %vm1575, %v9132, 0.0
        %9136 = vadd.xlane.f32.xlu0 %v9135
        %v9137 = vpop.xlane.xlu0 %9136
        %v9138 = vsel %vm1575, %v9133, 0.0
        %9139 = vadd.xlane.f32.xlu0 %v9138
        %v9140 = vpop.xlane.xlu0 %9139
        %v9141 = vsel %vm6812, %v9134, 0.0
        %9142 = vadd.xlane.f32.xlu0 %v9141
        %v9143 = vpop.xlane.xlu0 %9142
        %v9144 = vmul.f32 %v9137, %v1775
        %v9145 = vmul.f32 %v9140, %v1775
        %v9146 = vmul.f32 %v9143, %v1775
        %v9147 = vadd.f32 %v9144, 1e-06
        %v9148 = vadd.f32 %v9145, 1e-06
        %v9149 = vadd.f32 %v9146, 1e-06
        %v9150 = vrsqrt.pop %v9147
        %v9151 = vrsqrt.pop %v9148
        %v9152 = vrsqrt.pop %v9149
        %v9153 = vmul.f32 %v9129, %v9150
        %v9154 = vmul.f32 %v9130, %v9151
        %v9155 = vmul.f32 %v9131, %v9152
        %v9157 = vlaneseq
        %v9158 = vshrl.u32 %v9157, 7
        %v9159 = vsub.s32 0, %v9158
        %v9160 = vrot.slane %v6782, %v9159
        %v9162 = vmul.f32 %v9153, %v9160
        %v9163 = vmul.f32 %v9154, %v9160
        %v9164 = vmul.f32 %v9155, %v9160
        %v9166 = vlaneseq
        %v9167 = vshrl.u32 %v9166, 7
        %v9168 = vsub.s32 0, %v9167
        %v9169 = vrot.slane %v6783, %v9168
        %v9171 = vadd.f32 %v9162, %v9169
        %v9172 = vadd.f32 %v9163, %v9169
        %v9173 = vadd.f32 %v9164, %v9169
        %v9175 = vlaneseq
        %v9176 = vshrl.u32 %v9175, 7
        %v9177 = vsub.s32 0, %v9176
        %v9178 = vrot.slane %v6788, %v9177
        %v9181 = vsel %vm1575, %v9171, 0
        %v9184 = vsel %vm1575, %v9172, 0
        %v9187 = vsel %vm1575, %v9173, 0
        %9189 = vmatprep.subr.mxu0 0.0
        %9190 = vmatpush1.msra.mxu0 0.0
        %9191 = vmatprep.subr.mxu0 0.0
        %9192 = vmatpush1.msra.mxu0 0.0
        %9193 = vmatprep.subr.mxu0 0.0
        %9194 = vmatpush1.msra.mxu0 0.0
        %9195 = vmatprep.subr.mxu0 0.0
        %9196 = vmatpush1.msra.mxu0 0.0
        %9197 = vmatprep.subr.mxu0 0.0
        %9198 = vmatpush1.msra.mxu0 0.0
        %9199 = vmatprep.subr.mxu0 0.0
        %9200 = vmatpush1.msra.mxu0 0.0
        %9201 = vmatprep.subr.mxu0 0.0
        %9202 = vmatpush1.msra.mxu0 0.0
        %9203 = vmatprep.subr.mxu0 0.0
        %9204 = vmatpush1.msra.mxu0 0.0
        %9205 = vmatprep.subr.mxu0 0.0
        %9206 = vmatpush1.msra.mxu0 0.0
        %9207 = vmatprep.subr.mxu0 0.0
        %9208 = vmatpush1.msra.mxu0 0.0
        %9209 = vmatprep.subr.mxu0 0.0
        %9210 = vmatpush1.msra.mxu0 0.0
        %9211 = vmatprep.subr.mxu0 0.0
        %9212 = vmatpush1.msra.mxu0 0.0
        %9213 = vmatprep.subr.mxu0 0.0
        %9214 = vmatpush1.msra.mxu0 %v6787
        %9215 = vmatprep.subr.mxu0 0.0
        %9216 = vmatpush1.msra.mxu0 %v6786
        %9217 = vmatprep.subr.mxu0 0.0
        %9218 = vmatpush1.msra.mxu0 %v6785
        %9219 = vmatprep.subr.mxu0 0.0
        %9220 = vmatpush1.msra.mxu0 %v6784
        %9221 = vmatprep.subr.mxu0 0.0
        %9222 = vmatpush2.msra.mxu0 0.0
        %9223 = vmatprep.subr.mxu0 0.0
        %9224 = vmatpush2.msra.mxu0 0.0
        %9225 = vmatprep.subr.mxu0 0.0
        %9226 = vmatpush2.msra.mxu0 0.0
        %9227 = vmatprep.subr.mxu0 0.0
        %9228 = vmatpush2.msra.mxu0 0.0
        %9229 = vmatprep.subr.mxu0 0.0
        %9230 = vmatpush2.msra.mxu0 0.0
        %9231 = vmatprep.subr.mxu0 0.0
        %9232 = vmatpush2.msra.mxu0 0.0
        %9233 = vmatprep.subr.mxu0 0.0
        %9234 = vmatpush2.msra.mxu0 0.0
        %9235 = vmatprep.subr.mxu0 0.0
        %9236 = vmatpush2.msra.mxu0 0.0
        %9237 = vmatprep.subr.mxu0 0.0
        %9238 = vmatpush2.msra.mxu0 0.0
        %9239 = vmatprep.subr.mxu0 0.0
        %9240 = vmatpush2.msra.mxu0 0.0
        %9241 = vmatprep.subr.mxu0 0.0
        %9242 = vmatpush2.msra.mxu0 0.0
        %9243 = vmatprep.subr.mxu0 0.0
        %9244 = vmatpush2.msra.mxu0 0.0
        %9245 = vmatprep.subr.mxu0 0.0
        %9246 = vmatpush2.msra.mxu0 0.0
        %9247 = vmatprep.subr.mxu0 0.0
        %9248 = vmatpush2.msra.mxu0 0.0
        %9249 = vmatprep.subr.mxu0 0.0
        %9250 = vmatpush2.msra.mxu0 0.0
        %9251 = vmatprep.subr.mxu0 0.0
        %9252 = vmatpush2.msra.mxu0 0.0
        %9253 = vmatprep.mubr.f32.mxu0 0.0
        %9254 = vmatmul.mubr.f32.gmra.mxu0 %v9181
        %v9255 = vpop.f32.mrf.mxu0
        %v9256 = vadd.f32 %v9178, %v9255
        %v9257 = vpop.f32.mrf.mxu0
        %9258 = vmatprep.mubr.f32.mxu0 0.0
        %9259 = vmatmul.mubr.f32.gmra.mxu0 %v9184
        %v9260 = vpop.f32.mrf.mxu0
        %v9261 = vadd.f32 %v9178, %v9260
        %v9262 = vpop.f32.mrf.mxu0
        %9263 = vmatprep.mubr.f32.mxu0 0.0
        %9264 = vmatmul.mubr.f32.gmra.mxu0 %v9187
        %v9265 = vpop.f32.mrf.mxu0
        %v9266 = vadd.f32 %v9178, %v9265
        %v9267 = vpop.f32.mrf.mxu0
        %9268 = vdwg.mxu0
        %v9269 = vmul.f32 %v9256, %v9256
        %v9270 = vmul.f32 %v9261, %v9261
        %v9271 = vmul.f32 %v9266, %v9266
        %v9272 = vmul.f32 %v9256, %v9269
        %v9273 = vmul.f32 %v9261, %v9270
        %v9274 = vmul.f32 %v9266, %v9271
        %v9275 = vmul.f32 %v9272, 0.044715
        %v9276 = vmul.f32 %v9273, 0.044715
        %v9277 = vmul.f32 %v9274, 0.044715
        %v9278 = vadd.f32 %v9256, %v9275
        %v9279 = vadd.f32 %v9261, %v9276
        %v9280 = vadd.f32 %v9266, %v9277
        %v9281 = vmul.f32 %v9278, 0.7978846
        %v9282 = vmul.f32 %v9279, 0.7978846
        %v9283 = vmul.f32 %v9280, 0.7978846
        %v9284 = vtanh.pop %v9281
        %v9285 = vtanh.pop %v9282
        %v9286 = vtanh.pop %v9283
        %v9287 = vadd.f32 %v9284, 1.0
        %v9288 = vadd.f32 %v9285, 1.0
        %v9289 = vadd.f32 %v9286, 1.0
        %v9290 = vmul.f32 %v9287, 0.5
        %v9291 = vmul.f32 %v9288, 0.5
        %v9292 = vmul.f32 %v9289, 0.5
        %v9293 = vmul.f32 %v9256, %v9290
        %v9294 = vmul.f32 %v9261, %v9291
        %v9295 = vmul.f32 %v9266, %v9292
        %v9297 = vlaneseq
        %v9298 = vshrl.u32 %v9297, 7
        %v9299 = vsub.s32 0, %v9298
        %v9300 = vrot.slane %v6805, %v9299
        %9302 = vmatprep.subr.mxu0 0.0
        %9303 = vmatpush1.msra.mxu0 %v6804
        %9304 = vmatprep.subr.mxu0 0.0
        %9305 = vmatpush1.msra.mxu0 %v6803
        %9306 = vmatprep.subr.mxu0 0.0
        %9307 = vmatpush1.msra.mxu0 %v6802
        %9308 = vmatprep.subr.mxu0 0.0
        %9309 = vmatpush1.msra.mxu0 %v6801
        %9310 = vmatprep.subr.mxu0 0.0
        %9311 = vmatpush1.msra.mxu0 %v6800
        %9312 = vmatprep.subr.mxu0 0.0
        %9313 = vmatpush1.msra.mxu0 %v6799
        %9314 = vmatprep.subr.mxu0 0.0
        %9315 = vmatpush1.msra.mxu0 %v6798
        %9316 = vmatprep.subr.mxu0 0.0
        %9317 = vmatpush1.msra.mxu0 %v6797
        %9318 = vmatprep.subr.mxu0 0.0
        %9319 = vmatpush1.msra.mxu0 %v6796
        %9320 = vmatprep.subr.mxu0 0.0
        %9321 = vmatpush1.msra.mxu0 %v6795
        %9322 = vmatprep.subr.mxu0 0.0
        %9323 = vmatpush1.msra.mxu0 %v6794
        %9324 = vmatprep.subr.mxu0 0.0
        %9325 = vmatpush1.msra.mxu0 %v6793
        %9326 = vmatprep.subr.mxu0 0.0
        %9327 = vmatpush1.msra.mxu0 %v6792
        %9328 = vmatprep.subr.mxu0 0.0
        %9329 = vmatpush1.msra.mxu0 %v6791
        %9330 = vmatprep.subr.mxu0 0.0
        %9331 = vmatpush1.msra.mxu0 %v6790
        %9332 = vmatprep.subr.mxu0 0.0
        %9333 = vmatpush1.msra.mxu0 %v6789
        %9334 = vmatprep.subr.mxu0 0.0
        %9335 = vmatpush2.msra.mxu0 0.0
        %9336 = vmatprep.subr.mxu0 0.0
        %9337 = vmatpush2.msra.mxu0 0.0
        %9338 = vmatprep.subr.mxu0 0.0
        %9339 = vmatpush2.msra.mxu0 0.0
        %9340 = vmatprep.subr.mxu0 0.0
        %9341 = vmatpush2.msra.mxu0 0.0
        %9342 = vmatprep.subr.mxu0 0.0
        %9343 = vmatpush2.msra.mxu0 0.0
        %9344 = vmatprep.subr.mxu0 0.0
        %9345 = vmatpush2.msra.mxu0 0.0
        %9346 = vmatprep.subr.mxu0 0.0
        %9347 = vmatpush2.msra.mxu0 0.0
        %9348 = vmatprep.subr.mxu0 0.0
        %9349 = vmatpush2.msra.mxu0 0.0
        %9350 = vmatprep.subr.mxu0 0.0
        %9351 = vmatpush2.msra.mxu0 0.0
        %9352 = vmatprep.subr.mxu0 0.0
        %9353 = vmatpush2.msra.mxu0 0.0
        %9354 = vmatprep.subr.mxu0 0.0
        %9355 = vmatpush2.msra.mxu0 0.0
        %9356 = vmatprep.subr.mxu0 0.0
        %9357 = vmatpush2.msra.mxu0 0.0
        %9358 = vmatprep.subr.mxu0 0.0
        %9359 = vmatpush2.msra.mxu0 0.0
        %9360 = vmatprep.subr.mxu0 0.0
        %9361 = vmatpush2.msra.mxu0 0.0
        %9362 = vmatprep.subr.mxu0 0.0
        %9363 = vmatpush2.msra.mxu0 0.0
        %9364 = vmatprep.subr.mxu0 0.0
        %9365 = vmatpush2.msra.mxu0 0.0
        %9366 = vmatprep.mubr.f32.mxu0 0.0
        %9367 = vmatmul.mubr.f32.gmra.mxu0 %v9293
        %v9368 = vpop.f32.mrf.mxu0
        %v9369 = vadd.f32 %v9300, %v9368
        %v9370 = vpop.f32.mrf.mxu0
        %9371 = vmatprep.mubr.f32.mxu0 0.0
        %9372 = vmatmul.mubr.f32.gmra.mxu0 %v9294
        %v9373 = vpop.f32.mrf.mxu0
        %v9374 = vadd.f32 %v9300, %v9373
        %v9375 = vpop.f32.mrf.mxu0
        %9376 = vmatprep.mubr.f32.mxu0 0.0
        %9377 = vmatmul.mubr.f32.gmra.mxu0 %v9295
        %v9378 = vpop.f32.mrf.mxu0
        %v9379 = vadd.f32 %v9300, %v9378
        %v9380 = vpop.f32.mrf.mxu0
        %9381 = vdwg.mxu0
        %v9382 = vadd.f32 %v9114, %v9369
        %v9383 = vadd.f32 %v9115, %v9374
        %v9384 = vadd.f32 %v9116, %v9379
        %v9385 = vld [vmem:[%s85] sm:$0x1]
        %v9386 = vld [vmem:[%s87] sm:$0x1]
        %v9387 = vsel %vm1575, %v9382, 0.0
        %9388 = vadd.xlane.f32.xlu0 %v9387
        %v9389 = vpop.xlane.xlu0 %9388
        %v9390 = vsel %vm1575, %v9383, 0.0
        %9391 = vadd.xlane.f32.xlu0 %v9390
        %v9392 = vpop.xlane.xlu0 %9391
        %v9393 = vsel %vm6812, %v9384, 0.0
        %9394 = vadd.xlane.f32.xlu0 %v9393
        %v9395 = vpop.xlane.xlu0 %9394
        %v9396 = vmul.f32 %v9389, %v1775
        %v9397 = vmul.f32 %v9392, %v1775
        %v9398 = vmul.f32 %v9395, %v1775
        %v9399 = vsub.f32 %v9382, %v9396
        %v9400 = vsub.f32 %v9383, %v9397
        %v9401 = vsub.f32 %v9384, %v9398
        %v9402 = vmul.f32 %v9399, %v9399
        %v9403 = vmul.f32 %v9400, %v9400
        %v9404 = vmul.f32 %v9401, %v9401
        %v9405 = vsel %vm1575, %v9402, 0.0
        %9406 = vadd.xlane.f32.xlu0 %v9405
        %v9407 = vpop.xlane.xlu0 %9406
        %v9408 = vsel %vm1575, %v9403, 0.0
        %9409 = vadd.xlane.f32.xlu0 %v9408
        %v9410 = vpop.xlane.xlu0 %9409
        %v9411 = vsel %vm6812, %v9404, 0.0
        %9412 = vadd.xlane.f32.xlu0 %v9411
        %v9413 = vpop.xlane.xlu0 %9412
        %v9414 = vmul.f32 %v9407, %v1775
        %v9415 = vmul.f32 %v9410, %v1775
        %v9416 = vmul.f32 %v9413, %v1775
        %v9417 = vadd.f32 %v9414, 1e-06
        %v9418 = vadd.f32 %v9415, 1e-06
        %v9419 = vadd.f32 %v9416, 1e-06
        %v9420 = vrsqrt.pop %v9417
        %v9421 = vrsqrt.pop %v9418
        %v9422 = vrsqrt.pop %v9419
        %v9423 = vmul.f32 %v9399, %v9420
        %v9424 = vmul.f32 %v9400, %v9421
        %v9425 = vmul.f32 %v9401, %v9422
        %v9427 = vlaneseq
        %v9428 = vshrl.u32 %v9427, 7
        %v9429 = vsub.s32 0, %v9428
        %v9430 = vrot.slane %v9385, %v9429
        %v9432 = vmul.f32 %v9423, %v9430
        %v9433 = vmul.f32 %v9424, %v9430
        %v9434 = vmul.f32 %v9425, %v9430
        %v9436 = vlaneseq
        %v9437 = vshrl.u32 %v9436, 7
        %v9438 = vsub.s32 0, %v9437
        %v9439 = vrot.slane %v9386, %v9438
        %v9441 = vadd.f32 %v9432, %v9439
        %v9442 = vadd.f32 %v9433, %v9439
        %v9443 = vadd.f32 %v9434, %v9439
        %v9444 = vld [vmem:[%s89] sm:$0xff]
        %v9445 = vld [vmem:[%s89 + $0x8] sm:$0xff]
        %v9446 = vld [vmem:[%s89 + $0x10] sm:$0xff]
        %v9447 = vld [vmem:[%s89 + $0x18] sm:$0xff]
        %v9448 = vld [vmem:[%s91] sm:$0x1]
        %v9450 = vlaneseq
        %v9451 = vshrl.u32 %v9450, 7
        %v9452 = vsub.s32 0, %v9451
        %v9453 = vrot.slane %v9448, %v9452
        %v9456 = vsel %vm1575, %v9441, 0
        %v9459 = vsel %vm1575, %v9442, 0
        %v9462 = vsel %vm1575, %v9443, 0
        %9464 = vmatprep.subr.mxu0 0.0
        %9465 = vmatpush1.msra.mxu0 0.0
        %9466 = vmatprep.subr.mxu0 0.0
        %9467 = vmatpush1.msra.mxu0 0.0
        %9468 = vmatprep.subr.mxu0 0.0
        %9469 = vmatpush1.msra.mxu0 0.0
        %9470 = vmatprep.subr.mxu0 0.0
        %9471 = vmatpush1.msra.mxu0 0.0
        %9472 = vmatprep.subr.mxu0 0.0
        %9473 = vmatpush1.msra.mxu0 0.0
        %9474 = vmatprep.subr.mxu0 0.0
        %9475 = vmatpush1.msra.mxu0 0.0
        %9476 = vmatprep.subr.mxu0 0.0
        %9477 = vmatpush1.msra.mxu0 0.0
        %9478 = vmatprep.subr.mxu0 0.0
        %9479 = vmatpush1.msra.mxu0 0.0
        %9480 = vmatprep.subr.mxu0 0.0
        %9481 = vmatpush1.msra.mxu0 0.0
        %9482 = vmatprep.subr.mxu0 0.0
        %9483 = vmatpush1.msra.mxu0 0.0
        %9484 = vmatprep.subr.mxu0 0.0
        %9485 = vmatpush1.msra.mxu0 0.0
        %9486 = vmatprep.subr.mxu0 0.0
        %9487 = vmatpush1.msra.mxu0 0.0
        %9488 = vmatprep.subr.mxu0 0.0
        %9489 = vmatpush1.msra.mxu0 %v9447
        %9490 = vmatprep.subr.mxu0 0.0
        %9491 = vmatpush1.msra.mxu0 %v9446
        %9492 = vmatprep.subr.mxu0 0.0
        %9493 = vmatpush1.msra.mxu0 %v9445
        %9494 = vmatprep.subr.mxu0 0.0
        %9495 = vmatpush1.msra.mxu0 %v9444
        %9496 = vmatprep.subr.mxu0 0.0
        %9497 = vmatpush2.msra.mxu0 0.0
        %9498 = vmatprep.subr.mxu0 0.0
        %9499 = vmatpush2.msra.mxu0 0.0
        %9500 = vmatprep.subr.mxu0 0.0
        %9501 = vmatpush2.msra.mxu0 0.0
        %9502 = vmatprep.subr.mxu0 0.0
        %9503 = vmatpush2.msra.mxu0 0.0
        %9504 = vmatprep.subr.mxu0 0.0
        %9505 = vmatpush2.msra.mxu0 0.0
        %9506 = vmatprep.subr.mxu0 0.0
        %9507 = vmatpush2.msra.mxu0 0.0
        %9508 = vmatprep.subr.mxu0 0.0
        %9509 = vmatpush2.msra.mxu0 0.0
        %9510 = vmatprep.subr.mxu0 0.0
        %9511 = vmatpush2.msra.mxu0 0.0
        %9512 = vmatprep.subr.mxu0 0.0
        %9513 = vmatpush2.msra.mxu0 0.0
        %9514 = vmatprep.subr.mxu0 0.0
        %9515 = vmatpush2.msra.mxu0 0.0
        %9516 = vmatprep.subr.mxu0 0.0
        %9517 = vmatpush2.msra.mxu0 0.0
        %9518 = vmatprep.subr.mxu0 0.0
        %9519 = vmatpush2.msra.mxu0 0.0
        %9520 = vmatprep.subr.mxu0 0.0
        %9521 = vmatpush2.msra.mxu0 0.0
        %9522 = vmatprep.subr.mxu0 0.0
        %9523 = vmatpush2.msra.mxu0 0.0
        %9524 = vmatprep.subr.mxu0 0.0
        %9525 = vmatpush2.msra.mxu0 0.0
        %9526 = vmatprep.subr.mxu0 0.0
        %9527 = vmatpush2.msra.mxu0 0.0
        %9528 = vmatprep.mubr.f32.mxu0 0.0
        %9529 = vmatmul.mubr.f32.gmra.mxu0 %v9456
        %v9530 = vpop.f32.mrf.mxu0
        %v9531 = vadd.f32 %v9453, %v9530
        %v9532 = vpop.f32.mrf.mxu0
        %9533 = vmatprep.mubr.f32.mxu0 0.0
        %9534 = vmatmul.mubr.f32.gmra.mxu0 %v9459
        %v9535 = vpop.f32.mrf.mxu0
        %v9536 = vadd.f32 %v9453, %v9535
        %v9537 = vpop.f32.mrf.mxu0
        %9538 = vmatprep.mubr.f32.mxu0 0.0
        %9539 = vmatmul.mubr.f32.gmra.mxu0 %v9462
        %v9540 = vpop.f32.mrf.mxu0
        %v9541 = vadd.f32 %v9453, %v9540
        %v9542 = vpop.f32.mrf.mxu0
        %9543 = vdwg.mxu0
        %9544 = vst.msk [vmem:[%s1477] sm:$0xff] %vm1493, %v9531
        %9545 = vst.msk [vmem:[%s1477 + $0x8] sm:$0xff] %vm1493, %v9536
        %vm9546 = vcmask 385024
        %9547 = vst.msk [vmem:[%s1477 + $0x10] sm:$0x1] %vm9546, %v9541
        %s9548 = sand.u32 %s1104, 1
        %s9549 = scalar_lea.sflag [#allocation3], %s9548
        %s9550 = sand.u32 %s1104, 1
        %s9551 = smul.addr %s9550, 16
        %s9552 = scalar_lea.vmem [#allocation2], %s9551
        %p9553 = scmp.lt.s32.totalorder %s110, 1
        %s9554 = scalar_select %p9553, %s110, 1
        %s9555 = smul.addr %s9554, 3
        %s9556 = smul.addr %s9555, 8
        %s9557 = scalar_lea.vmem %s95, %s9556
        // Predicated region
        $region205: #{mae_forward.1} parent=203 // pred_check
          %p9558 = pneg %p1114
        $region206: #{mae_forward.1} parent=203 // pred_check_branch
          %9560 = sbr.rel (%p9558) target = $region208
        $region207: #{mae_forward.1} parent=203 // pred_region
          %s9562 = ssub.s32 256, 256
          %9563 = vsyncadd %s9549, %s9562
          %s9564 = smul.addr %s110, 2
          %s9565 = smul.addr %s9564, 128
          %s9566 = scalar_lea.hbm %s93, %s9565
          %s9567 = sshll.u32 %s9552, 4
          %s9568 = int_to_ptr.vmem [resolvable:$true] %s9567
          %9573 = dma.vmem_to_hbm [thread:$0]  %s9568, 256, %s9566, %s9549, 128, 128, 8
        $region208: #{mae_forward.1} parent=203 // pred_fallthru
          _
        // Predicated region
        $region209: #{mae_forward.1} parent=203 // pred_check
          %p9574 = pneg %p1140
        $region210: #{mae_forward.1} parent=203 // pred_check_branch
          %9576 = sbr.rel (%p9574) target = $region212
        $region211: #{mae_forward.1} parent=203 // pred_region
          _
        $region212: #{mae_forward.1} parent=203 // pred_fallthru
          _
      $region204: #{mae_forward.1} parent=5 // pred_fallthru
        _
      %p9577 = scmp.le.s32.totalorder 2, %s105
      // Predicated region
      $region213: #{mae_forward.1} parent=5 // pred_check
        %p9578 = pneg %p9577
      $region214: #{mae_forward.1} parent=5 // pred_check_branch
        %9580 = sbr.rel (%p9578) target = $region216
      $region215: #{mae_forward.1} parent=5 // pred_region
        %s9581 = ssub.s32 %s105, 2
        // Predicated region
        $region217: #{mae_forward.1} parent=215 // pred_check
          %p9582 = pneg %p1120
        $region218: #{mae_forward.1} parent=215 // pred_check_branch
          %9584 = sbr.rel (%p9582) target = $region220
        $region219: #{mae_forward.1} parent=215 // pred_region
          %s9585 = sand.u32 %s1105, 1
          %s9586 = scalar_lea.sflag [#allocation3], %s9585
          %s9587 = sand.u32 %s1105, 1
          %s9588 = smul.addr %s9587, 16
          %s9589 = scalar_lea.vmem [#allocation2], %s9588
          %9590 = dma.done %s9586, 256
        $region220: #{mae_forward.1} parent=215 // pred_fallthru
          _
        // Predicated region
        $region221: #{mae_forward.1} parent=215 // pred_check
          %p9591 = pneg %p1146
        $region222: #{mae_forward.1} parent=215 // pred_check_branch
          %9593 = sbr.rel (%p9591) target = $region224
        $region223: #{mae_forward.1} parent=215 // pred_region
          %p9594 = scmp.lt.s32.totalorder %s111, 1
          %s9595 = scalar_select %p9594, %s111, 1
          %s9596 = smul.addr %s9595, 3
          %s9597 = smul.addr %s9596, 8
          %s9598 = scalar_lea.vmem %s95, %s9597
        $region224: #{mae_forward.1} parent=215 // pred_fallthru
          _
      $region216: #{mae_forward.1} parent=5 // pred_fallthru
        _
    $region6: #{mae_forward.1} parent=1 // loop_footer
      %s109 = sadd.s32 1, %s105
    $region7: #{mae_forward.1} parent=1 // loop_footer_branch
      %104 = sbr.rel target = $region3
    $region8: #{mae_forward.1} parent=1 // loop_exit
      _
    %9599 = vsyncpa [#allocation3], 1
    %s9600 = scalar_lea.sflag [#allocation3], 1
    %9601 = vsyncpa %s9600, 1

</llo_original>
